<compile_context>
chip_gen: v5e
topology: v5e:2x2
jax: 0.10.0
libtpu: 0.0.40
codegen_flags: <defaults>
</compile_context>

<pallas_src>
import functools

import jax
import jax.numpy as jnp
from jax.experimental import pallas as pl
from jax.experimental.pallas import tpu as pltpu


# ----------------------------------------------------------------------------
# small helpers
# ----------------------------------------------------------------------------
def _round_up(x, m):
    return (x + m - 1) // m * m


def _activation(y, act):
    """Epilogue activation in f32 (VPU/EUP)."""
    if act == "leaky":
        return jnp.where(y > 0, y, 0.1 * y)
    if act == "mish":
        # mish(y) = y * tanh(softplus(y)) = y * ((1+e^y)^2 - 1) / ((1+e^y)^2 + 1)
        # one exp (EUP) + one approx reciprocal (EUP, near-free); clamp guards overflow.
        t = jnp.exp(jnp.minimum(y, 20.0))
        s = (1.0 + t) * (1.0 + t)
        m = y * (s - 1.0) * pl.reciprocal(s + 1.0, approx=True)
        return jnp.where(y > 20.0, y, m)
    return y  # "linear"


# ----------------------------------------------------------------------------
# Generic fused block kernel
#
# ref order:
#   per slab:  'd' -> x:(tm, K_s) bf16 direct K-slab (matmul against w_main rows)
#              'p' -> p:(tm, C_main) f32 pre-multiplied contribution (added to acc)
#   w_main:(K_d_total, C_main) bf16 (BN scale folded)   b_main:(1, C_main) f32
#   [w_up:(C_main,C_up) bf16, b_up:(1,C_up) f32, w_next:(C_up,C_next) bf16]   (fused
#        leaky 1x1 "up" conv + its contribution to the NEXT conv_set, emitted at small res)
#   [w_head:(C_main,128) bf16, b_head:(1,128) f32]      (fused head, lane-padded to 128)
# outputs (in order): [o_main (tm,C_main) bf16] [o_q (tm,C_next) f32] [o_head (tm,128) bf16]
# ----------------------------------------------------------------------------
def _fused_block_kernel(*refs, slab_kinds, k_sizes, act_main,
                        write_main, has_up, has_head):
    pos = 0
    slab_refs = []
    for _ in slab_kinds:
        slab_refs.append(refs[pos])
        pos += 1
    w_main_ref = refs[pos]
    b_main_ref = refs[pos + 1]
    pos += 2
    if has_up:
        w_up_ref, b_up_ref, w_next_ref = refs[pos], refs[pos + 1], refs[pos + 2]
        pos += 3
    if has_head:
        w_h_ref, b_h_ref = refs[pos], refs[pos + 1]
        pos += 2

    # split-K accumulation (MXU, f32 accumulator); "p" slabs are already-multiplied f32 terms
    acc = None
    off = 0
    for kind, sref, ks in zip(slab_kinds, slab_refs, k_sizes):
        if kind == "d":
            w = w_main_ref[pl.ds(off, ks), :]      # static, 16-aligned slice of fused weight
            off += ks
            d = jnp.dot(sref[...], w, preferred_element_type=jnp.float32)
        else:  # "p"
            d = sref[...]
        acc = d if acc is None else acc + d

    y = _activation(acc + b_main_ref[...], act_main)

    if write_main:
        o_main = refs[pos]
        pos += 1
        o_main[...] = y.astype(o_main.dtype)

    if has_up or has_head:
        yb = y.astype(jnp.bfloat16)
    if has_up:
        o_q = refs[pos]
        pos += 1
        z = jnp.dot(yb, w_up_ref[...], preferred_element_type=jnp.float32) + b_up_ref[...]
        zb = _activation(z, "leaky").astype(jnp.bfloat16)          # this IS conv01up/conv12up
        q = jnp.dot(zb, w_next_ref[...], preferred_element_type=jnp.float32)
        o_q[...] = q.astype(o_q.dtype)                             # f32 handoff, small res
    if has_head:
        o_head = refs[pos]
        pos += 1
        zh = jnp.dot(yb, w_h_ref[...], preferred_element_type=jnp.float32) + b_h_ref[...]
        o_head[...] = zh.astype(o_head.dtype)                      # bf16 store, f32 accum


def _row_tiling(M):
    """Row tile (multiple of 16) and padded M.  >=2 tiles whenever M>32 (v7x: 2 TCs),
    tile capped at 512 rows (v5e/v6e VMEM roofline sweet spot)."""
    M16 = _round_up(M, 16)
    if M16 <= 32:
        return M16, M16
    ntiles = max(2, -(-M16 // 512))
    tm = _round_up(-(-M16 // ntiles), 16)
    return tm, tm * ntiles


def fused_block(slabs, w_main, b_main, *, act_main,
                write_main=False, up_chain=None, head=None):
    """One fused pallas_call.

    slabs   : list of ("d", x:(M,K)) or ("p", p:(M,C_main) f32 pre-multiplied term)
    w_main  : (sum K_d, C_main) bf16 (BN folded),  b_main: (1, C_main) f32
    up_chain: optional (w_up, b_up, w_next) -> emits q = leaky(y@w_up+b_up) @ w_next (f32)
    head    : optional (w_head (C_main,128) bf16, b_head (1,128) f32) -> bf16 head output
    Returns outputs in order: [main bf16], [q f32], [head bf16].
    """
    M = slabs[0][1].shape[0]
    C_main = w_main.shape[1]
    slab_kinds = tuple(s[0] for s in slabs)
    k_sizes = tuple(s[1].shape[1] if s[0] == "d" else 0 for s in slabs)
    assert sum(k_sizes) == w_main.shape[0], (k_sizes, w_main.shape)

    tm, Mp = _row_tiling(M)
    grid = (Mp // tm,)

    def pad_rows(a):
        if a.shape[0] == Mp:
            return a
        return jnp.pad(a, ((0, Mp - a.shape[0]), (0, 0)))

    args, in_specs = [], []
    for kind, arr in slabs:
        x = pad_rows(arr.astype(jnp.bfloat16 if kind == "d" else jnp.float32))
        args.append(x)
        in_specs.append(pl.BlockSpec((tm, x.shape[1]), lambda i: (i, 0)))

    args += [w_main, b_main]
    in_specs += [pl.BlockSpec(w_main.shape, lambda i: (0, 0)),
                 pl.BlockSpec(b_main.shape, lambda i: (0, 0))]

    has_up = up_chain is not None
    has_head = head is not None
    flops = 2 * Mp * sum(k_sizes) * C_main
    if has_up:
        w_up, b_up, w_next = up_chain
        args += [w_up, b_up, w_next]
        in_specs += [pl.BlockSpec(w_up.shape, lambda i: (0, 0)),
                     pl.BlockSpec(b_up.shape, lambda i: (0, 0)),
                     pl.BlockSpec(w_next.shape, lambda i: (0, 0))]
        flops += 2 * Mp * (C_main * w_up.shape[1] + w_up.shape[1] * w_next.shape[1])
    if has_head:
        w_h, b_h = head
        args += [w_h, b_h]
        in_specs += [pl.BlockSpec(w_h.shape, lambda i: (0, 0)),
                     pl.BlockSpec(b_h.shape, lambda i: (0, 0))]
        flops += 2 * Mp * C_main * w_h.shape[1]

    out_shapes, out_specs = [], []
    if write_main:
        out_shapes.append(jax.ShapeDtypeStruct((Mp, C_main), jnp.bfloat16))
        out_specs.append(pl.BlockSpec((tm, C_main), lambda i: (i, 0)))
    if has_up:
        c_q = up_chain[2].shape[1]
        out_shapes.append(jax.ShapeDtypeStruct((Mp, c_q), jnp.float32))
        out_specs.append(pl.BlockSpec((tm, c_q), lambda i: (i, 0)))
    if has_head:
        c_h = head[0].shape[1]
        out_shapes.append(jax.ShapeDtypeStruct((Mp, c_h), jnp.bfloat16))
        out_specs.append(pl.BlockSpec((tm, c_h), lambda i: (i, 0)))

    bytes_accessed = sum(int(a.size) * int(a.dtype.itemsize) for a in args)
    for o in out_shapes:
        bytes_accessed += int(o.shape[0]) * int(o.shape[1]) * int(jnp.dtype(o.dtype).itemsize)
    transcendentals = Mp * C_main if act_main == "mish" else 0
    cost = pl.CostEstimate(flops=int(flops),
                           transcendentals=int(transcendentals),
                           bytes_accessed=int(bytes_accessed))

    kernel = functools.partial(
        _fused_block_kernel, slab_kinds=slab_kinds, k_sizes=k_sizes,
        act_main=act_main, write_main=write_main, has_up=has_up, has_head=has_head)

    outs = pl.pallas_call(
        kernel,
        out_shape=tuple(out_shapes),
        grid_spec=pltpu.PrefetchScalarGridSpec(
            num_scalar_prefetch=0,
            grid=grid,
            in_specs=in_specs,
            out_specs=out_specs,
        ),
        compiler_params=pltpu.CompilerParams(
            dimension_semantics=("parallel",),
            vmem_limit_bytes=48 * 1024 * 1024),
        cost_estimate=cost,
    )(*args)

    if Mp != M:
        outs = tuple(o[:M] for o in outs)
    return tuple(outs)


# ----------------------------------------------------------------------------
# wrapper-side glue (layout only; all FLOPs live in the Pallas kernels)
# ----------------------------------------------------------------------------
def _im2col_3x3_s2(x_nhwc):
    """3x3 / stride-2 / pad-1 patches packed channel-wise: (n*ho*wo, 9*c)."""
    n, h, w, c = x_nhwc.shape
    xp = jnp.pad(x_nhwc, ((0, 0), (1, 1), (1, 1), (0, 0)))
    ho = (h + 2 - 3) // 2 + 1
    wo = (w + 2 - 3) // 2 + 1
    taps = [xp[:, dy:dy + 2 * ho:2, dx:dx + 2 * wo:2, :]
            for dy in range(3) for dx in range(3)]
    patches = jnp.concatenate(taps, axis=-1)           # (n, ho, wo, 9*c), tap-major rows
    return patches.reshape(n * ho * wo, 9 * c), (n, ho, wo)


def _upsample2x_rows(q_flat, n, hs, ws):
    """nearest-2x upsample of a row-major (n*hs*ws, C) tensor -> (n*2hs*2ws, C)."""
    c = q_flat.shape[-1]
    t = q_flat.reshape(n, hs, ws, c)
    t = jnp.repeat(jnp.repeat(t, 2, axis=1), 2, axis=2)
    return t.reshape(n * 2 * hs * 2 * ws, c)


# ----------------------------------------------------------------------------
# deterministic synthetic parameters (folded BN, bf16 weights)
# ----------------------------------------------------------------------------
def init_msr_fpn_params(key, filters_in, fo):
    fi_0, fi_1, fi_2 = filters_in
    keys = jax.random.split(key, 10)

    def conv_bn(k, k_sizes, cout):
        k1, k2, k3 = jax.random.split(k, 3)
        ktot = sum(k_sizes)
        w = jax.random.normal(k1, (ktot, cout), jnp.float32) * 0.05
        gamma = 1.0 + 0.1 * jax.random.normal(k2, (cout,), jnp.float32)
        beta = 0.1 * jax.random.normal(k3, (cout,), jnp.float32)
        mean = jnp.zeros((cout,), jnp.float32)
        var = jnp.ones((cout,), jnp.float32)
        scale = gamma / jnp.sqrt(var + 1e-5)
        w_folded = (w * scale[None, :]).astype(jnp.bfloat16)   # BN scale folded into W
        bias = (beta - mean * scale).reshape(1, cout)          # f32 epilogue bias
        return {"w": w_folded, "b": bias}

    def head(k, cin, n_out):
        k1, k2 = jax.random.split(k)
        w = jax.random.normal(k1, (cin, n_out), jnp.float32) * 0.05
        b = 0.1 * jax.random.normal(k2, (n_out,), jnp.float32)
        # pad head to 128 lanes for dense vst; wrapper slices back to fo
        w_pad = jnp.zeros((cin, 128), jnp.float32).at[:, :n_out].set(w).astype(jnp.bfloat16)
        b_pad = jnp.zeros((1, 128), jnp.float32).at[:, :n_out].set(b)
        return {"w_pad": w_pad, "b_pad": b_pad}

    return {
        "fo": fo,
        "conv21down": conv_bn(keys[0], [fi_2] * 9, 256),           # 9 taps of x2
        "conv10down": conv_bn(keys[1], [256, fi_1] * 9, 512),      # 9 taps x [conv21down, x1]
        "conv_set_0": conv_bn(keys[2], [512, fi_0], 512),          # [conv10down, x0]
        "conv01up":   conv_bn(keys[3], [512], 256),
        "conv_set_1": conv_bn(keys[4], [256, 256, fi_1], 256),     # [up0, conv21down, x1]
        "conv12up":   conv_bn(keys[5], [256], 128),
        "conv_set_2": conv_bn(keys[6], [128, fi_2], 128),          # [up1, x2]
        "head0":      head(keys[7], 512, fo),
        "head1":      head(keys[8], 256, fo),
        "head2":      head(keys[9], 128, fo),
    }


# ----------------------------------------------------------------------------
# MSR_FPN forward (5 fused Pallas kernels)
# ----------------------------------------------------------------------------
def msr_fpn_forward(params, x0_nchw, x1_nchw, x2_nchw):
    bf = jnp.bfloat16
    x0 = jnp.transpose(x0_nchw, (0, 2, 3, 1)).astype(bf)
    x1 = jnp.transpose(x1_nchw, (0, 2, 3, 1)).astype(bf)
    x2 = jnp.transpose(x2_nchw, (0, 2, 3, 1)).astype(bf)
    n, h2, w2, c2 = x2.shape
    _, h1, w1, c1 = x1.shape
    _, h0, w0, c0 = x0.shape

    # -- kernel 1: conv21down (deformable approx: 3x3 s2 + BN + leaky), one deep-K im2col slab
    x2_cols, _ = _im2col_3x3_s2(x2)                           # (n*h1*w1, 9*c2)
    p = params["conv21down"]
    (c21,) = fused_block([("d", x2_cols)], p["w"], p["b"],
                         act_main="leaky", write_main=True)
    c21_nhwc = c21.reshape(n, h1, w1, 256)

    # route21 = [conv21down, x1]; shared by kernel 2's im2col and kernel 4's K=288 slab
    route21_nhwc = jnp.concatenate([c21_nhwc, x1], axis=-1)   # (n, h1, w1, 256+c1)
    route21_flat = route21_nhwc.reshape(n * h1 * w1, 256 + c1)

    # -- kernel 2: conv10down over route21, single deep-K im2col slab (K = 9*(256+c1)) -------
    r21_cols, _ = _im2col_3x3_s2(route21_nhwc)                # (n*h0*w0, 9*(256+c1))
    p = params["conv10down"]
    (c10,) = fused_block([("d", r21_cols)], p["w"], p["b"],
                         act_main="leaky", write_main=True)

    # -- kernel 3: conv_set_0 (Mish, MSR_L=identity) + conv01up + its conv_set_1 slab + head0
    x0_flat = x0.reshape(n * h0 * w0, c0)
    w_cs1 = params["conv_set_1"]["w"]
    ps = params["conv_set_0"]
    q01, head0 = fused_block(
        [("d", c10), ("d", x0_flat)], ps["w"], ps["b"], act_main="mish",
        up_chain=(params["conv01up"]["w"], params["conv01up"]["b"], w_cs1[:256]),
        head=(params["head0"]["w_pad"], params["head0"]["b_pad"]))

    # -- kernel 4: conv_set_1 over route01 = [up2(conv01up), conv21down, x1] + conv12up + head1
    #    upsample branch enters as a pre-multiplied f32 "p" slab (no U matrix, no recompute)
    q01_up = _upsample2x_rows(q01, n, h0, w0)                 # (n*h1*w1, 256) f32
    w_cs2 = params["conv_set_2"]["w"]
    ps = params["conv_set_1"]
    q12, head1 = fused_block(
        [("p", q01_up), ("d", route21_flat)], ps["w"][256:], ps["b"], act_main="mish",
        up_chain=(params["conv12up"]["w"], params["conv12up"]["b"], w_cs2[:128]),
        head=(params["head1"]["w_pad"], params["head1"]["b_pad"]))

    # -- kernel 5: conv_set_2 over route12 = [up2(conv12up), x2] + head2 ---------------------
    q12_up = _upsample2x_rows(q12, n, h1, w1)                 # (n*h2*w2, 128) f32
    x2_flat = x2.reshape(n * h2 * w2, c2)
    ps = params["conv_set_2"]
    (head2,) = fused_block(
        [("p", q12_up), ("d", x2_flat)], ps["w"][128:], ps["b"], act_main="mish",
        head=(params["head2"]["w_pad"], params["head2"]["b_pad"]))

    fo = params["fo"]
    out0 = head0[:, :fo].reshape(n, h0, w0, fo)
    out1 = head1[:, :fo].reshape(n, h1, w1, fo)
    out2 = head2[:, :fo].reshape(n, h2, w2, fo)
    to_nchw = lambda t: jnp.transpose(t, (0, 3, 1, 2)).astype(jnp.float32)
    return to_nchw(out2), to_nchw(out1), to_nchw(out0)


# ----------------------------------------------------------------------------
# pure-JAX f32 reference (same folded weights, same data flow) for validation
# ----------------------------------------------------------------------------
def msr_fpn_reference(params, x0_nchw, x1_nchw, x2_nchw):
    f32 = jnp.float32
    rd = lambda t: jnp.transpose(t, (0, 2, 3, 1)).astype(jnp.bfloat16).astype(f32)
    x0, x1, x2 = rd(x0_nchw), rd(x1_nchw), rd(x2_nchw)
    n = x2.shape[0]

    def mish(y):
        sp = jnp.maximum(y, 0.0) + jnp.log1p(jnp.exp(-jnp.abs(y)))
        return y * jnp.tanh(sp)

    def conv3x3_s2(sources, p):
        w = p["w"].astype(f32)
        h, wd = sources[0].shape[1], sources[0].shape[2]
        ho = (h + 2 - 3) // 2 + 1
        wo = (wd + 2 - 3) // 2 + 1
        acc = 0.0
        off = 0
        for dy in range(3):
            for dx in range(3):
                for src in sources:
                    c = src.shape[-1]
                    xp = jnp.pad(src, ((0, 0), (1, 1), (1, 1), (0, 0)))
                    tap = xp[:, dy:dy + 2 * ho:2, dx:dx + 2 * wo:2, :]
                    acc = acc + tap.reshape(n * ho * wo, c) @ w[off:off + c, :]
                    off += c
        y = acc + p["b"]
        y = jnp.where(y > 0, y, 0.1 * y)
        return y.reshape(n, ho, wo, -1)

    def conv1x1(sources, p, act):
        w = p["w"].astype(f32)
        acc = 0.0
        off = 0
        for src in sources:
            c = src.shape[-1]
            acc = acc + src.reshape(-1, c) @ w[off:off + c, :]
            off += c
        y = acc + p["b"]
        if act == "leaky":
            y = jnp.where(y > 0, y, 0.1 * y)
        elif act == "mish":
            y = mish(y)
        s0 = sources[0].shape
        return y.reshape(s0[0], s0[1], s0[2], -1)

    up2 = lambda t: jnp.repeat(jnp.repeat(t, 2, axis=1), 2, axis=2)

    c21 = conv3x3_s2([x2], params["conv21down"])
    c10 = conv3x3_s2([c21, x1], params["conv10down"])
    cs0 = conv1x1([c10, x0], params["conv_set_0"], "mish")
    c01 = conv1x1([cs0], params["conv01up"], "leaky")
    cs1 = conv1x1([up2(c01), c21, x1], params["conv_set_1"], "mish")
    c12 = conv1x1([cs1], params["conv12up"], "leaky")
    cs2 = conv1x1([up2(c12), x2], params["conv_set_2"], "mish")

    fo = params["fo"]

    def head(x, p):
        w = p["w_pad"].astype(f32)[:, :fo]
        b = p["b_pad"][:, :fo]
        y = x.reshape(-1, x.shape[-1]) @ w + b
        return y.reshape(x.shape[0], x.shape[1], x.shape[2], fo)

    o0 = head(cs0, params["head0"])
    o1 = head(cs1, params["head1"])
    o2 = head(cs2, params["head2"])
    tn = lambda t: jnp.transpose(t, (0, 3, 1, 2))
    return tn(o2), tn(o1), tn(o0)


# ----------------------------------------------------------------------------
if __name__ == "__main__":
    key = jax.random.PRNGKey(0)
    kx0, kx1, kx2, kp = jax.random.split(key, 4)

    # filters_in = (fi_0, fi_1, fi_2); x0 deepest (smallest spatial), x2 shallowest
    filters_in = (64, 32, 16)
    fo = 8  # stands in for cfg.DATA['NUM']

    x0 = jax.random.normal(kx0, (2, 64, 4, 4), jnp.float32)
    x1 = jax.random.normal(kx1, (2, 32, 8, 8), jnp.float32)
    x2 = jax.random.normal(kx2, (2, 16, 16, 16), jnp.float32)

    params = init_msr_fpn_params(kp, filters_in, fo)

    fwd = jax.jit(functools.partial(msr_fpn_forward, params))
    out2, out1, out0 = fwd(x0, x1, x2)
    jax.block_until_ready((out2, out1, out0))

    assert out2.shape == (2, fo, 16, 16)
    assert out1.shape == (2, fo, 8, 8)
    assert out0.shape == (2, fo, 4, 4)

    # validate against the pure-JAX f32 reference (relaxed tolerance for bf16 path)
    ref2, ref1, ref0 = jax.jit(functools.partial(msr_fpn_reference, params))(x0, x1, x2)
    for name, got, want in (("out2", out2, ref2), ("out1", out1, ref1), ("out0", out0, ref0)):
        diff = float(jnp.max(jnp.abs(got.astype(jnp.float32) - want.astype(jnp.float32))))
        scale = float(jnp.max(jnp.abs(want))) + 1e-3
        assert diff <= 0.08 * scale + 0.08, f"{name}: max diff {diff} vs scale {scale}"

    print("KERNEL_OK")
</pallas_src>

<mosaic_0001>
module attributes {stable_mosaic.version = 11 : i64} {
  func.func @_fused_block_kernel(%arg0: i32, %arg1: memref<64x144xbf16, #tpu.memory_space<vmem>>, %arg2: memref<144x256xbf16, #tpu.memory_space<vmem>>, %arg3: memref<1x256xf32, #tpu.memory_space<vmem>>, %arg4: memref<64x256xbf16, #tpu.memory_space<vmem>>) attributes {dimension_semantics = [#tpu.dimension_semantics<parallel>], iteration_bounds = array<i64: 2>, scalar_prefetch = 0 : i64, scratch_operands = 0 : i64, tpu.core_type = #tpu.core_type<tc>, window_params = [{transform_indices = @transform_0, window_bounds = array<i64: 64, 144>}, {pipeline_mode = #tpu.pipeline_mode<synchronous>, transform_indices = @transform_1, window_bounds = array<i64: 144, 256>}, {pipeline_mode = #tpu.pipeline_mode<synchronous>, transform_indices = @transform_2, window_bounds = array<i64: 1, 256>}, {transform_indices = @transform_3, window_bounds = array<i64: 64, 256>}]} {
    %c0 = arith.constant 0 : index
    %c0_0 = arith.constant 0 : index
    %0 = vector.load %arg2[%c0, %c0_0] : memref<144x256xbf16, #tpu.memory_space<vmem>>, vector<144x256xbf16>
    %c0_1 = arith.constant 0 : index
    %c0_2 = arith.constant 0 : index
    %1 = vector.load %arg1[%c0_1, %c0_2] : memref<64x144xbf16, #tpu.memory_space<vmem>>, vector<64x144xbf16>
    %cst = arith.constant dense<0.000000e+00> : vector<64x256xf32>
    %2 = tpu.matmul %1, %0, %cst {dimension_numbers = #tpu.dot_dimension_numbers<[1], [0], [0], [1], [0, 0, 1, 1], [], []>} : vector<64x144xbf16>, vector<144x256xbf16>, vector<64x256xf32> -> vector<64x256xf32>
    %c0_3 = arith.constant 0 : index
    %c0_4 = arith.constant 0 : index
    %3 = vector.load %arg3[%c0_3, %c0_4] : memref<1x256xf32, #tpu.memory_space<vmem>>, vector<1x256xf32>
    %4 = vector.broadcast %3 : vector<1x256xf32> to vector<64x256xf32>
    %5 = arith.addf %2, %4 : vector<64x256xf32>
    %cst_5 = arith.constant 0.000000e+00 : f32
    %6 = vector.broadcast %cst_5 : f32 to vector<64x256xf32>
    %7 = arith.cmpf ogt, %5, %6 : vector<64x256xf32>
    %cst_6 = arith.constant 1.000000e-01 : f32
    %8 = vector.broadcast %cst_6 : f32 to vector<64x256xf32>
    %9 = arith.mulf %8, %5 : vector<64x256xf32>
    %10 = arith.select %7, %5, %9 : vector<64x256xi1>, vector<64x256xf32>
    %11 = arith.truncf %10 : vector<64x256xf32> to vector<64x256xbf16>
    %c0_7 = arith.constant 0 : index
    %c0_8 = arith.constant 0 : index
    %12 = vector.load %arg4[%c0_7, %c0_8] : memref<64x256xbf16, #tpu.memory_space<vmem>>, vector<64x256xbf16>
    tpu.vector_store %arg4[%c0_7, %c0_8], %11 {strides = array<i32>} : memref<64x256xbf16, #tpu.memory_space<vmem>>, vector<64x256xbf16>,
    return
  }
  func.func @transform_0(%arg0: i32) -> (i32, i32) {
    %c0_i32 = arith.constant 0 : i32
    %c0_i32_0 = arith.constant 0 : i32
    return %arg0, %c0_i32 : i32, i32
  }
  func.func @transform_1(%arg0: i32) -> (i32, i32) {
    %c0_i32 = arith.constant 0 : i32
    %c0_i32_0 = arith.constant 0 : i32
    %c0_i32_1 = arith.constant 0 : i32
    return %c0_i32, %c0_i32_0 : i32, i32
  }
  func.func @transform_2(%arg0: i32) -> (i32, i32) {
    %c0_i32 = arith.constant 0 : i32
    %c0_i32_0 = arith.constant 0 : i32
    %c0_i32_1 = arith.constant 0 : i32
    return %c0_i32, %c0_i32_0 : i32, i32
  }
  func.func @transform_3(%arg0: i32) -> (i32, i32) {
    %c0_i32 = arith.constant 0 : i32
    %c0_i32_0 = arith.constant 0 : i32
    return %arg0, %c0_i32 : i32, i32
  }
}

module attributes {stable_mosaic.version = 11 : i64} {
  func.func @_fused_block_kernel(%arg0: i32, %arg1: memref<32x2592xbf16, #tpu.memory_space<vmem>>, %arg2: memref<2592x512xbf16, #tpu.memory_space<vmem>>, %arg3: memref<1x512xf32, #tpu.memory_space<vmem>>, %arg4: memref<32x512xbf16, #tpu.memory_space<vmem>>) attributes {dimension_semantics = [#tpu.dimension_semantics<parallel>], iteration_bounds = array<i64: 1>, scalar_prefetch = 0 : i64, scratch_operands = 0 : i64, tpu.core_type = #tpu.core_type<tc>, window_params = [{transform_indices = @transform_0, window_bounds = array<i64: 32, 2592>}, {pipeline_mode = #tpu.pipeline_mode<synchronous>, transform_indices = @transform_1, window_bounds = array<i64: 2592, 512>}, {pipeline_mode = #tpu.pipeline_mode<synchronous>, transform_indices = @transform_2, window_bounds = array<i64: 1, 512>}, {transform_indices = @transform_3, window_bounds = array<i64: 32, 512>}]} {
    %c0 = arith.constant 0 : index
    %c0_0 = arith.constant 0 : index
    %0 = vector.load %arg2[%c0, %c0_0] : memref<2592x512xbf16, #tpu.memory_space<vmem>>, vector<2592x512xbf16>
    %c0_1 = arith.constant 0 : index
    %c0_2 = arith.constant 0 : index
    %1 = vector.load %arg1[%c0_1, %c0_2] : memref<32x2592xbf16, #tpu.memory_space<vmem>>, vector<32x2592xbf16>
    %cst = arith.constant dense<0.000000e+00> : vector<32x512xf32>
    %2 = tpu.matmul %1, %0, %cst {dimension_numbers = #tpu.dot_dimension_numbers<[1], [0], [0], [1], [0, 0, 1, 1], [], []>} : vector<32x2592xbf16>, vector<2592x512xbf16>, vector<32x512xf32> -> vector<32x512xf32>
    %c0_3 = arith.constant 0 : index
    %c0_4 = arith.constant 0 : index
    %3 = vector.load %arg3[%c0_3, %c0_4] : memref<1x512xf32, #tpu.memory_space<vmem>>, vector<1x512xf32>
    %4 = vector.broadcast %3 : vector<1x512xf32> to vector<32x512xf32>
    %5 = arith.addf %2, %4 : vector<32x512xf32>
    %cst_5 = arith.constant 0.000000e+00 : f32
    %6 = vector.broadcast %cst_5 : f32 to vector<32x512xf32>
    %7 = arith.cmpf ogt, %5, %6 : vector<32x512xf32>
    %cst_6 = arith.constant 1.000000e-01 : f32
    %8 = vector.broadcast %cst_6 : f32 to vector<32x512xf32>
    %9 = arith.mulf %8, %5 : vector<32x512xf32>
    %10 = arith.select %7, %5, %9 : vector<32x512xi1>, vector<32x512xf32>
    %11 = arith.truncf %10 : vector<32x512xf32> to vector<32x512xbf16>
    %c0_7 = arith.constant 0 : index
    %c0_8 = arith.constant 0 : index
    %12 = vector.load %arg4[%c0_7, %c0_8] : memref<32x512xbf16, #tpu.memory_space<vmem>>, vector<32x512xbf16>
    tpu.vector_store %arg4[%c0_7, %c0_8], %11 {strides = array<i32>} : memref<32x512xbf16, #tpu.memory_space<vmem>>, vector<32x512xbf16>,
    return
  }
  func.func @transform_0(%arg0: i32) -> (i32, i32) {
    %c0_i32 = arith.constant 0 : i32
    %c0_i32_0 = arith.constant 0 : i32
    return %arg0, %c0_i32 : i32, i32
  }
  func.func @transform_1(%arg0: i32) -> (i32, i32) {
    %c0_i32 = arith.constant 0 : i32
    %c0_i32_0 = arith.constant 0 : i32
    %c0_i32_1 = arith.constant 0 : i32
    return %c0_i32, %c0_i32_0 : i32, i32
  }
  func.func @transform_2(%arg0: i32) -> (i32, i32) {
    %c0_i32 = arith.constant 0 : i32
    %c0_i32_0 = arith.constant 0 : i32
    %c0_i32_1 = arith.constant 0 : i32
    return %c0_i32, %c0_i32_0 : i32, i32
  }
  func.func @transform_3(%arg0: i32) -> (i32, i32) {
    %c0_i32 = arith.constant 0 : i32
    %c0_i32_0 = arith.constant 0 : i32
    return %arg0, %c0_i32 : i32, i32
  }
}

module attributes {stable_mosaic.version = 11 : i64} {
  func.func @_fused_block_kernel(%arg0: i32, %arg1: memref<32x512xbf16, #tpu.memory_space<vmem>>, %arg2: memref<32x64xbf16, #tpu.memory_space<vmem>>, %arg3: memref<576x512xbf16, #tpu.memory_space<vmem>>, %arg4: memref<1x512xf32, #tpu.memory_space<vmem>>, %arg5: memref<512x256xbf16, #tpu.memory_space<vmem>>, %arg6: memref<1x256xf32, #tpu.memory_space<vmem>>, %arg7: memref<256x256xbf16, #tpu.memory_space<vmem>>, %arg8: memref<512x128xbf16, #tpu.memory_space<vmem>>, %arg9: memref<1x128xf32, #tpu.memory_space<vmem>>, %arg10: memref<32x256xf32, #tpu.memory_space<vmem>>, %arg11: memref<32x128xbf16, #tpu.memory_space<vmem>>) attributes {dimension_semantics = [#tpu.dimension_semantics<parallel>], iteration_bounds = array<i64: 1>, scalar_prefetch = 0 : i64, scratch_operands = 0 : i64, tpu.core_type = #tpu.core_type<tc>, window_params = [{transform_indices = @transform_0, window_bounds = array<i64: 32, 512>}, {transform_indices = @transform_1, window_bounds = array<i64: 32, 64>}, {pipeline_mode = #tpu.pipeline_mode<synchronous>, transform_indices = @transform_2, window_bounds = array<i64: 576, 512>}, {pipeline_mode = #tpu.pipeline_mode<synchronous>, transform_indices = @transform_3, window_bounds = array<i64: 1, 512>}, {pipeline_mode = #tpu.pipeline_mode<synchronous>, transform_indices = @transform_4, window_bounds = array<i64: 512, 256>}, {pipeline_mode = #tpu.pipeline_mode<synchronous>, transform_indices = @transform_5, window_bounds = array<i64: 1, 256>}, {pipeline_mode = #tpu.pipeline_mode<synchronous>, transform_indices = @transform_6, window_bounds = array<i64: 256, 256>}, {pipeline_mode = #tpu.pipeline_mode<synchronous>, transform_indices = @transform_7, window_bounds = array<i64: 512, 128>}, {pipeline_mode = #tpu.pipeline_mode<synchronous>, transform_indices = @transform_8, window_bounds = array<i64: 1, 128>}, {transform_indices = @transform_9, window_bounds = array<i64: 32, 256>}, {transform_indices = @transform_10, window_bounds = array<i64: 32, 128>}]} {
    %c0 = arith.constant 0 : index
    %c0_0 = arith.constant 0 : index
    %0 = vector.load %arg3[%c0, %c0_0] : memref<576x512xbf16, #tpu.memory_space<vmem>>, vector<512x512xbf16>
    %c0_1 = arith.constant 0 : index
    %c0_2 = arith.constant 0 : index
    %1 = vector.load %arg1[%c0_1, %c0_2] : memref<32x512xbf16, #tpu.memory_space<vmem>>, vector<32x512xbf16>
    %cst = arith.constant dense<0.000000e+00> : vector<32x512xf32>
    %2 = tpu.matmul %1, %0, %cst {dimension_numbers = #tpu.dot_dimension_numbers<[1], [0], [0], [1], [0, 0, 1, 1], [], []>} : vector<32x512xbf16>, vector<512x512xbf16>, vector<32x512xf32> -> vector<32x512xf32>
    %c512 = arith.constant 512 : index
    %c0_3 = arith.constant 0 : index
    %3 = vector.load %arg3[%c512, %c0_3] : memref<576x512xbf16, #tpu.memory_space<vmem>>, vector<64x512xbf16>
    %c0_4 = arith.constant 0 : index
    %c0_5 = arith.constant 0 : index
    %4 = vector.load %arg2[%c0_4, %c0_5] : memref<32x64xbf16, #tpu.memory_space<vmem>>, vector<32x64xbf16>
    %cst_6 = arith.constant dense<0.000000e+00> : vector<32x512xf32>
    %5 = tpu.matmul %4, %3, %cst_6 {dimension_numbers = #tpu.dot_dimension_numbers<[1], [0], [0], [1], [0, 0, 1, 1], [], []>} : vector<32x64xbf16>, vector<64x512xbf16>, vector<32x512xf32> -> vector<32x512xf32>
    %6 = arith.addf %2, %5 : vector<32x512xf32>
    %c0_7 = arith.constant 0 : index
    %c0_8 = arith.constant 0 : index
    %7 = vector.load %arg4[%c0_7, %c0_8] : memref<1x512xf32, #tpu.memory_space<vmem>>, vector<1x512xf32>
    %8 = vector.broadcast %7 : vector<1x512xf32> to vector<32x512xf32>
    %9 = arith.addf %6, %8 : vector<32x512xf32>
    %cst_9 = arith.constant 2.000000e+01 : f32
    %10 = vector.broadcast %cst_9 : f32 to vector<32x512xf32>
    %11 = arith.minimumf %9, %10 : vector<32x512xf32>
    %12 = math.exp %11 : vector<32x512xf32>
    %cst_10 = arith.constant 1.000000e+00 : f32
    %13 = vector.broadcast %cst_10 : f32 to vector<32x512xf32>
    %14 = arith.addf %13, %12 : vector<32x512xf32>
    %cst_11 = arith.constant 1.000000e+00 : f32
    %15 = vector.broadcast %cst_11 : f32 to vector<32x512xf32>
    %16 = arith.addf %15, %12 : vector<32x512xf32>
    %17 = arith.mulf %14, %16 : vector<32x512xf32>
    %cst_12 = arith.constant 1.000000e+00 : f32
    %18 = vector.broadcast %cst_12 : f32 to vector<32x512xf32>
    %19 = arith.subf %17, %18 : vector<32x512xf32>
    %20 = arith.mulf %9, %19 : vector<32x512xf32>
    %cst_13 = arith.constant 1.000000e+00 : f32
    %21 = vector.broadcast %cst_13 : f32 to vector<32x512xf32>
    %22 = arith.addf %17, %21 : vector<32x512xf32>
    %23 = tpu.reciprocal %22 {approx = true} : vector<32x512xf32> -> vector<32x512xf32>
    %24 = arith.mulf %20, %23 : vector<32x512xf32>
    %cst_14 = arith.constant 2.000000e+01 : f32
    %25 = vector.broadcast %cst_14 : f32 to vector<32x512xf32>
    %26 = arith.cmpf ogt, %9, %25 : vector<32x512xf32>
    %27 = arith.select %26, %9, %24 : vector<32x512xi1>, vector<32x512xf32>
    %28 = arith.truncf %27 : vector<32x512xf32> to vector<32x512xbf16>
    %c0_15 = arith.constant 0 : index
    %c0_16 = arith.constant 0 : index
    %29 = vector.load %arg5[%c0_15, %c0_16] : memref<512x256xbf16, #tpu.memory_space<vmem>>, vector<512x256xbf16>
    %cst_17 = arith.constant dense<0.000000e+00> : vector<32x256xf32>
    %30 = tpu.matmul %28, %29, %cst_17 {dimension_numbers = #tpu.dot_dimension_numbers<[1], [0], [0], [1], [0, 0, 1, 1], [], []>} : vector<32x512xbf16>, vector<512x256xbf16>, vector<32x256xf32> -> vector<32x256xf32>
    %c0_18 = arith.constant 0 : index
    %c0_19 = arith.constant 0 : index
    %31 = vector.load %arg6[%c0_18, %c0_19] : memref<1x256xf32, #tpu.memory_space<vmem>>, vector<1x256xf32>
    %32 = vector.broadcast %31 : vector<1x256xf32> to vector<32x256xf32>
    %33 = arith.addf %30, %32 : vector<32x256xf32>
    %cst_20 = arith.constant 0.000000e+00 : f32
    %34 = vector.broadcast %cst_20 : f32 to vector<32x256xf32>
    %35 = arith.cmpf ogt, %33, %34 : vector<32x256xf32>
    %cst_21 = arith.constant 1.000000e-01 : f32
    %36 = vector.broadcast %cst_21 : f32 to vector<32x256xf32>
    %37 = arith.mulf %36, %33 : vector<32x256xf32>
    %38 = arith.select %35, %33, %37 : vector<32x256xi1>, vector<32x256xf32>
    %39 = arith.truncf %38 : vector<32x256xf32> to vector<32x256xbf16>
    %c0_22 = arith.constant 0 : index
    %c0_23 = arith.constant 0 : index
    %40 = vector.load %arg7[%c0_22, %c0_23] : memref<256x256xbf16, #tpu.memory_space<vmem>>, vector<256x256xbf16>
    %cst_24 = arith.constant dense<0.000000e+00> : vector<32x256xf32>
    %41 = tpu.matmul %39, %40, %cst_24 {dimension_numbers = #tpu.dot_dimension_numbers<[1], [0], [0], [1], [0, 0, 1, 1], [], []>} : vector<32x256xbf16>, vector<256x256xbf16>, vector<32x256xf32> -> vector<32x256xf32>
    %c0_25 = arith.constant 0 : index
    %c0_26 = arith.constant 0 : index
    %42 = vector.load %arg10[%c0_25, %c0_26] : memref<32x256xf32, #tpu.memory_space<vmem>>, vector<32x256xf32>
    tpu.vector_store %arg10[%c0_25, %c0_26], %41 {strides = array<i32>} : memref<32x256xf32, #tpu.memory_space<vmem>>, vector<32x256xf32>,
    %c0_27 = arith.constant 0 : index
    %c0_28 = arith.constant 0 : index
    %43 = vector.load %arg8[%c0_27, %c0_28] : memref<512x128xbf16, #tpu.memory_space<vmem>>, vector<512x128xbf16>
    %cst_29 = arith.constant dense<0.000000e+00> : vector<32x128xf32>
    %44 = tpu.matmul %28, %43, %cst_29 {dimension_numbers = #tpu.dot_dimension_numbers<[1], [0], [0], [1], [0, 0, 1, 1], [], []>} : vector<32x512xbf16>, vector<512x128xbf16>, vector<32x128xf32> -> vector<32x128xf32>
    %c0_30 = arith.constant 0 : index
    %c0_31 = arith.constant 0 : index
    %45 = vector.load %arg9[%c0_30, %c0_31] : memref<1x128xf32, #tpu.memory_space<vmem>>, vector<1x128xf32>
    %46 = vector.broadcast %45 : vector<1x128xf32> to vector<32x128xf32>
    %47 = arith.addf %44, %46 : vector<32x128xf32>
    %48 = arith.truncf %47 : vector<32x128xf32> to vector<32x128xbf16>
    %c0_32 = arith.constant 0 : index
    %c0_33 = arith.constant 0 : index
    %49 = vector.load %arg11[%c0_32, %c0_33] : memref<32x128xbf16, #tpu.memory_space<vmem>>, vector<32x128xbf16>
    tpu.vector_store %arg11[%c0_32, %c0_33], %48 {strides = array<i32>} : memref<32x128xbf16, #tpu.memory_space<vmem>>, vector<32x128xbf16>,
    return
  }
  func.func @transform_0(%arg0: i32) -> (i32, i32) {
    %c0_i32 = arith.constant 0 : i32
    %c0_i32_0 = arith.constant 0 : i32
    return %arg0, %c0_i32 : i32, i32
  }
  func.func @transform_1(%arg0: i32) -> (i32, i32) {
    %c0_i32 = arith.constant 0 : i32
    %c0_i32_0 = arith.constant 0 : i32
    return %arg0, %c0_i32 : i32, i32
  }
  func.func @transform_2(%arg0: i32) -> (i32, i32) {
    %c0_i32 = arith.constant 0 : i32
    %c0_i32_0 = arith.constant 0 : i32
    %c0_i32_1 = arith.constant 0 : i32
    return %c0_i32, %c0_i32_0 : i32, i32
  }
  func.func @transform_3(%arg0: i32) -> (i32, i32) {
    %c0_i32 = arith.constant 0 : i32
    %c0_i32_0 = arith.constant 0 : i32
    %c0_i32_1 = arith.constant 0 : i32
    return %c0_i32, %c0_i32_0 : i32, i32
  }
  func.func @transform_4(%arg0: i32) -> (i32, i32) {
    %c0_i32 = arith.constant 0 : i32
    %c0_i32_0 = arith.constant 0 : i32
    %c0_i32_1 = arith.constant 0 : i32
    return %c0_i32, %c0_i32_0 : i32, i32
  }
  func.func @transform_5(%arg0: i32) -> (i32, i32) {
    %c0_i32 = arith.constant 0 : i32
    %c0_i32_0 = arith.constant 0 : i32
    %c0_i32_1 = arith.constant 0 : i32
    return %c0_i32, %c0_i32_0 : i32, i32
  }
  func.func @transform_6(%arg0: i32) -> (i32, i32) {
    %c0_i32 = arith.constant 0 : i32
    %c0_i32_0 = arith.constant 0 : i32
    %c0_i32_1 = arith.constant 0 : i32
    return %c0_i32, %c0_i32_0 : i32, i32
  }
  func.func @transform_7(%arg0: i32) -> (i32, i32) {
    %c0_i32 = arith.constant 0 : i32
    %c0_i32_0 = arith.constant 0 : i32
    %c0_i32_1 = arith.constant 0 : i32
    return %c0_i32, %c0_i32_0 : i32, i32
  }
  func.func @transform_8(%arg0: i32) -> (i32, i32) {
    %c0_i32 = arith.constant 0 : i32
    %c0_i32_0 = arith.constant 0 : i32
    %c0_i32_1 = arith.constant 0 : i32
    return %c0_i32, %c0_i32_0 : i32, i32
  }
  func.func @transform_9(%arg0: i32) -> (i32, i32) {
    %c0_i32 = arith.constant 0 : i32
    %c0_i32_0 = arith.constant 0 : i32
    return %arg0, %c0_i32 : i32, i32
  }
  func.func @transform_10(%arg0: i32) -> (i32, i32) {
    %c0_i32 = arith.constant 0 : i32
    %c0_i32_0 = arith.constant 0 : i32
    return %arg0, %c0_i32 : i32, i32
  }
}

module attributes {stable_mosaic.version = 11 : i64} {
  func.func @_fused_block_kernel(%arg0: i32, %arg1: memref<64x256xf32, #tpu.memory_space<vmem>>, %arg2: memref<64x288xbf16, #tpu.memory_space<vmem>>, %arg3: memref<288x256xbf16, #tpu.memory_space<vmem>>, %arg4: memref<1x256xf32, #tpu.memory_space<vmem>>, %arg5: memref<256x128xbf16, #tpu.memory_space<vmem>>, %arg6: memref<1x128xf32, #tpu.memory_space<vmem>>, %arg7: memref<128x128xbf16, #tpu.memory_space<vmem>>, %arg8: memref<256x128xbf16, #tpu.memory_space<vmem>>, %arg9: memref<1x128xf32, #tpu.memory_space<vmem>>, %arg10: memref<64x128xf32, #tpu.memory_space<vmem>>, %arg11: memref<64x128xbf16, #tpu.memory_space<vmem>>) attributes {dimension_semantics = [#tpu.dimension_semantics<parallel>], iteration_bounds = array<i64: 2>, scalar_prefetch = 0 : i64, scratch_operands = 0 : i64, tpu.core_type = #tpu.core_type<tc>, window_params = [{transform_indices = @transform_0, window_bounds = array<i64: 64, 256>}, {transform_indices = @transform_1, window_bounds = array<i64: 64, 288>}, {pipeline_mode = #tpu.pipeline_mode<synchronous>, transform_indices = @transform_2, window_bounds = array<i64: 288, 256>}, {pipeline_mode = #tpu.pipeline_mode<synchronous>, transform_indices = @transform_3, window_bounds = array<i64: 1, 256>}, {pipeline_mode = #tpu.pipeline_mode<synchronous>, transform_indices = @transform_4, window_bounds = array<i64: 256, 128>}, {pipeline_mode = #tpu.pipeline_mode<synchronous>, transform_indices = @transform_5, window_bounds = array<i64: 1, 128>}, {pipeline_mode = #tpu.pipeline_mode<synchronous>, transform_indices = @transform_6, window_bounds = array<i64: 128, 128>}, {pipeline_mode = #tpu.pipeline_mode<synchronous>, transform_indices = @transform_7, window_bounds = array<i64: 256, 128>}, {pipeline_mode = #tpu.pipeline_mode<synchronous>, transform_indices = @transform_8, window_bounds = array<i64: 1, 128>}, {transform_indices = @transform_9, window_bounds = array<i64: 64, 128>}, {transform_indices = @transform_10, window_bounds = array<i64: 64, 128>}]} {
    %c0 = arith.constant 0 : index
    %c0_0 = arith.constant 0 : index
    %0 = vector.load %arg1[%c0, %c0_0] : memref<64x256xf32, #tpu.memory_space<vmem>>, vector<64x256xf32>
    %c0_1 = arith.constant 0 : index
    %c0_2 = arith.constant 0 : index
    %1 = vector.load %arg3[%c0_1, %c0_2] : memref<288x256xbf16, #tpu.memory_space<vmem>>, vector<288x256xbf16>
    %c0_3 = arith.constant 0 : index
    %c0_4 = arith.constant 0 : index
    %2 = vector.load %arg2[%c0_3, %c0_4] : memref<64x288xbf16, #tpu.memory_space<vmem>>, vector<64x288xbf16>
    %cst = arith.constant dense<0.000000e+00> : vector<64x256xf32>
    %3 = tpu.matmul %2, %1, %cst {dimension_numbers = #tpu.dot_dimension_numbers<[1], [0], [0], [1], [0, 0, 1, 1], [], []>} : vector<64x288xbf16>, vector<288x256xbf16>, vector<64x256xf32> -> vector<64x256xf32>
    %4 = arith.addf %0, %3 : vector<64x256xf32>
    %c0_5 = arith.constant 0 : index
    %c0_6 = arith.constant 0 : index
    %5 = vector.load %arg4[%c0_5, %c0_6] : memref<1x256xf32, #tpu.memory_space<vmem>>, vector<1x256xf32>
    %6 = vector.broadcast %5 : vector<1x256xf32> to vector<64x256xf32>
    %7 = arith.addf %4, %6 : vector<64x256xf32>
    %cst_7 = arith.constant 2.000000e+01 : f32
    %8 = vector.broadcast %cst_7 : f32 to vector<64x256xf32>
    %9 = arith.minimumf %7, %8 : vector<64x256xf32>
    %10 = math.exp %9 : vector<64x256xf32>
    %cst_8 = arith.constant 1.000000e+00 : f32
    %11 = vector.broadcast %cst_8 : f32 to vector<64x256xf32>
    %12 = arith.addf %11, %10 : vector<64x256xf32>
    %cst_9 = arith.constant 1.000000e+00 : f32
    %13 = vector.broadcast %cst_9 : f32 to vector<64x256xf32>
    %14 = arith.addf %13, %10 : vector<64x256xf32>
    %15 = arith.mulf %12, %14 : vector<64x256xf32>
    %cst_10 = arith.constant 1.000000e+00 : f32
    %16 = vector.broadcast %cst_10 : f32 to vector<64x256xf32>
    %17 = arith.subf %15, %16 : vector<64x256xf32>
    %18 = arith.mulf %7, %17 : vector<64x256xf32>
    %cst_11 = arith.constant 1.000000e+00 : f32
    %19 = vector.broadcast %cst_11 : f32 to vector<64x256xf32>
    %20 = arith.addf %15, %19 : vector<64x256xf32>
    %21 = tpu.reciprocal %20 {approx = true} : vector<64x256xf32> -> vector<64x256xf32>
    %22 = arith.mulf %18, %21 : vector<64x256xf32>
    %cst_12 = arith.constant 2.000000e+01 : f32
    %23 = vector.broadcast %cst_12 : f32 to vector<64x256xf32>
    %24 = arith.cmpf ogt, %7, %23 : vector<64x256xf32>
    %25 = arith.select %24, %7, %22 : vector<64x256xi1>, vector<64x256xf32>
    %26 = arith.truncf %25 : vector<64x256xf32> to vector<64x256xbf16>
    %c0_13 = arith.constant 0 : index
    %c0_14 = arith.constant 0 : index
    %27 = vector.load %arg5[%c0_13, %c0_14] : memref<256x128xbf16, #tpu.memory_space<vmem>>, vector<256x128xbf16>
    %cst_15 = arith.constant dense<0.000000e+00> : vector<64x128xf32>
    %28 = tpu.matmul %26, %27, %cst_15 {dimension_numbers = #tpu.dot_dimension_numbers<[1], [0], [0], [1], [0, 0, 1, 1], [], []>} : vector<64x256xbf16>, vector<256x128xbf16>, vector<64x128xf32> -> vector<64x128xf32>
    %c0_16 = arith.constant 0 : index
    %c0_17 = arith.constant 0 : index
    %29 = vector.load %arg6[%c0_16, %c0_17] : memref<1x128xf32, #tpu.memory_space<vmem>>, vector<1x128xf32>
    %30 = vector.broadcast %29 : vector<1x128xf32> to vector<64x128xf32>
    %31 = arith.addf %28, %30 : vector<64x128xf32>
    %cst_18 = arith.constant 0.000000e+00 : f32
    %32 = vector.broadcast %cst_18 : f32 to vector<64x128xf32>
    %33 = arith.cmpf ogt, %31, %32 : vector<64x128xf32>
    %cst_19 = arith.constant 1.000000e-01 : f32
    %34 = vector.broadcast %cst_19 : f32 to vector<64x128xf32>
    %35 = arith.mulf %34, %31 : vector<64x128xf32>
    %36 = arith.select %33, %31, %35 : vector<64x128xi1>, vector<64x128xf32>
    %37 = arith.truncf %36 : vector<64x128xf32> to vector<64x128xbf16>
    %c0_20 = arith.constant 0 : index
    %c0_21 = arith.constant 0 : index
    %38 = vector.load %arg7[%c0_20, %c0_21] : memref<128x128xbf16, #tpu.memory_space<vmem>>, vector<128x128xbf16>
    %cst_22 = arith.constant dense<0.000000e+00> : vector<64x128xf32>
    %39 = tpu.matmul %37, %38, %cst_22 {dimension_numbers = #tpu.dot_dimension_numbers<[1], [0], [0], [1], [0, 0, 1, 1], [], []>} : vector<64x128xbf16>, vector<128x128xbf16>, vector<64x128xf32> -> vector<64x128xf32>
    %c0_23 = arith.constant 0 : index
    %c0_24 = arith.constant 0 : index
    %40 = vector.load %arg10[%c0_23, %c0_24] : memref<64x128xf32, #tpu.memory_space<vmem>>, vector<64x128xf32>
    tpu.vector_store %arg10[%c0_23, %c0_24], %39 {strides = array<i32>} : memref<64x128xf32, #tpu.memory_space<vmem>>, vector<64x128xf32>,
    %c0_25 = arith.constant 0 : index
    %c0_26 = arith.constant 0 : index
    %41 = vector.load %arg8[%c0_25, %c0_26] : memref<256x128xbf16, #tpu.memory_space<vmem>>, vector<256x128xbf16>
    %cst_27 = arith.constant dense<0.000000e+00> : vector<64x128xf32>
    %42 = tpu.matmul %26, %41, %cst_27 {dimension_numbers = #tpu.dot_dimension_numbers<[1], [0], [0], [1], [0, 0, 1, 1], [], []>} : vector<64x256xbf16>, vector<256x128xbf16>, vector<64x128xf32> -> vector<64x128xf32>
    %c0_28 = arith.constant 0 : index
    %c0_29 = arith.constant 0 : index
    %43 = vector.load %arg9[%c0_28, %c0_29] : memref<1x128xf32, #tpu.memory_space<vmem>>, vector<1x128xf32>
    %44 = vector.broadcast %43 : vector<1x128xf32> to vector<64x128xf32>
    %45 = arith.addf %42, %44 : vector<64x128xf32>
    %46 = arith.truncf %45 : vector<64x128xf32> to vector<64x128xbf16>
    %c0_30 = arith.constant 0 : index
    %c0_31 = arith.constant 0 : index
    %47 = vector.load %arg11[%c0_30, %c0_31] : memref<64x128xbf16, #tpu.memory_space<vmem>>, vector<64x128xbf16>
    tpu.vector_store %arg11[%c0_30, %c0_31], %46 {strides = array<i32>} : memref<64x128xbf16, #tpu.memory_space<vmem>>, vector<64x128xbf16>,
    return
  }
  func.func @transform_0(%arg0: i32) -> (i32, i32) {
    %c0_i32 = arith.constant 0 : i32
    %c0_i32_0 = arith.constant 0 : i32
    return %arg0, %c0_i32 : i32, i32
  }
  func.func @transform_1(%arg0: i32) -> (i32, i32) {
    %c0_i32 = arith.constant 0 : i32
    %c0_i32_0 = arith.constant 0 : i32
    return %arg0, %c0_i32 : i32, i32
  }
  func.func @transform_2(%arg0: i32) -> (i32, i32) {
    %c0_i32 = arith.constant 0 : i32
    %c0_i32_0 = arith.constant 0 : i32
    %c0_i32_1 = arith.constant 0 : i32
    return %c0_i32, %c0_i32_0 : i32, i32
  }
  func.func @transform_3(%arg0: i32) -> (i32, i32) {
    %c0_i32 = arith.constant 0 : i32
    %c0_i32_0 = arith.constant 0 : i32
    %c0_i32_1 = arith.constant 0 : i32
    return %c0_i32, %c0_i32_0 : i32, i32
  }
  func.func @transform_4(%arg0: i32) -> (i32, i32) {
    %c0_i32 = arith.constant 0 : i32
    %c0_i32_0 = arith.constant 0 : i32
    %c0_i32_1 = arith.constant 0 : i32
    return %c0_i32, %c0_i32_0 : i32, i32
  }
  func.func @transform_5(%arg0: i32) -> (i32, i32) {
    %c0_i32 = arith.constant 0 : i32
    %c0_i32_0 = arith.constant 0 : i32
    %c0_i32_1 = arith.constant 0 : i32
    return %c0_i32, %c0_i32_0 : i32, i32
  }
  func.func @transform_6(%arg0: i32) -> (i32, i32) {
    %c0_i32 = arith.constant 0 : i32
    %c0_i32_0 = arith.constant 0 : i32
    %c0_i32_1 = arith.constant 0 : i32
    return %c0_i32, %c0_i32_0 : i32, i32
  }
  func.func @transform_7(%arg0: i32) -> (i32, i32) {
    %c0_i32 = arith.constant 0 : i32
    %c0_i32_0 = arith.constant 0 : i32
    %c0_i32_1 = arith.constant 0 : i32
    return %c0_i32, %c0_i32_0 : i32, i32
  }
  func.func @transform_8(%arg0: i32) -> (i32, i32) {
    %c0_i32 = arith.constant 0 : i32
    %c0_i32_0 = arith.constant 0 : i32
    %c0_i32_1 = arith.constant 0 : i32
    return %c0_i32, %c0_i32_0 : i32, i32
  }
  func.func @transform_9(%arg0: i32) -> (i32, i32) {
    %c0_i32 = arith.constant 0 : i32
    %c0_i32_0 = arith.constant 0 : i32
    return %arg0, %c0_i32 : i32, i32
  }
  func.func @transform_10(%arg0: i32) -> (i32, i32) {
    %c0_i32 = arith.constant 0 : i32
    %c0_i32_0 = arith.constant 0 : i32
    return %arg0, %c0_i32 : i32, i32
  }
}

module attributes {stable_mosaic.version = 11 : i64} {
  func.func @_fused_block_kernel(%arg0: i32, %arg1: memref<256x128xf32, #tpu.memory_space<vmem>>, %arg2: memref<256x16xbf16, #tpu.memory_space<vmem>>, %arg3: memref<16x128xbf16, #tpu.memory_space<vmem>>, %arg4: memref<1x128xf32, #tpu.memory_space<vmem>>, %arg5: memref<128x128xbf16, #tpu.memory_space<vmem>>, %arg6: memref<1x128xf32, #tpu.memory_space<vmem>>, %arg7: memref<256x128xbf16, #tpu.memory_space<vmem>>) attributes {dimension_semantics = [#tpu.dimension_semantics<parallel>], iteration_bounds = array<i64: 2>, scalar_prefetch = 0 : i64, scratch_operands = 0 : i64, tpu.core_type = #tpu.core_type<tc>, window_params = [{transform_indices = @transform_0, window_bounds = array<i64: 256, 128>}, {transform_indices = @transform_1, window_bounds = array<i64: 256, 16>}, {pipeline_mode = #tpu.pipeline_mode<synchronous>, transform_indices = @transform_2, window_bounds = array<i64: 16, 128>}, {pipeline_mode = #tpu.pipeline_mode<synchronous>, transform_indices = @transform_3, window_bounds = array<i64: 1, 128>}, {pipeline_mode = #tpu.pipeline_mode<synchronous>, transform_indices = @transform_4, window_bounds = array<i64: 128, 128>}, {pipeline_mode = #tpu.pipeline_mode<synchronous>, transform_indices = @transform_5, window_bounds = array<i64: 1, 128>}, {transform_indices = @transform_6, window_bounds = array<i64: 256, 128>}]} {
    %c0 = arith.constant 0 : index
    %c0_0 = arith.constant 0 : index
    %0 = vector.load %arg1[%c0, %c0_0] : memref<256x128xf32, #tpu.memory_space<vmem>>, vector<256x128xf32>
    %c0_1 = arith.constant 0 : index
    %c0_2 = arith.constant 0 : index
    %1 = vector.load %arg3[%c0_1, %c0_2] : memref<16x128xbf16, #tpu.memory_space<vmem>>, vector<16x128xbf16>
    %c0_3 = arith.constant 0 : index
    %c0_4 = arith.constant 0 : index
    %2 = vector.load %arg2[%c0_3, %c0_4] : memref<256x16xbf16, #tpu.memory_space<vmem>>, vector<256x16xbf16>
    %cst = arith.constant dense<0.000000e+00> : vector<256x128xf32>
    %3 = tpu.matmul %2, %1, %cst {dimension_numbers = #tpu.dot_dimension_numbers<[1], [0], [0], [1], [0, 0, 1, 1], [], []>} : vector<256x16xbf16>, vector<16x128xbf16>, vector<256x128xf32> -> vector<256x128xf32>
    %4 = arith.addf %0, %3 : vector<256x128xf32>
    %c0_5 = arith.constant 0 : index
    %c0_6 = arith.constant 0 : index
    %5 = vector.load %arg4[%c0_5, %c0_6] : memref<1x128xf32, #tpu.memory_space<vmem>>, vector<1x128xf32>
    %6 = vector.broadcast %5 : vector<1x128xf32> to vector<256x128xf32>
    %7 = arith.addf %4, %6 : vector<256x128xf32>
    %cst_7 = arith.constant 2.000000e+01 : f32
    %8 = vector.broadcast %cst_7 : f32 to vector<256x128xf32>
    %9 = arith.minimumf %7, %8 : vector<256x128xf32>
    %10 = math.exp %9 : vector<256x128xf32>
    %cst_8 = arith.constant 1.000000e+00 : f32
    %11 = vector.broadcast %cst_8 : f32 to vector<256x128xf32>
    %12 = arith.addf %11, %10 : vector<256x128xf32>
    %cst_9 = arith.constant 1.000000e+00 : f32
    %13 = vector.broadcast %cst_9 : f32 to vector<256x128xf32>
    %14 = arith.addf %13, %10 : vector<256x128xf32>
    %15 = arith.mulf %12, %14 : vector<256x128xf32>
    %cst_10 = arith.constant 1.000000e+00 : f32
    %16 = vector.broadcast %cst_10 : f32 to vector<256x128xf32>
    %17 = arith.subf %15, %16 : vector<256x128xf32>
    %18 = arith.mulf %7, %17 : vector<256x128xf32>
    %cst_11 = arith.constant 1.000000e+00 : f32
    %19 = vector.broadcast %cst_11 : f32 to vector<256x128xf32>
    %20 = arith.addf %15, %19 : vector<256x128xf32>
    %21 = tpu.reciprocal %20 {approx = true} : vector<256x128xf32> -> vector<256x128xf32>
    %22 = arith.mulf %18, %21 : vector<256x128xf32>
    %cst_12 = arith.constant 2.000000e+01 : f32
    %23 = vector.broadcast %cst_12 : f32 to vector<256x128xf32>
    %24 = arith.cmpf ogt, %7, %23 : vector<256x128xf32>
    %25 = arith.select %24, %7, %22 : vector<256x128xi1>, vector<256x128xf32>
    %26 = arith.truncf %25 : vector<256x128xf32> to vector<256x128xbf16>
    %c0_13 = arith.constant 0 : index
    %c0_14 = arith.constant 0 : index
    %27 = vector.load %arg5[%c0_13, %c0_14] : memref<128x128xbf16, #tpu.memory_space<vmem>>, vector<128x128xbf16>
    %cst_15 = arith.constant dense<0.000000e+00> : vector<256x128xf32>
    %28 = tpu.matmul %26, %27, %cst_15 {dimension_numbers = #tpu.dot_dimension_numbers<[1], [0], [0], [1], [0, 0, 1, 1], [], []>} : vector<256x128xbf16>, vector<128x128xbf16>, vector<256x128xf32> -> vector<256x128xf32>
    %c0_16 = arith.constant 0 : index
    %c0_17 = arith.constant 0 : index
    %29 = vector.load %arg6[%c0_16, %c0_17] : memref<1x128xf32, #tpu.memory_space<vmem>>, vector<1x128xf32>
    %30 = vector.broadcast %29 : vector<1x128xf32> to vector<256x128xf32>
    %31 = arith.addf %28, %30 : vector<256x128xf32>
    %32 = arith.truncf %31 : vector<256x128xf32> to vector<256x128xbf16>
    %c0_18 = arith.constant 0 : index
    %c0_19 = arith.constant 0 : index
    %33 = vector.load %arg7[%c0_18, %c0_19] : memref<256x128xbf16, #tpu.memory_space<vmem>>, vector<256x128xbf16>
    tpu.vector_store %arg7[%c0_18, %c0_19], %32 {strides = array<i32>} : memref<256x128xbf16, #tpu.memory_space<vmem>>, vector<256x128xbf16>,
    return
  }
  func.func @transform_0(%arg0: i32) -> (i32, i32) {
    %c0_i32 = arith.constant 0 : i32
    %c0_i32_0 = arith.constant 0 : i32
    return %arg0, %c0_i32 : i32, i32
  }
  func.func @transform_1(%arg0: i32) -> (i32, i32) {
    %c0_i32 = arith.constant 0 : i32
    %c0_i32_0 = arith.constant 0 : i32
    return %arg0, %c0_i32 : i32, i32
  }
  func.func @transform_2(%arg0: i32) -> (i32, i32) {
    %c0_i32 = arith.constant 0 : i32
    %c0_i32_0 = arith.constant 0 : i32
    %c0_i32_1 = arith.constant 0 : i32
    return %c0_i32, %c0_i32_0 : i32, i32
  }
  func.func @transform_3(%arg0: i32) -> (i32, i32) {
    %c0_i32 = arith.constant 0 : i32
    %c0_i32_0 = arith.constant 0 : i32
    %c0_i32_1 = arith.constant 0 : i32
    return %c0_i32, %c0_i32_0 : i32, i32
  }
  func.func @transform_4(%arg0: i32) -> (i32, i32) {
    %c0_i32 = arith.constant 0 : i32
    %c0_i32_0 = arith.constant 0 : i32
    %c0_i32_1 = arith.constant 0 : i32
    return %c0_i32, %c0_i32_0 : i32, i32
  }
  func.func @transform_5(%arg0: i32) -> (i32, i32) {
    %c0_i32 = arith.constant 0 : i32
    %c0_i32_0 = arith.constant 0 : i32
    %c0_i32_1 = arith.constant 0 : i32
    return %c0_i32, %c0_i32_0 : i32, i32
  }
  func.func @transform_6(%arg0: i32) -> (i32, i32) {
    %c0_i32 = arith.constant 0 : i32
    %c0_i32_0 = arith.constant 0 : i32
    return %arg0, %c0_i32 : i32, i32
  }
}

</mosaic_0001>

<llo_original>
// kernel: msr_fpn_forward.5
$region0: #{msr_fpn_forward.5}
  #allocation0 [shape = 'u32[]', space=smem, size = 0x4, offset = 0x4, fixed_abs, tag = 'smem constant byte address 0x4 - core index']
  #allocation1 [shape = 'u32[72,128]{1,0:T(1,128)}', space=vmem, size = 0x9000, scoped, tag = 'internal scratch']
  %s0 = inlined_call_operand.vmem [shape: bf16[128,144], index: 0, kind: input, shape index: {}]
  %s1 = inlined_call_operand.hbm [shape: bf16[144,256], index: 1, kind: input, shape index: {}]
  %s2 = inlined_call_operand.hbm [shape: f32[1,256], index: 2, kind: input, shape index: {}]
  %s3 = inlined_call_operand.vmem [shape: bf16[128,256], index: 3, kind: output, shape index: {}]
  %s4 = sld [smem:[#allocation0]]
  $region53: #{msr_fpn_forward.5} parent=0
    _
  %s6 = ssub.s32 1, %s4
  %s7 = scalar_select 0, %s6, %s4
  $region1: #{msr_fpn_forward.5} parent=0
    #allocation2 [shape = 'u8[73728]{0}', space=vmem, size = 0x12000, scoped, tag = 'input window, operand 1, single buffered']
    #allocation3 [shape = 's32[2]{0}', space=sflag, size = 0x8, scoped, tag = 'scoped memory for msr_fpn_forward.5']
    #allocation4 [shape = 'u8[1024]{0}', space=vmem, size = 0x400, scoped, tag = 'input window, operand 2, single buffered']
    #allocation5 [shape = 's32[1]{0}', space=sflag, size = 0x4, scoped, tag = 'scoped memory for msr_fpn_forward.5']
    %8 = vsyncpa [#allocation3], 0
    %9 = vsyncpa [#allocation5], 0
    loop: start=0, step=1, limit=4
    $region2: #{msr_fpn_forward.5} parent=1 // loop_pre_header
      _
    $region3: #{msr_fpn_forward.5} parent=1 // loop_header
      %s11 = sphi 0, %s15
      %p12 = scmp.ge.s32.totalorder %s11, 4
      %s21 = sphi 0, %s23
      %s24 = sphi 0, %s21
      %s25 = sphi 0, %s24
      %s41 = sphi 0, %s25
      %s45 = sphi 0, %s45
      %s47 = sphi 0, %s45
      %s48 = sphi 0, %s47
      %s62 = sphi 0, %s48
      %s66 = sphi 0, %s66
      %s68 = sphi 0, %s66
      %s69 = sphi 0, %s68
      %s83 = sphi 0, %s69
      %s89 = sphi 0, %s91
      %s92 = sphi 0, %s89
      %s93 = sphi 0, %s92
      %s109 = sphi 0, %s93
    $region4: #{msr_fpn_forward.5} parent=1 // loop_header_branch
      %14 = sbr.rel (%p12) target = $region8
    $region5: #{msr_fpn_forward.5} parent=1 // loop_body
      %s16 = ssub.s32 %s11, 1
      %s17 = ssub.s32 %s11, 2
      %s18 = sadd.s32 %s11, 1
      %s19 = ssub.s32 %s11, %s18
      %p20 = scmp.eq.s32.totalorder %s19, 0
      %s22 = sadd.s32 %s21, 1
      %s23 = scalar_select %p20, %s21, %s22
      %p26 = pneg %p20
      %p27 = scmp.eq.s32.totalorder %s11, 1
      %p28 = por %p26, %p27
      %p29 = scmp.ne.s32.totalorder %s21, %s24
      %p30 = scmp.eq.s32.totalorder %s11, 0
      %p31 = por %p29, %p30
      %p32 = scmp.ne.s32.totalorder %s21, %s24
      %p33 = scmp.eq.s32.totalorder %s16, 1
      %p34 = por %p32, %p33
      %p35 = scmp.ne.s32.totalorder %s24, %s25
      %p36 = scmp.eq.s32.totalorder %s16, 0
      %p37 = por %p35, %p36
      %p38 = scmp.ne.s32.totalorder %s24, %s25
      %p39 = scmp.eq.s32.totalorder %s17, 1
      %p40 = por %p38, %p39
      %p42 = scmp.ne.s32.totalorder %s25, %s41
      %p43 = scmp.eq.s32.totalorder %s17, 0
      %p44 = por %p42, %p43
      %s46 = sadd.s32 %s45, 1
      %p49 = scmp.eq.s32.totalorder %s11, 1
      %p50 = scmp.ne.s32.totalorder %s45, %s47
      %p51 = scmp.eq.s32.totalorder %s11, 0
      %p52 = por %p50, %p51
      %p53 = scmp.ne.s32.totalorder %s45, %s47
      %p54 = scmp.eq.s32.totalorder %s16, 1
      %p55 = por %p53, %p54
      %p56 = scmp.ne.s32.totalorder %s47, %s48
      %p57 = scmp.eq.s32.totalorder %s16, 0
      %p58 = por %p56, %p57
      %p59 = scmp.ne.s32.totalorder %s47, %s48
      %p60 = scmp.eq.s32.totalorder %s17, 1
      %p61 = por %p59, %p60
      %p63 = scmp.ne.s32.totalorder %s48, %s62
      %p64 = scmp.eq.s32.totalorder %s17, 0
      %p65 = por %p63, %p64
      %s67 = sadd.s32 %s66, 1
      %p70 = scmp.eq.s32.totalorder %s11, 1
      %p71 = scmp.ne.s32.totalorder %s66, %s68
      %p72 = scmp.eq.s32.totalorder %s11, 0
      %p73 = por %p71, %p72
      %p74 = scmp.ne.s32.totalorder %s66, %s68
      %p75 = scmp.eq.s32.totalorder %s16, 1
      %p76 = por %p74, %p75
      %p77 = scmp.ne.s32.totalorder %s68, %s69
      %p78 = scmp.eq.s32.totalorder %s16, 0
      %p79 = por %p77, %p78
      %p80 = scmp.ne.s32.totalorder %s68, %s69
      %p81 = scmp.eq.s32.totalorder %s17, 1
      %p82 = por %p80, %p81
      %p84 = scmp.ne.s32.totalorder %s69, %s83
      %p85 = scmp.eq.s32.totalorder %s17, 0
      %p86 = por %p84, %p85
      %s87 = ssub.s32 %s11, %s18
      %p88 = scmp.eq.s32.totalorder %s87, 0
      %s90 = sadd.s32 %s89, 1
      %s91 = scalar_select %p88, %s89, %s90
      %p94 = pneg %p88
      %p95 = scmp.eq.s32.totalorder %s11, 1
      %p96 = por %p94, %p95
      %p97 = scmp.ne.s32.totalorder %s89, %s92
      %p98 = scmp.eq.s32.totalorder %s11, 0
      %p99 = por %p97, %p98
      %p100 = scmp.ne.s32.totalorder %s89, %s92
      %p101 = scmp.eq.s32.totalorder %s16, 1
      %p102 = por %p100, %p101
      %p103 = scmp.ne.s32.totalorder %s92, %s93
      %p104 = scmp.eq.s32.totalorder %s16, 0
      %p105 = por %p103, %p104
      %p106 = scmp.ne.s32.totalorder %s92, %s93
      %p107 = scmp.eq.s32.totalorder %s17, 1
      %p108 = por %p106, %p107
      %p110 = scmp.ne.s32.totalorder %s93, %s109
      %p111 = scmp.eq.s32.totalorder %s17, 0
      %p112 = por %p110, %p111
      %p113 = scmp.le.s32.totalorder 1, %s11
      %p114 = scmp.lt.s32.totalorder %s11, 3
      %p115 = pnand %p113, %p114
      %p116 = pneg %p115
      // Predicated region
      $region9: #{msr_fpn_forward.5} parent=5 // pred_check
        _
      $region10: #{msr_fpn_forward.5} parent=5 // pred_check_branch
        %118 = sbr.rel (%p115) target = $region12
      $region11: #{msr_fpn_forward.5} parent=5 // pred_region
        %s119 = ssub.s32 %s11, 1
        // Predicated region
        $region13: #{msr_fpn_forward.5} parent=11 // pred_check
          %p120 = pneg %p58
        $region14: #{msr_fpn_forward.5} parent=11 // pred_check_branch
          %122 = sbr.rel (%p120) target = $region16
        $region15: #{msr_fpn_forward.5} parent=11 // pred_region
          %124 = vsyncadd [#allocation3], 0
          %s125 = sshll.u32 %s1, 4
          %s126 = int_to_ptr.hbm [resolvable:$true] %s125
          %s127 = sshll.u32 [#allocation2], 4
          %s128 = int_to_ptr.vmem [resolvable:$true] %s127
          %133 = dma.hbm_to_vmem [thread:$0]  %s126, 2304, %s128, [#allocation3], 128, 128, 8
        $region16: #{msr_fpn_forward.5} parent=11 // pred_fallthru
          _
        // Predicated region
        $region17: #{msr_fpn_forward.5} parent=11 // pred_check
          %p134 = pneg %p79
        $region18: #{msr_fpn_forward.5} parent=11 // pred_check_branch
          %136 = sbr.rel (%p134) target = $region20
        $region19: #{msr_fpn_forward.5} parent=11 // pred_region
          %138 = vsyncadd [#allocation5], 0
          %s140 = sshll.u32 %s2, 4
          %s141 = int_to_ptr.hbm [resolvable:$true] %s140
          %s142 = sshll.u32 [#allocation4], 4
          %s143 = int_to_ptr.vmem [resolvable:$true] %s142
          %145 = dma.hbm_to_vmem [thread:$0]  %s141, 32, %s143, [#allocation5]
        $region20: #{msr_fpn_forward.5} parent=11 // pred_fallthru
          _
      $region12: #{msr_fpn_forward.5} parent=5 // pred_fallthru
        _
      %p146 = scmp.lt.s32.totalorder %s11, 2
      // Predicated region
      $region21: #{msr_fpn_forward.5} parent=5 // pred_check
        %p147 = pneg %p146
      $region22: #{msr_fpn_forward.5} parent=5 // pred_check_branch
        %149 = sbr.rel (%p147) target = $region24
      $region23: #{msr_fpn_forward.5} parent=5 // pred_region
        // Predicated region
        $region25: #{msr_fpn_forward.5} parent=23 // pred_check
          %p150 = pneg %p31
        $region26: #{msr_fpn_forward.5} parent=23 // pred_check_branch
          %152 = sbr.rel (%p150) target = $region28
        $region27: #{msr_fpn_forward.5} parent=23 // pred_region
          %s153 = smul.u32 8, %s11
          %p154 = scmp.lt.s32.totalorder %s153, 15
          %s155 = scalar_select %p154, %s153, 15
          %s156 = smul.addr %s155, 2
          %s157 = smul.addr %s156, 4
          %s158 = scalar_lea.vmem %s0, %s157
          %s159 = smul.u32 8, %s11
        $region28: #{msr_fpn_forward.5} parent=23 // pred_fallthru
          _
      $region24: #{msr_fpn_forward.5} parent=5 // pred_fallthru
        _
      %p160 = scmp.le.s32.totalorder 1, %s11
      %p161 = scmp.lt.s32.totalorder %s11, 3
      %p162 = pnand %p160, %p161
      %p163 = pneg %p162
      // Predicated region
      $region29: #{msr_fpn_forward.5} parent=5 // pred_check
        _
      $region30: #{msr_fpn_forward.5} parent=5 // pred_check_branch
        %165 = sbr.rel (%p162) target = $region32
      $region31: #{msr_fpn_forward.5} parent=5 // pred_region
        %s166 = ssub.s32 %s11, 1
        // Predicated region
        $region33: #{msr_fpn_forward.5} parent=31 // pred_check
          %p167 = pneg %p58
        $region34: #{msr_fpn_forward.5} parent=31 // pred_check_branch
          %169 = sbr.rel (%p167) target = $region36
        $region35: #{msr_fpn_forward.5} parent=31 // pred_region
          %171 = dma.done [#allocation3], 2304
        $region36: #{msr_fpn_forward.5} parent=31 // pred_fallthru
          _
        // Predicated region
        $region37: #{msr_fpn_forward.5} parent=31 // pred_check
          %p172 = pneg %p79
        $region38: #{msr_fpn_forward.5} parent=31 // pred_check_branch
          %174 = sbr.rel (%p172) target = $region40
        $region39: #{msr_fpn_forward.5} parent=31 // pred_region
          %176 = dma.done [#allocation5], 32
        $region40: #{msr_fpn_forward.5} parent=31 // pred_fallthru
          _
        %s177 = smul.u32 8, %s16
        %p178 = scmp.lt.s32.totalorder %s177, 15
        %s179 = scalar_select %p178, %s177, 15
        %s180 = smul.addr %s179, 2
        %s181 = smul.addr %s180, 4
        %s182 = scalar_lea.vmem %s0, %s181
        %p183 = pneg %p37
        %p184 = pneg %p34
        %p185 = pneg %p58
        %p186 = pneg %p55
        %p187 = pneg %p79
        %p188 = pneg %p76
        %p189 = pneg %p105
        %p190 = pneg %p102
        %s191 = smul.u32 8, %s16
        %p192 = scmp.lt.s32.totalorder %s191, 15
        %s193 = scalar_select %p192, %s191, 15
        %s194 = smul.addr %s193, 2
        %s195 = smul.addr %s194, 4
        %s196 = scalar_lea.vmem %s3, %s195
        %s197 = smul.u32 8, %s16
        %p198 = scmp.lt.s32.totalorder %s197, 15
        %s199 = scalar_select %p198, %s197, 15
        %s200 = smul.addr %s199, 2
        %s201 = smul.addr %s200, 4
        %s202 = scalar_lea.vmem %s0, %s201
        %s203 = smul.u32 8, %s16
        %s204 = smul.u32 8, %s16
        %p205 = scmp.lt.s32.totalorder %s204, 15
        %s206 = scalar_select %p205, %s204, 15
        %s207 = smul.addr %s206, 2
        %s208 = smul.addr %s207, 4
        %s209 = scalar_lea.vmem %s3, %s208
        %s210 = smul.u32 8, %s16
        %v212 = vld [vmem:[#allocation2] sm:$0xff]
        %v213 = vld [vmem:[#allocation2 + $0x8] sm:$0xff]
        %v214 = vld [vmem:[#allocation2 + $0x10] sm:$0xff]
        %v215 = vld [vmem:[#allocation2 + $0x18] sm:$0xff]
        %v216 = vld [vmem:[#allocation2 + $0x20] sm:$0xff]
        %v217 = vld [vmem:[#allocation2 + $0x28] sm:$0xff]
        %v218 = vld [vmem:[#allocation2 + $0x30] sm:$0xff]
        %v219 = vld [vmem:[#allocation2 + $0x38] sm:$0xff]
        %v220 = vld [vmem:[#allocation2 + $0x40] sm:$0xff]
        %v221 = vld [vmem:[#allocation2 + $0x48] sm:$0xff]
        %v222 = vld [vmem:[#allocation2 + $0x50] sm:$0xff]
        %v223 = vld [vmem:[#allocation2 + $0x58] sm:$0xff]
        %v224 = vld [vmem:[#allocation2 + $0x60] sm:$0xff]
        %v225 = vld [vmem:[#allocation2 + $0x68] sm:$0xff]
        %v226 = vld [vmem:[#allocation2 + $0x70] sm:$0xff]
        %v227 = vld [vmem:[#allocation2 + $0x78] sm:$0xff]
        %v228 = vld [vmem:[#allocation2 + $0x80] sm:$0xff]
        %v229 = vld [vmem:[#allocation2 + $0x88] sm:$0xff]
        %v230 = vld [vmem:[%s202] sm:$0xff]
        %v231 = vld [vmem:[%s202 + $0x8] sm:$0xff]
        %v232 = vld [vmem:[%s202 + $0x10] sm:$0xff]
        %v233 = vld [vmem:[%s202 + $0x18] sm:$0xff]
        %v234 = vld [vmem:[%s202 + $0x20] sm:$0xff]
        %v235 = vld [vmem:[%s202 + $0x28] sm:$0xff]
        %v236 = vld [vmem:[%s202 + $0x30] sm:$0xff]
        %v237 = vld [vmem:[%s202 + $0x38] sm:$0xff]
        %v238 = vld [vmem:[#allocation4] sm:$0x3]
        %v240 = vperm.slane %v238, 0
        %v241 = vperm.slane %v238, 1
        %v252 = vunpack.c.l.b16 %v230
        %v253 = vunpack.c.h.b16 %v230
        %v254 = vunpack.c.l.b16 %v231
        %v255 = vunpack.c.h.b16 %v231
        %v256 = vunpack.c.l.b16 %v232
        %v257 = vunpack.c.h.b16 %v232
        %v258 = vunpack.c.l.b16 %v233
        %v259 = vunpack.c.h.b16 %v233
        %v260 = vunpack.c.l.b16 %v234
        %v261 = vunpack.c.h.b16 %v234
        %v262 = vunpack.c.l.b16 %v235
        %v263 = vunpack.c.h.b16 %v235
        %v264 = vunpack.c.l.b16 %v236
        %v265 = vunpack.c.h.b16 %v236
        %v266 = vunpack.c.l.b16 %v237
        %v267 = vunpack.c.h.b16 %v237
        %v268 = vpack.c.b16 %v254, %v252
        %v269 = vpack.c.b16 %v255, %v253
        %v270 = vpack.c.b16 %v258, %v256
        %v271 = vpack.c.b16 %v259, %v257
        %v272 = vpack.c.b16 %v262, %v260
        %v273 = vpack.c.b16 %v263, %v261
        %v274 = vpack.c.b16 %v266, %v264
        %v275 = vpack.c.b16 %v267, %v265
        %v298 = vunpack.c.l.b16 %v212
        %v299 = vunpack.c.h.b16 %v212
        %v300 = vunpack.c.l.b16 %v213
        %v301 = vunpack.c.h.b16 %v213
        %v302 = vunpack.c.l.b16 %v214
        %v303 = vunpack.c.h.b16 %v214
        %v304 = vunpack.c.l.b16 %v215
        %v305 = vunpack.c.h.b16 %v215
        %v306 = vunpack.c.l.b16 %v216
        %v307 = vunpack.c.h.b16 %v216
        %v308 = vunpack.c.l.b16 %v217
        %v309 = vunpack.c.h.b16 %v217
        %v310 = vunpack.c.l.b16 %v218
        %v311 = vunpack.c.h.b16 %v218
        %v312 = vunpack.c.l.b16 %v219
        %v313 = vunpack.c.h.b16 %v219
        %v314 = vunpack.c.l.b16 %v220
        %v315 = vunpack.c.h.b16 %v220
        %v316 = vunpack.c.l.b16 %v221
        %v317 = vunpack.c.h.b16 %v221
        %v318 = vunpack.c.l.b16 %v222
        %v319 = vunpack.c.h.b16 %v222
        %v320 = vunpack.c.l.b16 %v223
        %v321 = vunpack.c.h.b16 %v223
        %v322 = vunpack.c.l.b16 %v224
        %v323 = vunpack.c.h.b16 %v224
        %v324 = vunpack.c.l.b16 %v225
        %v325 = vunpack.c.h.b16 %v225
        %v326 = vunpack.c.l.b16 %v226
        %v327 = vunpack.c.h.b16 %v226
        %v328 = vunpack.c.l.b16 %v227
        %v329 = vunpack.c.h.b16 %v227
        %v330 = vunpack.c.l.b16 %v228
        %v331 = vunpack.c.h.b16 %v228
        %v332 = vunpack.c.l.b16 %v229
        %v333 = vunpack.c.h.b16 %v229
        %v334 = vpack.c.b16 %v300, %v298
        %v335 = vpack.c.b16 %v301, %v299
        %v336 = vpack.c.b16 %v304, %v302
        %v337 = vpack.c.b16 %v305, %v303
        %v338 = vpack.c.b16 %v308, %v306
        %v339 = vpack.c.b16 %v309, %v307
        %v340 = vpack.c.b16 %v312, %v310
        %v341 = vpack.c.b16 %v313, %v311
        %v342 = vpack.c.b16 %v316, %v314
        %v343 = vpack.c.b16 %v317, %v315
        %v344 = vpack.c.b16 %v320, %v318
        %v345 = vpack.c.b16 %v321, %v319
        %v346 = vpack.c.b16 %v324, %v322
        %v347 = vpack.c.b16 %v325, %v323
        %v348 = vpack.c.b16 %v328, %v326
        %v349 = vpack.c.b16 %v329, %v327
        %v350 = vpack.c.b16 %v332, %v330
        %v351 = vpack.c.b16 %v333, %v331
        %vm370 = vcmask 130048
        %v372 = vsel %vm370, %v269, 0
        %v375 = vsel %vm370, %v271, 0
        %v378 = vsel %vm370, %v273, 0
        %v381 = vsel %vm370, %v275, 0
        %383 = vmatpush.bf16.msra.mxu0 %v348
        %384 = vmatpush.bf16.msra.mxu0 %v346
        %385 = vmatpush.bf16.msra.mxu0 %v344
        %386 = vmatpush.bf16.msra.mxu0 %v342
        %387 = vmatpush.bf16.msra.mxu0 %v340
        %388 = vmatpush.bf16.msra.mxu0 %v338
        %389 = vmatpush.bf16.msra.mxu0 %v336
        %390 = vmatpush.bf16.msra.mxu0 %v334
        %391 = vmatmul.bf16.gmra.mxu0 %v268
        %v392 = vpop.f32.mrf.mxu0
        %v393 = vadd.f32 %v240, %v392
        %v394 = vpop.f32.mrf.mxu0
        %v395 = vadd.f32 %v240, %v394
        %396 = vmatmul.bf16.gmra.mxu0 %v270
        %v397 = vpop.f32.mrf.mxu0
        %v398 = vadd.f32 %v240, %v397
        %v399 = vpop.f32.mrf.mxu0
        %v400 = vadd.f32 %v240, %v399
        %401 = vmatmul.bf16.gmra.mxu0 %v272
        %v402 = vpop.f32.mrf.mxu0
        %v403 = vadd.f32 %v240, %v402
        %v404 = vpop.f32.mrf.mxu0
        %v405 = vadd.f32 %v240, %v404
        %406 = vmatmul.bf16.gmra.mxu0 %v274
        %v407 = vpop.f32.mrf.mxu0
        %v408 = vadd.f32 %v240, %v407
        %v409 = vpop.f32.mrf.mxu0
        %v410 = vadd.f32 %v240, %v409
        %411 = vdwg.mxu0
        %412 = vmatpush.bf16.msra.mxu0 0
        %413 = vmatpush.bf16.msra.mxu0 0
        %414 = vmatpush.bf16.msra.mxu0 0
        %415 = vmatpush.bf16.msra.mxu0 0
        %416 = vmatpush.bf16.msra.mxu0 0
        %417 = vmatpush.bf16.msra.mxu0 0
        %418 = vmatpush.bf16.msra.mxu0 0
        %419 = vmatpush.bf16.msra.mxu0 %v350
        %420 = vmatmul.bf16.gmra.mxu0 %v372
        %v421 = vpop.f32.mrf.mxu0
        %v422 = vadd.f32 %v393, %v421
        %v423 = vpop.f32.mrf.mxu0
        %v424 = vadd.f32 %v395, %v423
        %425 = vmatmul.bf16.gmra.mxu0 %v375
        %v426 = vpop.f32.mrf.mxu0
        %v427 = vadd.f32 %v398, %v426
        %v428 = vpop.f32.mrf.mxu0
        %v429 = vadd.f32 %v400, %v428
        %430 = vmatmul.bf16.gmra.mxu0 %v378
        %v431 = vpop.f32.mrf.mxu0
        %v432 = vadd.f32 %v403, %v431
        %v433 = vpop.f32.mrf.mxu0
        %v434 = vadd.f32 %v405, %v433
        %435 = vmatmul.bf16.gmra.mxu0 %v381
        %v436 = vpop.f32.mrf.mxu0
        %v437 = vadd.f32 %v408, %v436
        %v438 = vpop.f32.mrf.mxu0
        %v439 = vadd.f32 %v410, %v438
        %440 = vdwg.mxu0
        %441 = vmatpush.bf16.msra.mxu0 %v349
        %442 = vmatpush.bf16.msra.mxu0 %v347
        %443 = vmatpush.bf16.msra.mxu0 %v345
        %444 = vmatpush.bf16.msra.mxu0 %v343
        %445 = vmatpush.bf16.msra.mxu0 %v341
        %446 = vmatpush.bf16.msra.mxu0 %v339
        %447 = vmatpush.bf16.msra.mxu0 %v337
        %448 = vmatpush.bf16.msra.mxu0 %v335
        %449 = vmatmul.bf16.gmra.mxu0 %v268
        %v450 = vpop.f32.mrf.mxu0
        %v451 = vadd.f32 %v241, %v450
        %v452 = vpop.f32.mrf.mxu0
        %v453 = vadd.f32 %v241, %v452
        %454 = vmatmul.bf16.gmra.mxu0 %v270
        %v455 = vpop.f32.mrf.mxu0
        %v456 = vadd.f32 %v241, %v455
        %v457 = vpop.f32.mrf.mxu0
        %v458 = vadd.f32 %v241, %v457
        %459 = vmatmul.bf16.gmra.mxu0 %v272
        %v460 = vpop.f32.mrf.mxu0
        %v461 = vadd.f32 %v241, %v460
        %v462 = vpop.f32.mrf.mxu0
        %v463 = vadd.f32 %v241, %v462
        %464 = vmatmul.bf16.gmra.mxu0 %v274
        %v465 = vpop.f32.mrf.mxu0
        %v466 = vadd.f32 %v241, %v465
        %v467 = vpop.f32.mrf.mxu0
        %v468 = vadd.f32 %v241, %v467
        %469 = vdwg.mxu0
        %470 = vmatpush.bf16.msra.mxu0 0
        %471 = vmatpush.bf16.msra.mxu0 0
        %472 = vmatpush.bf16.msra.mxu0 0
        %473 = vmatpush.bf16.msra.mxu0 0
        %474 = vmatpush.bf16.msra.mxu0 0
        %475 = vmatpush.bf16.msra.mxu0 0
        %476 = vmatpush.bf16.msra.mxu0 0
        %477 = vmatpush.bf16.msra.mxu0 %v351
        %478 = vmatmul.bf16.gmra.mxu0 %v372
        %v479 = vpop.f32.mrf.mxu0
        %v480 = vadd.f32 %v451, %v479
        %v481 = vpop.f32.mrf.mxu0
        %v482 = vadd.f32 %v453, %v481
        %483 = vmatmul.bf16.gmra.mxu0 %v375
        %v484 = vpop.f32.mrf.mxu0
        %v485 = vadd.f32 %v456, %v484
        %v486 = vpop.f32.mrf.mxu0
        %v487 = vadd.f32 %v458, %v486
        %488 = vmatmul.bf16.gmra.mxu0 %v378
        %v489 = vpop.f32.mrf.mxu0
        %v490 = vadd.f32 %v461, %v489
        %v491 = vpop.f32.mrf.mxu0
        %v492 = vadd.f32 %v463, %v491
        %493 = vmatmul.bf16.gmra.mxu0 %v381
        %v494 = vpop.f32.mrf.mxu0
        %v495 = vadd.f32 %v466, %v494
        %v496 = vpop.f32.mrf.mxu0
        %v497 = vadd.f32 %v468, %v496
        %498 = vdwg.mxu0
        %vm499 = vcmp.gt.f32.partialorder %v422, 0.0
        %vm500 = vcmp.gt.f32.partialorder %v480, 0.0
        %vm501 = vcmp.gt.f32.partialorder %v424, 0.0
        %vm502 = vcmp.gt.f32.partialorder %v482, 0.0
        %vm503 = vcmp.gt.f32.partialorder %v427, 0.0
        %vm504 = vcmp.gt.f32.partialorder %v485, 0.0
        %vm505 = vcmp.gt.f32.partialorder %v429, 0.0
        %vm506 = vcmp.gt.f32.partialorder %v487, 0.0
        %vm507 = vcmp.gt.f32.partialorder %v432, 0.0
        %vm508 = vcmp.gt.f32.partialorder %v490, 0.0
        %vm509 = vcmp.gt.f32.partialorder %v434, 0.0
        %vm510 = vcmp.gt.f32.partialorder %v492, 0.0
        %vm511 = vcmp.gt.f32.partialorder %v437, 0.0
        %vm512 = vcmp.gt.f32.partialorder %v495, 0.0
        %vm513 = vcmp.gt.f32.partialorder %v439, 0.0
        %vm514 = vcmp.gt.f32.partialorder %v497, 0.0
        %v515 = vmul.f32 %v422, 0.1
        %v516 = vmul.f32 %v480, 0.1
        %v517 = vmul.f32 %v424, 0.1
        %v518 = vmul.f32 %v482, 0.1
        %v519 = vmul.f32 %v427, 0.1
        %v520 = vmul.f32 %v485, 0.1
        %v521 = vmul.f32 %v429, 0.1
        %v522 = vmul.f32 %v487, 0.1
        %v523 = vmul.f32 %v432, 0.1
        %v524 = vmul.f32 %v490, 0.1
        %v525 = vmul.f32 %v434, 0.1
        %v526 = vmul.f32 %v492, 0.1
        %v527 = vmul.f32 %v437, 0.1
        %v528 = vmul.f32 %v495, 0.1
        %v529 = vmul.f32 %v439, 0.1
        %v530 = vmul.f32 %v497, 0.1
        %v531 = vsel %vm499, %v422, %v515
        %v532 = vsel %vm500, %v480, %v516
        %v533 = vsel %vm501, %v424, %v517
        %v534 = vsel %vm502, %v482, %v518
        %v535 = vsel %vm503, %v427, %v519
        %v536 = vsel %vm504, %v485, %v520
        %v537 = vsel %vm505, %v429, %v521
        %v538 = vsel %vm506, %v487, %v522
        %v539 = vsel %vm507, %v432, %v523
        %v540 = vsel %vm508, %v490, %v524
        %v541 = vsel %vm509, %v434, %v525
        %v542 = vsel %vm510, %v492, %v526
        %v543 = vsel %vm511, %v437, %v527
        %v544 = vsel %vm512, %v495, %v528
        %v545 = vsel %vm513, %v439, %v529
        %v546 = vsel %vm514, %v497, %v530
        %v547 = vpack.c.bf16 %v532, %v531
        %v548 = vpack.c.bf16 %v534, %v533
        %v549 = vpack.c.bf16 %v536, %v535
        %v550 = vpack.c.bf16 %v538, %v537
        %v551 = vpack.c.bf16 %v540, %v539
        %v552 = vpack.c.bf16 %v542, %v541
        %v553 = vpack.c.bf16 %v544, %v543
        %v554 = vpack.c.bf16 %v546, %v545
        %555 = vst [vmem:[%s209] sm:$0xff] %v547
        %556 = vst [vmem:[%s209 + $0x8] sm:$0xff] %v548
        %557 = vst [vmem:[%s209 + $0x10] sm:$0xff] %v549
        %558 = vst [vmem:[%s209 + $0x18] sm:$0xff] %v550
        %559 = vst [vmem:[%s209 + $0x20] sm:$0xff] %v551
        %560 = vst [vmem:[%s209 + $0x28] sm:$0xff] %v552
        %561 = vst [vmem:[%s209 + $0x30] sm:$0xff] %v553
        %562 = vst [vmem:[%s209 + $0x38] sm:$0xff] %v554
        %s563 = smul.u32 8, %s16
        %p564 = scmp.lt.s32.totalorder %s563, 15
        %s565 = scalar_select %p564, %s563, 15
        %s566 = smul.addr %s565, 2
        %s567 = smul.addr %s566, 4
        %s568 = scalar_lea.vmem %s3, %s567
        // Predicated region
        $region41: #{msr_fpn_forward.5} parent=31 // pred_check
          %p569 = pneg %p102
        $region42: #{msr_fpn_forward.5} parent=31 // pred_check_branch
          %571 = sbr.rel (%p569) target = $region44
        $region43: #{msr_fpn_forward.5} parent=31 // pred_region
          %s572 = smul.u32 8, %s16
        $region44: #{msr_fpn_forward.5} parent=31 // pred_fallthru
          _
      $region32: #{msr_fpn_forward.5} parent=5 // pred_fallthru
        _
      %p573 = scmp.le.s32.totalorder 2, %s11
      // Predicated region
      $region45: #{msr_fpn_forward.5} parent=5 // pred_check
        %p574 = pneg %p573
      $region46: #{msr_fpn_forward.5} parent=5 // pred_check_branch
        %576 = sbr.rel (%p574) target = $region48
      $region47: #{msr_fpn_forward.5} parent=5 // pred_region
        %s577 = ssub.s32 %s11, 2
        // Predicated region
        $region49: #{msr_fpn_forward.5} parent=47 // pred_check
          %p578 = pneg %p108
        $region50: #{msr_fpn_forward.5} parent=47 // pred_check_branch
          %580 = sbr.rel (%p578) target = $region52
        $region51: #{msr_fpn_forward.5} parent=47 // pred_region
          %s581 = smul.u32 8, %s17
          %p582 = scmp.lt.s32.totalorder %s581, 15
          %s583 = scalar_select %p582, %s581, 15
          %s584 = smul.addr %s583, 2
          %s585 = smul.addr %s584, 4
          %s586 = scalar_lea.vmem %s3, %s585
        $region52: #{msr_fpn_forward.5} parent=47 // pred_fallthru
          _
      $region48: #{msr_fpn_forward.5} parent=5 // pred_fallthru
        _
    $region6: #{msr_fpn_forward.5} parent=1 // loop_footer
      %s15 = sadd.s32 1, %s11
    $region7: #{msr_fpn_forward.5} parent=1 // loop_footer_branch
      %10 = sbr.rel target = $region3
    $region8: #{msr_fpn_forward.5} parent=1 // loop_exit
      _
    %587 = vsyncpa [#allocation3], 1
    %s588 = scalar_lea.sflag [#allocation3], 1
    %589 = vsyncpa %s588, 1
    %590 = vsyncpa [#allocation5], 1

// kernel: msr_fpn_forward.8
$region0: #{msr_fpn_forward.8}
  #allocation0 [shape = 'u32[]', space=smem, size = 0x4, offset = 0x4, fixed_abs, tag = 'smem constant byte address 0x4 - core index']
  #allocation1 [shape = 'u32[72,128]{1,0:T(1,128)}', space=vmem, size = 0x9000, scoped, tag = 'internal scratch']
  %s0 = inlined_call_operand.vmem [shape: f32[128,256], index: 0, kind: input, shape index: {}]
  %s1 = inlined_call_operand.vmem [shape: bf16[128,288], index: 1, kind: input, shape index: {}]
  %s2 = inlined_call_operand.vmem [shape: bf16[288,256], index: 2, kind: input, shape index: {}]
  %s3 = inlined_call_operand.vmem [shape: f32[1,256], index: 3, kind: input, shape index: {}]
  %s4 = inlined_call_operand.vmem [shape: bf16[256,128], index: 4, kind: input, shape index: {}]
  %s5 = inlined_call_operand.vmem [shape: f32[1,128], index: 5, kind: input, shape index: {}]
  %s6 = inlined_call_operand.vmem [shape: bf16[128,128], index: 6, kind: input, shape index: {}]
  %s7 = inlined_call_operand.vmem [shape: bf16[256,128], index: 7, kind: input, shape index: {}]
  %s8 = inlined_call_operand.vmem [shape: f32[1,128], index: 8, kind: input, shape index: {}]
  %s9 = inlined_call_operand.vmem [shape: f32[128,128], index: 9, kind: output, shape index: {0}]
  %s10 = inlined_call_operand.vmem [shape: bf16[128,128], index: 10, kind: output, shape index: {1}]
  %11 = xla_tuple %s9, %s10
  %s12 = sld [smem:[#allocation0]]
  $region77: #{msr_fpn_forward.8} parent=0
    _
  %s14 = ssub.s32 1, %s12
  %s15 = scalar_select 0, %s14, %s12
  loop: start=0, step=1, limit=4
  $region2: #{msr_fpn_forward.8} parent=0 // loop_pre_header
    _
  $region3: #{msr_fpn_forward.8} parent=0 // loop_header
    %s17 = sphi 0, %s21
    %p18 = scmp.ge.s32.totalorder %s17, 4
    %s27 = sphi 0, %s29
    %s30 = sphi 0, %s27
    %s31 = sphi 0, %s30
    %s47 = sphi 0, %s31
    %s53 = sphi 0, %s55
    %s56 = sphi 0, %s53
    %s57 = sphi 0, %s56
    %s73 = sphi 0, %s57
    %s77 = sphi 0, %s77
    %s79 = sphi 0, %s77
    %s80 = sphi 0, %s79
    %s94 = sphi 0, %s80
    %s98 = sphi 0, %s98
    %s100 = sphi 0, %s98
    %s101 = sphi 0, %s100
    %s115 = sphi 0, %s101
    %s119 = sphi 0, %s119
    %s121 = sphi 0, %s119
    %s122 = sphi 0, %s121
    %s136 = sphi 0, %s122
    %s140 = sphi 0, %s140
    %s142 = sphi 0, %s140
    %s143 = sphi 0, %s142
    %s157 = sphi 0, %s143
    %s161 = sphi 0, %s161
    %s163 = sphi 0, %s161
    %s164 = sphi 0, %s163
    %s178 = sphi 0, %s164
    %s182 = sphi 0, %s182
    %s184 = sphi 0, %s182
    %s185 = sphi 0, %s184
    %s199 = sphi 0, %s185
    %s203 = sphi 0, %s203
    %s205 = sphi 0, %s203
    %s206 = sphi 0, %s205
    %s220 = sphi 0, %s206
    %s226 = sphi 0, %s228
    %s229 = sphi 0, %s226
    %s230 = sphi 0, %s229
    %s246 = sphi 0, %s230
    %s252 = sphi 0, %s254
    %s255 = sphi 0, %s252
    %s256 = sphi 0, %s255
    %s272 = sphi 0, %s256
  $region4: #{msr_fpn_forward.8} parent=0 // loop_header_branch
    %20 = sbr.rel (%p18) target = $region8
  $region5: #{msr_fpn_forward.8} parent=0 // loop_body
    %s22 = ssub.s32 %s17, 1
    %s23 = ssub.s32 %s17, 2
    %s24 = sadd.s32 %s17, 1
    %s25 = ssub.s32 %s17, %s24
    %p26 = scmp.eq.s32.totalorder %s25, 0
    %s28 = sadd.s32 %s27, 1
    %s29 = scalar_select %p26, %s27, %s28
    %p32 = pneg %p26
    %p33 = scmp.eq.s32.totalorder %s17, 1
    %p34 = por %p32, %p33
    %p35 = scmp.ne.s32.totalorder %s27, %s30
    %p36 = scmp.eq.s32.totalorder %s17, 0
    %p37 = por %p35, %p36
    %p38 = scmp.ne.s32.totalorder %s27, %s30
    %p39 = scmp.eq.s32.totalorder %s22, 1
    %p40 = por %p38, %p39
    %p41 = scmp.ne.s32.totalorder %s30, %s31
    %p42 = scmp.eq.s32.totalorder %s22, 0
    %p43 = por %p41, %p42
    %p44 = scmp.ne.s32.totalorder %s30, %s31
    %p45 = scmp.eq.s32.totalorder %s23, 1
    %p46 = por %p44, %p45
    %p48 = scmp.ne.s32.totalorder %s31, %s47
    %p49 = scmp.eq.s32.totalorder %s23, 0
    %p50 = por %p48, %p49
    %s51 = ssub.s32 %s17, %s24
    %p52 = scmp.eq.s32.totalorder %s51, 0
    %s54 = sadd.s32 %s53, 1
    %s55 = scalar_select %p52, %s53, %s54
    %p58 = pneg %p52
    %p59 = scmp.eq.s32.totalorder %s17, 1
    %p60 = por %p58, %p59
    %p61 = scmp.ne.s32.totalorder %s53, %s56
    %p62 = scmp.eq.s32.totalorder %s17, 0
    %p63 = por %p61, %p62
    %p64 = scmp.ne.s32.totalorder %s53, %s56
    %p65 = scmp.eq.s32.totalorder %s22, 1
    %p66 = por %p64, %p65
    %p67 = scmp.ne.s32.totalorder %s56, %s57
    %p68 = scmp.eq.s32.totalorder %s22, 0
    %p69 = por %p67, %p68
    %p70 = scmp.ne.s32.totalorder %s56, %s57
    %p71 = scmp.eq.s32.totalorder %s23, 1
    %p72 = por %p70, %p71
    %p74 = scmp.ne.s32.totalorder %s57, %s73
    %p75 = scmp.eq.s32.totalorder %s23, 0
    %p76 = por %p74, %p75
    %s78 = sadd.s32 %s77, 1
    %p81 = scmp.eq.s32.totalorder %s17, 1
    %p82 = scmp.ne.s32.totalorder %s77, %s79
    %p83 = scmp.eq.s32.totalorder %s17, 0
    %p84 = por %p82, %p83
    %p85 = scmp.ne.s32.totalorder %s77, %s79
    %p86 = scmp.eq.s32.totalorder %s22, 1
    %p87 = por %p85, %p86
    %p88 = scmp.ne.s32.totalorder %s79, %s80
    %p89 = scmp.eq.s32.totalorder %s22, 0
    %p90 = por %p88, %p89
    %p91 = scmp.ne.s32.totalorder %s79, %s80
    %p92 = scmp.eq.s32.totalorder %s23, 1
    %p93 = por %p91, %p92
    %p95 = scmp.ne.s32.totalorder %s80, %s94
    %p96 = scmp.eq.s32.totalorder %s23, 0
    %p97 = por %p95, %p96
    %s99 = sadd.s32 %s98, 1
    %p102 = scmp.eq.s32.totalorder %s17, 1
    %p103 = scmp.ne.s32.totalorder %s98, %s100
    %p104 = scmp.eq.s32.totalorder %s17, 0
    %p105 = por %p103, %p104
    %p106 = scmp.ne.s32.totalorder %s98, %s100
    %p107 = scmp.eq.s32.totalorder %s22, 1
    %p108 = por %p106, %p107
    %p109 = scmp.ne.s32.totalorder %s100, %s101
    %p110 = scmp.eq.s32.totalorder %s22, 0
    %p111 = por %p109, %p110
    %p112 = scmp.ne.s32.totalorder %s100, %s101
    %p113 = scmp.eq.s32.totalorder %s23, 1
    %p114 = por %p112, %p113
    %p116 = scmp.ne.s32.totalorder %s101, %s115
    %p117 = scmp.eq.s32.totalorder %s23, 0
    %p118 = por %p116, %p117
    %s120 = sadd.s32 %s119, 1
    %p123 = scmp.eq.s32.totalorder %s17, 1
    %p124 = scmp.ne.s32.totalorder %s119, %s121
    %p125 = scmp.eq.s32.totalorder %s17, 0
    %p126 = por %p124, %p125
    %p127 = scmp.ne.s32.totalorder %s119, %s121
    %p128 = scmp.eq.s32.totalorder %s22, 1
    %p129 = por %p127, %p128
    %p130 = scmp.ne.s32.totalorder %s121, %s122
    %p131 = scmp.eq.s32.totalorder %s22, 0
    %p132 = por %p130, %p131
    %p133 = scmp.ne.s32.totalorder %s121, %s122
    %p134 = scmp.eq.s32.totalorder %s23, 1
    %p135 = por %p133, %p134
    %p137 = scmp.ne.s32.totalorder %s122, %s136
    %p138 = scmp.eq.s32.totalorder %s23, 0
    %p139 = por %p137, %p138
    %s141 = sadd.s32 %s140, 1
    %p144 = scmp.eq.s32.totalorder %s17, 1
    %p145 = scmp.ne.s32.totalorder %s140, %s142
    %p146 = scmp.eq.s32.totalorder %s17, 0
    %p147 = por %p145, %p146
    %p148 = scmp.ne.s32.totalorder %s140, %s142
    %p149 = scmp.eq.s32.totalorder %s22, 1
    %p150 = por %p148, %p149
    %p151 = scmp.ne.s32.totalorder %s142, %s143
    %p152 = scmp.eq.s32.totalorder %s22, 0
    %p153 = por %p151, %p152
    %p154 = scmp.ne.s32.totalorder %s142, %s143
    %p155 = scmp.eq.s32.totalorder %s23, 1
    %p156 = por %p154, %p155
    %p158 = scmp.ne.s32.totalorder %s143, %s157
    %p159 = scmp.eq.s32.totalorder %s23, 0
    %p160 = por %p158, %p159
    %s162 = sadd.s32 %s161, 1
    %p165 = scmp.eq.s32.totalorder %s17, 1
    %p166 = scmp.ne.s32.totalorder %s161, %s163
    %p167 = scmp.eq.s32.totalorder %s17, 0
    %p168 = por %p166, %p167
    %p169 = scmp.ne.s32.totalorder %s161, %s163
    %p170 = scmp.eq.s32.totalorder %s22, 1
    %p171 = por %p169, %p170
    %p172 = scmp.ne.s32.totalorder %s163, %s164
    %p173 = scmp.eq.s32.totalorder %s22, 0
    %p174 = por %p172, %p173
    %p175 = scmp.ne.s32.totalorder %s163, %s164
    %p176 = scmp.eq.s32.totalorder %s23, 1
    %p177 = por %p175, %p176
    %p179 = scmp.ne.s32.totalorder %s164, %s178
    %p180 = scmp.eq.s32.totalorder %s23, 0
    %p181 = por %p179, %p180
    %s183 = sadd.s32 %s182, 1
    %p186 = scmp.eq.s32.totalorder %s17, 1
    %p187 = scmp.ne.s32.totalorder %s182, %s184
    %p188 = scmp.eq.s32.totalorder %s17, 0
    %p189 = por %p187, %p188
    %p190 = scmp.ne.s32.totalorder %s182, %s184
    %p191 = scmp.eq.s32.totalorder %s22, 1
    %p192 = por %p190, %p191
    %p193 = scmp.ne.s32.totalorder %s184, %s185
    %p194 = scmp.eq.s32.totalorder %s22, 0
    %p195 = por %p193, %p194
    %p196 = scmp.ne.s32.totalorder %s184, %s185
    %p197 = scmp.eq.s32.totalorder %s23, 1
    %p198 = por %p196, %p197
    %p200 = scmp.ne.s32.totalorder %s185, %s199
    %p201 = scmp.eq.s32.totalorder %s23, 0
    %p202 = por %p200, %p201
    %s204 = sadd.s32 %s203, 1
    %p207 = scmp.eq.s32.totalorder %s17, 1
    %p208 = scmp.ne.s32.totalorder %s203, %s205
    %p209 = scmp.eq.s32.totalorder %s17, 0
    %p210 = por %p208, %p209
    %p211 = scmp.ne.s32.totalorder %s203, %s205
    %p212 = scmp.eq.s32.totalorder %s22, 1
    %p213 = por %p211, %p212
    %p214 = scmp.ne.s32.totalorder %s205, %s206
    %p215 = scmp.eq.s32.totalorder %s22, 0
    %p216 = por %p214, %p215
    %p217 = scmp.ne.s32.totalorder %s205, %s206
    %p218 = scmp.eq.s32.totalorder %s23, 1
    %p219 = por %p217, %p218
    %p221 = scmp.ne.s32.totalorder %s206, %s220
    %p222 = scmp.eq.s32.totalorder %s23, 0
    %p223 = por %p221, %p222
    %s224 = ssub.s32 %s17, %s24
    %p225 = scmp.eq.s32.totalorder %s224, 0
    %s227 = sadd.s32 %s226, 1
    %s228 = scalar_select %p225, %s226, %s227
    %p231 = pneg %p225
    %p232 = scmp.eq.s32.totalorder %s17, 1
    %p233 = por %p231, %p232
    %p234 = scmp.ne.s32.totalorder %s226, %s229
    %p235 = scmp.eq.s32.totalorder %s17, 0
    %p236 = por %p234, %p235
    %p237 = scmp.ne.s32.totalorder %s226, %s229
    %p238 = scmp.eq.s32.totalorder %s22, 1
    %p239 = por %p237, %p238
    %p240 = scmp.ne.s32.totalorder %s229, %s230
    %p241 = scmp.eq.s32.totalorder %s22, 0
    %p242 = por %p240, %p241
    %p243 = scmp.ne.s32.totalorder %s229, %s230
    %p244 = scmp.eq.s32.totalorder %s23, 1
    %p245 = por %p243, %p244
    %p247 = scmp.ne.s32.totalorder %s230, %s246
    %p248 = scmp.eq.s32.totalorder %s23, 0
    %p249 = por %p247, %p248
    %s250 = ssub.s32 %s17, %s24
    %p251 = scmp.eq.s32.totalorder %s250, 0
    %s253 = sadd.s32 %s252, 1
    %s254 = scalar_select %p251, %s252, %s253
    %p257 = pneg %p251
    %p258 = scmp.eq.s32.totalorder %s17, 1
    %p259 = por %p257, %p258
    %p260 = scmp.ne.s32.totalorder %s252, %s255
    %p261 = scmp.eq.s32.totalorder %s17, 0
    %p262 = por %p260, %p261
    %p263 = scmp.ne.s32.totalorder %s252, %s255
    %p264 = scmp.eq.s32.totalorder %s22, 1
    %p265 = por %p263, %p264
    %p266 = scmp.ne.s32.totalorder %s255, %s256
    %p267 = scmp.eq.s32.totalorder %s22, 0
    %p268 = por %p266, %p267
    %p269 = scmp.ne.s32.totalorder %s255, %s256
    %p270 = scmp.eq.s32.totalorder %s23, 1
    %p271 = por %p269, %p270
    %p273 = scmp.ne.s32.totalorder %s256, %s272
    %p274 = scmp.eq.s32.totalorder %s23, 0
    %p275 = por %p273, %p274
    %p276 = scmp.le.s32.totalorder 1, %s17
    %p277 = scmp.lt.s32.totalorder %s17, 3
    %p278 = pnand %p276, %p277
    %p279 = pneg %p278
    // Predicated region
    $region9: #{msr_fpn_forward.8} parent=5 // pred_check
      _
    $region10: #{msr_fpn_forward.8} parent=5 // pred_check_branch
      %281 = sbr.rel (%p278) target = $region12
    $region11: #{msr_fpn_forward.8} parent=5 // pred_region
      %s282 = ssub.s32 %s17, 1
      // Predicated region
      $region13: #{msr_fpn_forward.8} parent=11 // pred_check
        %p283 = pneg %p90
      $region14: #{msr_fpn_forward.8} parent=11 // pred_check_branch
        %285 = sbr.rel (%p283) target = $region16
      $region15: #{msr_fpn_forward.8} parent=11 // pred_region
        _
      $region16: #{msr_fpn_forward.8} parent=11 // pred_fallthru
        _
      // Predicated region
      $region17: #{msr_fpn_forward.8} parent=11 // pred_check
        %p286 = pneg %p111
      $region18: #{msr_fpn_forward.8} parent=11 // pred_check_branch
        %288 = sbr.rel (%p286) target = $region20
      $region19: #{msr_fpn_forward.8} parent=11 // pred_region
        _
      $region20: #{msr_fpn_forward.8} parent=11 // pred_fallthru
        _
      // Predicated region
      $region21: #{msr_fpn_forward.8} parent=11 // pred_check
        %p289 = pneg %p132
      $region22: #{msr_fpn_forward.8} parent=11 // pred_check_branch
        %291 = sbr.rel (%p289) target = $region24
      $region23: #{msr_fpn_forward.8} parent=11 // pred_region
        _
      $region24: #{msr_fpn_forward.8} parent=11 // pred_fallthru
        _
      // Predicated region
      $region25: #{msr_fpn_forward.8} parent=11 // pred_check
        %p292 = pneg %p153
      $region26: #{msr_fpn_forward.8} parent=11 // pred_check_branch
        %294 = sbr.rel (%p292) target = $region28
      $region27: #{msr_fpn_forward.8} parent=11 // pred_region
        _
      $region28: #{msr_fpn_forward.8} parent=11 // pred_fallthru
        _
      // Predicated region
      $region29: #{msr_fpn_forward.8} parent=11 // pred_check
        %p295 = pneg %p174
      $region30: #{msr_fpn_forward.8} parent=11 // pred_check_branch
        %297 = sbr.rel (%p295) target = $region32
      $region31: #{msr_fpn_forward.8} parent=11 // pred_region
        _
      $region32: #{msr_fpn_forward.8} parent=11 // pred_fallthru
        _
      // Predicated region
      $region33: #{msr_fpn_forward.8} parent=11 // pred_check
        %p298 = pneg %p195
      $region34: #{msr_fpn_forward.8} parent=11 // pred_check_branch
        %300 = sbr.rel (%p298) target = $region36
      $region35: #{msr_fpn_forward.8} parent=11 // pred_region
        _
      $region36: #{msr_fpn_forward.8} parent=11 // pred_fallthru
        _
      // Predicated region
      $region37: #{msr_fpn_forward.8} parent=11 // pred_check
        %p301 = pneg %p216
      $region38: #{msr_fpn_forward.8} parent=11 // pred_check_branch
        %303 = sbr.rel (%p301) target = $region40
      $region39: #{msr_fpn_forward.8} parent=11 // pred_region
        _
      $region40: #{msr_fpn_forward.8} parent=11 // pred_fallthru
        _
    $region12: #{msr_fpn_forward.8} parent=5 // pred_fallthru
      _
    %p304 = scmp.lt.s32.totalorder %s17, 2
    // Predicated region
    $region41: #{msr_fpn_forward.8} parent=5 // pred_check
      %p305 = pneg %p304
    $region42: #{msr_fpn_forward.8} parent=5 // pred_check_branch
      %307 = sbr.rel (%p305) target = $region44
    $region43: #{msr_fpn_forward.8} parent=5 // pred_region
      // Predicated region
      $region45: #{msr_fpn_forward.8} parent=43 // pred_check
        %p308 = pneg %p37
      $region46: #{msr_fpn_forward.8} parent=43 // pred_check_branch
        %310 = sbr.rel (%p308) target = $region48
      $region47: #{msr_fpn_forward.8} parent=43 // pred_region
        %s311 = smul.u32 8, %s17
        %p312 = scmp.lt.s32.totalorder %s311, 15
        %s313 = scalar_select %p312, %s311, 15
        %s314 = smul.addr %s313, 2
        %s315 = smul.addr %s314, 8
        %s316 = scalar_lea.vmem %s0, %s315
        %s317 = smul.u32 8, %s17
      $region48: #{msr_fpn_forward.8} parent=43 // pred_fallthru
        _
      // Predicated region
      $region49: #{msr_fpn_forward.8} parent=43 // pred_check
        %p318 = pneg %p63
      $region50: #{msr_fpn_forward.8} parent=43 // pred_check_branch
        %320 = sbr.rel (%p318) target = $region52
      $region51: #{msr_fpn_forward.8} parent=43 // pred_region
        %s321 = smul.u32 8, %s17
        %p322 = scmp.lt.s32.totalorder %s321, 15
        %s323 = scalar_select %p322, %s321, 15
        %s324 = smul.addr %s323, 3
        %s325 = smul.addr %s324, 4
        %s326 = scalar_lea.vmem %s1, %s325
        %s327 = smul.u32 8, %s17
      $region52: #{msr_fpn_forward.8} parent=43 // pred_fallthru
        _
    $region44: #{msr_fpn_forward.8} parent=5 // pred_fallthru
      _
    %p328 = scmp.le.s32.totalorder 1, %s17
    %p329 = scmp.lt.s32.totalorder %s17, 3
    %p330 = pnand %p328, %p329
    %p331 = pneg %p330
    // Predicated region
    $region53: #{msr_fpn_forward.8} parent=5 // pred_check
      _
    $region54: #{msr_fpn_forward.8} parent=5 // pred_check_branch
      %333 = sbr.rel (%p330) target = $region56
    $region55: #{msr_fpn_forward.8} parent=5 // pred_region
      %s334 = ssub.s32 %s17, 1
      %s335 = smul.u32 8, %s22
      %p336 = scmp.lt.s32.totalorder %s335, 15
      %s337 = scalar_select %p336, %s335, 15
      %s338 = smul.addr %s337, 2
      %s339 = smul.addr %s338, 8
      %s340 = scalar_lea.vmem %s0, %s339
      %p341 = pneg %p43
      %p342 = pneg %p40
      %s343 = smul.u32 8, %s22
      %p344 = scmp.lt.s32.totalorder %s343, 15
      %s345 = scalar_select %p344, %s343, 15
      %s346 = smul.addr %s345, 3
      %s347 = smul.addr %s346, 4
      %s348 = scalar_lea.vmem %s1, %s347
      %p349 = pneg %p69
      %p350 = pneg %p66
      %p351 = pneg %p90
      %p352 = pneg %p87
      %p353 = pneg %p111
      %p354 = pneg %p108
      %p355 = pneg %p132
      %p356 = pneg %p129
      %p357 = pneg %p153
      %p358 = pneg %p150
      %p359 = pneg %p174
      %p360 = pneg %p171
      %p361 = pneg %p195
      %p362 = pneg %p192
      %p363 = pneg %p216
      %p364 = pneg %p213
      %p365 = pneg %p242
      %p366 = pneg %p239
      %s367 = smul.u32 8, %s22
      %p368 = scmp.lt.s32.totalorder %s367, 15
      %s369 = scalar_select %p368, %s367, 15
      %s370 = smul.addr %s369, 8
      %s371 = scalar_lea.vmem %s9, %s370
      %p372 = pneg %p268
      %p373 = pneg %p265
      %s374 = smul.u32 8, %s22
      %p375 = scmp.lt.s32.totalorder %s374, 15
      %s376 = scalar_select %p375, %s374, 15
      %s377 = smul.addr %s376, 4
      %s378 = scalar_lea.vmem %s10, %s377
      %s379 = smul.u32 8, %s22
      %p380 = scmp.lt.s32.totalorder %s379, 15
      %s381 = scalar_select %p380, %s379, 15
      %s382 = smul.addr %s381, 2
      %s383 = smul.addr %s382, 8
      %s384 = scalar_lea.vmem %s0, %s383
      %s385 = smul.u32 8, %s22
      %s386 = smul.u32 8, %s22
      %p387 = scmp.lt.s32.totalorder %s386, 15
      %s388 = scalar_select %p387, %s386, 15
      %s389 = smul.addr %s388, 3
      %s390 = smul.addr %s389, 4
      %s391 = scalar_lea.vmem %s1, %s390
      %s392 = smul.u32 8, %s22
      %s393 = smul.u32 8, %s22
      %p394 = scmp.lt.s32.totalorder %s393, 15
      %s395 = scalar_select %p394, %s393, 15
      %s396 = smul.addr %s395, 8
      %s397 = scalar_lea.vmem %s9, %s396
      %s398 = smul.u32 8, %s22
      %s399 = smul.u32 8, %s22
      %p400 = scmp.lt.s32.totalorder %s399, 15
      %s401 = scalar_select %p400, %s399, 15
      %s402 = smul.addr %s401, 4
      %s403 = scalar_lea.vmem %s10, %s402
      %s404 = smul.u32 8, %s22
      %v406 = vld [vmem:[%s384] sm:$0xff]
      %v407 = vld [vmem:[%s384 + $0x8] sm:$0xff]
      %v408 = vld [vmem:[%s384 + $0x10] sm:$0xff]
      %v409 = vld [vmem:[%s384 + $0x18] sm:$0xff]
      %v410 = vld [vmem:[%s384 + $0x20] sm:$0xff]
      %v411 = vld [vmem:[%s384 + $0x28] sm:$0xff]
      %v412 = vld [vmem:[%s384 + $0x30] sm:$0xff]
      %v413 = vld [vmem:[%s384 + $0x38] sm:$0xff]
      %v414 = vld [vmem:[%s384 + $0x40] sm:$0xff]
      %v415 = vld [vmem:[%s384 + $0x48] sm:$0xff]
      %v416 = vld [vmem:[%s384 + $0x50] sm:$0xff]
      %v417 = vld [vmem:[%s384 + $0x58] sm:$0xff]
      %v418 = vld [vmem:[%s384 + $0x60] sm:$0xff]
      %v419 = vld [vmem:[%s384 + $0x68] sm:$0xff]
      %v420 = vld [vmem:[%s384 + $0x70] sm:$0xff]
      %v421 = vld [vmem:[%s384 + $0x78] sm:$0xff]
      %v422 = vld [vmem:[%s2] sm:$0xff]
      %v423 = vld [vmem:[%s2 + $0x8] sm:$0xff]
      %v424 = vld [vmem:[%s2 + $0x10] sm:$0xff]
      %v425 = vld [vmem:[%s2 + $0x18] sm:$0xff]
      %v426 = vld [vmem:[%s2 + $0x20] sm:$0xff]
      %v427 = vld [vmem:[%s2 + $0x28] sm:$0xff]
      %v428 = vld [vmem:[%s2 + $0x30] sm:$0xff]
      %v429 = vld [vmem:[%s2 + $0x38] sm:$0xff]
      %v430 = vld [vmem:[%s2 + $0x40] sm:$0xff]
      %v431 = vld [vmem:[%s2 + $0x48] sm:$0xff]
      %v432 = vld [vmem:[%s2 + $0x50] sm:$0xff]
      %v433 = vld [vmem:[%s2 + $0x58] sm:$0xff]
      %v434 = vld [vmem:[%s2 + $0x60] sm:$0xff]
      %v435 = vld [vmem:[%s2 + $0x68] sm:$0xff]
      %v436 = vld [vmem:[%s2 + $0x70] sm:$0xff]
      %v437 = vld [vmem:[%s2 + $0x78] sm:$0xff]
      %v438 = vld [vmem:[%s2 + $0x80] sm:$0xff]
      %v439 = vld [vmem:[%s2 + $0x88] sm:$0xff]
      %v440 = vld [vmem:[%s2 + $0x90] sm:$0xff]
      %v441 = vld [vmem:[%s2 + $0x98] sm:$0xff]
      %v442 = vld [vmem:[%s2 + $0xa0] sm:$0xff]
      %v443 = vld [vmem:[%s2 + $0xa8] sm:$0xff]
      %v444 = vld [vmem:[%s2 + $0xb0] sm:$0xff]
      %v445 = vld [vmem:[%s2 + $0xb8] sm:$0xff]
      %v446 = vld [vmem:[%s2 + $0xc0] sm:$0xff]
      %v447 = vld [vmem:[%s2 + $0xc8] sm:$0xff]
      %v448 = vld [vmem:[%s2 + $0xd0] sm:$0xff]
      %v449 = vld [vmem:[%s2 + $0xd8] sm:$0xff]
      %v450 = vld [vmem:[%s2 + $0xe0] sm:$0xff]
      %v451 = vld [vmem:[%s2 + $0xe8] sm:$0xff]
      %v452 = vld [vmem:[%s2 + $0xf0] sm:$0xff]
      %v453 = vld [vmem:[%s2 + $0xf8] sm:$0xff]
      %v454 = vld [vmem:[%s2 + $0x100] sm:$0xff]
      %v455 = vld [vmem:[%s2 + $0x108] sm:$0xff]
      %v456 = vld [vmem:[%s2 + $0x110] sm:$0xff]
      %v457 = vld [vmem:[%s2 + $0x118] sm:$0xff]
      %v458 = vld [vmem:[%s391] sm:$0xff]
      %v459 = vld [vmem:[%s391 + $0x8] sm:$0xf]
      %v460 = vld [vmem:[%s391 + $0xc] sm:$0xff]
      %v461 = vld [vmem:[%s391 + $0x14] sm:$0xf]
      %v462 = vld [vmem:[%s391 + $0x18] sm:$0xff]
      %v463 = vld [vmem:[%s391 + $0x20] sm:$0xf]
      %v464 = vld [vmem:[%s391 + $0x24] sm:$0xff]
      %v465 = vld [vmem:[%s391 + $0x2c] sm:$0xf]
      %v466 = vld [vmem:[%s391 + $0x30] sm:$0xff]
      %v467 = vld [vmem:[%s391 + $0x38] sm:$0xf]
      %v468 = vld [vmem:[%s391 + $0x3c] sm:$0xff]
      %v469 = vld [vmem:[%s391 + $0x44] sm:$0xf]
      %v470 = vld [vmem:[%s391 + $0x48] sm:$0xff]
      %v471 = vld [vmem:[%s391 + $0x50] sm:$0xf]
      %v472 = vld [vmem:[%s391 + $0x54] sm:$0xff]
      %v473 = vld [vmem:[%s391 + $0x5c] sm:$0xf]
      %v490 = vunpack.c.l.b16 %v458
      %v491 = vunpack.c.h.b16 %v458
      %v492 = vunpack.c.l.b16 %v459
      %v493 = vunpack.c.l.b16 %v460
      %v494 = vunpack.c.h.b16 %v460
      %v495 = vunpack.c.l.b16 %v461
      %v496 = vunpack.c.l.b16 %v462
      %v497 = vunpack.c.h.b16 %v462
      %v498 = vunpack.c.l.b16 %v463
      %v499 = vunpack.c.l.b16 %v464
      %v500 = vunpack.c.h.b16 %v464
      %v501 = vunpack.c.l.b16 %v465
      %v502 = vunpack.c.l.b16 %v466
      %v503 = vunpack.c.h.b16 %v466
      %v504 = vunpack.c.l.b16 %v467
      %v505 = vunpack.c.l.b16 %v468
      %v506 = vunpack.c.h.b16 %v468
      %v507 = vunpack.c.l.b16 %v469
      %v508 = vunpack.c.l.b16 %v470
      %v509 = vunpack.c.h.b16 %v470
      %v510 = vunpack.c.l.b16 %v471
      %v511 = vunpack.c.l.b16 %v472
      %v512 = vunpack.c.h.b16 %v472
      %v513 = vunpack.c.l.b16 %v473
      %v514 = vpack.c.b16 %v493, %v490
      %v515 = vpack.c.b16 %v494, %v491
      %v516 = vpack.c.b16 %v495, %v492
      %v517 = vpack.c.b16 %v499, %v496
      %v518 = vpack.c.b16 %v500, %v497
      %v519 = vpack.c.b16 %v501, %v498
      %v520 = vpack.c.b16 %v505, %v502
      %v521 = vpack.c.b16 %v506, %v503
      %v522 = vpack.c.b16 %v507, %v504
      %v523 = vpack.c.b16 %v511, %v508
      %v524 = vpack.c.b16 %v512, %v509
      %v525 = vpack.c.b16 %v513, %v510
      %v570 = vunpack.c.l.b16 %v422
      %v571 = vunpack.c.h.b16 %v422
      %v572 = vunpack.c.l.b16 %v423
      %v573 = vunpack.c.h.b16 %v423
      %v574 = vunpack.c.l.b16 %v424
      %v575 = vunpack.c.h.b16 %v424
      %v576 = vunpack.c.l.b16 %v425
      %v577 = vunpack.c.h.b16 %v425
      %v578 = vunpack.c.l.b16 %v426
      %v579 = vunpack.c.h.b16 %v426
      %v580 = vunpack.c.l.b16 %v427
      %v581 = vunpack.c.h.b16 %v427
      %v582 = vunpack.c.l.b16 %v428
      %v583 = vunpack.c.h.b16 %v428
      %v584 = vunpack.c.l.b16 %v429
      %v585 = vunpack.c.h.b16 %v429
      %v586 = vunpack.c.l.b16 %v430
      %v587 = vunpack.c.h.b16 %v430
      %v588 = vunpack.c.l.b16 %v431
      %v589 = vunpack.c.h.b16 %v431
      %v590 = vunpack.c.l.b16 %v432
      %v591 = vunpack.c.h.b16 %v432
      %v592 = vunpack.c.l.b16 %v433
      %v593 = vunpack.c.h.b16 %v433
      %v594 = vunpack.c.l.b16 %v434
      %v595 = vunpack.c.h.b16 %v434
      %v596 = vunpack.c.l.b16 %v435
      %v597 = vunpack.c.h.b16 %v435
      %v598 = vunpack.c.l.b16 %v436
      %v599 = vunpack.c.h.b16 %v436
      %v600 = vunpack.c.l.b16 %v437
      %v601 = vunpack.c.h.b16 %v437
      %v602 = vunpack.c.l.b16 %v438
      %v603 = vunpack.c.h.b16 %v438
      %v604 = vunpack.c.l.b16 %v439
      %v605 = vunpack.c.h.b16 %v439
      %v606 = vunpack.c.l.b16 %v440
      %v607 = vunpack.c.h.b16 %v440
      %v608 = vunpack.c.l.b16 %v441
      %v609 = vunpack.c.h.b16 %v441
      %v610 = vunpack.c.l.b16 %v442
      %v611 = vunpack.c.h.b16 %v442
      %v612 = vunpack.c.l.b16 %v443
      %v613 = vunpack.c.h.b16 %v443
      %v614 = vunpack.c.l.b16 %v444
      %v615 = vunpack.c.h.b16 %v444
      %v616 = vunpack.c.l.b16 %v445
      %v617 = vunpack.c.h.b16 %v445
      %v618 = vunpack.c.l.b16 %v446
      %v619 = vunpack.c.h.b16 %v446
      %v620 = vunpack.c.l.b16 %v447
      %v621 = vunpack.c.h.b16 %v447
      %v622 = vunpack.c.l.b16 %v448
      %v623 = vunpack.c.h.b16 %v448
      %v624 = vunpack.c.l.b16 %v449
      %v625 = vunpack.c.h.b16 %v449
      %v626 = vunpack.c.l.b16 %v450
      %v627 = vunpack.c.h.b16 %v450
      %v628 = vunpack.c.l.b16 %v451
      %v629 = vunpack.c.h.b16 %v451
      %v630 = vunpack.c.l.b16 %v452
      %v631 = vunpack.c.h.b16 %v452
      %v632 = vunpack.c.l.b16 %v453
      %v633 = vunpack.c.h.b16 %v453
      %v634 = vunpack.c.l.b16 %v454
      %v635 = vunpack.c.h.b16 %v454
      %v636 = vunpack.c.l.b16 %v455
      %v637 = vunpack.c.h.b16 %v455
      %v638 = vunpack.c.l.b16 %v456
      %v639 = vunpack.c.h.b16 %v456
      %v640 = vunpack.c.l.b16 %v457
      %v641 = vunpack.c.h.b16 %v457
      %v642 = vpack.c.b16 %v572, %v570
      %v643 = vpack.c.b16 %v573, %v571
      %v644 = vpack.c.b16 %v576, %v574
      %v645 = vpack.c.b16 %v577, %v575
      %v646 = vpack.c.b16 %v580, %v578
      %v647 = vpack.c.b16 %v581, %v579
      %v648 = vpack.c.b16 %v584, %v582
      %v649 = vpack.c.b16 %v585, %v583
      %v650 = vpack.c.b16 %v588, %v586
      %v651 = vpack.c.b16 %v589, %v587
      %v652 = vpack.c.b16 %v592, %v590
      %v653 = vpack.c.b16 %v593, %v591
      %v654 = vpack.c.b16 %v596, %v594
      %v655 = vpack.c.b16 %v597, %v595
      %v656 = vpack.c.b16 %v600, %v598
      %v657 = vpack.c.b16 %v601, %v599
      %v658 = vpack.c.b16 %v604, %v602
      %v659 = vpack.c.b16 %v605, %v603
      %v660 = vpack.c.b16 %v608, %v606
      %v661 = vpack.c.b16 %v609, %v607
      %v662 = vpack.c.b16 %v612, %v610
      %v663 = vpack.c.b16 %v613, %v611
      %v664 = vpack.c.b16 %v616, %v614
      %v665 = vpack.c.b16 %v617, %v615
      %v666 = vpack.c.b16 %v620, %v618
      %v667 = vpack.c.b16 %v621, %v619
      %v668 = vpack.c.b16 %v624, %v622
      %v669 = vpack.c.b16 %v625, %v623
      %v670 = vpack.c.b16 %v628, %v626
      %v671 = vpack.c.b16 %v629, %v627
      %v672 = vpack.c.b16 %v632, %v630
      %v673 = vpack.c.b16 %v633, %v631
      %v674 = vpack.c.b16 %v636, %v634
      %v675 = vpack.c.b16 %v637, %v635
      %v676 = vpack.c.b16 %v640, %v638
      %v677 = vpack.c.b16 %v641, %v639
      %vm714 = vcmask 261120
      %v716 = vsel %vm714, %v516, 0
      %v719 = vsel %vm714, %v519, 0
      %v722 = vsel %vm714, %v522, 0
      %v725 = vsel %vm714, %v525, 0
      %727 = vmatpush.bf16.msra.mxu0 %v656
      %728 = vmatpush.bf16.msra.mxu0 %v654
      %729 = vmatpush.bf16.msra.mxu0 %v652
      %730 = vmatpush.bf16.msra.mxu0 %v650
      %731 = vmatpush.bf16.msra.mxu0 %v648
      %732 = vmatpush.bf16.msra.mxu0 %v646
      %733 = vmatpush.bf16.msra.mxu0 %v644
      %734 = vmatpush.bf16.msra.mxu0 %v642
      %735 = vmatmul.bf16.gmra.mxu0 %v514
      %v736 = vpop.f32.mrf.mxu0
      %v737 = vadd.f32 0.0, %v736
      %v738 = vpop.f32.mrf.mxu0
      %v739 = vadd.f32 0.0, %v738
      %740 = vmatmul.bf16.gmra.mxu0 %v517
      %v741 = vpop.f32.mrf.mxu0
      %v742 = vadd.f32 0.0, %v741
      %v743 = vpop.f32.mrf.mxu0
      %v744 = vadd.f32 0.0, %v743
      %745 = vmatmul.bf16.gmra.mxu0 %v520
      %v746 = vpop.f32.mrf.mxu0
      %v747 = vadd.f32 0.0, %v746
      %v748 = vpop.f32.mrf.mxu0
      %v749 = vadd.f32 0.0, %v748
      %750 = vmatmul.bf16.gmra.mxu0 %v523
      %v751 = vpop.f32.mrf.mxu0
      %v752 = vadd.f32 0.0, %v751
      %v753 = vpop.f32.mrf.mxu0
      %v754 = vadd.f32 0.0, %v753
      %755 = vdwg.mxu0
      %756 = vmatpush.bf16.msra.mxu0 %v672
      %757 = vmatpush.bf16.msra.mxu0 %v670
      %758 = vmatpush.bf16.msra.mxu0 %v668
      %759 = vmatpush.bf16.msra.mxu0 %v666
      %760 = vmatpush.bf16.msra.mxu0 %v664
      %761 = vmatpush.bf16.msra.mxu0 %v662
      %762 = vmatpush.bf16.msra.mxu0 %v660
      %763 = vmatpush.bf16.msra.mxu0 %v658
      %764 = vmatmul.bf16.gmra.mxu0 %v515
      %v765 = vpop.f32.mrf.mxu0
      %v766 = vadd.f32 %v737, %v765
      %v767 = vpop.f32.mrf.mxu0
      %v768 = vadd.f32 %v739, %v767
      %769 = vmatmul.bf16.gmra.mxu0 %v518
      %v770 = vpop.f32.mrf.mxu0
      %v771 = vadd.f32 %v742, %v770
      %v772 = vpop.f32.mrf.mxu0
      %v773 = vadd.f32 %v744, %v772
      %774 = vmatmul.bf16.gmra.mxu0 %v521
      %v775 = vpop.f32.mrf.mxu0
      %v776 = vadd.f32 %v747, %v775
      %v777 = vpop.f32.mrf.mxu0
      %v778 = vadd.f32 %v749, %v777
      %779 = vmatmul.bf16.gmra.mxu0 %v524
      %v780 = vpop.f32.mrf.mxu0
      %v781 = vadd.f32 %v752, %v780
      %v782 = vpop.f32.mrf.mxu0
      %v783 = vadd.f32 %v754, %v782
      %784 = vdwg.mxu0
      %785 = vmatpush.bf16.msra.mxu0 0
      %786 = vmatpush.bf16.msra.mxu0 0
      %787 = vmatpush.bf16.msra.mxu0 0
      %788 = vmatpush.bf16.msra.mxu0 0
      %789 = vmatpush.bf16.msra.mxu0 0
      %790 = vmatpush.bf16.msra.mxu0 0
      %791 = vmatpush.bf16.msra.mxu0 %v676
      %792 = vmatpush.bf16.msra.mxu0 %v674
      %793 = vmatmul.bf16.gmra.mxu0 %v716
      %v794 = vpop.f32.mrf.mxu0
      %v795 = vadd.f32 %v766, %v794
      %v796 = vpop.f32.mrf.mxu0
      %v797 = vadd.f32 %v768, %v796
      %798 = vmatmul.bf16.gmra.mxu0 %v719
      %v799 = vpop.f32.mrf.mxu0
      %v800 = vadd.f32 %v771, %v799
      %v801 = vpop.f32.mrf.mxu0
      %v802 = vadd.f32 %v773, %v801
      %803 = vmatmul.bf16.gmra.mxu0 %v722
      %v804 = vpop.f32.mrf.mxu0
      %v805 = vadd.f32 %v776, %v804
      %v806 = vpop.f32.mrf.mxu0
      %v807 = vadd.f32 %v778, %v806
      %808 = vmatmul.bf16.gmra.mxu0 %v725
      %v809 = vpop.f32.mrf.mxu0
      %v810 = vadd.f32 %v781, %v809
      %v811 = vpop.f32.mrf.mxu0
      %v812 = vadd.f32 %v783, %v811
      %813 = vdwg.mxu0
      %814 = vmatpush.bf16.msra.mxu0 %v657
      %815 = vmatpush.bf16.msra.mxu0 %v655
      %816 = vmatpush.bf16.msra.mxu0 %v653
      %817 = vmatpush.bf16.msra.mxu0 %v651
      %818 = vmatpush.bf16.msra.mxu0 %v649
      %819 = vmatpush.bf16.msra.mxu0 %v647
      %820 = vmatpush.bf16.msra.mxu0 %v645
      %821 = vmatpush.bf16.msra.mxu0 %v643
      %822 = vmatmul.bf16.gmra.mxu0 %v514
      %v823 = vpop.f32.mrf.mxu0
      %v824 = vadd.f32 0.0, %v823
      %v825 = vpop.f32.mrf.mxu0
      %v826 = vadd.f32 0.0, %v825
      %827 = vmatmul.bf16.gmra.mxu0 %v517
      %v828 = vpop.f32.mrf.mxu0
      %v829 = vadd.f32 0.0, %v828
      %v830 = vpop.f32.mrf.mxu0
      %v831 = vadd.f32 0.0, %v830
      %832 = vmatmul.bf16.gmra.mxu0 %v520
      %v833 = vpop.f32.mrf.mxu0
      %v834 = vadd.f32 0.0, %v833
      %v835 = vpop.f32.mrf.mxu0
      %v836 = vadd.f32 0.0, %v835
      %837 = vmatmul.bf16.gmra.mxu0 %v523
      %v838 = vpop.f32.mrf.mxu0
      %v839 = vadd.f32 0.0, %v838
      %v840 = vpop.f32.mrf.mxu0
      %v841 = vadd.f32 0.0, %v840
      %842 = vdwg.mxu0
      %843 = vmatpush.bf16.msra.mxu0 %v673
      %844 = vmatpush.bf16.msra.mxu0 %v671
      %845 = vmatpush.bf16.msra.mxu0 %v669
      %846 = vmatpush.bf16.msra.mxu0 %v667
      %847 = vmatpush.bf16.msra.mxu0 %v665
      %848 = vmatpush.bf16.msra.mxu0 %v663
      %849 = vmatpush.bf16.msra.mxu0 %v661
      %850 = vmatpush.bf16.msra.mxu0 %v659
      %851 = vmatmul.bf16.gmra.mxu0 %v515
      %v852 = vpop.f32.mrf.mxu0
      %v853 = vadd.f32 %v824, %v852
      %v854 = vpop.f32.mrf.mxu0
      %v855 = vadd.f32 %v826, %v854
      %856 = vmatmul.bf16.gmra.mxu0 %v518
      %v857 = vpop.f32.mrf.mxu0
      %v858 = vadd.f32 %v829, %v857
      %v859 = vpop.f32.mrf.mxu0
      %v860 = vadd.f32 %v831, %v859
      %861 = vmatmul.bf16.gmra.mxu0 %v521
      %v862 = vpop.f32.mrf.mxu0
      %v863 = vadd.f32 %v834, %v862
      %v864 = vpop.f32.mrf.mxu0
      %v865 = vadd.f32 %v836, %v864
      %866 = vmatmul.bf16.gmra.mxu0 %v524
      %v867 = vpop.f32.mrf.mxu0
      %v868 = vadd.f32 %v839, %v867
      %v869 = vpop.f32.mrf.mxu0
      %v870 = vadd.f32 %v841, %v869
      %871 = vdwg.mxu0
      %872 = vmatpush.bf16.msra.mxu0 0
      %873 = vmatpush.bf16.msra.mxu0 0
      %874 = vmatpush.bf16.msra.mxu0 0
      %875 = vmatpush.bf16.msra.mxu0 0
      %876 = vmatpush.bf16.msra.mxu0 0
      %877 = vmatpush.bf16.msra.mxu0 0
      %878 = vmatpush.bf16.msra.mxu0 %v677
      %879 = vmatpush.bf16.msra.mxu0 %v675
      %880 = vmatmul.bf16.gmra.mxu0 %v716
      %v881 = vpop.f32.mrf.mxu0
      %v882 = vadd.f32 %v853, %v881
      %v883 = vpop.f32.mrf.mxu0
      %v884 = vadd.f32 %v855, %v883
      %885 = vmatmul.bf16.gmra.mxu0 %v719
      %v886 = vpop.f32.mrf.mxu0
      %v887 = vadd.f32 %v858, %v886
      %v888 = vpop.f32.mrf.mxu0
      %v889 = vadd.f32 %v860, %v888
      %890 = vmatmul.bf16.gmra.mxu0 %v722
      %v891 = vpop.f32.mrf.mxu0
      %v892 = vadd.f32 %v863, %v891
      %v893 = vpop.f32.mrf.mxu0
      %v894 = vadd.f32 %v865, %v893
      %895 = vmatmul.bf16.gmra.mxu0 %v725
      %v896 = vpop.f32.mrf.mxu0
      %v897 = vadd.f32 %v868, %v896
      %v898 = vpop.f32.mrf.mxu0
      %v899 = vadd.f32 %v870, %v898
      %900 = vdwg.mxu0
      %v901 = vadd.f32 %v406, %v795
      %v902 = vadd.f32 %v407, %v882
      %v903 = vadd.f32 %v408, %v797
      %v904 = vadd.f32 %v409, %v884
      %v905 = vadd.f32 %v410, %v800
      %v906 = vadd.f32 %v411, %v887
      %v907 = vadd.f32 %v412, %v802
      %v908 = vadd.f32 %v413, %v889
      %v909 = vadd.f32 %v414, %v805
      %v910 = vadd.f32 %v415, %v892
      %v911 = vadd.f32 %v416, %v807
      %v912 = vadd.f32 %v417, %v894
      %v913 = vadd.f32 %v418, %v810
      %v914 = vadd.f32 %v419, %v897
      %v915 = vadd.f32 %v420, %v812
      %v916 = vadd.f32 %v421, %v899
      %v917 = vld [vmem:[%s3] sm:$0x3]
      %v919 = vperm.slane %v917, 0
      %v920 = vperm.slane %v917, 1
      %v923 = vadd.f32 %v901, %v919
      %v924 = vadd.f32 %v902, %v920
      %v925 = vadd.f32 %v903, %v919
      %v926 = vadd.f32 %v904, %v920
      %v927 = vadd.f32 %v905, %v919
      %v928 = vadd.f32 %v906, %v920
      %v929 = vadd.f32 %v907, %v919
      %v930 = vadd.f32 %v908, %v920
      %v931 = vadd.f32 %v909, %v919
      %v932 = vadd.f32 %v910, %v920
      %v933 = vadd.f32 %v911, %v919
      %v934 = vadd.f32 %v912, %v920
      %v935 = vadd.f32 %v913, %v919
      %v936 = vadd.f32 %v914, %v920
      %v937 = vadd.f32 %v915, %v919
      %v938 = vadd.f32 %v916, %v920
      %v939 = vmin.f32 %v923, 20.0
      %v940 = vmin.f32 %v924, 20.0
      %v941 = vmin.f32 %v925, 20.0
      %v942 = vmin.f32 %v926, 20.0
      %v943 = vmin.f32 %v927, 20.0
      %v944 = vmin.f32 %v928, 20.0
      %v945 = vmin.f32 %v929, 20.0
      %v946 = vmin.f32 %v930, 20.0
      %v947 = vmin.f32 %v931, 20.0
      %v948 = vmin.f32 %v932, 20.0
      %v949 = vmin.f32 %v933, 20.0
      %v950 = vmin.f32 %v934, 20.0
      %v951 = vmin.f32 %v935, 20.0
      %v952 = vmin.f32 %v936, 20.0
      %v953 = vmin.f32 %v937, 20.0
      %v954 = vmin.f32 %v938, 20.0
      %v955 = vmul.f32 %v939, 1.442695
      %v956 = vpow.pop %v955
      %v957 = vmul.f32 %v940, 1.442695
      %v958 = vpow.pop %v957
      %v959 = vmul.f32 %v941, 1.442695
      %v960 = vpow.pop %v959
      %v961 = vmul.f32 %v942, 1.442695
      %v962 = vpow.pop %v961
      %v963 = vmul.f32 %v943, 1.442695
      %v964 = vpow.pop %v963
      %v965 = vmul.f32 %v944, 1.442695
      %v966 = vpow.pop %v965
      %v967 = vmul.f32 %v945, 1.442695
      %v968 = vpow.pop %v967
      %v969 = vmul.f32 %v946, 1.442695
      %v970 = vpow.pop %v969
      %v971 = vmul.f32 %v947, 1.442695
      %v972 = vpow.pop %v971
      %v973 = vmul.f32 %v948, 1.442695
      %v974 = vpow.pop %v973
      %v975 = vmul.f32 %v949, 1.442695
      %v976 = vpow.pop %v975
      %v977 = vmul.f32 %v950, 1.442695
      %v978 = vpow.pop %v977
      %v979 = vmul.f32 %v951, 1.442695
      %v980 = vpow.pop %v979
      %v981 = vmul.f32 %v952, 1.442695
      %v982 = vpow.pop %v981
      %v983 = vmul.f32 %v953, 1.442695
      %v984 = vpow.pop %v983
      %v985 = vmul.f32 %v954, 1.442695
      %v986 = vpow.pop %v985
      %v987 = vadd.f32 %v956, 1.0
      %v988 = vadd.f32 %v958, 1.0
      %v989 = vadd.f32 %v960, 1.0
      %v990 = vadd.f32 %v962, 1.0
      %v991 = vadd.f32 %v964, 1.0
      %v992 = vadd.f32 %v966, 1.0
      %v993 = vadd.f32 %v968, 1.0
      %v994 = vadd.f32 %v970, 1.0
      %v995 = vadd.f32 %v972, 1.0
      %v996 = vadd.f32 %v974, 1.0
      %v997 = vadd.f32 %v976, 1.0
      %v998 = vadd.f32 %v978, 1.0
      %v999 = vadd.f32 %v980, 1.0
      %v1000 = vadd.f32 %v982, 1.0
      %v1001 = vadd.f32 %v984, 1.0
      %v1002 = vadd.f32 %v986, 1.0
      %v1003 = vmul.f32 %v987, %v987
      %v1004 = vmul.f32 %v988, %v988
      %v1005 = vmul.f32 %v989, %v989
      %v1006 = vmul.f32 %v990, %v990
      %v1007 = vmul.f32 %v991, %v991
      %v1008 = vmul.f32 %v992, %v992
      %v1009 = vmul.f32 %v993, %v993
      %v1010 = vmul.f32 %v994, %v994
      %v1011 = vmul.f32 %v995, %v995
      %v1012 = vmul.f32 %v996, %v996
      %v1013 = vmul.f32 %v997, %v997
      %v1014 = vmul.f32 %v998, %v998
      %v1015 = vmul.f32 %v999, %v999
      %v1016 = vmul.f32 %v1000, %v1000
      %v1017 = vmul.f32 %v1001, %v1001
      %v1018 = vmul.f32 %v1002, %v1002
      %v1019 = vsub.f32 %v1003, 1.0
      %v1020 = vsub.f32 %v1004, 1.0
      %v1021 = vsub.f32 %v1005, 1.0
      %v1022 = vsub.f32 %v1006, 1.0
      %v1023 = vsub.f32 %v1007, 1.0
      %v1024 = vsub.f32 %v1008, 1.0
      %v1025 = vsub.f32 %v1009, 1.0
      %v1026 = vsub.f32 %v1010, 1.0
      %v1027 = vsub.f32 %v1011, 1.0
      %v1028 = vsub.f32 %v1012, 1.0
      %v1029 = vsub.f32 %v1013, 1.0
      %v1030 = vsub.f32 %v1014, 1.0
      %v1031 = vsub.f32 %v1015, 1.0
      %v1032 = vsub.f32 %v1016, 1.0
      %v1033 = vsub.f32 %v1017, 1.0
      %v1034 = vsub.f32 %v1018, 1.0
      %v1035 = vmul.f32 %v923, %v1019
      %v1036 = vmul.f32 %v924, %v1020
      %v1037 = vmul.f32 %v925, %v1021
      %v1038 = vmul.f32 %v926, %v1022
      %v1039 = vmul.f32 %v927, %v1023
      %v1040 = vmul.f32 %v928, %v1024
      %v1041 = vmul.f32 %v929, %v1025
      %v1042 = vmul.f32 %v930, %v1026
      %v1043 = vmul.f32 %v931, %v1027
      %v1044 = vmul.f32 %v932, %v1028
      %v1045 = vmul.f32 %v933, %v1029
      %v1046 = vmul.f32 %v934, %v1030
      %v1047 = vmul.f32 %v935, %v1031
      %v1048 = vmul.f32 %v936, %v1032
      %v1049 = vmul.f32 %v937, %v1033
      %v1050 = vmul.f32 %v938, %v1034
      %v1051 = vadd.f32 %v1003, 1.0
      %v1052 = vadd.f32 %v1004, 1.0
      %v1053 = vadd.f32 %v1005, 1.0
      %v1054 = vadd.f32 %v1006, 1.0
      %v1055 = vadd.f32 %v1007, 1.0
      %v1056 = vadd.f32 %v1008, 1.0
      %v1057 = vadd.f32 %v1009, 1.0
      %v1058 = vadd.f32 %v1010, 1.0
      %v1059 = vadd.f32 %v1011, 1.0
      %v1060 = vadd.f32 %v1012, 1.0
      %v1061 = vadd.f32 %v1013, 1.0
      %v1062 = vadd.f32 %v1014, 1.0
      %v1063 = vadd.f32 %v1015, 1.0
      %v1064 = vadd.f32 %v1016, 1.0
      %v1065 = vadd.f32 %v1017, 1.0
      %v1066 = vadd.f32 %v1018, 1.0
      %v1067 = vrcp.pop %v1051
      %v1068 = vrcp.pop %v1052
      %v1069 = vrcp.pop %v1053
      %v1070 = vrcp.pop %v1054
      %v1071 = vrcp.pop %v1055
      %v1072 = vrcp.pop %v1056
      %v1073 = vrcp.pop %v1057
      %v1074 = vrcp.pop %v1058
      %v1075 = vrcp.pop %v1059
      %v1076 = vrcp.pop %v1060
      %v1077 = vrcp.pop %v1061
      %v1078 = vrcp.pop %v1062
      %v1079 = vrcp.pop %v1063
      %v1080 = vrcp.pop %v1064
      %v1081 = vrcp.pop %v1065
      %v1082 = vrcp.pop %v1066
      %v1083 = vmul.f32 %v1035, %v1067
      %v1084 = vmul.f32 %v1036, %v1068
      %v1085 = vmul.f32 %v1037, %v1069
      %v1086 = vmul.f32 %v1038, %v1070
      %v1087 = vmul.f32 %v1039, %v1071
      %v1088 = vmul.f32 %v1040, %v1072
      %v1089 = vmul.f32 %v1041, %v1073
      %v1090 = vmul.f32 %v1042, %v1074
      %v1091 = vmul.f32 %v1043, %v1075
      %v1092 = vmul.f32 %v1044, %v1076
      %v1093 = vmul.f32 %v1045, %v1077
      %v1094 = vmul.f32 %v1046, %v1078
      %v1095 = vmul.f32 %v1047, %v1079
      %v1096 = vmul.f32 %v1048, %v1080
      %v1097 = vmul.f32 %v1049, %v1081
      %v1098 = vmul.f32 %v1050, %v1082
      %vm1099 = vcmp.gt.f32.partialorder %v923, 20.0
      %vm1100 = vcmp.gt.f32.partialorder %v924, 20.0
      %vm1101 = vcmp.gt.f32.partialorder %v925, 20.0
      %vm1102 = vcmp.gt.f32.partialorder %v926, 20.0
      %vm1103 = vcmp.gt.f32.partialorder %v927, 20.0
      %vm1104 = vcmp.gt.f32.partialorder %v928, 20.0
      %vm1105 = vcmp.gt.f32.partialorder %v929, 20.0
      %vm1106 = vcmp.gt.f32.partialorder %v930, 20.0
      %vm1107 = vcmp.gt.f32.partialorder %v931, 20.0
      %vm1108 = vcmp.gt.f32.partialorder %v932, 20.0
      %vm1109 = vcmp.gt.f32.partialorder %v933, 20.0
      %vm1110 = vcmp.gt.f32.partialorder %v934, 20.0
      %vm1111 = vcmp.gt.f32.partialorder %v935, 20.0
      %vm1112 = vcmp.gt.f32.partialorder %v936, 20.0
      %vm1113 = vcmp.gt.f32.partialorder %v937, 20.0
      %vm1114 = vcmp.gt.f32.partialorder %v938, 20.0
      %v1115 = vsel %vm1099, %v923, %v1083
      %v1116 = vsel %vm1100, %v924, %v1084
      %v1117 = vsel %vm1101, %v925, %v1085
      %v1118 = vsel %vm1102, %v926, %v1086
      %v1119 = vsel %vm1103, %v927, %v1087
      %v1120 = vsel %vm1104, %v928, %v1088
      %v1121 = vsel %vm1105, %v929, %v1089
      %v1122 = vsel %vm1106, %v930, %v1090
      %v1123 = vsel %vm1107, %v931, %v1091
      %v1124 = vsel %vm1108, %v932, %v1092
      %v1125 = vsel %vm1109, %v933, %v1093
      %v1126 = vsel %vm1110, %v934, %v1094
      %v1127 = vsel %vm1111, %v935, %v1095
      %v1128 = vsel %vm1112, %v936, %v1096
      %v1129 = vsel %vm1113, %v937, %v1097
      %v1130 = vsel %vm1114, %v938, %v1098
      %v1131 = vpack.c.bf16 %v1117, %v1115
      %v1132 = vpack.c.bf16 %v1118, %v1116
      %v1133 = vpack.c.bf16 %v1121, %v1119
      %v1134 = vpack.c.bf16 %v1122, %v1120
      %v1135 = vpack.c.bf16 %v1125, %v1123
      %v1136 = vpack.c.bf16 %v1126, %v1124
      %v1137 = vpack.c.bf16 %v1129, %v1127
      %v1138 = vpack.c.bf16 %v1130, %v1128
      %v1139 = vld [vmem:[%s4] sm:$0xf]
      %v1140 = vld [vmem:[%s4 + $0x4] sm:$0xf]
      %v1141 = vld [vmem:[%s4 + $0x8] sm:$0xf]
      %v1142 = vld [vmem:[%s4 + $0xc] sm:$0xf]
      %v1143 = vld [vmem:[%s4 + $0x10] sm:$0xf]
      %v1144 = vld [vmem:[%s4 + $0x14] sm:$0xf]
      %v1145 = vld [vmem:[%s4 + $0x18] sm:$0xf]
      %v1146 = vld [vmem:[%s4 + $0x1c] sm:$0xf]
      %v1147 = vld [vmem:[%s4 + $0x20] sm:$0xf]
      %v1148 = vld [vmem:[%s4 + $0x24] sm:$0xf]
      %v1149 = vld [vmem:[%s4 + $0x28] sm:$0xf]
      %v1150 = vld [vmem:[%s4 + $0x2c] sm:$0xf]
      %v1151 = vld [vmem:[%s4 + $0x30] sm:$0xf]
      %v1152 = vld [vmem:[%s4 + $0x34] sm:$0xf]
      %v1153 = vld [vmem:[%s4 + $0x38] sm:$0xf]
      %v1154 = vld [vmem:[%s4 + $0x3c] sm:$0xf]
      %v1155 = vld [vmem:[%s4 + $0x40] sm:$0xf]
      %v1156 = vld [vmem:[%s4 + $0x44] sm:$0xf]
      %v1157 = vld [vmem:[%s4 + $0x48] sm:$0xf]
      %v1158 = vld [vmem:[%s4 + $0x4c] sm:$0xf]
      %v1159 = vld [vmem:[%s4 + $0x50] sm:$0xf]
      %v1160 = vld [vmem:[%s4 + $0x54] sm:$0xf]
      %v1161 = vld [vmem:[%s4 + $0x58] sm:$0xf]
      %v1162 = vld [vmem:[%s4 + $0x5c] sm:$0xf]
      %v1163 = vld [vmem:[%s4 + $0x60] sm:$0xf]
      %v1164 = vld [vmem:[%s4 + $0x64] sm:$0xf]
      %v1165 = vld [vmem:[%s4 + $0x68] sm:$0xf]
      %v1166 = vld [vmem:[%s4 + $0x6c] sm:$0xf]
      %v1167 = vld [vmem:[%s4 + $0x70] sm:$0xf]
      %v1168 = vld [vmem:[%s4 + $0x74] sm:$0xf]
      %v1169 = vld [vmem:[%s4 + $0x78] sm:$0xf]
      %v1170 = vld [vmem:[%s4 + $0x7c] sm:$0xf]
      %v1171 = vld [vmem:[%s5] sm:$0x1]
      %v1173 = vperm.slane %v1171, 0
      %v1207 = vunpack.c.l.b16 %v1139
      %v1208 = vunpack.c.l.b16 %v1140
      %v1209 = vunpack.c.l.b16 %v1141
      %v1210 = vunpack.c.l.b16 %v1142
      %v1211 = vunpack.c.l.b16 %v1143
      %v1212 = vunpack.c.l.b16 %v1144
      %v1213 = vunpack.c.l.b16 %v1145
      %v1214 = vunpack.c.l.b16 %v1146
      %v1215 = vunpack.c.l.b16 %v1147
      %v1216 = vunpack.c.l.b16 %v1148
      %v1217 = vunpack.c.l.b16 %v1149
      %v1218 = vunpack.c.l.b16 %v1150
      %v1219 = vunpack.c.l.b16 %v1151
      %v1220 = vunpack.c.l.b16 %v1152
      %v1221 = vunpack.c.l.b16 %v1153
      %v1222 = vunpack.c.l.b16 %v1154
      %v1223 = vunpack.c.l.b16 %v1155
      %v1224 = vunpack.c.l.b16 %v1156
      %v1225 = vunpack.c.l.b16 %v1157
      %v1226 = vunpack.c.l.b16 %v1158
      %v1227 = vunpack.c.l.b16 %v1159
      %v1228 = vunpack.c.l.b16 %v1160
      %v1229 = vunpack.c.l.b16 %v1161
      %v1230 = vunpack.c.l.b16 %v1162
      %v1231 = vunpack.c.l.b16 %v1163
      %v1232 = vunpack.c.l.b16 %v1164
      %v1233 = vunpack.c.l.b16 %v1165
      %v1234 = vunpack.c.l.b16 %v1166
      %v1235 = vunpack.c.l.b16 %v1167
      %v1236 = vunpack.c.l.b16 %v1168
      %v1237 = vunpack.c.l.b16 %v1169
      %v1238 = vunpack.c.l.b16 %v1170
      %v1239 = vpack.c.b16 %v1208, %v1207
      %v1240 = vpack.c.b16 %v1210, %v1209
      %v1241 = vpack.c.b16 %v1212, %v1211
      %v1242 = vpack.c.b16 %v1214, %v1213
      %v1243 = vpack.c.b16 %v1216, %v1215
      %v1244 = vpack.c.b16 %v1218, %v1217
      %v1245 = vpack.c.b16 %v1220, %v1219
      %v1246 = vpack.c.b16 %v1222, %v1221
      %v1247 = vpack.c.b16 %v1224, %v1223
      %v1248 = vpack.c.b16 %v1226, %v1225
      %v1249 = vpack.c.b16 %v1228, %v1227
      %v1250 = vpack.c.b16 %v1230, %v1229
      %v1251 = vpack.c.b16 %v1232, %v1231
      %v1252 = vpack.c.b16 %v1234, %v1233
      %v1253 = vpack.c.b16 %v1236, %v1235
      %v1254 = vpack.c.b16 %v1238, %v1237
      %1271 = vmatpush.bf16.msra.mxu0 %v1246
      %1272 = vmatpush.bf16.msra.mxu0 %v1245
      %1273 = vmatpush.bf16.msra.mxu0 %v1244
      %1274 = vmatpush.bf16.msra.mxu0 %v1243
      %1275 = vmatpush.bf16.msra.mxu0 %v1242
      %1276 = vmatpush.bf16.msra.mxu0 %v1241
      %1277 = vmatpush.bf16.msra.mxu0 %v1240
      %1278 = vmatpush.bf16.msra.mxu0 %v1239
      %1279 = vmatmul.bf16.gmra.mxu0 %v1131
      %v1280 = vpop.f32.mrf.mxu0
      %v1281 = vadd.f32 %v1173, %v1280
      %v1282 = vpop.f32.mrf.mxu0
      %v1283 = vadd.f32 %v1173, %v1282
      %1284 = vmatmul.bf16.gmra.mxu0 %v1133
      %v1285 = vpop.f32.mrf.mxu0
      %v1286 = vadd.f32 %v1173, %v1285
      %v1287 = vpop.f32.mrf.mxu0
      %v1288 = vadd.f32 %v1173, %v1287
      %1289 = vmatmul.bf16.gmra.mxu0 %v1135
      %v1290 = vpop.f32.mrf.mxu0
      %v1291 = vadd.f32 %v1173, %v1290
      %v1292 = vpop.f32.mrf.mxu0
      %v1293 = vadd.f32 %v1173, %v1292
      %1294 = vmatmul.bf16.gmra.mxu0 %v1137
      %v1295 = vpop.f32.mrf.mxu0
      %v1296 = vadd.f32 %v1173, %v1295
      %v1297 = vpop.f32.mrf.mxu0
      %v1298 = vadd.f32 %v1173, %v1297
      %1299 = vdwg.mxu0
      %1300 = vmatpush.bf16.msra.mxu0 %v1254
      %1301 = vmatpush.bf16.msra.mxu0 %v1253
      %1302 = vmatpush.bf16.msra.mxu0 %v1252
      %1303 = vmatpush.bf16.msra.mxu0 %v1251
      %1304 = vmatpush.bf16.msra.mxu0 %v1250
      %1305 = vmatpush.bf16.msra.mxu0 %v1249
      %1306 = vmatpush.bf16.msra.mxu0 %v1248
      %1307 = vmatpush.bf16.msra.mxu0 %v1247
      %1308 = vmatmul.bf16.gmra.mxu0 %v1132
      %v1309 = vpop.f32.mrf.mxu0
      %v1310 = vadd.f32 %v1281, %v1309
      %v1311 = vpop.f32.mrf.mxu0
      %v1312 = vadd.f32 %v1283, %v1311
      %1313 = vmatmul.bf16.gmra.mxu0 %v1134
      %v1314 = vpop.f32.mrf.mxu0
      %v1315 = vadd.f32 %v1286, %v1314
      %v1316 = vpop.f32.mrf.mxu0
      %v1317 = vadd.f32 %v1288, %v1316
      %1318 = vmatmul.bf16.gmra.mxu0 %v1136
      %v1319 = vpop.f32.mrf.mxu0
      %v1320 = vadd.f32 %v1291, %v1319
      %v1321 = vpop.f32.mrf.mxu0
      %v1322 = vadd.f32 %v1293, %v1321
      %1323 = vmatmul.bf16.gmra.mxu0 %v1138
      %v1324 = vpop.f32.mrf.mxu0
      %v1325 = vadd.f32 %v1296, %v1324
      %v1326 = vpop.f32.mrf.mxu0
      %v1327 = vadd.f32 %v1298, %v1326
      %1328 = vdwg.mxu0
      %vm1329 = vcmp.gt.f32.partialorder %v1310, 0.0
      %vm1330 = vcmp.gt.f32.partialorder %v1312, 0.0
      %vm1331 = vcmp.gt.f32.partialorder %v1315, 0.0
      %vm1332 = vcmp.gt.f32.partialorder %v1317, 0.0
      %vm1333 = vcmp.gt.f32.partialorder %v1320, 0.0
      %vm1334 = vcmp.gt.f32.partialorder %v1322, 0.0
      %vm1335 = vcmp.gt.f32.partialorder %v1325, 0.0
      %vm1336 = vcmp.gt.f32.partialorder %v1327, 0.0
      %v1337 = vmul.f32 %v1310, 0.1
      %v1338 = vmul.f32 %v1312, 0.1
      %v1339 = vmul.f32 %v1315, 0.1
      %v1340 = vmul.f32 %v1317, 0.1
      %v1341 = vmul.f32 %v1320, 0.1
      %v1342 = vmul.f32 %v1322, 0.1
      %v1343 = vmul.f32 %v1325, 0.1
      %v1344 = vmul.f32 %v1327, 0.1
      %v1345 = vsel %vm1329, %v1310, %v1337
      %v1346 = vsel %vm1330, %v1312, %v1338
      %v1347 = vsel %vm1331, %v1315, %v1339
      %v1348 = vsel %vm1332, %v1317, %v1340
      %v1349 = vsel %vm1333, %v1320, %v1341
      %v1350 = vsel %vm1334, %v1322, %v1342
      %v1351 = vsel %vm1335, %v1325, %v1343
      %v1352 = vsel %vm1336, %v1327, %v1344
      %v1353 = vpack.c.bf16 %v1346, %v1345
      %v1354 = vpack.c.bf16 %v1348, %v1347
      %v1355 = vpack.c.bf16 %v1350, %v1349
      %v1356 = vpack.c.bf16 %v1352, %v1351
      %v1357 = vld [vmem:[%s6] sm:$0xf]
      %v1358 = vld [vmem:[%s6 + $0x4] sm:$0xf]
      %v1359 = vld [vmem:[%s6 + $0x8] sm:$0xf]
      %v1360 = vld [vmem:[%s6 + $0xc] sm:$0xf]
      %v1361 = vld [vmem:[%s6 + $0x10] sm:$0xf]
      %v1362 = vld [vmem:[%s6 + $0x14] sm:$0xf]
      %v1363 = vld [vmem:[%s6 + $0x18] sm:$0xf]
      %v1364 = vld [vmem:[%s6 + $0x1c] sm:$0xf]
      %v1365 = vld [vmem:[%s6 + $0x20] sm:$0xf]
      %v1366 = vld [vmem:[%s6 + $0x24] sm:$0xf]
      %v1367 = vld [vmem:[%s6 + $0x28] sm:$0xf]
      %v1368 = vld [vmem:[%s6 + $0x2c] sm:$0xf]
      %v1369 = vld [vmem:[%s6 + $0x30] sm:$0xf]
      %v1370 = vld [vmem:[%s6 + $0x34] sm:$0xf]
      %v1371 = vld [vmem:[%s6 + $0x38] sm:$0xf]
      %v1372 = vld [vmem:[%s6 + $0x3c] sm:$0xf]
      %v1389 = vunpack.c.l.b16 %v1357
      %v1390 = vunpack.c.l.b16 %v1358
      %v1391 = vunpack.c.l.b16 %v1359
      %v1392 = vunpack.c.l.b16 %v1360
      %v1393 = vunpack.c.l.b16 %v1361
      %v1394 = vunpack.c.l.b16 %v1362
      %v1395 = vunpack.c.l.b16 %v1363
      %v1396 = vunpack.c.l.b16 %v1364
      %v1397 = vunpack.c.l.b16 %v1365
      %v1398 = vunpack.c.l.b16 %v1366
      %v1399 = vunpack.c.l.b16 %v1367
      %v1400 = vunpack.c.l.b16 %v1368
      %v1401 = vunpack.c.l.b16 %v1369
      %v1402 = vunpack.c.l.b16 %v1370
      %v1403 = vunpack.c.l.b16 %v1371
      %v1404 = vunpack.c.l.b16 %v1372
      %v1405 = vpack.c.b16 %v1390, %v1389
      %v1406 = vpack.c.b16 %v1392, %v1391
      %v1407 = vpack.c.b16 %v1394, %v1393
      %v1408 = vpack.c.b16 %v1396, %v1395
      %v1409 = vpack.c.b16 %v1398, %v1397
      %v1410 = vpack.c.b16 %v1400, %v1399
      %v1411 = vpack.c.b16 %v1402, %v1401
      %v1412 = vpack.c.b16 %v1404, %v1403
      %1421 = vmatpush.bf16.msra.mxu0 %v1412
      %1422 = vmatpush.bf16.msra.mxu0 %v1411
      %1423 = vmatpush.bf16.msra.mxu0 %v1410
      %1424 = vmatpush.bf16.msra.mxu0 %v1409
      %1425 = vmatpush.bf16.msra.mxu0 %v1408
      %1426 = vmatpush.bf16.msra.mxu0 %v1407
      %1427 = vmatpush.bf16.msra.mxu0 %v1406
      %1428 = vmatpush.bf16.msra.mxu0 %v1405
      %1429 = vmatmul.bf16.gmra.mxu0 %v1353
      %v1430 = vpop.f32.mrf.mxu0
      %v1431 = vadd.f32 0.0, %v1430
      %v1432 = vpop.f32.mrf.mxu0
      %v1433 = vadd.f32 0.0, %v1432
      %1434 = vmatmul.bf16.gmra.mxu0 %v1354
      %v1435 = vpop.f32.mrf.mxu0
      %v1436 = vadd.f32 0.0, %v1435
      %v1437 = vpop.f32.mrf.mxu0
      %v1438 = vadd.f32 0.0, %v1437
      %1439 = vmatmul.bf16.gmra.mxu0 %v1355
      %v1440 = vpop.f32.mrf.mxu0
      %v1441 = vadd.f32 0.0, %v1440
      %v1442 = vpop.f32.mrf.mxu0
      %v1443 = vadd.f32 0.0, %v1442
      %1444 = vmatmul.bf16.gmra.mxu0 %v1356
      %v1445 = vpop.f32.mrf.mxu0
      %v1446 = vadd.f32 0.0, %v1445
      %v1447 = vpop.f32.mrf.mxu0
      %v1448 = vadd.f32 0.0, %v1447
      %1449 = vdwg.mxu0
      %1450 = vst [vmem:[%s397] sm:$0xff] %v1431
      %1451 = vst [vmem:[%s397 + $0x8] sm:$0xff] %v1433
      %1452 = vst [vmem:[%s397 + $0x10] sm:$0xff] %v1436
      %1453 = vst [vmem:[%s397 + $0x18] sm:$0xff] %v1438
      %1454 = vst [vmem:[%s397 + $0x20] sm:$0xff] %v1441
      %1455 = vst [vmem:[%s397 + $0x28] sm:$0xff] %v1443
      %1456 = vst [vmem:[%s397 + $0x30] sm:$0xff] %v1446
      %1457 = vst [vmem:[%s397 + $0x38] sm:$0xff] %v1448
      %v1458 = vld [vmem:[%s7] sm:$0xf]
      %v1459 = vld [vmem:[%s7 + $0x4] sm:$0xf]
      %v1460 = vld [vmem:[%s7 + $0x8] sm:$0xf]
      %v1461 = vld [vmem:[%s7 + $0xc] sm:$0xf]
      %v1462 = vld [vmem:[%s7 + $0x10] sm:$0xf]
      %v1463 = vld [vmem:[%s7 + $0x14] sm:$0xf]
      %v1464 = vld [vmem:[%s7 + $0x18] sm:$0xf]
      %v1465 = vld [vmem:[%s7 + $0x1c] sm:$0xf]
      %v1466 = vld [vmem:[%s7 + $0x20] sm:$0xf]
      %v1467 = vld [vmem:[%s7 + $0x24] sm:$0xf]
      %v1468 = vld [vmem:[%s7 + $0x28] sm:$0xf]
      %v1469 = vld [vmem:[%s7 + $0x2c] sm:$0xf]
      %v1470 = vld [vmem:[%s7 + $0x30] sm:$0xf]
      %v1471 = vld [vmem:[%s7 + $0x34] sm:$0xf]
      %v1472 = vld [vmem:[%s7 + $0x38] sm:$0xf]
      %v1473 = vld [vmem:[%s7 + $0x3c] sm:$0xf]
      %v1474 = vld [vmem:[%s7 + $0x40] sm:$0xf]
      %v1475 = vld [vmem:[%s7 + $0x44] sm:$0xf]
      %v1476 = vld [vmem:[%s7 + $0x48] sm:$0xf]
      %v1477 = vld [vmem:[%s7 + $0x4c] sm:$0xf]
      %v1478 = vld [vmem:[%s7 + $0x50] sm:$0xf]
      %v1479 = vld [vmem:[%s7 + $0x54] sm:$0xf]
      %v1480 = vld [vmem:[%s7 + $0x58] sm:$0xf]
      %v1481 = vld [vmem:[%s7 + $0x5c] sm:$0xf]
      %v1482 = vld [vmem:[%s7 + $0x60] sm:$0xf]
      %v1483 = vld [vmem:[%s7 + $0x64] sm:$0xf]
      %v1484 = vld [vmem:[%s7 + $0x68] sm:$0xf]
      %v1485 = vld [vmem:[%s7 + $0x6c] sm:$0xf]
      %v1486 = vld [vmem:[%s7 + $0x70] sm:$0xf]
      %v1487 = vld [vmem:[%s7 + $0x74] sm:$0xf]
      %v1488 = vld [vmem:[%s7 + $0x78] sm:$0xf]
      %v1489 = vld [vmem:[%s7 + $0x7c] sm:$0xf]
      %v1490 = vld [vmem:[%s8] sm:$0x1]
      %v1492 = vperm.slane %v1490, 0
      %v1526 = vunpack.c.l.b16 %v1458
      %v1527 = vunpack.c.l.b16 %v1459
      %v1528 = vunpack.c.l.b16 %v1460
      %v1529 = vunpack.c.l.b16 %v1461
      %v1530 = vunpack.c.l.b16 %v1462
      %v1531 = vunpack.c.l.b16 %v1463
      %v1532 = vunpack.c.l.b16 %v1464
      %v1533 = vunpack.c.l.b16 %v1465
      %v1534 = vunpack.c.l.b16 %v1466
      %v1535 = vunpack.c.l.b16 %v1467
      %v1536 = vunpack.c.l.b16 %v1468
      %v1537 = vunpack.c.l.b16 %v1469
      %v1538 = vunpack.c.l.b16 %v1470
      %v1539 = vunpack.c.l.b16 %v1471
      %v1540 = vunpack.c.l.b16 %v1472
      %v1541 = vunpack.c.l.b16 %v1473
      %v1542 = vunpack.c.l.b16 %v1474
      %v1543 = vunpack.c.l.b16 %v1475
      %v1544 = vunpack.c.l.b16 %v1476
      %v1545 = vunpack.c.l.b16 %v1477
      %v1546 = vunpack.c.l.b16 %v1478
      %v1547 = vunpack.c.l.b16 %v1479
      %v1548 = vunpack.c.l.b16 %v1480
      %v1549 = vunpack.c.l.b16 %v1481
      %v1550 = vunpack.c.l.b16 %v1482
      %v1551 = vunpack.c.l.b16 %v1483
      %v1552 = vunpack.c.l.b16 %v1484
      %v1553 = vunpack.c.l.b16 %v1485
      %v1554 = vunpack.c.l.b16 %v1486
      %v1555 = vunpack.c.l.b16 %v1487
      %v1556 = vunpack.c.l.b16 %v1488
      %v1557 = vunpack.c.l.b16 %v1489
      %v1558 = vpack.c.b16 %v1527, %v1526
      %v1559 = vpack.c.b16 %v1529, %v1528
      %v1560 = vpack.c.b16 %v1531, %v1530
      %v1561 = vpack.c.b16 %v1533, %v1532
      %v1562 = vpack.c.b16 %v1535, %v1534
      %v1563 = vpack.c.b16 %v1537, %v1536
      %v1564 = vpack.c.b16 %v1539, %v1538
      %v1565 = vpack.c.b16 %v1541, %v1540
      %v1566 = vpack.c.b16 %v1543, %v1542
      %v1567 = vpack.c.b16 %v1545, %v1544
      %v1568 = vpack.c.b16 %v1547, %v1546
      %v1569 = vpack.c.b16 %v1549, %v1548
      %v1570 = vpack.c.b16 %v1551, %v1550
      %v1571 = vpack.c.b16 %v1553, %v1552
      %v1572 = vpack.c.b16 %v1555, %v1554
      %v1573 = vpack.c.b16 %v1557, %v1556
      %1590 = vmatpush.bf16.msra.mxu0 %v1565
      %1591 = vmatpush.bf16.msra.mxu0 %v1564
      %1592 = vmatpush.bf16.msra.mxu0 %v1563
      %1593 = vmatpush.bf16.msra.mxu0 %v1562
      %1594 = vmatpush.bf16.msra.mxu0 %v1561
      %1595 = vmatpush.bf16.msra.mxu0 %v1560
      %1596 = vmatpush.bf16.msra.mxu0 %v1559
      %1597 = vmatpush.bf16.msra.mxu0 %v1558
      %1598 = vmatmul.bf16.gmra.mxu0 %v1131
      %v1599 = vpop.f32.mrf.mxu0
      %v1600 = vadd.f32 %v1492, %v1599
      %v1601 = vpop.f32.mrf.mxu0
      %v1602 = vadd.f32 %v1492, %v1601
      %1603 = vmatmul.bf16.gmra.mxu0 %v1133
      %v1604 = vpop.f32.mrf.mxu0
      %v1605 = vadd.f32 %v1492, %v1604
      %v1606 = vpop.f32.mrf.mxu0
      %v1607 = vadd.f32 %v1492, %v1606
      %1608 = vmatmul.bf16.gmra.mxu0 %v1135
      %v1609 = vpop.f32.mrf.mxu0
      %v1610 = vadd.f32 %v1492, %v1609
      %v1611 = vpop.f32.mrf.mxu0
      %v1612 = vadd.f32 %v1492, %v1611
      %1613 = vmatmul.bf16.gmra.mxu0 %v1137
      %v1614 = vpop.f32.mrf.mxu0
      %v1615 = vadd.f32 %v1492, %v1614
      %v1616 = vpop.f32.mrf.mxu0
      %v1617 = vadd.f32 %v1492, %v1616
      %1618 = vdwg.mxu0
      %1619 = vmatpush.bf16.msra.mxu0 %v1573
      %1620 = vmatpush.bf16.msra.mxu0 %v1572
      %1621 = vmatpush.bf16.msra.mxu0 %v1571
      %1622 = vmatpush.bf16.msra.mxu0 %v1570
      %1623 = vmatpush.bf16.msra.mxu0 %v1569
      %1624 = vmatpush.bf16.msra.mxu0 %v1568
      %1625 = vmatpush.bf16.msra.mxu0 %v1567
      %1626 = vmatpush.bf16.msra.mxu0 %v1566
      %1627 = vmatmul.bf16.gmra.mxu0 %v1132
      %v1628 = vpop.f32.mrf.mxu0
      %v1629 = vadd.f32 %v1600, %v1628
      %v1630 = vpop.f32.mrf.mxu0
      %v1631 = vadd.f32 %v1602, %v1630
      %1632 = vmatmul.bf16.gmra.mxu0 %v1134
      %v1633 = vpop.f32.mrf.mxu0
      %v1634 = vadd.f32 %v1605, %v1633
      %v1635 = vpop.f32.mrf.mxu0
      %v1636 = vadd.f32 %v1607, %v1635
      %1637 = vmatmul.bf16.gmra.mxu0 %v1136
      %v1638 = vpop.f32.mrf.mxu0
      %v1639 = vadd.f32 %v1610, %v1638
      %v1640 = vpop.f32.mrf.mxu0
      %v1641 = vadd.f32 %v1612, %v1640
      %1642 = vmatmul.bf16.gmra.mxu0 %v1138
      %v1643 = vpop.f32.mrf.mxu0
      %v1644 = vadd.f32 %v1615, %v1643
      %v1645 = vpop.f32.mrf.mxu0
      %v1646 = vadd.f32 %v1617, %v1645
      %1647 = vdwg.mxu0
      %v1648 = vpack.c.bf16 %v1629, %v1629
      %v1649 = vpack.c.bf16 %v1631, %v1631
      %v1650 = vpack.c.bf16 %v1634, %v1634
      %v1651 = vpack.c.bf16 %v1636, %v1636
      %v1652 = vpack.c.bf16 %v1639, %v1639
      %v1653 = vpack.c.bf16 %v1641, %v1641
      %v1654 = vpack.c.bf16 %v1644, %v1644
      %v1655 = vpack.c.bf16 %v1646, %v1646
      %1656 = vst [vmem:[%s403] sm:$0xf] %v1648
      %1657 = vst [vmem:[%s403 + $0x4] sm:$0xf] %v1649
      %1658 = vst [vmem:[%s403 + $0x8] sm:$0xf] %v1650
      %1659 = vst [vmem:[%s403 + $0xc] sm:$0xf] %v1651
      %1660 = vst [vmem:[%s403 + $0x10] sm:$0xf] %v1652
      %1661 = vst [vmem:[%s403 + $0x14] sm:$0xf] %v1653
      %1662 = vst [vmem:[%s403 + $0x18] sm:$0xf] %v1654
      %1663 = vst [vmem:[%s403 + $0x1c] sm:$0xf] %v1655
      %s1664 = smul.u32 8, %s22
      %p1665 = scmp.lt.s32.totalorder %s1664, 15
      %s1666 = scalar_select %p1665, %s1664, 15
      %s1667 = smul.addr %s1666, 8
      %s1668 = scalar_lea.vmem %s9, %s1667
      %s1669 = smul.u32 8, %s22
      %p1670 = scmp.lt.s32.totalorder %s1669, 15
      %s1671 = scalar_select %p1670, %s1669, 15
      %s1672 = smul.addr %s1671, 4
      %s1673 = scalar_lea.vmem %s10, %s1672
      // Predicated region
      $region57: #{msr_fpn_forward.8} parent=55 // pred_check
        %p1674 = pneg %p239
      $region58: #{msr_fpn_forward.8} parent=55 // pred_check_branch
        %1676 = sbr.rel (%p1674) target = $region60
      $region59: #{msr_fpn_forward.8} parent=55 // pred_region
        %s1677 = smul.u32 8, %s22
      $region60: #{msr_fpn_forward.8} parent=55 // pred_fallthru
        _
      // Predicated region
      $region61: #{msr_fpn_forward.8} parent=55 // pred_check
        %p1678 = pneg %p265
      $region62: #{msr_fpn_forward.8} parent=55 // pred_check_branch
        %1680 = sbr.rel (%p1678) target = $region64
      $region63: #{msr_fpn_forward.8} parent=55 // pred_region
        %s1681 = smul.u32 8, %s22
      $region64: #{msr_fpn_forward.8} parent=55 // pred_fallthru
        _
    $region56: #{msr_fpn_forward.8} parent=5 // pred_fallthru
      _
    %p1682 = scmp.le.s32.totalorder 2, %s17
    // Predicated region
    $region65: #{msr_fpn_forward.8} parent=5 // pred_check
      %p1683 = pneg %p1682
    $region66: #{msr_fpn_forward.8} parent=5 // pred_check_branch
      %1685 = sbr.rel (%p1683) target = $region68
    $region67: #{msr_fpn_forward.8} parent=5 // pred_region
      %s1686 = ssub.s32 %s17, 2
      // Predicated region
      $region69: #{msr_fpn_forward.8} parent=67 // pred_check
        %p1687 = pneg %p245
      $region70: #{msr_fpn_forward.8} parent=67 // pred_check_branch
        %1689 = sbr.rel (%p1687) target = $region72
      $region71: #{msr_fpn_forward.8} parent=67 // pred_region
        %s1690 = smul.u32 8, %s23
        %p1691 = scmp.lt.s32.totalorder %s1690, 15
        %s1692 = scalar_select %p1691, %s1690, 15
        %s1693 = smul.addr %s1692, 8
        %s1694 = scalar_lea.vmem %s9, %s1693
      $region72: #{msr_fpn_forward.8} parent=67 // pred_fallthru
        _
      // Predicated region
      $region73: #{msr_fpn_forward.8} parent=67 // pred_check
        %p1695 = pneg %p271
      $region74: #{msr_fpn_forward.8} parent=67 // pred_check_branch
        %1697 = sbr.rel (%p1695) target = $region76
      $region75: #{msr_fpn_forward.8} parent=67 // pred_region
        %s1698 = smul.u32 8, %s23
        %p1699 = scmp.lt.s32.totalorder %s1698, 15
        %s1700 = scalar_select %p1699, %s1698, 15
        %s1701 = smul.addr %s1700, 4
        %s1702 = scalar_lea.vmem %s10, %s1701
      $region76: #{msr_fpn_forward.8} parent=67 // pred_fallthru
        _
    $region68: #{msr_fpn_forward.8} parent=5 // pred_fallthru
      _
  $region6: #{msr_fpn_forward.8} parent=0 // loop_footer
    %s21 = sadd.s32 1, %s17
  $region7: #{msr_fpn_forward.8} parent=0 // loop_footer_branch
    %16 = sbr.rel target = $region3
  $region8: #{msr_fpn_forward.8} parent=0 // loop_exit
    _

// kernel: msr_fpn_forward.7
$region0: #{msr_fpn_forward.7}
  #allocation0 [shape = 'u32[]', space=smem, size = 0x4, offset = 0x4, fixed_abs, tag = 'smem constant byte address 0x4 - core index']
  #allocation1 [shape = 'u32[72,128]{1,0:T(1,128)}', space=vmem, size = 0x9000, scoped, tag = 'internal scratch']
  %s0 = inlined_call_operand.vmem [shape: bf16[32,512], index: 0, kind: input, shape index: {}]
  %s1 = inlined_call_operand.vmem [shape: bf16[32,64], index: 1, kind: input, shape index: {}]
  %s2 = inlined_call_operand.vmem [shape: bf16[576,512], index: 2, kind: input, shape index: {}]
  %s3 = inlined_call_operand.vmem [shape: f32[1,512], index: 3, kind: input, shape index: {}]
  %s4 = inlined_call_operand.vmem [shape: bf16[512,256], index: 4, kind: input, shape index: {}]
  %s5 = inlined_call_operand.vmem [shape: f32[1,256], index: 5, kind: input, shape index: {}]
  %s6 = inlined_call_operand.vmem [shape: bf16[256,256], index: 6, kind: input, shape index: {}]
  %s7 = inlined_call_operand.vmem [shape: bf16[512,128], index: 7, kind: input, shape index: {}]
  %s8 = inlined_call_operand.vmem [shape: f32[1,128], index: 8, kind: input, shape index: {}]
  %s9 = inlined_call_operand.vmem [shape: f32[32,256], index: 9, kind: output, shape index: {0}]
  %s10 = inlined_call_operand.vmem [shape: bf16[32,128], index: 10, kind: output, shape index: {1}]
  %11 = xla_tuple %s9, %s10
  %s12 = sld [smem:[#allocation0]]
  $region54: #{msr_fpn_forward.7} parent=0
    _
  %s14 = ssub.s32 1, %s12
  %s15 = scalar_select 0, %s14, %s12
  // Predicated region
  $region2: #{msr_fpn_forward.7} parent=0 // pred_check
    _
  $region3: #{msr_fpn_forward.7} parent=0 // pred_check_branch
    %17 = sbr.rel (0) target = $region5
  $region4: #{msr_fpn_forward.7} parent=0 // pred_region
    _
  $region5: #{msr_fpn_forward.7} parent=0 // pred_fallthru
    _
  // Predicated region
  $region6: #{msr_fpn_forward.7} parent=0 // pred_check
    _
  $region7: #{msr_fpn_forward.7} parent=0 // pred_check_branch
    %19 = sbr.rel (0) target = $region9
  $region8: #{msr_fpn_forward.7} parent=0 // pred_region
    _
  $region9: #{msr_fpn_forward.7} parent=0 // pred_fallthru
    _
  // Predicated region
  $region10: #{msr_fpn_forward.7} parent=0 // pred_check
    _
  $region11: #{msr_fpn_forward.7} parent=0 // pred_check_branch
    %21 = sbr.rel (0) target = $region13
  $region12: #{msr_fpn_forward.7} parent=0 // pred_region
    _
  $region13: #{msr_fpn_forward.7} parent=0 // pred_fallthru
    _
  // Predicated region
  $region14: #{msr_fpn_forward.7} parent=0 // pred_check
    _
  $region15: #{msr_fpn_forward.7} parent=0 // pred_check_branch
    %23 = sbr.rel (0) target = $region17
  $region16: #{msr_fpn_forward.7} parent=0 // pred_region
    _
  $region17: #{msr_fpn_forward.7} parent=0 // pred_fallthru
    _
  // Predicated region
  $region18: #{msr_fpn_forward.7} parent=0 // pred_check
    _
  $region19: #{msr_fpn_forward.7} parent=0 // pred_check_branch
    %25 = sbr.rel (0) target = $region21
  $region20: #{msr_fpn_forward.7} parent=0 // pred_region
    _
  $region21: #{msr_fpn_forward.7} parent=0 // pred_fallthru
    _
  // Predicated region
  $region22: #{msr_fpn_forward.7} parent=0 // pred_check
    _
  $region23: #{msr_fpn_forward.7} parent=0 // pred_check_branch
    %27 = sbr.rel (0) target = $region25
  $region24: #{msr_fpn_forward.7} parent=0 // pred_region
    _
  $region25: #{msr_fpn_forward.7} parent=0 // pred_fallthru
    _
  // Predicated region
  $region26: #{msr_fpn_forward.7} parent=0 // pred_check
    _
  $region27: #{msr_fpn_forward.7} parent=0 // pred_check_branch
    %29 = sbr.rel (0) target = $region29
  $region28: #{msr_fpn_forward.7} parent=0 // pred_region
    _
  $region29: #{msr_fpn_forward.7} parent=0 // pred_fallthru
    _
  // Predicated region
  $region30: #{msr_fpn_forward.7} parent=0 // pred_check
    _
  $region31: #{msr_fpn_forward.7} parent=0 // pred_check_branch
    %31 = sbr.rel (0) target = $region33
  $region32: #{msr_fpn_forward.7} parent=0 // pred_region
    _
  $region33: #{msr_fpn_forward.7} parent=0 // pred_fallthru
    _
  // Predicated region
  $region34: #{msr_fpn_forward.7} parent=0 // pred_check
    _
  $region35: #{msr_fpn_forward.7} parent=0 // pred_check_branch
    %33 = sbr.rel (0) target = $region37
  $region36: #{msr_fpn_forward.7} parent=0 // pred_region
    _
  $region37: #{msr_fpn_forward.7} parent=0 // pred_fallthru
    _
  %v35 = vld [vmem:[%s2] sm:$0xff]
  %v36 = vld [vmem:[%s2 + $0x8] sm:$0xff]
  %v37 = vld [vmem:[%s2 + $0x10] sm:$0xff]
  %v38 = vld [vmem:[%s2 + $0x18] sm:$0xff]
  %v39 = vld [vmem:[%s2 + $0x20] sm:$0xff]
  %v40 = vld [vmem:[%s2 + $0x28] sm:$0xff]
  %v41 = vld [vmem:[%s2 + $0x30] sm:$0xff]
  %v42 = vld [vmem:[%s2 + $0x38] sm:$0xff]
  %v43 = vld [vmem:[%s2 + $0x40] sm:$0xff]
  %v44 = vld [vmem:[%s2 + $0x48] sm:$0xff]
  %v45 = vld [vmem:[%s2 + $0x50] sm:$0xff]
  %v46 = vld [vmem:[%s2 + $0x58] sm:$0xff]
  %v47 = vld [vmem:[%s2 + $0x60] sm:$0xff]
  %v48 = vld [vmem:[%s2 + $0x68] sm:$0xff]
  %v49 = vld [vmem:[%s2 + $0x70] sm:$0xff]
  %v50 = vld [vmem:[%s2 + $0x78] sm:$0xff]
  %v51 = vld [vmem:[%s2 + $0x80] sm:$0xff]
  %v52 = vld [vmem:[%s2 + $0x88] sm:$0xff]
  %v53 = vld [vmem:[%s2 + $0x90] sm:$0xff]
  %v54 = vld [vmem:[%s2 + $0x98] sm:$0xff]
  %v55 = vld [vmem:[%s2 + $0xa0] sm:$0xff]
  %v56 = vld [vmem:[%s2 + $0xa8] sm:$0xff]
  %v57 = vld [vmem:[%s2 + $0xb0] sm:$0xff]
  %v58 = vld [vmem:[%s2 + $0xb8] sm:$0xff]
  %v59 = vld [vmem:[%s2 + $0xc0] sm:$0xff]
  %v60 = vld [vmem:[%s2 + $0xc8] sm:$0xff]
  %v61 = vld [vmem:[%s2 + $0xd0] sm:$0xff]
  %v62 = vld [vmem:[%s2 + $0xd8] sm:$0xff]
  %v63 = vld [vmem:[%s2 + $0xe0] sm:$0xff]
  %v64 = vld [vmem:[%s2 + $0xe8] sm:$0xff]
  %v65 = vld [vmem:[%s2 + $0xf0] sm:$0xff]
  %v66 = vld [vmem:[%s2 + $0xf8] sm:$0xff]
  %v67 = vld [vmem:[%s2 + $0x100] sm:$0xff]
  %v68 = vld [vmem:[%s2 + $0x108] sm:$0xff]
  %v69 = vld [vmem:[%s2 + $0x110] sm:$0xff]
  %v70 = vld [vmem:[%s2 + $0x118] sm:$0xff]
  %v71 = vld [vmem:[%s2 + $0x120] sm:$0xff]
  %v72 = vld [vmem:[%s2 + $0x128] sm:$0xff]
  %v73 = vld [vmem:[%s2 + $0x130] sm:$0xff]
  %v74 = vld [vmem:[%s2 + $0x138] sm:$0xff]
  %v75 = vld [vmem:[%s2 + $0x140] sm:$0xff]
  %v76 = vld [vmem:[%s2 + $0x148] sm:$0xff]
  %v77 = vld [vmem:[%s2 + $0x150] sm:$0xff]
  %v78 = vld [vmem:[%s2 + $0x158] sm:$0xff]
  %v79 = vld [vmem:[%s2 + $0x160] sm:$0xff]
  %v80 = vld [vmem:[%s2 + $0x168] sm:$0xff]
  %v81 = vld [vmem:[%s2 + $0x170] sm:$0xff]
  %v82 = vld [vmem:[%s2 + $0x178] sm:$0xff]
  %v83 = vld [vmem:[%s2 + $0x180] sm:$0xff]
  %v84 = vld [vmem:[%s2 + $0x188] sm:$0xff]
  %v85 = vld [vmem:[%s2 + $0x190] sm:$0xff]
  %v86 = vld [vmem:[%s2 + $0x198] sm:$0xff]
  %v87 = vld [vmem:[%s2 + $0x1a0] sm:$0xff]
  %v88 = vld [vmem:[%s2 + $0x1a8] sm:$0xff]
  %v89 = vld [vmem:[%s2 + $0x1b0] sm:$0xff]
  %v90 = vld [vmem:[%s2 + $0x1b8] sm:$0xff]
  %v91 = vld [vmem:[%s2 + $0x1c0] sm:$0xff]
  %v92 = vld [vmem:[%s2 + $0x1c8] sm:$0xff]
  %v93 = vld [vmem:[%s2 + $0x1d0] sm:$0xff]
  %v94 = vld [vmem:[%s2 + $0x1d8] sm:$0xff]
  %v95 = vld [vmem:[%s2 + $0x1e0] sm:$0xff]
  %v96 = vld [vmem:[%s2 + $0x1e8] sm:$0xff]
  %v97 = vld [vmem:[%s2 + $0x1f0] sm:$0xff]
  %v98 = vld [vmem:[%s2 + $0x1f8] sm:$0xff]
  %v99 = vld [vmem:[%s2 + $0x200] sm:$0xff]
  %v100 = vld [vmem:[%s2 + $0x208] sm:$0xff]
  %v101 = vld [vmem:[%s2 + $0x210] sm:$0xff]
  %v102 = vld [vmem:[%s2 + $0x218] sm:$0xff]
  %v103 = vld [vmem:[%s2 + $0x220] sm:$0xff]
  %v104 = vld [vmem:[%s2 + $0x228] sm:$0xff]
  %v105 = vld [vmem:[%s2 + $0x230] sm:$0xff]
  %v106 = vld [vmem:[%s2 + $0x238] sm:$0xff]
  %v107 = vld [vmem:[%s2 + $0x240] sm:$0xff]
  %v108 = vld [vmem:[%s2 + $0x248] sm:$0xff]
  %v109 = vld [vmem:[%s2 + $0x250] sm:$0xff]
  %v110 = vld [vmem:[%s2 + $0x258] sm:$0xff]
  %v111 = vld [vmem:[%s2 + $0x260] sm:$0xff]
  %v112 = vld [vmem:[%s2 + $0x268] sm:$0xff]
  %v113 = vld [vmem:[%s2 + $0x270] sm:$0xff]
  %v114 = vld [vmem:[%s2 + $0x278] sm:$0xff]
  %v115 = vld [vmem:[%s2 + $0x280] sm:$0xff]
  %v116 = vld [vmem:[%s2 + $0x288] sm:$0xff]
  %v117 = vld [vmem:[%s2 + $0x290] sm:$0xff]
  %v118 = vld [vmem:[%s2 + $0x298] sm:$0xff]
  %v119 = vld [vmem:[%s2 + $0x2a0] sm:$0xff]
  %v120 = vld [vmem:[%s2 + $0x2a8] sm:$0xff]
  %v121 = vld [vmem:[%s2 + $0x2b0] sm:$0xff]
  %v122 = vld [vmem:[%s2 + $0x2b8] sm:$0xff]
  %v123 = vld [vmem:[%s2 + $0x2c0] sm:$0xff]
  %v124 = vld [vmem:[%s2 + $0x2c8] sm:$0xff]
  %v125 = vld [vmem:[%s2 + $0x2d0] sm:$0xff]
  %v126 = vld [vmem:[%s2 + $0x2d8] sm:$0xff]
  %v127 = vld [vmem:[%s2 + $0x2e0] sm:$0xff]
  %v128 = vld [vmem:[%s2 + $0x2e8] sm:$0xff]
  %v129 = vld [vmem:[%s2 + $0x2f0] sm:$0xff]
  %v130 = vld [vmem:[%s2 + $0x2f8] sm:$0xff]
  %v131 = vld [vmem:[%s2 + $0x300] sm:$0xff]
  %v132 = vld [vmem:[%s2 + $0x308] sm:$0xff]
  %v133 = vld [vmem:[%s2 + $0x310] sm:$0xff]
  %v134 = vld [vmem:[%s2 + $0x318] sm:$0xff]
  %v135 = vld [vmem:[%s2 + $0x320] sm:$0xff]
  %v136 = vld [vmem:[%s2 + $0x328] sm:$0xff]
  %v137 = vld [vmem:[%s2 + $0x330] sm:$0xff]
  %v138 = vld [vmem:[%s2 + $0x338] sm:$0xff]
  %v139 = vld [vmem:[%s2 + $0x340] sm:$0xff]
  %v140 = vld [vmem:[%s2 + $0x348] sm:$0xff]
  %v141 = vld [vmem:[%s2 + $0x350] sm:$0xff]
  %v142 = vld [vmem:[%s2 + $0x358] sm:$0xff]
  %v143 = vld [vmem:[%s2 + $0x360] sm:$0xff]
  %v144 = vld [vmem:[%s2 + $0x368] sm:$0xff]
  %v145 = vld [vmem:[%s2 + $0x370] sm:$0xff]
  %v146 = vld [vmem:[%s2 + $0x378] sm:$0xff]
  %v147 = vld [vmem:[%s2 + $0x380] sm:$0xff]
  %v148 = vld [vmem:[%s2 + $0x388] sm:$0xff]
  %v149 = vld [vmem:[%s2 + $0x390] sm:$0xff]
  %v150 = vld [vmem:[%s2 + $0x398] sm:$0xff]
  %v151 = vld [vmem:[%s2 + $0x3a0] sm:$0xff]
  %v152 = vld [vmem:[%s2 + $0x3a8] sm:$0xff]
  %v153 = vld [vmem:[%s2 + $0x3b0] sm:$0xff]
  %v154 = vld [vmem:[%s2 + $0x3b8] sm:$0xff]
  %v155 = vld [vmem:[%s2 + $0x3c0] sm:$0xff]
  %v156 = vld [vmem:[%s2 + $0x3c8] sm:$0xff]
  %v157 = vld [vmem:[%s2 + $0x3d0] sm:$0xff]
  %v158 = vld [vmem:[%s2 + $0x3d8] sm:$0xff]
  %v159 = vld [vmem:[%s2 + $0x3e0] sm:$0xff]
  %v160 = vld [vmem:[%s2 + $0x3e8] sm:$0xff]
  %v161 = vld [vmem:[%s2 + $0x3f0] sm:$0xff]
  %v162 = vld [vmem:[%s2 + $0x3f8] sm:$0xff]
  %v163 = vld [vmem:[%s0] sm:$0xff]
  %v164 = vld [vmem:[%s0 + $0x8] sm:$0xff]
  %v165 = vld [vmem:[%s0 + $0x10] sm:$0xff]
  %v166 = vld [vmem:[%s0 + $0x18] sm:$0xff]
  %v167 = vld [vmem:[%s0 + $0x20] sm:$0xff]
  %v168 = vld [vmem:[%s0 + $0x28] sm:$0xff]
  %v169 = vld [vmem:[%s0 + $0x30] sm:$0xff]
  %v170 = vld [vmem:[%s0 + $0x38] sm:$0xff]
  %v171 = vld [vmem:[%s2 + $0x400] sm:$0xff]
  %v172 = vld [vmem:[%s2 + $0x408] sm:$0xff]
  %v173 = vld [vmem:[%s2 + $0x410] sm:$0xff]
  %v174 = vld [vmem:[%s2 + $0x418] sm:$0xff]
  %v175 = vld [vmem:[%s2 + $0x420] sm:$0xff]
  %v176 = vld [vmem:[%s2 + $0x428] sm:$0xff]
  %v177 = vld [vmem:[%s2 + $0x430] sm:$0xff]
  %v178 = vld [vmem:[%s2 + $0x438] sm:$0xff]
  %v179 = vld [vmem:[%s2 + $0x440] sm:$0xff]
  %v180 = vld [vmem:[%s2 + $0x448] sm:$0xff]
  %v181 = vld [vmem:[%s2 + $0x450] sm:$0xff]
  %v182 = vld [vmem:[%s2 + $0x458] sm:$0xff]
  %v183 = vld [vmem:[%s2 + $0x460] sm:$0xff]
  %v184 = vld [vmem:[%s2 + $0x468] sm:$0xff]
  %v185 = vld [vmem:[%s2 + $0x470] sm:$0xff]
  %v186 = vld [vmem:[%s2 + $0x478] sm:$0xff]
  %v187 = vld [vmem:[%s1] sm:$0xf]
  %v188 = vld [vmem:[%s1 + $0x4] sm:$0xf]
  %v189 = vld [vmem:[%s1 + $0x8] sm:$0xf]
  %v190 = vld [vmem:[%s1 + $0xc] sm:$0xf]
  %v195 = vunpack.c.l.b16 %v187
  %v196 = vunpack.c.l.b16 %v188
  %v197 = vunpack.c.l.b16 %v189
  %v198 = vunpack.c.l.b16 %v190
  %v199 = vpack.c.b16 %v196, %v195
  %v200 = vpack.c.b16 %v198, %v197
  %v217 = vunpack.c.l.b16 %v171
  %v218 = vunpack.c.h.b16 %v171
  %v219 = vunpack.c.l.b16 %v172
  %v220 = vunpack.c.h.b16 %v172
  %v221 = vunpack.c.l.b16 %v173
  %v222 = vunpack.c.h.b16 %v173
  %v223 = vunpack.c.l.b16 %v174
  %v224 = vunpack.c.h.b16 %v174
  %v225 = vunpack.c.l.b16 %v175
  %v226 = vunpack.c.h.b16 %v175
  %v227 = vunpack.c.l.b16 %v176
  %v228 = vunpack.c.h.b16 %v176
  %v229 = vunpack.c.l.b16 %v177
  %v230 = vunpack.c.h.b16 %v177
  %v231 = vunpack.c.l.b16 %v178
  %v232 = vunpack.c.h.b16 %v178
  %v233 = vunpack.c.l.b16 %v179
  %v234 = vunpack.c.h.b16 %v179
  %v235 = vunpack.c.l.b16 %v180
  %v236 = vunpack.c.h.b16 %v180
  %v237 = vunpack.c.l.b16 %v181
  %v238 = vunpack.c.h.b16 %v181
  %v239 = vunpack.c.l.b16 %v182
  %v240 = vunpack.c.h.b16 %v182
  %v241 = vunpack.c.l.b16 %v183
  %v242 = vunpack.c.h.b16 %v183
  %v243 = vunpack.c.l.b16 %v184
  %v244 = vunpack.c.h.b16 %v184
  %v245 = vunpack.c.l.b16 %v185
  %v246 = vunpack.c.h.b16 %v185
  %v247 = vunpack.c.l.b16 %v186
  %v248 = vunpack.c.h.b16 %v186
  %v249 = vpack.c.b16 %v221, %v217
  %v250 = vpack.c.b16 %v222, %v218
  %v251 = vpack.c.b16 %v223, %v219
  %v252 = vpack.c.b16 %v224, %v220
  %v253 = vpack.c.b16 %v229, %v225
  %v254 = vpack.c.b16 %v230, %v226
  %v255 = vpack.c.b16 %v231, %v227
  %v256 = vpack.c.b16 %v232, %v228
  %v257 = vpack.c.b16 %v237, %v233
  %v258 = vpack.c.b16 %v238, %v234
  %v259 = vpack.c.b16 %v239, %v235
  %v260 = vpack.c.b16 %v240, %v236
  %v261 = vpack.c.b16 %v245, %v241
  %v262 = vpack.c.b16 %v246, %v242
  %v263 = vpack.c.b16 %v247, %v243
  %v264 = vpack.c.b16 %v248, %v244
  %vm281 = vcmask 523264
  %v283 = vsel %vm281, %v199, 0
  %v286 = vsel %vm281, %v200, 0
  %288 = vmatpush.bf16.msra.mxu0 0
  %289 = vmatpush.bf16.msra.mxu0 0
  %290 = vmatpush.bf16.msra.mxu0 0
  %291 = vmatpush.bf16.msra.mxu0 0
  %292 = vmatpush.bf16.msra.mxu0 %v261
  %293 = vmatpush.bf16.msra.mxu0 %v257
  %294 = vmatpush.bf16.msra.mxu0 %v253
  %295 = vmatpush.bf16.msra.mxu0 %v249
  %296 = vmatmul.bf16.gmra.mxu0 %v283
  %v297 = vpop.f32.mrf.mxu0
  %v298 = vadd.f32 0.0, %v297
  %v299 = vpop.f32.mrf.mxu0
  %v300 = vadd.f32 0.0, %v299
  %301 = vmatmul.bf16.gmra.mxu0 %v286
  %v302 = vpop.f32.mrf.mxu0
  %v303 = vadd.f32 0.0, %v302
  %v304 = vpop.f32.mrf.mxu0
  %v305 = vadd.f32 0.0, %v304
  %306 = vdwg.mxu0
  %307 = vmatpush.bf16.msra.mxu0 0
  %308 = vmatpush.bf16.msra.mxu0 0
  %309 = vmatpush.bf16.msra.mxu0 0
  %310 = vmatpush.bf16.msra.mxu0 0
  %311 = vmatpush.bf16.msra.mxu0 %v262
  %312 = vmatpush.bf16.msra.mxu0 %v258
  %313 = vmatpush.bf16.msra.mxu0 %v254
  %314 = vmatpush.bf16.msra.mxu0 %v250
  %315 = vmatmul.bf16.gmra.mxu0 %v283
  %v316 = vpop.f32.mrf.mxu0
  %v317 = vadd.f32 0.0, %v316
  %v318 = vpop.f32.mrf.mxu0
  %v319 = vadd.f32 0.0, %v318
  %320 = vmatmul.bf16.gmra.mxu0 %v286
  %v321 = vpop.f32.mrf.mxu0
  %v322 = vadd.f32 0.0, %v321
  %v323 = vpop.f32.mrf.mxu0
  %v324 = vadd.f32 0.0, %v323
  %325 = vdwg.mxu0
  %326 = vmatpush.bf16.msra.mxu0 0
  %327 = vmatpush.bf16.msra.mxu0 0
  %328 = vmatpush.bf16.msra.mxu0 0
  %329 = vmatpush.bf16.msra.mxu0 0
  %330 = vmatpush.bf16.msra.mxu0 %v263
  %331 = vmatpush.bf16.msra.mxu0 %v259
  %332 = vmatpush.bf16.msra.mxu0 %v255
  %333 = vmatpush.bf16.msra.mxu0 %v251
  %334 = vmatmul.bf16.gmra.mxu0 %v283
  %v335 = vpop.f32.mrf.mxu0
  %v336 = vadd.f32 0.0, %v335
  %v337 = vpop.f32.mrf.mxu0
  %v338 = vadd.f32 0.0, %v337
  %339 = vmatmul.bf16.gmra.mxu0 %v286
  %v340 = vpop.f32.mrf.mxu0
  %v341 = vadd.f32 0.0, %v340
  %v342 = vpop.f32.mrf.mxu0
  %v343 = vadd.f32 0.0, %v342
  %344 = vdwg.mxu0
  %345 = vmatpush.bf16.msra.mxu0 0
  %346 = vmatpush.bf16.msra.mxu0 0
  %347 = vmatpush.bf16.msra.mxu0 0
  %348 = vmatpush.bf16.msra.mxu0 0
  %349 = vmatpush.bf16.msra.mxu0 %v264
  %350 = vmatpush.bf16.msra.mxu0 %v260
  %351 = vmatpush.bf16.msra.mxu0 %v256
  %352 = vmatpush.bf16.msra.mxu0 %v252
  %353 = vmatmul.bf16.gmra.mxu0 %v283
  %v354 = vpop.f32.mrf.mxu0
  %v355 = vadd.f32 0.0, %v354
  %v356 = vpop.f32.mrf.mxu0
  %v357 = vadd.f32 0.0, %v356
  %358 = vmatmul.bf16.gmra.mxu0 %v286
  %v359 = vpop.f32.mrf.mxu0
  %v360 = vadd.f32 0.0, %v359
  %v361 = vpop.f32.mrf.mxu0
  %v362 = vadd.f32 0.0, %v361
  %363 = vdwg.mxu0
  %v372 = vunpack.c.l.b16 %v163
  %v373 = vunpack.c.h.b16 %v163
  %v374 = vunpack.c.l.b16 %v164
  %v375 = vunpack.c.h.b16 %v164
  %v376 = vunpack.c.l.b16 %v165
  %v377 = vunpack.c.h.b16 %v165
  %v378 = vunpack.c.l.b16 %v166
  %v379 = vunpack.c.h.b16 %v166
  %v380 = vunpack.c.l.b16 %v167
  %v381 = vunpack.c.h.b16 %v167
  %v382 = vunpack.c.l.b16 %v168
  %v383 = vunpack.c.h.b16 %v168
  %v384 = vunpack.c.l.b16 %v169
  %v385 = vunpack.c.h.b16 %v169
  %v386 = vunpack.c.l.b16 %v170
  %v387 = vunpack.c.h.b16 %v170
  %v388 = vpack.c.b16 %v376, %v372
  %v389 = vpack.c.b16 %v377, %v373
  %v390 = vpack.c.b16 %v378, %v374
  %v391 = vpack.c.b16 %v379, %v375
  %v392 = vpack.c.b16 %v384, %v380
  %v393 = vpack.c.b16 %v385, %v381
  %v394 = vpack.c.b16 %v386, %v382
  %v395 = vpack.c.b16 %v387, %v383
  %v532 = vunpack.c.l.b16 %v35
  %v533 = vunpack.c.h.b16 %v35
  %v534 = vunpack.c.l.b16 %v36
  %v535 = vunpack.c.h.b16 %v36
  %v536 = vunpack.c.l.b16 %v37
  %v537 = vunpack.c.h.b16 %v37
  %v538 = vunpack.c.l.b16 %v38
  %v539 = vunpack.c.h.b16 %v38
  %v540 = vunpack.c.l.b16 %v39
  %v541 = vunpack.c.h.b16 %v39
  %v542 = vunpack.c.l.b16 %v40
  %v543 = vunpack.c.h.b16 %v40
  %v544 = vunpack.c.l.b16 %v41
  %v545 = vunpack.c.h.b16 %v41
  %v546 = vunpack.c.l.b16 %v42
  %v547 = vunpack.c.h.b16 %v42
  %v548 = vunpack.c.l.b16 %v43
  %v549 = vunpack.c.h.b16 %v43
  %v550 = vunpack.c.l.b16 %v44
  %v551 = vunpack.c.h.b16 %v44
  %v552 = vunpack.c.l.b16 %v45
  %v553 = vunpack.c.h.b16 %v45
  %v554 = vunpack.c.l.b16 %v46
  %v555 = vunpack.c.h.b16 %v46
  %v556 = vunpack.c.l.b16 %v47
  %v557 = vunpack.c.h.b16 %v47
  %v558 = vunpack.c.l.b16 %v48
  %v559 = vunpack.c.h.b16 %v48
  %v560 = vunpack.c.l.b16 %v49
  %v561 = vunpack.c.h.b16 %v49
  %v562 = vunpack.c.l.b16 %v50
  %v563 = vunpack.c.h.b16 %v50
  %v564 = vunpack.c.l.b16 %v51
  %v565 = vunpack.c.h.b16 %v51
  %v566 = vunpack.c.l.b16 %v52
  %v567 = vunpack.c.h.b16 %v52
  %v568 = vunpack.c.l.b16 %v53
  %v569 = vunpack.c.h.b16 %v53
  %v570 = vunpack.c.l.b16 %v54
  %v571 = vunpack.c.h.b16 %v54
  %v572 = vunpack.c.l.b16 %v55
  %v573 = vunpack.c.h.b16 %v55
  %v574 = vunpack.c.l.b16 %v56
  %v575 = vunpack.c.h.b16 %v56
  %v576 = vunpack.c.l.b16 %v57
  %v577 = vunpack.c.h.b16 %v57
  %v578 = vunpack.c.l.b16 %v58
  %v579 = vunpack.c.h.b16 %v58
  %v580 = vunpack.c.l.b16 %v59
  %v581 = vunpack.c.h.b16 %v59
  %v582 = vunpack.c.l.b16 %v60
  %v583 = vunpack.c.h.b16 %v60
  %v584 = vunpack.c.l.b16 %v61
  %v585 = vunpack.c.h.b16 %v61
  %v586 = vunpack.c.l.b16 %v62
  %v587 = vunpack.c.h.b16 %v62
  %v588 = vunpack.c.l.b16 %v63
  %v589 = vunpack.c.h.b16 %v63
  %v590 = vunpack.c.l.b16 %v64
  %v591 = vunpack.c.h.b16 %v64
  %v592 = vunpack.c.l.b16 %v65
  %v593 = vunpack.c.h.b16 %v65
  %v594 = vunpack.c.l.b16 %v66
  %v595 = vunpack.c.h.b16 %v66
  %v596 = vunpack.c.l.b16 %v67
  %v597 = vunpack.c.h.b16 %v67
  %v598 = vunpack.c.l.b16 %v68
  %v599 = vunpack.c.h.b16 %v68
  %v600 = vunpack.c.l.b16 %v69
  %v601 = vunpack.c.h.b16 %v69
  %v602 = vunpack.c.l.b16 %v70
  %v603 = vunpack.c.h.b16 %v70
  %v604 = vunpack.c.l.b16 %v71
  %v605 = vunpack.c.h.b16 %v71
  %v606 = vunpack.c.l.b16 %v72
  %v607 = vunpack.c.h.b16 %v72
  %v608 = vunpack.c.l.b16 %v73
  %v609 = vunpack.c.h.b16 %v73
  %v610 = vunpack.c.l.b16 %v74
  %v611 = vunpack.c.h.b16 %v74
  %v612 = vunpack.c.l.b16 %v75
  %v613 = vunpack.c.h.b16 %v75
  %v614 = vunpack.c.l.b16 %v76
  %v615 = vunpack.c.h.b16 %v76
  %v616 = vunpack.c.l.b16 %v77
  %v617 = vunpack.c.h.b16 %v77
  %v618 = vunpack.c.l.b16 %v78
  %v619 = vunpack.c.h.b16 %v78
  %v620 = vunpack.c.l.b16 %v79
  %v621 = vunpack.c.h.b16 %v79
  %v622 = vunpack.c.l.b16 %v80
  %v623 = vunpack.c.h.b16 %v80
  %v624 = vunpack.c.l.b16 %v81
  %v625 = vunpack.c.h.b16 %v81
  %v626 = vunpack.c.l.b16 %v82
  %v627 = vunpack.c.h.b16 %v82
  %v628 = vunpack.c.l.b16 %v83
  %v629 = vunpack.c.h.b16 %v83
  %v630 = vunpack.c.l.b16 %v84
  %v631 = vunpack.c.h.b16 %v84
  %v632 = vunpack.c.l.b16 %v85
  %v633 = vunpack.c.h.b16 %v85
  %v634 = vunpack.c.l.b16 %v86
  %v635 = vunpack.c.h.b16 %v86
  %v636 = vunpack.c.l.b16 %v87
  %v637 = vunpack.c.h.b16 %v87
  %v638 = vunpack.c.l.b16 %v88
  %v639 = vunpack.c.h.b16 %v88
  %v640 = vunpack.c.l.b16 %v89
  %v641 = vunpack.c.h.b16 %v89
  %v642 = vunpack.c.l.b16 %v90
  %v643 = vunpack.c.h.b16 %v90
  %v644 = vunpack.c.l.b16 %v91
  %v645 = vunpack.c.h.b16 %v91
  %v646 = vunpack.c.l.b16 %v92
  %v647 = vunpack.c.h.b16 %v92
  %v648 = vunpack.c.l.b16 %v93
  %v649 = vunpack.c.h.b16 %v93
  %v650 = vunpack.c.l.b16 %v94
  %v651 = vunpack.c.h.b16 %v94
  %v652 = vunpack.c.l.b16 %v95
  %v653 = vunpack.c.h.b16 %v95
  %v654 = vunpack.c.l.b16 %v96
  %v655 = vunpack.c.h.b16 %v96
  %v656 = vunpack.c.l.b16 %v97
  %v657 = vunpack.c.h.b16 %v97
  %v658 = vunpack.c.l.b16 %v98
  %v659 = vunpack.c.h.b16 %v98
  %v660 = vunpack.c.l.b16 %v99
  %v661 = vunpack.c.h.b16 %v99
  %v662 = vunpack.c.l.b16 %v100
  %v663 = vunpack.c.h.b16 %v100
  %v664 = vunpack.c.l.b16 %v101
  %v665 = vunpack.c.h.b16 %v101
  %v666 = vunpack.c.l.b16 %v102
  %v667 = vunpack.c.h.b16 %v102
  %v668 = vunpack.c.l.b16 %v103
  %v669 = vunpack.c.h.b16 %v103
  %v670 = vunpack.c.l.b16 %v104
  %v671 = vunpack.c.h.b16 %v104
  %v672 = vunpack.c.l.b16 %v105
  %v673 = vunpack.c.h.b16 %v105
  %v674 = vunpack.c.l.b16 %v106
  %v675 = vunpack.c.h.b16 %v106
  %v676 = vunpack.c.l.b16 %v107
  %v677 = vunpack.c.h.b16 %v107
  %v678 = vunpack.c.l.b16 %v108
  %v679 = vunpack.c.h.b16 %v108
  %v680 = vunpack.c.l.b16 %v109
  %v681 = vunpack.c.h.b16 %v109
  %v682 = vunpack.c.l.b16 %v110
  %v683 = vunpack.c.h.b16 %v110
  %v684 = vunpack.c.l.b16 %v111
  %v685 = vunpack.c.h.b16 %v111
  %v686 = vunpack.c.l.b16 %v112
  %v687 = vunpack.c.h.b16 %v112
  %v688 = vunpack.c.l.b16 %v113
  %v689 = vunpack.c.h.b16 %v113
  %v690 = vunpack.c.l.b16 %v114
  %v691 = vunpack.c.h.b16 %v114
  %v692 = vunpack.c.l.b16 %v115
  %v693 = vunpack.c.h.b16 %v115
  %v694 = vunpack.c.l.b16 %v116
  %v695 = vunpack.c.h.b16 %v116
  %v696 = vunpack.c.l.b16 %v117
  %v697 = vunpack.c.h.b16 %v117
  %v698 = vunpack.c.l.b16 %v118
  %v699 = vunpack.c.h.b16 %v118
  %v700 = vunpack.c.l.b16 %v119
  %v701 = vunpack.c.h.b16 %v119
  %v702 = vunpack.c.l.b16 %v120
  %v703 = vunpack.c.h.b16 %v120
  %v704 = vunpack.c.l.b16 %v121
  %v705 = vunpack.c.h.b16 %v121
  %v706 = vunpack.c.l.b16 %v122
  %v707 = vunpack.c.h.b16 %v122
  %v708 = vunpack.c.l.b16 %v123
  %v709 = vunpack.c.h.b16 %v123
  %v710 = vunpack.c.l.b16 %v124
  %v711 = vunpack.c.h.b16 %v124
  %v712 = vunpack.c.l.b16 %v125
  %v713 = vunpack.c.h.b16 %v125
  %v714 = vunpack.c.l.b16 %v126
  %v715 = vunpack.c.h.b16 %v126
  %v716 = vunpack.c.l.b16 %v127
  %v717 = vunpack.c.h.b16 %v127
  %v718 = vunpack.c.l.b16 %v128
  %v719 = vunpack.c.h.b16 %v128
  %v720 = vunpack.c.l.b16 %v129
  %v721 = vunpack.c.h.b16 %v129
  %v722 = vunpack.c.l.b16 %v130
  %v723 = vunpack.c.h.b16 %v130
  %v724 = vunpack.c.l.b16 %v131
  %v725 = vunpack.c.h.b16 %v131
  %v726 = vunpack.c.l.b16 %v132
  %v727 = vunpack.c.h.b16 %v132
  %v728 = vunpack.c.l.b16 %v133
  %v729 = vunpack.c.h.b16 %v133
  %v730 = vunpack.c.l.b16 %v134
  %v731 = vunpack.c.h.b16 %v134
  %v732 = vunpack.c.l.b16 %v135
  %v733 = vunpack.c.h.b16 %v135
  %v734 = vunpack.c.l.b16 %v136
  %v735 = vunpack.c.h.b16 %v136
  %v736 = vunpack.c.l.b16 %v137
  %v737 = vunpack.c.h.b16 %v137
  %v738 = vunpack.c.l.b16 %v138
  %v739 = vunpack.c.h.b16 %v138
  %v740 = vunpack.c.l.b16 %v139
  %v741 = vunpack.c.h.b16 %v139
  %v742 = vunpack.c.l.b16 %v140
  %v743 = vunpack.c.h.b16 %v140
  %v744 = vunpack.c.l.b16 %v141
  %v745 = vunpack.c.h.b16 %v141
  %v746 = vunpack.c.l.b16 %v142
  %v747 = vunpack.c.h.b16 %v142
  %v748 = vunpack.c.l.b16 %v143
  %v749 = vunpack.c.h.b16 %v143
  %v750 = vunpack.c.l.b16 %v144
  %v751 = vunpack.c.h.b16 %v144
  %v752 = vunpack.c.l.b16 %v145
  %v753 = vunpack.c.h.b16 %v145
  %v754 = vunpack.c.l.b16 %v146
  %v755 = vunpack.c.h.b16 %v146
  %v756 = vunpack.c.l.b16 %v147
  %v757 = vunpack.c.h.b16 %v147
  %v758 = vunpack.c.l.b16 %v148
  %v759 = vunpack.c.h.b16 %v148
  %v760 = vunpack.c.l.b16 %v149
  %v761 = vunpack.c.h.b16 %v149
  %v762 = vunpack.c.l.b16 %v150
  %v763 = vunpack.c.h.b16 %v150
  %v764 = vunpack.c.l.b16 %v151
  %v765 = vunpack.c.h.b16 %v151
  %v766 = vunpack.c.l.b16 %v152
  %v767 = vunpack.c.h.b16 %v152
  %v768 = vunpack.c.l.b16 %v153
  %v769 = vunpack.c.h.b16 %v153
  %v770 = vunpack.c.l.b16 %v154
  %v771 = vunpack.c.h.b16 %v154
  %v772 = vunpack.c.l.b16 %v155
  %v773 = vunpack.c.h.b16 %v155
  %v774 = vunpack.c.l.b16 %v156
  %v775 = vunpack.c.h.b16 %v156
  %v776 = vunpack.c.l.b16 %v157
  %v777 = vunpack.c.h.b16 %v157
  %v778 = vunpack.c.l.b16 %v158
  %v779 = vunpack.c.h.b16 %v158
  %v780 = vunpack.c.l.b16 %v159
  %v781 = vunpack.c.h.b16 %v159
  %v782 = vunpack.c.l.b16 %v160
  %v783 = vunpack.c.h.b16 %v160
  %v784 = vunpack.c.l.b16 %v161
  %v785 = vunpack.c.h.b16 %v161
  %v786 = vunpack.c.l.b16 %v162
  %v787 = vunpack.c.h.b16 %v162
  %v788 = vpack.c.b16 %v536, %v532
  %v789 = vpack.c.b16 %v537, %v533
  %v790 = vpack.c.b16 %v538, %v534
  %v791 = vpack.c.b16 %v539, %v535
  %v792 = vpack.c.b16 %v544, %v540
  %v793 = vpack.c.b16 %v545, %v541
  %v794 = vpack.c.b16 %v546, %v542
  %v795 = vpack.c.b16 %v547, %v543
  %v796 = vpack.c.b16 %v552, %v548
  %v797 = vpack.c.b16 %v553, %v549
  %v798 = vpack.c.b16 %v554, %v550
  %v799 = vpack.c.b16 %v555, %v551
  %v800 = vpack.c.b16 %v560, %v556
  %v801 = vpack.c.b16 %v561, %v557
  %v802 = vpack.c.b16 %v562, %v558
  %v803 = vpack.c.b16 %v563, %v559
  %v804 = vpack.c.b16 %v568, %v564
  %v805 = vpack.c.b16 %v569, %v565
  %v806 = vpack.c.b16 %v570, %v566
  %v807 = vpack.c.b16 %v571, %v567
  %v808 = vpack.c.b16 %v576, %v572
  %v809 = vpack.c.b16 %v577, %v573
  %v810 = vpack.c.b16 %v578, %v574
  %v811 = vpack.c.b16 %v579, %v575
  %v812 = vpack.c.b16 %v584, %v580
  %v813 = vpack.c.b16 %v585, %v581
  %v814 = vpack.c.b16 %v586, %v582
  %v815 = vpack.c.b16 %v587, %v583
  %v816 = vpack.c.b16 %v592, %v588
  %v817 = vpack.c.b16 %v593, %v589
  %v818 = vpack.c.b16 %v594, %v590
  %v819 = vpack.c.b16 %v595, %v591
  %v820 = vpack.c.b16 %v600, %v596
  %v821 = vpack.c.b16 %v601, %v597
  %v822 = vpack.c.b16 %v602, %v598
  %v823 = vpack.c.b16 %v603, %v599
  %v824 = vpack.c.b16 %v608, %v604
  %v825 = vpack.c.b16 %v609, %v605
  %v826 = vpack.c.b16 %v610, %v606
  %v827 = vpack.c.b16 %v611, %v607
  %v828 = vpack.c.b16 %v616, %v612
  %v829 = vpack.c.b16 %v617, %v613
  %v830 = vpack.c.b16 %v618, %v614
  %v831 = vpack.c.b16 %v619, %v615
  %v832 = vpack.c.b16 %v624, %v620
  %v833 = vpack.c.b16 %v625, %v621
  %v834 = vpack.c.b16 %v626, %v622
  %v835 = vpack.c.b16 %v627, %v623
  %v836 = vpack.c.b16 %v632, %v628
  %v837 = vpack.c.b16 %v633, %v629
  %v838 = vpack.c.b16 %v634, %v630
  %v839 = vpack.c.b16 %v635, %v631
  %v840 = vpack.c.b16 %v640, %v636
  %v841 = vpack.c.b16 %v641, %v637
  %v842 = vpack.c.b16 %v642, %v638
  %v843 = vpack.c.b16 %v643, %v639
  %v844 = vpack.c.b16 %v648, %v644
  %v845 = vpack.c.b16 %v649, %v645
  %v846 = vpack.c.b16 %v650, %v646
  %v847 = vpack.c.b16 %v651, %v647
  %v848 = vpack.c.b16 %v656, %v652
  %v849 = vpack.c.b16 %v657, %v653
  %v850 = vpack.c.b16 %v658, %v654
  %v851 = vpack.c.b16 %v659, %v655
  %v852 = vpack.c.b16 %v664, %v660
  %v853 = vpack.c.b16 %v665, %v661
  %v854 = vpack.c.b16 %v666, %v662
  %v855 = vpack.c.b16 %v667, %v663
  %v856 = vpack.c.b16 %v672, %v668
  %v857 = vpack.c.b16 %v673, %v669
  %v858 = vpack.c.b16 %v674, %v670
  %v859 = vpack.c.b16 %v675, %v671
  %v860 = vpack.c.b16 %v680, %v676
  %v861 = vpack.c.b16 %v681, %v677
  %v862 = vpack.c.b16 %v682, %v678
  %v863 = vpack.c.b16 %v683, %v679
  %v864 = vpack.c.b16 %v688, %v684
  %v865 = vpack.c.b16 %v689, %v685
  %v866 = vpack.c.b16 %v690, %v686
  %v867 = vpack.c.b16 %v691, %v687
  %v868 = vpack.c.b16 %v696, %v692
  %v869 = vpack.c.b16 %v697, %v693
  %v870 = vpack.c.b16 %v698, %v694
  %v871 = vpack.c.b16 %v699, %v695
  %v872 = vpack.c.b16 %v704, %v700
  %v873 = vpack.c.b16 %v705, %v701
  %v874 = vpack.c.b16 %v706, %v702
  %v875 = vpack.c.b16 %v707, %v703
  %v876 = vpack.c.b16 %v712, %v708
  %v877 = vpack.c.b16 %v713, %v709
  %v878 = vpack.c.b16 %v714, %v710
  %v879 = vpack.c.b16 %v715, %v711
  %v880 = vpack.c.b16 %v720, %v716
  %v881 = vpack.c.b16 %v721, %v717
  %v882 = vpack.c.b16 %v722, %v718
  %v883 = vpack.c.b16 %v723, %v719
  %v884 = vpack.c.b16 %v728, %v724
  %v885 = vpack.c.b16 %v729, %v725
  %v886 = vpack.c.b16 %v730, %v726
  %v887 = vpack.c.b16 %v731, %v727
  %v888 = vpack.c.b16 %v736, %v732
  %v889 = vpack.c.b16 %v737, %v733
  %v890 = vpack.c.b16 %v738, %v734
  %v891 = vpack.c.b16 %v739, %v735
  %v892 = vpack.c.b16 %v744, %v740
  %v893 = vpack.c.b16 %v745, %v741
  %v894 = vpack.c.b16 %v746, %v742
  %v895 = vpack.c.b16 %v747, %v743
  %v896 = vpack.c.b16 %v752, %v748
  %v897 = vpack.c.b16 %v753, %v749
  %v898 = vpack.c.b16 %v754, %v750
  %v899 = vpack.c.b16 %v755, %v751
  %v900 = vpack.c.b16 %v760, %v756
  %v901 = vpack.c.b16 %v761, %v757
  %v902 = vpack.c.b16 %v762, %v758
  %v903 = vpack.c.b16 %v763, %v759
  %v904 = vpack.c.b16 %v768, %v764
  %v905 = vpack.c.b16 %v769, %v765
  %v906 = vpack.c.b16 %v770, %v766
  %v907 = vpack.c.b16 %v771, %v767
  %v908 = vpack.c.b16 %v776, %v772
  %v909 = vpack.c.b16 %v777, %v773
  %v910 = vpack.c.b16 %v778, %v774
  %v911 = vpack.c.b16 %v779, %v775
  %v912 = vpack.c.b16 %v784, %v780
  %v913 = vpack.c.b16 %v785, %v781
  %v914 = vpack.c.b16 %v786, %v782
  %v915 = vpack.c.b16 %v787, %v783
  %1044 = vmatpush.bf16.msra.mxu0 %v816
  %1045 = vmatpush.bf16.msra.mxu0 %v812
  %1046 = vmatpush.bf16.msra.mxu0 %v808
  %1047 = vmatpush.bf16.msra.mxu0 %v804
  %1048 = vmatpush.bf16.msra.mxu0 %v800
  %1049 = vmatpush.bf16.msra.mxu0 %v796
  %1050 = vmatpush.bf16.msra.mxu0 %v792
  %1051 = vmatpush.bf16.msra.mxu0 %v788
  %1052 = vmatmul.bf16.gmra.mxu0 %v388
  %v1053 = vpop.f32.mrf.mxu0
  %v1054 = vadd.f32 %v298, %v1053
  %v1055 = vpop.f32.mrf.mxu0
  %v1056 = vadd.f32 %v300, %v1055
  %1057 = vmatmul.bf16.gmra.mxu0 %v392
  %v1058 = vpop.f32.mrf.mxu0
  %v1059 = vadd.f32 %v303, %v1058
  %v1060 = vpop.f32.mrf.mxu0
  %v1061 = vadd.f32 %v305, %v1060
  %1062 = vdwg.mxu0
  %1063 = vmatpush.bf16.msra.mxu0 %v848
  %1064 = vmatpush.bf16.msra.mxu0 %v844
  %1065 = vmatpush.bf16.msra.mxu0 %v840
  %1066 = vmatpush.bf16.msra.mxu0 %v836
  %1067 = vmatpush.bf16.msra.mxu0 %v832
  %1068 = vmatpush.bf16.msra.mxu0 %v828
  %1069 = vmatpush.bf16.msra.mxu0 %v824
  %1070 = vmatpush.bf16.msra.mxu0 %v820
  %1071 = vmatmul.bf16.gmra.mxu0 %v389
  %v1072 = vpop.f32.mrf.mxu0
  %v1073 = vadd.f32 %v1054, %v1072
  %v1074 = vpop.f32.mrf.mxu0
  %v1075 = vadd.f32 %v1056, %v1074
  %1076 = vmatmul.bf16.gmra.mxu0 %v393
  %v1077 = vpop.f32.mrf.mxu0
  %v1078 = vadd.f32 %v1059, %v1077
  %v1079 = vpop.f32.mrf.mxu0
  %v1080 = vadd.f32 %v1061, %v1079
  %1081 = vdwg.mxu0
  %1082 = vmatpush.bf16.msra.mxu0 %v880
  %1083 = vmatpush.bf16.msra.mxu0 %v876
  %1084 = vmatpush.bf16.msra.mxu0 %v872
  %1085 = vmatpush.bf16.msra.mxu0 %v868
  %1086 = vmatpush.bf16.msra.mxu0 %v864
  %1087 = vmatpush.bf16.msra.mxu0 %v860
  %1088 = vmatpush.bf16.msra.mxu0 %v856
  %1089 = vmatpush.bf16.msra.mxu0 %v852
  %1090 = vmatmul.bf16.gmra.mxu0 %v390
  %v1091 = vpop.f32.mrf.mxu0
  %v1092 = vadd.f32 %v1073, %v1091
  %v1093 = vpop.f32.mrf.mxu0
  %v1094 = vadd.f32 %v1075, %v1093
  %1095 = vmatmul.bf16.gmra.mxu0 %v394
  %v1096 = vpop.f32.mrf.mxu0
  %v1097 = vadd.f32 %v1078, %v1096
  %v1098 = vpop.f32.mrf.mxu0
  %v1099 = vadd.f32 %v1080, %v1098
  %1100 = vdwg.mxu0
  %1101 = vmatpush.bf16.msra.mxu0 %v912
  %1102 = vmatpush.bf16.msra.mxu0 %v908
  %1103 = vmatpush.bf16.msra.mxu0 %v904
  %1104 = vmatpush.bf16.msra.mxu0 %v900
  %1105 = vmatpush.bf16.msra.mxu0 %v896
  %1106 = vmatpush.bf16.msra.mxu0 %v892
  %1107 = vmatpush.bf16.msra.mxu0 %v888
  %1108 = vmatpush.bf16.msra.mxu0 %v884
  %1109 = vmatmul.bf16.gmra.mxu0 %v391
  %v1110 = vpop.f32.mrf.mxu0
  %v1111 = vadd.f32 %v1092, %v1110
  %v1112 = vpop.f32.mrf.mxu0
  %v1113 = vadd.f32 %v1094, %v1112
  %1114 = vmatmul.bf16.gmra.mxu0 %v395
  %v1115 = vpop.f32.mrf.mxu0
  %v1116 = vadd.f32 %v1097, %v1115
  %v1117 = vpop.f32.mrf.mxu0
  %v1118 = vadd.f32 %v1099, %v1117
  %1119 = vdwg.mxu0
  %1120 = vmatpush.bf16.msra.mxu0 %v817
  %1121 = vmatpush.bf16.msra.mxu0 %v813
  %1122 = vmatpush.bf16.msra.mxu0 %v809
  %1123 = vmatpush.bf16.msra.mxu0 %v805
  %1124 = vmatpush.bf16.msra.mxu0 %v801
  %1125 = vmatpush.bf16.msra.mxu0 %v797
  %1126 = vmatpush.bf16.msra.mxu0 %v793
  %1127 = vmatpush.bf16.msra.mxu0 %v789
  %1128 = vmatmul.bf16.gmra.mxu0 %v388
  %v1129 = vpop.f32.mrf.mxu0
  %v1130 = vadd.f32 %v317, %v1129
  %v1131 = vpop.f32.mrf.mxu0
  %v1132 = vadd.f32 %v319, %v1131
  %1133 = vmatmul.bf16.gmra.mxu0 %v392
  %v1134 = vpop.f32.mrf.mxu0
  %v1135 = vadd.f32 %v322, %v1134
  %v1136 = vpop.f32.mrf.mxu0
  %v1137 = vadd.f32 %v324, %v1136
  %1138 = vdwg.mxu0
  %1139 = vmatpush.bf16.msra.mxu0 %v849
  %1140 = vmatpush.bf16.msra.mxu0 %v845
  %1141 = vmatpush.bf16.msra.mxu0 %v841
  %1142 = vmatpush.bf16.msra.mxu0 %v837
  %1143 = vmatpush.bf16.msra.mxu0 %v833
  %1144 = vmatpush.bf16.msra.mxu0 %v829
  %1145 = vmatpush.bf16.msra.mxu0 %v825
  %1146 = vmatpush.bf16.msra.mxu0 %v821
  %1147 = vmatmul.bf16.gmra.mxu0 %v389
  %v1148 = vpop.f32.mrf.mxu0
  %v1149 = vadd.f32 %v1130, %v1148
  %v1150 = vpop.f32.mrf.mxu0
  %v1151 = vadd.f32 %v1132, %v1150
  %1152 = vmatmul.bf16.gmra.mxu0 %v393
  %v1153 = vpop.f32.mrf.mxu0
  %v1154 = vadd.f32 %v1135, %v1153
  %v1155 = vpop.f32.mrf.mxu0
  %v1156 = vadd.f32 %v1137, %v1155
  %1157 = vdwg.mxu0
  %1158 = vmatpush.bf16.msra.mxu0 %v881
  %1159 = vmatpush.bf16.msra.mxu0 %v877
  %1160 = vmatpush.bf16.msra.mxu0 %v873
  %1161 = vmatpush.bf16.msra.mxu0 %v869
  %1162 = vmatpush.bf16.msra.mxu0 %v865
  %1163 = vmatpush.bf16.msra.mxu0 %v861
  %1164 = vmatpush.bf16.msra.mxu0 %v857
  %1165 = vmatpush.bf16.msra.mxu0 %v853
  %1166 = vmatmul.bf16.gmra.mxu0 %v390
  %v1167 = vpop.f32.mrf.mxu0
  %v1168 = vadd.f32 %v1149, %v1167
  %v1169 = vpop.f32.mrf.mxu0
  %v1170 = vadd.f32 %v1151, %v1169
  %1171 = vmatmul.bf16.gmra.mxu0 %v394
  %v1172 = vpop.f32.mrf.mxu0
  %v1173 = vadd.f32 %v1154, %v1172
  %v1174 = vpop.f32.mrf.mxu0
  %v1175 = vadd.f32 %v1156, %v1174
  %1176 = vdwg.mxu0
  %1177 = vmatpush.bf16.msra.mxu0 %v913
  %1178 = vmatpush.bf16.msra.mxu0 %v909
  %1179 = vmatpush.bf16.msra.mxu0 %v905
  %1180 = vmatpush.bf16.msra.mxu0 %v901
  %1181 = vmatpush.bf16.msra.mxu0 %v897
  %1182 = vmatpush.bf16.msra.mxu0 %v893
  %1183 = vmatpush.bf16.msra.mxu0 %v889
  %1184 = vmatpush.bf16.msra.mxu0 %v885
  %1185 = vmatmul.bf16.gmra.mxu0 %v391
  %v1186 = vpop.f32.mrf.mxu0
  %v1187 = vadd.f32 %v1168, %v1186
  %v1188 = vpop.f32.mrf.mxu0
  %v1189 = vadd.f32 %v1170, %v1188
  %1190 = vmatmul.bf16.gmra.mxu0 %v395
  %v1191 = vpop.f32.mrf.mxu0
  %v1192 = vadd.f32 %v1173, %v1191
  %v1193 = vpop.f32.mrf.mxu0
  %v1194 = vadd.f32 %v1175, %v1193
  %1195 = vdwg.mxu0
  %1196 = vmatpush.bf16.msra.mxu0 %v818
  %1197 = vmatpush.bf16.msra.mxu0 %v814
  %1198 = vmatpush.bf16.msra.mxu0 %v810
  %1199 = vmatpush.bf16.msra.mxu0 %v806
  %1200 = vmatpush.bf16.msra.mxu0 %v802
  %1201 = vmatpush.bf16.msra.mxu0 %v798
  %1202 = vmatpush.bf16.msra.mxu0 %v794
  %1203 = vmatpush.bf16.msra.mxu0 %v790
  %1204 = vmatmul.bf16.gmra.mxu0 %v388
  %v1205 = vpop.f32.mrf.mxu0
  %v1206 = vadd.f32 %v336, %v1205
  %v1207 = vpop.f32.mrf.mxu0
  %v1208 = vadd.f32 %v338, %v1207
  %1209 = vmatmul.bf16.gmra.mxu0 %v392
  %v1210 = vpop.f32.mrf.mxu0
  %v1211 = vadd.f32 %v341, %v1210
  %v1212 = vpop.f32.mrf.mxu0
  %v1213 = vadd.f32 %v343, %v1212
  %1214 = vdwg.mxu0
  %1215 = vmatpush.bf16.msra.mxu0 %v850
  %1216 = vmatpush.bf16.msra.mxu0 %v846
  %1217 = vmatpush.bf16.msra.mxu0 %v842
  %1218 = vmatpush.bf16.msra.mxu0 %v838
  %1219 = vmatpush.bf16.msra.mxu0 %v834
  %1220 = vmatpush.bf16.msra.mxu0 %v830
  %1221 = vmatpush.bf16.msra.mxu0 %v826
  %1222 = vmatpush.bf16.msra.mxu0 %v822
  %1223 = vmatmul.bf16.gmra.mxu0 %v389
  %v1224 = vpop.f32.mrf.mxu0
  %v1225 = vadd.f32 %v1206, %v1224
  %v1226 = vpop.f32.mrf.mxu0
  %v1227 = vadd.f32 %v1208, %v1226
  %1228 = vmatmul.bf16.gmra.mxu0 %v393
  %v1229 = vpop.f32.mrf.mxu0
  %v1230 = vadd.f32 %v1211, %v1229
  %v1231 = vpop.f32.mrf.mxu0
  %v1232 = vadd.f32 %v1213, %v1231
  %1233 = vdwg.mxu0
  %1234 = vmatpush.bf16.msra.mxu0 %v882
  %1235 = vmatpush.bf16.msra.mxu0 %v878
  %1236 = vmatpush.bf16.msra.mxu0 %v874
  %1237 = vmatpush.bf16.msra.mxu0 %v870
  %1238 = vmatpush.bf16.msra.mxu0 %v866
  %1239 = vmatpush.bf16.msra.mxu0 %v862
  %1240 = vmatpush.bf16.msra.mxu0 %v858
  %1241 = vmatpush.bf16.msra.mxu0 %v854
  %1242 = vmatmul.bf16.gmra.mxu0 %v390
  %v1243 = vpop.f32.mrf.mxu0
  %v1244 = vadd.f32 %v1225, %v1243
  %v1245 = vpop.f32.mrf.mxu0
  %v1246 = vadd.f32 %v1227, %v1245
  %1247 = vmatmul.bf16.gmra.mxu0 %v394
  %v1248 = vpop.f32.mrf.mxu0
  %v1249 = vadd.f32 %v1230, %v1248
  %v1250 = vpop.f32.mrf.mxu0
  %v1251 = vadd.f32 %v1232, %v1250
  %1252 = vdwg.mxu0
  %1253 = vmatpush.bf16.msra.mxu0 %v914
  %1254 = vmatpush.bf16.msra.mxu0 %v910
  %1255 = vmatpush.bf16.msra.mxu0 %v906
  %1256 = vmatpush.bf16.msra.mxu0 %v902
  %1257 = vmatpush.bf16.msra.mxu0 %v898
  %1258 = vmatpush.bf16.msra.mxu0 %v894
  %1259 = vmatpush.bf16.msra.mxu0 %v890
  %1260 = vmatpush.bf16.msra.mxu0 %v886
  %1261 = vmatmul.bf16.gmra.mxu0 %v391
  %v1262 = vpop.f32.mrf.mxu0
  %v1263 = vadd.f32 %v1244, %v1262
  %v1264 = vpop.f32.mrf.mxu0
  %v1265 = vadd.f32 %v1246, %v1264
  %1266 = vmatmul.bf16.gmra.mxu0 %v395
  %v1267 = vpop.f32.mrf.mxu0
  %v1268 = vadd.f32 %v1249, %v1267
  %v1269 = vpop.f32.mrf.mxu0
  %v1270 = vadd.f32 %v1251, %v1269
  %1271 = vdwg.mxu0
  %1272 = vmatpush.bf16.msra.mxu0 %v819
  %1273 = vmatpush.bf16.msra.mxu0 %v815
  %1274 = vmatpush.bf16.msra.mxu0 %v811
  %1275 = vmatpush.bf16.msra.mxu0 %v807
  %1276 = vmatpush.bf16.msra.mxu0 %v803
  %1277 = vmatpush.bf16.msra.mxu0 %v799
  %1278 = vmatpush.bf16.msra.mxu0 %v795
  %1279 = vmatpush.bf16.msra.mxu0 %v791
  %1280 = vmatmul.bf16.gmra.mxu0 %v388
  %v1281 = vpop.f32.mrf.mxu0
  %v1282 = vadd.f32 %v355, %v1281
  %v1283 = vpop.f32.mrf.mxu0
  %v1284 = vadd.f32 %v357, %v1283
  %1285 = vmatmul.bf16.gmra.mxu0 %v392
  %v1286 = vpop.f32.mrf.mxu0
  %v1287 = vadd.f32 %v360, %v1286
  %v1288 = vpop.f32.mrf.mxu0
  %v1289 = vadd.f32 %v362, %v1288
  %1290 = vdwg.mxu0
  %1291 = vmatpush.bf16.msra.mxu0 %v851
  %1292 = vmatpush.bf16.msra.mxu0 %v847
  %1293 = vmatpush.bf16.msra.mxu0 %v843
  %1294 = vmatpush.bf16.msra.mxu0 %v839
  %1295 = vmatpush.bf16.msra.mxu0 %v835
  %1296 = vmatpush.bf16.msra.mxu0 %v831
  %1297 = vmatpush.bf16.msra.mxu0 %v827
  %1298 = vmatpush.bf16.msra.mxu0 %v823
  %1299 = vmatmul.bf16.gmra.mxu0 %v389
  %v1300 = vpop.f32.mrf.mxu0
  %v1301 = vadd.f32 %v1282, %v1300
  %v1302 = vpop.f32.mrf.mxu0
  %v1303 = vadd.f32 %v1284, %v1302
  %1304 = vmatmul.bf16.gmra.mxu0 %v393
  %v1305 = vpop.f32.mrf.mxu0
  %v1306 = vadd.f32 %v1287, %v1305
  %v1307 = vpop.f32.mrf.mxu0
  %v1308 = vadd.f32 %v1289, %v1307
  %1309 = vdwg.mxu0
  %1310 = vmatpush.bf16.msra.mxu0 %v883
  %1311 = vmatpush.bf16.msra.mxu0 %v879
  %1312 = vmatpush.bf16.msra.mxu0 %v875
  %1313 = vmatpush.bf16.msra.mxu0 %v871
  %1314 = vmatpush.bf16.msra.mxu0 %v867
  %1315 = vmatpush.bf16.msra.mxu0 %v863
  %1316 = vmatpush.bf16.msra.mxu0 %v859
  %1317 = vmatpush.bf16.msra.mxu0 %v855
  %1318 = vmatmul.bf16.gmra.mxu0 %v390
  %v1319 = vpop.f32.mrf.mxu0
  %v1320 = vadd.f32 %v1301, %v1319
  %v1321 = vpop.f32.mrf.mxu0
  %v1322 = vadd.f32 %v1303, %v1321
  %1323 = vmatmul.bf16.gmra.mxu0 %v394
  %v1324 = vpop.f32.mrf.mxu0
  %v1325 = vadd.f32 %v1306, %v1324
  %v1326 = vpop.f32.mrf.mxu0
  %v1327 = vadd.f32 %v1308, %v1326
  %1328 = vdwg.mxu0
  %1329 = vmatpush.bf16.msra.mxu0 %v915
  %1330 = vmatpush.bf16.msra.mxu0 %v911
  %1331 = vmatpush.bf16.msra.mxu0 %v907
  %1332 = vmatpush.bf16.msra.mxu0 %v903
  %1333 = vmatpush.bf16.msra.mxu0 %v899
  %1334 = vmatpush.bf16.msra.mxu0 %v895
  %1335 = vmatpush.bf16.msra.mxu0 %v891
  %1336 = vmatpush.bf16.msra.mxu0 %v887
  %1337 = vmatmul.bf16.gmra.mxu0 %v391
  %v1338 = vpop.f32.mrf.mxu0
  %v1339 = vadd.f32 %v1320, %v1338
  %v1340 = vpop.f32.mrf.mxu0
  %v1341 = vadd.f32 %v1322, %v1340
  %1342 = vmatmul.bf16.gmra.mxu0 %v395
  %v1343 = vpop.f32.mrf.mxu0
  %v1344 = vadd.f32 %v1325, %v1343
  %v1345 = vpop.f32.mrf.mxu0
  %v1346 = vadd.f32 %v1327, %v1345
  %1347 = vdwg.mxu0
  %v1348 = vld [vmem:[%s3] sm:$0xf]
  %v1350 = vperm.slane %v1348, 0
  %v1351 = vperm.slane %v1348, 1
  %v1352 = vperm.slane %v1348, 2
  %v1353 = vperm.slane %v1348, 3
  %v1358 = vadd.f32 %v1111, %v1350
  %v1359 = vadd.f32 %v1187, %v1351
  %v1360 = vadd.f32 %v1263, %v1352
  %v1361 = vadd.f32 %v1339, %v1353
  %v1362 = vadd.f32 %v1113, %v1350
  %v1363 = vadd.f32 %v1189, %v1351
  %v1364 = vadd.f32 %v1265, %v1352
  %v1365 = vadd.f32 %v1341, %v1353
  %v1366 = vadd.f32 %v1116, %v1350
  %v1367 = vadd.f32 %v1192, %v1351
  %v1368 = vadd.f32 %v1268, %v1352
  %v1369 = vadd.f32 %v1344, %v1353
  %v1370 = vadd.f32 %v1118, %v1350
  %v1371 = vadd.f32 %v1194, %v1351
  %v1372 = vadd.f32 %v1270, %v1352
  %v1373 = vadd.f32 %v1346, %v1353
  %v1374 = vmin.f32 %v1358, 20.0
  %v1375 = vmin.f32 %v1359, 20.0
  %v1376 = vmin.f32 %v1360, 20.0
  %v1377 = vmin.f32 %v1361, 20.0
  %v1378 = vmin.f32 %v1362, 20.0
  %v1379 = vmin.f32 %v1363, 20.0
  %v1380 = vmin.f32 %v1364, 20.0
  %v1381 = vmin.f32 %v1365, 20.0
  %v1382 = vmin.f32 %v1366, 20.0
  %v1383 = vmin.f32 %v1367, 20.0
  %v1384 = vmin.f32 %v1368, 20.0
  %v1385 = vmin.f32 %v1369, 20.0
  %v1386 = vmin.f32 %v1370, 20.0
  %v1387 = vmin.f32 %v1371, 20.0
  %v1388 = vmin.f32 %v1372, 20.0
  %v1389 = vmin.f32 %v1373, 20.0
  %v1390 = vmul.f32 %v1374, 1.442695
  %v1391 = vpow.pop %v1390
  %v1392 = vmul.f32 %v1375, 1.442695
  %v1393 = vpow.pop %v1392
  %v1394 = vmul.f32 %v1376, 1.442695
  %v1395 = vpow.pop %v1394
  %v1396 = vmul.f32 %v1377, 1.442695
  %v1397 = vpow.pop %v1396
  %v1398 = vmul.f32 %v1378, 1.442695
  %v1399 = vpow.pop %v1398
  %v1400 = vmul.f32 %v1379, 1.442695
  %v1401 = vpow.pop %v1400
  %v1402 = vmul.f32 %v1380, 1.442695
  %v1403 = vpow.pop %v1402
  %v1404 = vmul.f32 %v1381, 1.442695
  %v1405 = vpow.pop %v1404
  %v1406 = vmul.f32 %v1382, 1.442695
  %v1407 = vpow.pop %v1406
  %v1408 = vmul.f32 %v1383, 1.442695
  %v1409 = vpow.pop %v1408
  %v1410 = vmul.f32 %v1384, 1.442695
  %v1411 = vpow.pop %v1410
  %v1412 = vmul.f32 %v1385, 1.442695
  %v1413 = vpow.pop %v1412
  %v1414 = vmul.f32 %v1386, 1.442695
  %v1415 = vpow.pop %v1414
  %v1416 = vmul.f32 %v1387, 1.442695
  %v1417 = vpow.pop %v1416
  %v1418 = vmul.f32 %v1388, 1.442695
  %v1419 = vpow.pop %v1418
  %v1420 = vmul.f32 %v1389, 1.442695
  %v1421 = vpow.pop %v1420
  %v1422 = vadd.f32 %v1391, 1.0
  %v1423 = vadd.f32 %v1393, 1.0
  %v1424 = vadd.f32 %v1395, 1.0
  %v1425 = vadd.f32 %v1397, 1.0
  %v1426 = vadd.f32 %v1399, 1.0
  %v1427 = vadd.f32 %v1401, 1.0
  %v1428 = vadd.f32 %v1403, 1.0
  %v1429 = vadd.f32 %v1405, 1.0
  %v1430 = vadd.f32 %v1407, 1.0
  %v1431 = vadd.f32 %v1409, 1.0
  %v1432 = vadd.f32 %v1411, 1.0
  %v1433 = vadd.f32 %v1413, 1.0
  %v1434 = vadd.f32 %v1415, 1.0
  %v1435 = vadd.f32 %v1417, 1.0
  %v1436 = vadd.f32 %v1419, 1.0
  %v1437 = vadd.f32 %v1421, 1.0
  %v1438 = vmul.f32 %v1422, %v1422
  %v1439 = vmul.f32 %v1423, %v1423
  %v1440 = vmul.f32 %v1424, %v1424
  %v1441 = vmul.f32 %v1425, %v1425
  %v1442 = vmul.f32 %v1426, %v1426
  %v1443 = vmul.f32 %v1427, %v1427
  %v1444 = vmul.f32 %v1428, %v1428
  %v1445 = vmul.f32 %v1429, %v1429
  %v1446 = vmul.f32 %v1430, %v1430
  %v1447 = vmul.f32 %v1431, %v1431
  %v1448 = vmul.f32 %v1432, %v1432
  %v1449 = vmul.f32 %v1433, %v1433
  %v1450 = vmul.f32 %v1434, %v1434
  %v1451 = vmul.f32 %v1435, %v1435
  %v1452 = vmul.f32 %v1436, %v1436
  %v1453 = vmul.f32 %v1437, %v1437
  %v1454 = vsub.f32 %v1438, 1.0
  %v1455 = vsub.f32 %v1439, 1.0
  %v1456 = vsub.f32 %v1440, 1.0
  %v1457 = vsub.f32 %v1441, 1.0
  %v1458 = vsub.f32 %v1442, 1.0
  %v1459 = vsub.f32 %v1443, 1.0
  %v1460 = vsub.f32 %v1444, 1.0
  %v1461 = vsub.f32 %v1445, 1.0
  %v1462 = vsub.f32 %v1446, 1.0
  %v1463 = vsub.f32 %v1447, 1.0
  %v1464 = vsub.f32 %v1448, 1.0
  %v1465 = vsub.f32 %v1449, 1.0
  %v1466 = vsub.f32 %v1450, 1.0
  %v1467 = vsub.f32 %v1451, 1.0
  %v1468 = vsub.f32 %v1452, 1.0
  %v1469 = vsub.f32 %v1453, 1.0
  %v1470 = vmul.f32 %v1358, %v1454
  %v1471 = vmul.f32 %v1359, %v1455
  %v1472 = vmul.f32 %v1360, %v1456
  %v1473 = vmul.f32 %v1361, %v1457
  %v1474 = vmul.f32 %v1362, %v1458
  %v1475 = vmul.f32 %v1363, %v1459
  %v1476 = vmul.f32 %v1364, %v1460
  %v1477 = vmul.f32 %v1365, %v1461
  %v1478 = vmul.f32 %v1366, %v1462
  %v1479 = vmul.f32 %v1367, %v1463
  %v1480 = vmul.f32 %v1368, %v1464
  %v1481 = vmul.f32 %v1369, %v1465
  %v1482 = vmul.f32 %v1370, %v1466
  %v1483 = vmul.f32 %v1371, %v1467
  %v1484 = vmul.f32 %v1372, %v1468
  %v1485 = vmul.f32 %v1373, %v1469
  %v1486 = vadd.f32 %v1438, 1.0
  %v1487 = vadd.f32 %v1439, 1.0
  %v1488 = vadd.f32 %v1440, 1.0
  %v1489 = vadd.f32 %v1441, 1.0
  %v1490 = vadd.f32 %v1442, 1.0
  %v1491 = vadd.f32 %v1443, 1.0
  %v1492 = vadd.f32 %v1444, 1.0
  %v1493 = vadd.f32 %v1445, 1.0
  %v1494 = vadd.f32 %v1446, 1.0
  %v1495 = vadd.f32 %v1447, 1.0
  %v1496 = vadd.f32 %v1448, 1.0
  %v1497 = vadd.f32 %v1449, 1.0
  %v1498 = vadd.f32 %v1450, 1.0
  %v1499 = vadd.f32 %v1451, 1.0
  %v1500 = vadd.f32 %v1452, 1.0
  %v1501 = vadd.f32 %v1453, 1.0
  %v1502 = vrcp.pop %v1486
  %v1503 = vrcp.pop %v1487
  %v1504 = vrcp.pop %v1488
  %v1505 = vrcp.pop %v1489
  %v1506 = vrcp.pop %v1490
  %v1507 = vrcp.pop %v1491
  %v1508 = vrcp.pop %v1492
  %v1509 = vrcp.pop %v1493
  %v1510 = vrcp.pop %v1494
  %v1511 = vrcp.pop %v1495
  %v1512 = vrcp.pop %v1496
  %v1513 = vrcp.pop %v1497
  %v1514 = vrcp.pop %v1498
  %v1515 = vrcp.pop %v1499
  %v1516 = vrcp.pop %v1500
  %v1517 = vrcp.pop %v1501
  %v1518 = vmul.f32 %v1470, %v1502
  %v1519 = vmul.f32 %v1471, %v1503
  %v1520 = vmul.f32 %v1472, %v1504
  %v1521 = vmul.f32 %v1473, %v1505
  %v1522 = vmul.f32 %v1474, %v1506
  %v1523 = vmul.f32 %v1475, %v1507
  %v1524 = vmul.f32 %v1476, %v1508
  %v1525 = vmul.f32 %v1477, %v1509
  %v1526 = vmul.f32 %v1478, %v1510
  %v1527 = vmul.f32 %v1479, %v1511
  %v1528 = vmul.f32 %v1480, %v1512
  %v1529 = vmul.f32 %v1481, %v1513
  %v1530 = vmul.f32 %v1482, %v1514
  %v1531 = vmul.f32 %v1483, %v1515
  %v1532 = vmul.f32 %v1484, %v1516
  %v1533 = vmul.f32 %v1485, %v1517
  %vm1534 = vcmp.gt.f32.partialorder %v1358, 20.0
  %vm1535 = vcmp.gt.f32.partialorder %v1359, 20.0
  %vm1536 = vcmp.gt.f32.partialorder %v1360, 20.0
  %vm1537 = vcmp.gt.f32.partialorder %v1361, 20.0
  %vm1538 = vcmp.gt.f32.partialorder %v1362, 20.0
  %vm1539 = vcmp.gt.f32.partialorder %v1363, 20.0
  %vm1540 = vcmp.gt.f32.partialorder %v1364, 20.0
  %vm1541 = vcmp.gt.f32.partialorder %v1365, 20.0
  %vm1542 = vcmp.gt.f32.partialorder %v1366, 20.0
  %vm1543 = vcmp.gt.f32.partialorder %v1367, 20.0
  %vm1544 = vcmp.gt.f32.partialorder %v1368, 20.0
  %vm1545 = vcmp.gt.f32.partialorder %v1369, 20.0
  %vm1546 = vcmp.gt.f32.partialorder %v1370, 20.0
  %vm1547 = vcmp.gt.f32.partialorder %v1371, 20.0
  %vm1548 = vcmp.gt.f32.partialorder %v1372, 20.0
  %vm1549 = vcmp.gt.f32.partialorder %v1373, 20.0
  %v1550 = vsel %vm1534, %v1358, %v1518
  %v1551 = vsel %vm1535, %v1359, %v1519
  %v1552 = vsel %vm1536, %v1360, %v1520
  %v1553 = vsel %vm1537, %v1361, %v1521
  %v1554 = vsel %vm1538, %v1362, %v1522
  %v1555 = vsel %vm1539, %v1363, %v1523
  %v1556 = vsel %vm1540, %v1364, %v1524
  %v1557 = vsel %vm1541, %v1365, %v1525
  %v1558 = vsel %vm1542, %v1366, %v1526
  %v1559 = vsel %vm1543, %v1367, %v1527
  %v1560 = vsel %vm1544, %v1368, %v1528
  %v1561 = vsel %vm1545, %v1369, %v1529
  %v1562 = vsel %vm1546, %v1370, %v1530
  %v1563 = vsel %vm1547, %v1371, %v1531
  %v1564 = vsel %vm1548, %v1372, %v1532
  %v1565 = vsel %vm1549, %v1373, %v1533
  %v1566 = vpack.c.bf16 %v1554, %v1550
  %v1567 = vpack.c.bf16 %v1555, %v1551
  %v1568 = vpack.c.bf16 %v1556, %v1552
  %v1569 = vpack.c.bf16 %v1557, %v1553
  %v1570 = vpack.c.bf16 %v1562, %v1558
  %v1571 = vpack.c.bf16 %v1563, %v1559
  %v1572 = vpack.c.bf16 %v1564, %v1560
  %v1573 = vpack.c.bf16 %v1565, %v1561
  %v1574 = vld [vmem:[%s4] sm:$0xff]
  %v1575 = vld [vmem:[%s4 + $0x8] sm:$0xff]
  %v1576 = vld [vmem:[%s4 + $0x10] sm:$0xff]
  %v1577 = vld [vmem:[%s4 + $0x18] sm:$0xff]
  %v1578 = vld [vmem:[%s4 + $0x20] sm:$0xff]
  %v1579 = vld [vmem:[%s4 + $0x28] sm:$0xff]
  %v1580 = vld [vmem:[%s4 + $0x30] sm:$0xff]
  %v1581 = vld [vmem:[%s4 + $0x38] sm:$0xff]
  %v1582 = vld [vmem:[%s4 + $0x40] sm:$0xff]
  %v1583 = vld [vmem:[%s4 + $0x48] sm:$0xff]
  %v1584 = vld [vmem:[%s4 + $0x50] sm:$0xff]
  %v1585 = vld [vmem:[%s4 + $0x58] sm:$0xff]
  %v1586 = vld [vmem:[%s4 + $0x60] sm:$0xff]
  %v1587 = vld [vmem:[%s4 + $0x68] sm:$0xff]
  %v1588 = vld [vmem:[%s4 + $0x70] sm:$0xff]
  %v1589 = vld [vmem:[%s4 + $0x78] sm:$0xff]
  %v1590 = vld [vmem:[%s4 + $0x80] sm:$0xff]
  %v1591 = vld [vmem:[%s4 + $0x88] sm:$0xff]
  %v1592 = vld [vmem:[%s4 + $0x90] sm:$0xff]
  %v1593 = vld [vmem:[%s4 + $0x98] sm:$0xff]
  %v1594 = vld [vmem:[%s4 + $0xa0] sm:$0xff]
  %v1595 = vld [vmem:[%s4 + $0xa8] sm:$0xff]
  %v1596 = vld [vmem:[%s4 + $0xb0] sm:$0xff]
  %v1597 = vld [vmem:[%s4 + $0xb8] sm:$0xff]
  %v1598 = vld [vmem:[%s4 + $0xc0] sm:$0xff]
  %v1599 = vld [vmem:[%s4 + $0xc8] sm:$0xff]
  %v1600 = vld [vmem:[%s4 + $0xd0] sm:$0xff]
  %v1601 = vld [vmem:[%s4 + $0xd8] sm:$0xff]
  %v1602 = vld [vmem:[%s4 + $0xe0] sm:$0xff]
  %v1603 = vld [vmem:[%s4 + $0xe8] sm:$0xff]
  %v1604 = vld [vmem:[%s4 + $0xf0] sm:$0xff]
  %v1605 = vld [vmem:[%s4 + $0xf8] sm:$0xff]
  %v1606 = vld [vmem:[%s4 + $0x100] sm:$0xff]
  %v1607 = vld [vmem:[%s4 + $0x108] sm:$0xff]
  %v1608 = vld [vmem:[%s4 + $0x110] sm:$0xff]
  %v1609 = vld [vmem:[%s4 + $0x118] sm:$0xff]
  %v1610 = vld [vmem:[%s4 + $0x120] sm:$0xff]
  %v1611 = vld [vmem:[%s4 + $0x128] sm:$0xff]
  %v1612 = vld [vmem:[%s4 + $0x130] sm:$0xff]
  %v1613 = vld [vmem:[%s4 + $0x138] sm:$0xff]
  %v1614 = vld [vmem:[%s4 + $0x140] sm:$0xff]
  %v1615 = vld [vmem:[%s4 + $0x148] sm:$0xff]
  %v1616 = vld [vmem:[%s4 + $0x150] sm:$0xff]
  %v1617 = vld [vmem:[%s4 + $0x158] sm:$0xff]
  %v1618 = vld [vmem:[%s4 + $0x160] sm:$0xff]
  %v1619 = vld [vmem:[%s4 + $0x168] sm:$0xff]
  %v1620 = vld [vmem:[%s4 + $0x170] sm:$0xff]
  %v1621 = vld [vmem:[%s4 + $0x178] sm:$0xff]
  %v1622 = vld [vmem:[%s4 + $0x180] sm:$0xff]
  %v1623 = vld [vmem:[%s4 + $0x188] sm:$0xff]
  %v1624 = vld [vmem:[%s4 + $0x190] sm:$0xff]
  %v1625 = vld [vmem:[%s4 + $0x198] sm:$0xff]
  %v1626 = vld [vmem:[%s4 + $0x1a0] sm:$0xff]
  %v1627 = vld [vmem:[%s4 + $0x1a8] sm:$0xff]
  %v1628 = vld [vmem:[%s4 + $0x1b0] sm:$0xff]
  %v1629 = vld [vmem:[%s4 + $0x1b8] sm:$0xff]
  %v1630 = vld [vmem:[%s4 + $0x1c0] sm:$0xff]
  %v1631 = vld [vmem:[%s4 + $0x1c8] sm:$0xff]
  %v1632 = vld [vmem:[%s4 + $0x1d0] sm:$0xff]
  %v1633 = vld [vmem:[%s4 + $0x1d8] sm:$0xff]
  %v1634 = vld [vmem:[%s4 + $0x1e0] sm:$0xff]
  %v1635 = vld [vmem:[%s4 + $0x1e8] sm:$0xff]
  %v1636 = vld [vmem:[%s4 + $0x1f0] sm:$0xff]
  %v1637 = vld [vmem:[%s4 + $0x1f8] sm:$0xff]
  %v1638 = vld [vmem:[%s5] sm:$0x3]
  %v1640 = vperm.slane %v1638, 0
  %v1641 = vperm.slane %v1638, 1
  %v1708 = vunpack.c.l.b16 %v1574
  %v1709 = vunpack.c.h.b16 %v1574
  %v1710 = vunpack.c.l.b16 %v1575
  %v1711 = vunpack.c.h.b16 %v1575
  %v1712 = vunpack.c.l.b16 %v1576
  %v1713 = vunpack.c.h.b16 %v1576
  %v1714 = vunpack.c.l.b16 %v1577
  %v1715 = vunpack.c.h.b16 %v1577
  %v1716 = vunpack.c.l.b16 %v1578
  %v1717 = vunpack.c.h.b16 %v1578
  %v1718 = vunpack.c.l.b16 %v1579
  %v1719 = vunpack.c.h.b16 %v1579
  %v1720 = vunpack.c.l.b16 %v1580
  %v1721 = vunpack.c.h.b16 %v1580
  %v1722 = vunpack.c.l.b16 %v1581
  %v1723 = vunpack.c.h.b16 %v1581
  %v1724 = vunpack.c.l.b16 %v1582
  %v1725 = vunpack.c.h.b16 %v1582
  %v1726 = vunpack.c.l.b16 %v1583
  %v1727 = vunpack.c.h.b16 %v1583
  %v1728 = vunpack.c.l.b16 %v1584
  %v1729 = vunpack.c.h.b16 %v1584
  %v1730 = vunpack.c.l.b16 %v1585
  %v1731 = vunpack.c.h.b16 %v1585
  %v1732 = vunpack.c.l.b16 %v1586
  %v1733 = vunpack.c.h.b16 %v1586
  %v1734 = vunpack.c.l.b16 %v1587
  %v1735 = vunpack.c.h.b16 %v1587
  %v1736 = vunpack.c.l.b16 %v1588
  %v1737 = vunpack.c.h.b16 %v1588
  %v1738 = vunpack.c.l.b16 %v1589
  %v1739 = vunpack.c.h.b16 %v1589
  %v1740 = vunpack.c.l.b16 %v1590
  %v1741 = vunpack.c.h.b16 %v1590
  %v1742 = vunpack.c.l.b16 %v1591
  %v1743 = vunpack.c.h.b16 %v1591
  %v1744 = vunpack.c.l.b16 %v1592
  %v1745 = vunpack.c.h.b16 %v1592
  %v1746 = vunpack.c.l.b16 %v1593
  %v1747 = vunpack.c.h.b16 %v1593
  %v1748 = vunpack.c.l.b16 %v1594
  %v1749 = vunpack.c.h.b16 %v1594
  %v1750 = vunpack.c.l.b16 %v1595
  %v1751 = vunpack.c.h.b16 %v1595
  %v1752 = vunpack.c.l.b16 %v1596
  %v1753 = vunpack.c.h.b16 %v1596
  %v1754 = vunpack.c.l.b16 %v1597
  %v1755 = vunpack.c.h.b16 %v1597
  %v1756 = vunpack.c.l.b16 %v1598
  %v1757 = vunpack.c.h.b16 %v1598
  %v1758 = vunpack.c.l.b16 %v1599
  %v1759 = vunpack.c.h.b16 %v1599
  %v1760 = vunpack.c.l.b16 %v1600
  %v1761 = vunpack.c.h.b16 %v1600
  %v1762 = vunpack.c.l.b16 %v1601
  %v1763 = vunpack.c.h.b16 %v1601
  %v1764 = vunpack.c.l.b16 %v1602
  %v1765 = vunpack.c.h.b16 %v1602
  %v1766 = vunpack.c.l.b16 %v1603
  %v1767 = vunpack.c.h.b16 %v1603
  %v1768 = vunpack.c.l.b16 %v1604
  %v1769 = vunpack.c.h.b16 %v1604
  %v1770 = vunpack.c.l.b16 %v1605
  %v1771 = vunpack.c.h.b16 %v1605
  %v1772 = vunpack.c.l.b16 %v1606
  %v1773 = vunpack.c.h.b16 %v1606
  %v1774 = vunpack.c.l.b16 %v1607
  %v1775 = vunpack.c.h.b16 %v1607
  %v1776 = vunpack.c.l.b16 %v1608
  %v1777 = vunpack.c.h.b16 %v1608
  %v1778 = vunpack.c.l.b16 %v1609
  %v1779 = vunpack.c.h.b16 %v1609
  %v1780 = vunpack.c.l.b16 %v1610
  %v1781 = vunpack.c.h.b16 %v1610
  %v1782 = vunpack.c.l.b16 %v1611
  %v1783 = vunpack.c.h.b16 %v1611
  %v1784 = vunpack.c.l.b16 %v1612
  %v1785 = vunpack.c.h.b16 %v1612
  %v1786 = vunpack.c.l.b16 %v1613
  %v1787 = vunpack.c.h.b16 %v1613
  %v1788 = vunpack.c.l.b16 %v1614
  %v1789 = vunpack.c.h.b16 %v1614
  %v1790 = vunpack.c.l.b16 %v1615
  %v1791 = vunpack.c.h.b16 %v1615
  %v1792 = vunpack.c.l.b16 %v1616
  %v1793 = vunpack.c.h.b16 %v1616
  %v1794 = vunpack.c.l.b16 %v1617
  %v1795 = vunpack.c.h.b16 %v1617
  %v1796 = vunpack.c.l.b16 %v1618
  %v1797 = vunpack.c.h.b16 %v1618
  %v1798 = vunpack.c.l.b16 %v1619
  %v1799 = vunpack.c.h.b16 %v1619
  %v1800 = vunpack.c.l.b16 %v1620
  %v1801 = vunpack.c.h.b16 %v1620
  %v1802 = vunpack.c.l.b16 %v1621
  %v1803 = vunpack.c.h.b16 %v1621
  %v1804 = vunpack.c.l.b16 %v1622
  %v1805 = vunpack.c.h.b16 %v1622
  %v1806 = vunpack.c.l.b16 %v1623
  %v1807 = vunpack.c.h.b16 %v1623
  %v1808 = vunpack.c.l.b16 %v1624
  %v1809 = vunpack.c.h.b16 %v1624
  %v1810 = vunpack.c.l.b16 %v1625
  %v1811 = vunpack.c.h.b16 %v1625
  %v1812 = vunpack.c.l.b16 %v1626
  %v1813 = vunpack.c.h.b16 %v1626
  %v1814 = vunpack.c.l.b16 %v1627
  %v1815 = vunpack.c.h.b16 %v1627
  %v1816 = vunpack.c.l.b16 %v1628
  %v1817 = vunpack.c.h.b16 %v1628
  %v1818 = vunpack.c.l.b16 %v1629
  %v1819 = vunpack.c.h.b16 %v1629
  %v1820 = vunpack.c.l.b16 %v1630
  %v1821 = vunpack.c.h.b16 %v1630
  %v1822 = vunpack.c.l.b16 %v1631
  %v1823 = vunpack.c.h.b16 %v1631
  %v1824 = vunpack.c.l.b16 %v1632
  %v1825 = vunpack.c.h.b16 %v1632
  %v1826 = vunpack.c.l.b16 %v1633
  %v1827 = vunpack.c.h.b16 %v1633
  %v1828 = vunpack.c.l.b16 %v1634
  %v1829 = vunpack.c.h.b16 %v1634
  %v1830 = vunpack.c.l.b16 %v1635
  %v1831 = vunpack.c.h.b16 %v1635
  %v1832 = vunpack.c.l.b16 %v1636
  %v1833 = vunpack.c.h.b16 %v1636
  %v1834 = vunpack.c.l.b16 %v1637
  %v1835 = vunpack.c.h.b16 %v1637
  %v1836 = vpack.c.b16 %v1710, %v1708
  %v1837 = vpack.c.b16 %v1711, %v1709
  %v1838 = vpack.c.b16 %v1714, %v1712
  %v1839 = vpack.c.b16 %v1715, %v1713
  %v1840 = vpack.c.b16 %v1718, %v1716
  %v1841 = vpack.c.b16 %v1719, %v1717
  %v1842 = vpack.c.b16 %v1722, %v1720
  %v1843 = vpack.c.b16 %v1723, %v1721
  %v1844 = vpack.c.b16 %v1726, %v1724
  %v1845 = vpack.c.b16 %v1727, %v1725
  %v1846 = vpack.c.b16 %v1730, %v1728
  %v1847 = vpack.c.b16 %v1731, %v1729
  %v1848 = vpack.c.b16 %v1734, %v1732
  %v1849 = vpack.c.b16 %v1735, %v1733
  %v1850 = vpack.c.b16 %v1738, %v1736
  %v1851 = vpack.c.b16 %v1739, %v1737
  %v1852 = vpack.c.b16 %v1742, %v1740
  %v1853 = vpack.c.b16 %v1743, %v1741
  %v1854 = vpack.c.b16 %v1746, %v1744
  %v1855 = vpack.c.b16 %v1747, %v1745
  %v1856 = vpack.c.b16 %v1750, %v1748
  %v1857 = vpack.c.b16 %v1751, %v1749
  %v1858 = vpack.c.b16 %v1754, %v1752
  %v1859 = vpack.c.b16 %v1755, %v1753
  %v1860 = vpack.c.b16 %v1758, %v1756
  %v1861 = vpack.c.b16 %v1759, %v1757
  %v1862 = vpack.c.b16 %v1762, %v1760
  %v1863 = vpack.c.b16 %v1763, %v1761
  %v1864 = vpack.c.b16 %v1766, %v1764
  %v1865 = vpack.c.b16 %v1767, %v1765
  %v1866 = vpack.c.b16 %v1770, %v1768
  %v1867 = vpack.c.b16 %v1771, %v1769
  %v1868 = vpack.c.b16 %v1774, %v1772
  %v1869 = vpack.c.b16 %v1775, %v1773
  %v1870 = vpack.c.b16 %v1778, %v1776
  %v1871 = vpack.c.b16 %v1779, %v1777
  %v1872 = vpack.c.b16 %v1782, %v1780
  %v1873 = vpack.c.b16 %v1783, %v1781
  %v1874 = vpack.c.b16 %v1786, %v1784
  %v1875 = vpack.c.b16 %v1787, %v1785
  %v1876 = vpack.c.b16 %v1790, %v1788
  %v1877 = vpack.c.b16 %v1791, %v1789
  %v1878 = vpack.c.b16 %v1794, %v1792
  %v1879 = vpack.c.b16 %v1795, %v1793
  %v1880 = vpack.c.b16 %v1798, %v1796
  %v1881 = vpack.c.b16 %v1799, %v1797
  %v1882 = vpack.c.b16 %v1802, %v1800
  %v1883 = vpack.c.b16 %v1803, %v1801
  %v1884 = vpack.c.b16 %v1806, %v1804
  %v1885 = vpack.c.b16 %v1807, %v1805
  %v1886 = vpack.c.b16 %v1810, %v1808
  %v1887 = vpack.c.b16 %v1811, %v1809
  %v1888 = vpack.c.b16 %v1814, %v1812
  %v1889 = vpack.c.b16 %v1815, %v1813
  %v1890 = vpack.c.b16 %v1818, %v1816
  %v1891 = vpack.c.b16 %v1819, %v1817
  %v1892 = vpack.c.b16 %v1822, %v1820
  %v1893 = vpack.c.b16 %v1823, %v1821
  %v1894 = vpack.c.b16 %v1826, %v1824
  %v1895 = vpack.c.b16 %v1827, %v1825
  %v1896 = vpack.c.b16 %v1830, %v1828
  %v1897 = vpack.c.b16 %v1831, %v1829
  %v1898 = vpack.c.b16 %v1834, %v1832
  %v1899 = vpack.c.b16 %v1835, %v1833
  %1964 = vmatpush.bf16.msra.mxu0 %v1850
  %1965 = vmatpush.bf16.msra.mxu0 %v1848
  %1966 = vmatpush.bf16.msra.mxu0 %v1846
  %1967 = vmatpush.bf16.msra.mxu0 %v1844
  %1968 = vmatpush.bf16.msra.mxu0 %v1842
  %1969 = vmatpush.bf16.msra.mxu0 %v1840
  %1970 = vmatpush.bf16.msra.mxu0 %v1838
  %1971 = vmatpush.bf16.msra.mxu0 %v1836
  %1972 = vmatmul.bf16.gmra.mxu0 %v1566
  %v1973 = vpop.f32.mrf.mxu0
  %v1974 = vadd.f32 %v1640, %v1973
  %v1975 = vpop.f32.mrf.mxu0
  %v1976 = vadd.f32 %v1640, %v1975
  %1977 = vmatmul.bf16.gmra.mxu0 %v1570
  %v1978 = vpop.f32.mrf.mxu0
  %v1979 = vadd.f32 %v1640, %v1978
  %v1980 = vpop.f32.mrf.mxu0
  %v1981 = vadd.f32 %v1640, %v1980
  %1982 = vdwg.mxu0
  %1983 = vmatpush.bf16.msra.mxu0 %v1866
  %1984 = vmatpush.bf16.msra.mxu0 %v1864
  %1985 = vmatpush.bf16.msra.mxu0 %v1862
  %1986 = vmatpush.bf16.msra.mxu0 %v1860
  %1987 = vmatpush.bf16.msra.mxu0 %v1858
  %1988 = vmatpush.bf16.msra.mxu0 %v1856
  %1989 = vmatpush.bf16.msra.mxu0 %v1854
  %1990 = vmatpush.bf16.msra.mxu0 %v1852
  %1991 = vmatmul.bf16.gmra.mxu0 %v1567
  %v1992 = vpop.f32.mrf.mxu0
  %v1993 = vadd.f32 %v1974, %v1992
  %v1994 = vpop.f32.mrf.mxu0
  %v1995 = vadd.f32 %v1976, %v1994
  %1996 = vmatmul.bf16.gmra.mxu0 %v1571
  %v1997 = vpop.f32.mrf.mxu0
  %v1998 = vadd.f32 %v1979, %v1997
  %v1999 = vpop.f32.mrf.mxu0
  %v2000 = vadd.f32 %v1981, %v1999
  %2001 = vdwg.mxu0
  %2002 = vmatpush.bf16.msra.mxu0 %v1882
  %2003 = vmatpush.bf16.msra.mxu0 %v1880
  %2004 = vmatpush.bf16.msra.mxu0 %v1878
  %2005 = vmatpush.bf16.msra.mxu0 %v1876
  %2006 = vmatpush.bf16.msra.mxu0 %v1874
  %2007 = vmatpush.bf16.msra.mxu0 %v1872
  %2008 = vmatpush.bf16.msra.mxu0 %v1870
  %2009 = vmatpush.bf16.msra.mxu0 %v1868
  %2010 = vmatmul.bf16.gmra.mxu0 %v1568
  %v2011 = vpop.f32.mrf.mxu0
  %v2012 = vadd.f32 %v1993, %v2011
  %v2013 = vpop.f32.mrf.mxu0
  %v2014 = vadd.f32 %v1995, %v2013
  %2015 = vmatmul.bf16.gmra.mxu0 %v1572
  %v2016 = vpop.f32.mrf.mxu0
  %v2017 = vadd.f32 %v1998, %v2016
  %v2018 = vpop.f32.mrf.mxu0
  %v2019 = vadd.f32 %v2000, %v2018
  %2020 = vdwg.mxu0
  %2021 = vmatpush.bf16.msra.mxu0 %v1898
  %2022 = vmatpush.bf16.msra.mxu0 %v1896
  %2023 = vmatpush.bf16.msra.mxu0 %v1894
  %2024 = vmatpush.bf16.msra.mxu0 %v1892
  %2025 = vmatpush.bf16.msra.mxu0 %v1890
  %2026 = vmatpush.bf16.msra.mxu0 %v1888
  %2027 = vmatpush.bf16.msra.mxu0 %v1886
  %2028 = vmatpush.bf16.msra.mxu0 %v1884
  %2029 = vmatmul.bf16.gmra.mxu0 %v1569
  %v2030 = vpop.f32.mrf.mxu0
  %v2031 = vadd.f32 %v2012, %v2030
  %v2032 = vpop.f32.mrf.mxu0
  %v2033 = vadd.f32 %v2014, %v2032
  %2034 = vmatmul.bf16.gmra.mxu0 %v1573
  %v2035 = vpop.f32.mrf.mxu0
  %v2036 = vadd.f32 %v2017, %v2035
  %v2037 = vpop.f32.mrf.mxu0
  %v2038 = vadd.f32 %v2019, %v2037
  %2039 = vdwg.mxu0
  %2040 = vmatpush.bf16.msra.mxu0 %v1851
  %2041 = vmatpush.bf16.msra.mxu0 %v1849
  %2042 = vmatpush.bf16.msra.mxu0 %v1847
  %2043 = vmatpush.bf16.msra.mxu0 %v1845
  %2044 = vmatpush.bf16.msra.mxu0 %v1843
  %2045 = vmatpush.bf16.msra.mxu0 %v1841
  %2046 = vmatpush.bf16.msra.mxu0 %v1839
  %2047 = vmatpush.bf16.msra.mxu0 %v1837
  %2048 = vmatmul.bf16.gmra.mxu0 %v1566
  %v2049 = vpop.f32.mrf.mxu0
  %v2050 = vadd.f32 %v1641, %v2049
  %v2051 = vpop.f32.mrf.mxu0
  %v2052 = vadd.f32 %v1641, %v2051
  %2053 = vmatmul.bf16.gmra.mxu0 %v1570
  %v2054 = vpop.f32.mrf.mxu0
  %v2055 = vadd.f32 %v1641, %v2054
  %v2056 = vpop.f32.mrf.mxu0
  %v2057 = vadd.f32 %v1641, %v2056
  %2058 = vdwg.mxu0
  %2059 = vmatpush.bf16.msra.mxu0 %v1867
  %2060 = vmatpush.bf16.msra.mxu0 %v1865
  %2061 = vmatpush.bf16.msra.mxu0 %v1863
  %2062 = vmatpush.bf16.msra.mxu0 %v1861
  %2063 = vmatpush.bf16.msra.mxu0 %v1859
  %2064 = vmatpush.bf16.msra.mxu0 %v1857
  %2065 = vmatpush.bf16.msra.mxu0 %v1855
  %2066 = vmatpush.bf16.msra.mxu0 %v1853
  %2067 = vmatmul.bf16.gmra.mxu0 %v1567
  %v2068 = vpop.f32.mrf.mxu0
  %v2069 = vadd.f32 %v2050, %v2068
  %v2070 = vpop.f32.mrf.mxu0
  %v2071 = vadd.f32 %v2052, %v2070
  %2072 = vmatmul.bf16.gmra.mxu0 %v1571
  %v2073 = vpop.f32.mrf.mxu0
  %v2074 = vadd.f32 %v2055, %v2073
  %v2075 = vpop.f32.mrf.mxu0
  %v2076 = vadd.f32 %v2057, %v2075
  %2077 = vdwg.mxu0
  %2078 = vmatpush.bf16.msra.mxu0 %v1883
  %2079 = vmatpush.bf16.msra.mxu0 %v1881
  %2080 = vmatpush.bf16.msra.mxu0 %v1879
  %2081 = vmatpush.bf16.msra.mxu0 %v1877
  %2082 = vmatpush.bf16.msra.mxu0 %v1875
  %2083 = vmatpush.bf16.msra.mxu0 %v1873
  %2084 = vmatpush.bf16.msra.mxu0 %v1871
  %2085 = vmatpush.bf16.msra.mxu0 %v1869
  %2086 = vmatmul.bf16.gmra.mxu0 %v1568
  %v2087 = vpop.f32.mrf.mxu0
  %v2088 = vadd.f32 %v2069, %v2087
  %v2089 = vpop.f32.mrf.mxu0
  %v2090 = vadd.f32 %v2071, %v2089
  %2091 = vmatmul.bf16.gmra.mxu0 %v1572
  %v2092 = vpop.f32.mrf.mxu0
  %v2093 = vadd.f32 %v2074, %v2092
  %v2094 = vpop.f32.mrf.mxu0
  %v2095 = vadd.f32 %v2076, %v2094
  %2096 = vdwg.mxu0
  %2097 = vmatpush.bf16.msra.mxu0 %v1899
  %2098 = vmatpush.bf16.msra.mxu0 %v1897
  %2099 = vmatpush.bf16.msra.mxu0 %v1895
  %2100 = vmatpush.bf16.msra.mxu0 %v1893
  %2101 = vmatpush.bf16.msra.mxu0 %v1891
  %2102 = vmatpush.bf16.msra.mxu0 %v1889
  %2103 = vmatpush.bf16.msra.mxu0 %v1887
  %2104 = vmatpush.bf16.msra.mxu0 %v1885
  %2105 = vmatmul.bf16.gmra.mxu0 %v1569
  %v2106 = vpop.f32.mrf.mxu0
  %v2107 = vadd.f32 %v2088, %v2106
  %v2108 = vpop.f32.mrf.mxu0
  %v2109 = vadd.f32 %v2090, %v2108
  %2110 = vmatmul.bf16.gmra.mxu0 %v1573
  %v2111 = vpop.f32.mrf.mxu0
  %v2112 = vadd.f32 %v2093, %v2111
  %v2113 = vpop.f32.mrf.mxu0
  %v2114 = vadd.f32 %v2095, %v2113
  %2115 = vdwg.mxu0
  %vm2116 = vcmp.gt.f32.partialorder %v2031, 0.0
  %vm2117 = vcmp.gt.f32.partialorder %v2107, 0.0
  %vm2118 = vcmp.gt.f32.partialorder %v2033, 0.0
  %vm2119 = vcmp.gt.f32.partialorder %v2109, 0.0
  %vm2120 = vcmp.gt.f32.partialorder %v2036, 0.0
  %vm2121 = vcmp.gt.f32.partialorder %v2112, 0.0
  %vm2122 = vcmp.gt.f32.partialorder %v2038, 0.0
  %vm2123 = vcmp.gt.f32.partialorder %v2114, 0.0
  %v2124 = vmul.f32 %v2031, 0.1
  %v2125 = vmul.f32 %v2107, 0.1
  %v2126 = vmul.f32 %v2033, 0.1
  %v2127 = vmul.f32 %v2109, 0.1
  %v2128 = vmul.f32 %v2036, 0.1
  %v2129 = vmul.f32 %v2112, 0.1
  %v2130 = vmul.f32 %v2038, 0.1
  %v2131 = vmul.f32 %v2114, 0.1
  %v2132 = vsel %vm2116, %v2031, %v2124
  %v2133 = vsel %vm2117, %v2107, %v2125
  %v2134 = vsel %vm2118, %v2033, %v2126
  %v2135 = vsel %vm2119, %v2109, %v2127
  %v2136 = vsel %vm2120, %v2036, %v2128
  %v2137 = vsel %vm2121, %v2112, %v2129
  %v2138 = vsel %vm2122, %v2038, %v2130
  %v2139 = vsel %vm2123, %v2114, %v2131
  %v2140 = vpack.c.bf16 %v2134, %v2132
  %v2141 = vpack.c.bf16 %v2135, %v2133
  %v2142 = vpack.c.bf16 %v2138, %v2136
  %v2143 = vpack.c.bf16 %v2139, %v2137
  %v2144 = vld [vmem:[%s6] sm:$0xff]
  %v2145 = vld [vmem:[%s6 + $0x8] sm:$0xff]
  %v2146 = vld [vmem:[%s6 + $0x10] sm:$0xff]
  %v2147 = vld [vmem:[%s6 + $0x18] sm:$0xff]
  %v2148 = vld [vmem:[%s6 + $0x20] sm:$0xff]
  %v2149 = vld [vmem:[%s6 + $0x28] sm:$0xff]
  %v2150 = vld [vmem:[%s6 + $0x30] sm:$0xff]
  %v2151 = vld [vmem:[%s6 + $0x38] sm:$0xff]
  %v2152 = vld [vmem:[%s6 + $0x40] sm:$0xff]
  %v2153 = vld [vmem:[%s6 + $0x48] sm:$0xff]
  %v2154 = vld [vmem:[%s6 + $0x50] sm:$0xff]
  %v2155 = vld [vmem:[%s6 + $0x58] sm:$0xff]
  %v2156 = vld [vmem:[%s6 + $0x60] sm:$0xff]
  %v2157 = vld [vmem:[%s6 + $0x68] sm:$0xff]
  %v2158 = vld [vmem:[%s6 + $0x70] sm:$0xff]
  %v2159 = vld [vmem:[%s6 + $0x78] sm:$0xff]
  %v2160 = vld [vmem:[%s6 + $0x80] sm:$0xff]
  %v2161 = vld [vmem:[%s6 + $0x88] sm:$0xff]
  %v2162 = vld [vmem:[%s6 + $0x90] sm:$0xff]
  %v2163 = vld [vmem:[%s6 + $0x98] sm:$0xff]
  %v2164 = vld [vmem:[%s6 + $0xa0] sm:$0xff]
  %v2165 = vld [vmem:[%s6 + $0xa8] sm:$0xff]
  %v2166 = vld [vmem:[%s6 + $0xb0] sm:$0xff]
  %v2167 = vld [vmem:[%s6 + $0xb8] sm:$0xff]
  %v2168 = vld [vmem:[%s6 + $0xc0] sm:$0xff]
  %v2169 = vld [vmem:[%s6 + $0xc8] sm:$0xff]
  %v2170 = vld [vmem:[%s6 + $0xd0] sm:$0xff]
  %v2171 = vld [vmem:[%s6 + $0xd8] sm:$0xff]
  %v2172 = vld [vmem:[%s6 + $0xe0] sm:$0xff]
  %v2173 = vld [vmem:[%s6 + $0xe8] sm:$0xff]
  %v2174 = vld [vmem:[%s6 + $0xf0] sm:$0xff]
  %v2175 = vld [vmem:[%s6 + $0xf8] sm:$0xff]
  %v2208 = vunpack.c.l.b16 %v2144
  %v2209 = vunpack.c.h.b16 %v2144
  %v2210 = vunpack.c.l.b16 %v2145
  %v2211 = vunpack.c.h.b16 %v2145
  %v2212 = vunpack.c.l.b16 %v2146
  %v2213 = vunpack.c.h.b16 %v2146
  %v2214 = vunpack.c.l.b16 %v2147
  %v2215 = vunpack.c.h.b16 %v2147
  %v2216 = vunpack.c.l.b16 %v2148
  %v2217 = vunpack.c.h.b16 %v2148
  %v2218 = vunpack.c.l.b16 %v2149
  %v2219 = vunpack.c.h.b16 %v2149
  %v2220 = vunpack.c.l.b16 %v2150
  %v2221 = vunpack.c.h.b16 %v2150
  %v2222 = vunpack.c.l.b16 %v2151
  %v2223 = vunpack.c.h.b16 %v2151
  %v2224 = vunpack.c.l.b16 %v2152
  %v2225 = vunpack.c.h.b16 %v2152
  %v2226 = vunpack.c.l.b16 %v2153
  %v2227 = vunpack.c.h.b16 %v2153
  %v2228 = vunpack.c.l.b16 %v2154
  %v2229 = vunpack.c.h.b16 %v2154
  %v2230 = vunpack.c.l.b16 %v2155
  %v2231 = vunpack.c.h.b16 %v2155
  %v2232 = vunpack.c.l.b16 %v2156
  %v2233 = vunpack.c.h.b16 %v2156
  %v2234 = vunpack.c.l.b16 %v2157
  %v2235 = vunpack.c.h.b16 %v2157
  %v2236 = vunpack.c.l.b16 %v2158
  %v2237 = vunpack.c.h.b16 %v2158
  %v2238 = vunpack.c.l.b16 %v2159
  %v2239 = vunpack.c.h.b16 %v2159
  %v2240 = vunpack.c.l.b16 %v2160
  %v2241 = vunpack.c.h.b16 %v2160
  %v2242 = vunpack.c.l.b16 %v2161
  %v2243 = vunpack.c.h.b16 %v2161
  %v2244 = vunpack.c.l.b16 %v2162
  %v2245 = vunpack.c.h.b16 %v2162
  %v2246 = vunpack.c.l.b16 %v2163
  %v2247 = vunpack.c.h.b16 %v2163
  %v2248 = vunpack.c.l.b16 %v2164
  %v2249 = vunpack.c.h.b16 %v2164
  %v2250 = vunpack.c.l.b16 %v2165
  %v2251 = vunpack.c.h.b16 %v2165
  %v2252 = vunpack.c.l.b16 %v2166
  %v2253 = vunpack.c.h.b16 %v2166
  %v2254 = vunpack.c.l.b16 %v2167
  %v2255 = vunpack.c.h.b16 %v2167
  %v2256 = vunpack.c.l.b16 %v2168
  %v2257 = vunpack.c.h.b16 %v2168
  %v2258 = vunpack.c.l.b16 %v2169
  %v2259 = vunpack.c.h.b16 %v2169
  %v2260 = vunpack.c.l.b16 %v2170
  %v2261 = vunpack.c.h.b16 %v2170
  %v2262 = vunpack.c.l.b16 %v2171
  %v2263 = vunpack.c.h.b16 %v2171
  %v2264 = vunpack.c.l.b16 %v2172
  %v2265 = vunpack.c.h.b16 %v2172
  %v2266 = vunpack.c.l.b16 %v2173
  %v2267 = vunpack.c.h.b16 %v2173
  %v2268 = vunpack.c.l.b16 %v2174
  %v2269 = vunpack.c.h.b16 %v2174
  %v2270 = vunpack.c.l.b16 %v2175
  %v2271 = vunpack.c.h.b16 %v2175
  %v2272 = vpack.c.b16 %v2210, %v2208
  %v2273 = vpack.c.b16 %v2211, %v2209
  %v2274 = vpack.c.b16 %v2214, %v2212
  %v2275 = vpack.c.b16 %v2215, %v2213
  %v2276 = vpack.c.b16 %v2218, %v2216
  %v2277 = vpack.c.b16 %v2219, %v2217
  %v2278 = vpack.c.b16 %v2222, %v2220
  %v2279 = vpack.c.b16 %v2223, %v2221
  %v2280 = vpack.c.b16 %v2226, %v2224
  %v2281 = vpack.c.b16 %v2227, %v2225
  %v2282 = vpack.c.b16 %v2230, %v2228
  %v2283 = vpack.c.b16 %v2231, %v2229
  %v2284 = vpack.c.b16 %v2234, %v2232
  %v2285 = vpack.c.b16 %v2235, %v2233
  %v2286 = vpack.c.b16 %v2238, %v2236
  %v2287 = vpack.c.b16 %v2239, %v2237
  %v2288 = vpack.c.b16 %v2242, %v2240
  %v2289 = vpack.c.b16 %v2243, %v2241
  %v2290 = vpack.c.b16 %v2246, %v2244
  %v2291 = vpack.c.b16 %v2247, %v2245
  %v2292 = vpack.c.b16 %v2250, %v2248
  %v2293 = vpack.c.b16 %v2251, %v2249
  %v2294 = vpack.c.b16 %v2254, %v2252
  %v2295 = vpack.c.b16 %v2255, %v2253
  %v2296 = vpack.c.b16 %v2258, %v2256
  %v2297 = vpack.c.b16 %v2259, %v2257
  %v2298 = vpack.c.b16 %v2262, %v2260
  %v2299 = vpack.c.b16 %v2263, %v2261
  %v2300 = vpack.c.b16 %v2266, %v2264
  %v2301 = vpack.c.b16 %v2267, %v2265
  %v2302 = vpack.c.b16 %v2270, %v2268
  %v2303 = vpack.c.b16 %v2271, %v2269
  %2336 = vmatpush.bf16.msra.mxu0 %v2286
  %2337 = vmatpush.bf16.msra.mxu0 %v2284
  %2338 = vmatpush.bf16.msra.mxu0 %v2282
  %2339 = vmatpush.bf16.msra.mxu0 %v2280
  %2340 = vmatpush.bf16.msra.mxu0 %v2278
  %2341 = vmatpush.bf16.msra.mxu0 %v2276
  %2342 = vmatpush.bf16.msra.mxu0 %v2274
  %2343 = vmatpush.bf16.msra.mxu0 %v2272
  %2344 = vmatmul.bf16.gmra.mxu0 %v2140
  %v2345 = vpop.f32.mrf.mxu0
  %v2346 = vadd.f32 0.0, %v2345
  %v2347 = vpop.f32.mrf.mxu0
  %v2348 = vadd.f32 0.0, %v2347
  %2349 = vmatmul.bf16.gmra.mxu0 %v2142
  %v2350 = vpop.f32.mrf.mxu0
  %v2351 = vadd.f32 0.0, %v2350
  %v2352 = vpop.f32.mrf.mxu0
  %v2353 = vadd.f32 0.0, %v2352
  %2354 = vdwg.mxu0
  %2355 = vmatpush.bf16.msra.mxu0 %v2302
  %2356 = vmatpush.bf16.msra.mxu0 %v2300
  %2357 = vmatpush.bf16.msra.mxu0 %v2298
  %2358 = vmatpush.bf16.msra.mxu0 %v2296
  %2359 = vmatpush.bf16.msra.mxu0 %v2294
  %2360 = vmatpush.bf16.msra.mxu0 %v2292
  %2361 = vmatpush.bf16.msra.mxu0 %v2290
  %2362 = vmatpush.bf16.msra.mxu0 %v2288
  %2363 = vmatmul.bf16.gmra.mxu0 %v2141
  %v2364 = vpop.f32.mrf.mxu0
  %v2365 = vadd.f32 %v2346, %v2364
  %v2366 = vpop.f32.mrf.mxu0
  %v2367 = vadd.f32 %v2348, %v2366
  %2368 = vmatmul.bf16.gmra.mxu0 %v2143
  %v2369 = vpop.f32.mrf.mxu0
  %v2370 = vadd.f32 %v2351, %v2369
  %v2371 = vpop.f32.mrf.mxu0
  %v2372 = vadd.f32 %v2353, %v2371
  %2373 = vdwg.mxu0
  %2374 = vmatpush.bf16.msra.mxu0 %v2287
  %2375 = vmatpush.bf16.msra.mxu0 %v2285
  %2376 = vmatpush.bf16.msra.mxu0 %v2283
  %2377 = vmatpush.bf16.msra.mxu0 %v2281
  %2378 = vmatpush.bf16.msra.mxu0 %v2279
  %2379 = vmatpush.bf16.msra.mxu0 %v2277
  %2380 = vmatpush.bf16.msra.mxu0 %v2275
  %2381 = vmatpush.bf16.msra.mxu0 %v2273
  %2382 = vmatmul.bf16.gmra.mxu0 %v2140
  %v2383 = vpop.f32.mrf.mxu0
  %v2384 = vadd.f32 0.0, %v2383
  %v2385 = vpop.f32.mrf.mxu0
  %v2386 = vadd.f32 0.0, %v2385
  %2387 = vmatmul.bf16.gmra.mxu0 %v2142
  %v2388 = vpop.f32.mrf.mxu0
  %v2389 = vadd.f32 0.0, %v2388
  %v2390 = vpop.f32.mrf.mxu0
  %v2391 = vadd.f32 0.0, %v2390
  %2392 = vdwg.mxu0
  %2393 = vmatpush.bf16.msra.mxu0 %v2303
  %2394 = vmatpush.bf16.msra.mxu0 %v2301
  %2395 = vmatpush.bf16.msra.mxu0 %v2299
  %2396 = vmatpush.bf16.msra.mxu0 %v2297
  %2397 = vmatpush.bf16.msra.mxu0 %v2295
  %2398 = vmatpush.bf16.msra.mxu0 %v2293
  %2399 = vmatpush.bf16.msra.mxu0 %v2291
  %2400 = vmatpush.bf16.msra.mxu0 %v2289
  %2401 = vmatmul.bf16.gmra.mxu0 %v2141
  %v2402 = vpop.f32.mrf.mxu0
  %v2403 = vadd.f32 %v2384, %v2402
  %v2404 = vpop.f32.mrf.mxu0
  %v2405 = vadd.f32 %v2386, %v2404
  %2406 = vmatmul.bf16.gmra.mxu0 %v2143
  %v2407 = vpop.f32.mrf.mxu0
  %v2408 = vadd.f32 %v2389, %v2407
  %v2409 = vpop.f32.mrf.mxu0
  %v2410 = vadd.f32 %v2391, %v2409
  %2411 = vdwg.mxu0
  %2412 = vst [vmem:[%s9] sm:$0xff] %v2365
  %2413 = vst [vmem:[%s9 + $0x8] sm:$0xff] %v2403
  %2414 = vst [vmem:[%s9 + $0x10] sm:$0xff] %v2367
  %2415 = vst [vmem:[%s9 + $0x18] sm:$0xff] %v2405
  %2416 = vst [vmem:[%s9 + $0x20] sm:$0xff] %v2370
  %2417 = vst [vmem:[%s9 + $0x28] sm:$0xff] %v2408
  %2418 = vst [vmem:[%s9 + $0x30] sm:$0xff] %v2372
  %2419 = vst [vmem:[%s9 + $0x38] sm:$0xff] %v2410
  %v2420 = vld [vmem:[%s7] sm:$0xf]
  %v2421 = vld [vmem:[%s7 + $0x4] sm:$0xf]
  %v2422 = vld [vmem:[%s7 + $0x8] sm:$0xf]
  %v2423 = vld [vmem:[%s7 + $0xc] sm:$0xf]
  %v2424 = vld [vmem:[%s7 + $0x10] sm:$0xf]
  %v2425 = vld [vmem:[%s7 + $0x14] sm:$0xf]
  %v2426 = vld [vmem:[%s7 + $0x18] sm:$0xf]
  %v2427 = vld [vmem:[%s7 + $0x1c] sm:$0xf]
  %v2428 = vld [vmem:[%s7 + $0x20] sm:$0xf]
  %v2429 = vld [vmem:[%s7 + $0x24] sm:$0xf]
  %v2430 = vld [vmem:[%s7 + $0x28] sm:$0xf]
  %v2431 = vld [vmem:[%s7 + $0x2c] sm:$0xf]
  %v2432 = vld [vmem:[%s7 + $0x30] sm:$0xf]
  %v2433 = vld [vmem:[%s7 + $0x34] sm:$0xf]
  %v2434 = vld [vmem:[%s7 + $0x38] sm:$0xf]
  %v2435 = vld [vmem:[%s7 + $0x3c] sm:$0xf]
  %v2436 = vld [vmem:[%s7 + $0x40] sm:$0xf]
  %v2437 = vld [vmem:[%s7 + $0x44] sm:$0xf]
  %v2438 = vld [vmem:[%s7 + $0x48] sm:$0xf]
  %v2439 = vld [vmem:[%s7 + $0x4c] sm:$0xf]
  %v2440 = vld [vmem:[%s7 + $0x50] sm:$0xf]
  %v2441 = vld [vmem:[%s7 + $0x54] sm:$0xf]
  %v2442 = vld [vmem:[%s7 + $0x58] sm:$0xf]
  %v2443 = vld [vmem:[%s7 + $0x5c] sm:$0xf]
  %v2444 = vld [vmem:[%s7 + $0x60] sm:$0xf]
  %v2445 = vld [vmem:[%s7 + $0x64] sm:$0xf]
  %v2446 = vld [vmem:[%s7 + $0x68] sm:$0xf]
  %v2447 = vld [vmem:[%s7 + $0x6c] sm:$0xf]
  %v2448 = vld [vmem:[%s7 + $0x70] sm:$0xf]
  %v2449 = vld [vmem:[%s7 + $0x74] sm:$0xf]
  %v2450 = vld [vmem:[%s7 + $0x78] sm:$0xf]
  %v2451 = vld [vmem:[%s7 + $0x7c] sm:$0xf]
  %v2452 = vld [vmem:[%s7 + $0x80] sm:$0xf]
  %v2453 = vld [vmem:[%s7 + $0x84] sm:$0xf]
  %v2454 = vld [vmem:[%s7 + $0x88] sm:$0xf]
  %v2455 = vld [vmem:[%s7 + $0x8c] sm:$0xf]
  %v2456 = vld [vmem:[%s7 + $0x90] sm:$0xf]
  %v2457 = vld [vmem:[%s7 + $0x94] sm:$0xf]
  %v2458 = vld [vmem:[%s7 + $0x98] sm:$0xf]
  %v2459 = vld [vmem:[%s7 + $0x9c] sm:$0xf]
  %v2460 = vld [vmem:[%s7 + $0xa0] sm:$0xf]
  %v2461 = vld [vmem:[%s7 + $0xa4] sm:$0xf]
  %v2462 = vld [vmem:[%s7 + $0xa8] sm:$0xf]
  %v2463 = vld [vmem:[%s7 + $0xac] sm:$0xf]
  %v2464 = vld [vmem:[%s7 + $0xb0] sm:$0xf]
  %v2465 = vld [vmem:[%s7 + $0xb4] sm:$0xf]
  %v2466 = vld [vmem:[%s7 + $0xb8] sm:$0xf]
  %v2467 = vld [vmem:[%s7 + $0xbc] sm:$0xf]
  %v2468 = vld [vmem:[%s7 + $0xc0] sm:$0xf]
  %v2469 = vld [vmem:[%s7 + $0xc4] sm:$0xf]
  %v2470 = vld [vmem:[%s7 + $0xc8] sm:$0xf]
  %v2471 = vld [vmem:[%s7 + $0xcc] sm:$0xf]
  %v2472 = vld [vmem:[%s7 + $0xd0] sm:$0xf]
  %v2473 = vld [vmem:[%s7 + $0xd4] sm:$0xf]
  %v2474 = vld [vmem:[%s7 + $0xd8] sm:$0xf]
  %v2475 = vld [vmem:[%s7 + $0xdc] sm:$0xf]
  %v2476 = vld [vmem:[%s7 + $0xe0] sm:$0xf]
  %v2477 = vld [vmem:[%s7 + $0xe4] sm:$0xf]
  %v2478 = vld [vmem:[%s7 + $0xe8] sm:$0xf]
  %v2479 = vld [vmem:[%s7 + $0xec] sm:$0xf]
  %v2480 = vld [vmem:[%s7 + $0xf0] sm:$0xf]
  %v2481 = vld [vmem:[%s7 + $0xf4] sm:$0xf]
  %v2482 = vld [vmem:[%s7 + $0xf8] sm:$0xf]
  %v2483 = vld [vmem:[%s7 + $0xfc] sm:$0xf]
  %v2484 = vld [vmem:[%s8] sm:$0x1]
  %v2486 = vperm.slane %v2484, 0
  %v2552 = vunpack.c.l.b16 %v2420
  %v2553 = vunpack.c.l.b16 %v2421
  %v2554 = vunpack.c.l.b16 %v2422
  %v2555 = vunpack.c.l.b16 %v2423
  %v2556 = vunpack.c.l.b16 %v2424
  %v2557 = vunpack.c.l.b16 %v2425
  %v2558 = vunpack.c.l.b16 %v2426
  %v2559 = vunpack.c.l.b16 %v2427
  %v2560 = vunpack.c.l.b16 %v2428
  %v2561 = vunpack.c.l.b16 %v2429
  %v2562 = vunpack.c.l.b16 %v2430
  %v2563 = vunpack.c.l.b16 %v2431
  %v2564 = vunpack.c.l.b16 %v2432
  %v2565 = vunpack.c.l.b16 %v2433
  %v2566 = vunpack.c.l.b16 %v2434
  %v2567 = vunpack.c.l.b16 %v2435
  %v2568 = vunpack.c.l.b16 %v2436
  %v2569 = vunpack.c.l.b16 %v2437
  %v2570 = vunpack.c.l.b16 %v2438
  %v2571 = vunpack.c.l.b16 %v2439
  %v2572 = vunpack.c.l.b16 %v2440
  %v2573 = vunpack.c.l.b16 %v2441
  %v2574 = vunpack.c.l.b16 %v2442
  %v2575 = vunpack.c.l.b16 %v2443
  %v2576 = vunpack.c.l.b16 %v2444
  %v2577 = vunpack.c.l.b16 %v2445
  %v2578 = vunpack.c.l.b16 %v2446
  %v2579 = vunpack.c.l.b16 %v2447
  %v2580 = vunpack.c.l.b16 %v2448
  %v2581 = vunpack.c.l.b16 %v2449
  %v2582 = vunpack.c.l.b16 %v2450
  %v2583 = vunpack.c.l.b16 %v2451
  %v2584 = vunpack.c.l.b16 %v2452
  %v2585 = vunpack.c.l.b16 %v2453
  %v2586 = vunpack.c.l.b16 %v2454
  %v2587 = vunpack.c.l.b16 %v2455
  %v2588 = vunpack.c.l.b16 %v2456
  %v2589 = vunpack.c.l.b16 %v2457
  %v2590 = vunpack.c.l.b16 %v2458
  %v2591 = vunpack.c.l.b16 %v2459
  %v2592 = vunpack.c.l.b16 %v2460
  %v2593 = vunpack.c.l.b16 %v2461
  %v2594 = vunpack.c.l.b16 %v2462
  %v2595 = vunpack.c.l.b16 %v2463
  %v2596 = vunpack.c.l.b16 %v2464
  %v2597 = vunpack.c.l.b16 %v2465
  %v2598 = vunpack.c.l.b16 %v2466
  %v2599 = vunpack.c.l.b16 %v2467
  %v2600 = vunpack.c.l.b16 %v2468
  %v2601 = vunpack.c.l.b16 %v2469
  %v2602 = vunpack.c.l.b16 %v2470
  %v2603 = vunpack.c.l.b16 %v2471
  %v2604 = vunpack.c.l.b16 %v2472
  %v2605 = vunpack.c.l.b16 %v2473
  %v2606 = vunpack.c.l.b16 %v2474
  %v2607 = vunpack.c.l.b16 %v2475
  %v2608 = vunpack.c.l.b16 %v2476
  %v2609 = vunpack.c.l.b16 %v2477
  %v2610 = vunpack.c.l.b16 %v2478
  %v2611 = vunpack.c.l.b16 %v2479
  %v2612 = vunpack.c.l.b16 %v2480
  %v2613 = vunpack.c.l.b16 %v2481
  %v2614 = vunpack.c.l.b16 %v2482
  %v2615 = vunpack.c.l.b16 %v2483
  %v2616 = vpack.c.b16 %v2553, %v2552
  %v2617 = vpack.c.b16 %v2555, %v2554
  %v2618 = vpack.c.b16 %v2557, %v2556
  %v2619 = vpack.c.b16 %v2559, %v2558
  %v2620 = vpack.c.b16 %v2561, %v2560
  %v2621 = vpack.c.b16 %v2563, %v2562
  %v2622 = vpack.c.b16 %v2565, %v2564
  %v2623 = vpack.c.b16 %v2567, %v2566
  %v2624 = vpack.c.b16 %v2569, %v2568
  %v2625 = vpack.c.b16 %v2571, %v2570
  %v2626 = vpack.c.b16 %v2573, %v2572
  %v2627 = vpack.c.b16 %v2575, %v2574
  %v2628 = vpack.c.b16 %v2577, %v2576
  %v2629 = vpack.c.b16 %v2579, %v2578
  %v2630 = vpack.c.b16 %v2581, %v2580
  %v2631 = vpack.c.b16 %v2583, %v2582
  %v2632 = vpack.c.b16 %v2585, %v2584
  %v2633 = vpack.c.b16 %v2587, %v2586
  %v2634 = vpack.c.b16 %v2589, %v2588
  %v2635 = vpack.c.b16 %v2591, %v2590
  %v2636 = vpack.c.b16 %v2593, %v2592
  %v2637 = vpack.c.b16 %v2595, %v2594
  %v2638 = vpack.c.b16 %v2597, %v2596
  %v2639 = vpack.c.b16 %v2599, %v2598
  %v2640 = vpack.c.b16 %v2601, %v2600
  %v2641 = vpack.c.b16 %v2603, %v2602
  %v2642 = vpack.c.b16 %v2605, %v2604
  %v2643 = vpack.c.b16 %v2607, %v2606
  %v2644 = vpack.c.b16 %v2609, %v2608
  %v2645 = vpack.c.b16 %v2611, %v2610
  %v2646 = vpack.c.b16 %v2613, %v2612
  %v2647 = vpack.c.b16 %v2615, %v2614
  %2680 = vmatpush.bf16.msra.mxu0 %v2623
  %2681 = vmatpush.bf16.msra.mxu0 %v2622
  %2682 = vmatpush.bf16.msra.mxu0 %v2621
  %2683 = vmatpush.bf16.msra.mxu0 %v2620
  %2684 = vmatpush.bf16.msra.mxu0 %v2619
  %2685 = vmatpush.bf16.msra.mxu0 %v2618
  %2686 = vmatpush.bf16.msra.mxu0 %v2617
  %2687 = vmatpush.bf16.msra.mxu0 %v2616
  %2688 = vmatmul.bf16.gmra.mxu0 %v1566
  %v2689 = vpop.f32.mrf.mxu0
  %v2690 = vadd.f32 %v2486, %v2689
  %v2691 = vpop.f32.mrf.mxu0
  %v2692 = vadd.f32 %v2486, %v2691
  %2693 = vmatmul.bf16.gmra.mxu0 %v1570
  %v2694 = vpop.f32.mrf.mxu0
  %v2695 = vadd.f32 %v2486, %v2694
  %v2696 = vpop.f32.mrf.mxu0
  %v2697 = vadd.f32 %v2486, %v2696
  %2698 = vdwg.mxu0
  %2699 = vmatpush.bf16.msra.mxu0 %v2631
  %2700 = vmatpush.bf16.msra.mxu0 %v2630
  %2701 = vmatpush.bf16.msra.mxu0 %v2629
  %2702 = vmatpush.bf16.msra.mxu0 %v2628
  %2703 = vmatpush.bf16.msra.mxu0 %v2627
  %2704 = vmatpush.bf16.msra.mxu0 %v2626
  %2705 = vmatpush.bf16.msra.mxu0 %v2625
  %2706 = vmatpush.bf16.msra.mxu0 %v2624
  %2707 = vmatmul.bf16.gmra.mxu0 %v1567
  %v2708 = vpop.f32.mrf.mxu0
  %v2709 = vadd.f32 %v2690, %v2708
  %v2710 = vpop.f32.mrf.mxu0
  %v2711 = vadd.f32 %v2692, %v2710
  %2712 = vmatmul.bf16.gmra.mxu0 %v1571
  %v2713 = vpop.f32.mrf.mxu0
  %v2714 = vadd.f32 %v2695, %v2713
  %v2715 = vpop.f32.mrf.mxu0
  %v2716 = vadd.f32 %v2697, %v2715
  %2717 = vdwg.mxu0
  %2718 = vmatpush.bf16.msra.mxu0 %v2639
  %2719 = vmatpush.bf16.msra.mxu0 %v2638
  %2720 = vmatpush.bf16.msra.mxu0 %v2637
  %2721 = vmatpush.bf16.msra.mxu0 %v2636
  %2722 = vmatpush.bf16.msra.mxu0 %v2635
  %2723 = vmatpush.bf16.msra.mxu0 %v2634
  %2724 = vmatpush.bf16.msra.mxu0 %v2633
  %2725 = vmatpush.bf16.msra.mxu0 %v2632
  %2726 = vmatmul.bf16.gmra.mxu0 %v1568
  %v2727 = vpop.f32.mrf.mxu0
  %v2728 = vadd.f32 %v2709, %v2727
  %v2729 = vpop.f32.mrf.mxu0
  %v2730 = vadd.f32 %v2711, %v2729
  %2731 = vmatmul.bf16.gmra.mxu0 %v1572
  %v2732 = vpop.f32.mrf.mxu0
  %v2733 = vadd.f32 %v2714, %v2732
  %v2734 = vpop.f32.mrf.mxu0
  %v2735 = vadd.f32 %v2716, %v2734
  %2736 = vdwg.mxu0
  %2737 = vmatpush.bf16.msra.mxu0 %v2647
  %2738 = vmatpush.bf16.msra.mxu0 %v2646
  %2739 = vmatpush.bf16.msra.mxu0 %v2645
  %2740 = vmatpush.bf16.msra.mxu0 %v2644
  %2741 = vmatpush.bf16.msra.mxu0 %v2643
  %2742 = vmatpush.bf16.msra.mxu0 %v2642
  %2743 = vmatpush.bf16.msra.mxu0 %v2641
  %2744 = vmatpush.bf16.msra.mxu0 %v2640
  %2745 = vmatmul.bf16.gmra.mxu0 %v1569
  %v2746 = vpop.f32.mrf.mxu0
  %v2747 = vadd.f32 %v2728, %v2746
  %v2748 = vpop.f32.mrf.mxu0
  %v2749 = vadd.f32 %v2730, %v2748
  %2750 = vmatmul.bf16.gmra.mxu0 %v1573
  %v2751 = vpop.f32.mrf.mxu0
  %v2752 = vadd.f32 %v2733, %v2751
  %v2753 = vpop.f32.mrf.mxu0
  %v2754 = vadd.f32 %v2735, %v2753
  %2755 = vdwg.mxu0
  %v2756 = vpack.c.bf16 %v2747, %v2747
  %v2757 = vpack.c.bf16 %v2749, %v2749
  %v2758 = vpack.c.bf16 %v2752, %v2752
  %v2759 = vpack.c.bf16 %v2754, %v2754
  %2760 = vst [vmem:[%s10] sm:$0xf] %v2756
  %2761 = vst [vmem:[%s10 + $0x4] sm:$0xf] %v2757
  %2762 = vst [vmem:[%s10 + $0x8] sm:$0xf] %v2758
  %2763 = vst [vmem:[%s10 + $0xc] sm:$0xf] %v2759
  // Predicated region
  $region38: #{msr_fpn_forward.7} parent=0 // pred_check
    _
  $region39: #{msr_fpn_forward.7} parent=0 // pred_check_branch
    %2765 = sbr.rel (0) target = $region41
  $region40: #{msr_fpn_forward.7} parent=0 // pred_region
    _
  $region41: #{msr_fpn_forward.7} parent=0 // pred_fallthru
    _
  // Predicated region
  $region42: #{msr_fpn_forward.7} parent=0 // pred_check
    _
  $region43: #{msr_fpn_forward.7} parent=0 // pred_check_branch
    %2767 = sbr.rel (0) target = $region45
  $region44: #{msr_fpn_forward.7} parent=0 // pred_region
    _
  $region45: #{msr_fpn_forward.7} parent=0 // pred_fallthru
    _
  // Predicated region
  $region46: #{msr_fpn_forward.7} parent=0 // pred_check
    _
  $region47: #{msr_fpn_forward.7} parent=0 // pred_check_branch
    %2769 = sbr.rel (0) target = $region49
  $region48: #{msr_fpn_forward.7} parent=0 // pred_region
    _
  $region49: #{msr_fpn_forward.7} parent=0 // pred_fallthru
    _
  // Predicated region
  $region50: #{msr_fpn_forward.7} parent=0 // pred_check
    _
  $region51: #{msr_fpn_forward.7} parent=0 // pred_check_branch
    %2771 = sbr.rel (0) target = $region53
  $region52: #{msr_fpn_forward.7} parent=0 // pred_region
    _
  $region53: #{msr_fpn_forward.7} parent=0 // pred_fallthru
    _

// kernel: msr_fpn_forward.9
$region0: #{msr_fpn_forward.9}
  #allocation0 [shape = 'u32[]', space=smem, size = 0x4, offset = 0x4, fixed_abs, tag = 'smem constant byte address 0x4 - core index']
  #allocation1 [shape = 'u32[72,128]{1,0:T(1,128)}', space=vmem, size = 0x9000, scoped, tag = 'internal scratch']
  %s0 = inlined_call_operand.vmem [shape: f32[512,128], index: 0, kind: input, shape index: {}]
  %s1 = inlined_call_operand.vmem [shape: bf16[512,16], index: 1, kind: input, shape index: {}]
  %s2 = inlined_call_operand.vmem [shape: bf16[16,128], index: 2, kind: input, shape index: {}]
  %s3 = inlined_call_operand.vmem [shape: f32[1,128], index: 3, kind: input, shape index: {}]
  %s4 = inlined_call_operand.vmem [shape: bf16[128,128], index: 4, kind: input, shape index: {}]
  %s5 = inlined_call_operand.vmem [shape: f32[1,128], index: 5, kind: input, shape index: {}]
  %s6 = inlined_call_operand.vmem [shape: bf16[512,128], index: 6, kind: output, shape index: {}]
  %s7 = sld [smem:[#allocation0]]
  $region57: #{msr_fpn_forward.9} parent=0
    _
  %s9 = ssub.s32 1, %s7
  %s10 = scalar_select 0, %s9, %s7
  loop: start=0, step=1, limit=4
  $region2: #{msr_fpn_forward.9} parent=0 // loop_pre_header
    _
  $region3: #{msr_fpn_forward.9} parent=0 // loop_header
    %s12 = sphi 0, %s16
    %p13 = scmp.ge.s32.totalorder %s12, 4
    %s22 = sphi 0, %s24
    %s25 = sphi 0, %s22
    %s26 = sphi 0, %s25
    %s42 = sphi 0, %s26
    %s48 = sphi 0, %s50
    %s51 = sphi 0, %s48
    %s52 = sphi 0, %s51
    %s68 = sphi 0, %s52
    %s72 = sphi 0, %s72
    %s74 = sphi 0, %s72
    %s75 = sphi 0, %s74
    %s89 = sphi 0, %s75
    %s93 = sphi 0, %s93
    %s95 = sphi 0, %s93
    %s96 = sphi 0, %s95
    %s110 = sphi 0, %s96
    %s114 = sphi 0, %s114
    %s116 = sphi 0, %s114
    %s117 = sphi 0, %s116
    %s131 = sphi 0, %s117
    %s135 = sphi 0, %s135
    %s137 = sphi 0, %s135
    %s138 = sphi 0, %s137
    %s152 = sphi 0, %s138
    %s158 = sphi 0, %s160
    %s161 = sphi 0, %s158
    %s162 = sphi 0, %s161
    %s178 = sphi 0, %s162
  $region4: #{msr_fpn_forward.9} parent=0 // loop_header_branch
    %15 = sbr.rel (%p13) target = $region8
  $region5: #{msr_fpn_forward.9} parent=0 // loop_body
    %s17 = ssub.s32 %s12, 1
    %s18 = ssub.s32 %s12, 2
    %s19 = sadd.s32 %s12, 1
    %s20 = ssub.s32 %s12, %s19
    %p21 = scmp.eq.s32.totalorder %s20, 0
    %s23 = sadd.s32 %s22, 1
    %s24 = scalar_select %p21, %s22, %s23
    %p27 = pneg %p21
    %p28 = scmp.eq.s32.totalorder %s12, 1
    %p29 = por %p27, %p28
    %p30 = scmp.ne.s32.totalorder %s22, %s25
    %p31 = scmp.eq.s32.totalorder %s12, 0
    %p32 = por %p30, %p31
    %p33 = scmp.ne.s32.totalorder %s22, %s25
    %p34 = scmp.eq.s32.totalorder %s17, 1
    %p35 = por %p33, %p34
    %p36 = scmp.ne.s32.totalorder %s25, %s26
    %p37 = scmp.eq.s32.totalorder %s17, 0
    %p38 = por %p36, %p37
    %p39 = scmp.ne.s32.totalorder %s25, %s26
    %p40 = scmp.eq.s32.totalorder %s18, 1
    %p41 = por %p39, %p40
    %p43 = scmp.ne.s32.totalorder %s26, %s42
    %p44 = scmp.eq.s32.totalorder %s18, 0
    %p45 = por %p43, %p44
    %s46 = ssub.s32 %s12, %s19
    %p47 = scmp.eq.s32.totalorder %s46, 0
    %s49 = sadd.s32 %s48, 1
    %s50 = scalar_select %p47, %s48, %s49
    %p53 = pneg %p47
    %p54 = scmp.eq.s32.totalorder %s12, 1
    %p55 = por %p53, %p54
    %p56 = scmp.ne.s32.totalorder %s48, %s51
    %p57 = scmp.eq.s32.totalorder %s12, 0
    %p58 = por %p56, %p57
    %p59 = scmp.ne.s32.totalorder %s48, %s51
    %p60 = scmp.eq.s32.totalorder %s17, 1
    %p61 = por %p59, %p60
    %p62 = scmp.ne.s32.totalorder %s51, %s52
    %p63 = scmp.eq.s32.totalorder %s17, 0
    %p64 = por %p62, %p63
    %p65 = scmp.ne.s32.totalorder %s51, %s52
    %p66 = scmp.eq.s32.totalorder %s18, 1
    %p67 = por %p65, %p66
    %p69 = scmp.ne.s32.totalorder %s52, %s68
    %p70 = scmp.eq.s32.totalorder %s18, 0
    %p71 = por %p69, %p70
    %s73 = sadd.s32 %s72, 1
    %p76 = scmp.eq.s32.totalorder %s12, 1
    %p77 = scmp.ne.s32.totalorder %s72, %s74
    %p78 = scmp.eq.s32.totalorder %s12, 0
    %p79 = por %p77, %p78
    %p80 = scmp.ne.s32.totalorder %s72, %s74
    %p81 = scmp.eq.s32.totalorder %s17, 1
    %p82 = por %p80, %p81
    %p83 = scmp.ne.s32.totalorder %s74, %s75
    %p84 = scmp.eq.s32.totalorder %s17, 0
    %p85 = por %p83, %p84
    %p86 = scmp.ne.s32.totalorder %s74, %s75
    %p87 = scmp.eq.s32.totalorder %s18, 1
    %p88 = por %p86, %p87
    %p90 = scmp.ne.s32.totalorder %s75, %s89
    %p91 = scmp.eq.s32.totalorder %s18, 0
    %p92 = por %p90, %p91
    %s94 = sadd.s32 %s93, 1
    %p97 = scmp.eq.s32.totalorder %s12, 1
    %p98 = scmp.ne.s32.totalorder %s93, %s95
    %p99 = scmp.eq.s32.totalorder %s12, 0
    %p100 = por %p98, %p99
    %p101 = scmp.ne.s32.totalorder %s93, %s95
    %p102 = scmp.eq.s32.totalorder %s17, 1
    %p103 = por %p101, %p102
    %p104 = scmp.ne.s32.totalorder %s95, %s96
    %p105 = scmp.eq.s32.totalorder %s17, 0
    %p106 = por %p104, %p105
    %p107 = scmp.ne.s32.totalorder %s95, %s96
    %p108 = scmp.eq.s32.totalorder %s18, 1
    %p109 = por %p107, %p108
    %p111 = scmp.ne.s32.totalorder %s96, %s110
    %p112 = scmp.eq.s32.totalorder %s18, 0
    %p113 = por %p111, %p112
    %s115 = sadd.s32 %s114, 1
    %p118 = scmp.eq.s32.totalorder %s12, 1
    %p119 = scmp.ne.s32.totalorder %s114, %s116
    %p120 = scmp.eq.s32.totalorder %s12, 0
    %p121 = por %p119, %p120
    %p122 = scmp.ne.s32.totalorder %s114, %s116
    %p123 = scmp.eq.s32.totalorder %s17, 1
    %p124 = por %p122, %p123
    %p125 = scmp.ne.s32.totalorder %s116, %s117
    %p126 = scmp.eq.s32.totalorder %s17, 0
    %p127 = por %p125, %p126
    %p128 = scmp.ne.s32.totalorder %s116, %s117
    %p129 = scmp.eq.s32.totalorder %s18, 1
    %p130 = por %p128, %p129
    %p132 = scmp.ne.s32.totalorder %s117, %s131
    %p133 = scmp.eq.s32.totalorder %s18, 0
    %p134 = por %p132, %p133
    %s136 = sadd.s32 %s135, 1
    %p139 = scmp.eq.s32.totalorder %s12, 1
    %p140 = scmp.ne.s32.totalorder %s135, %s137
    %p141 = scmp.eq.s32.totalorder %s12, 0
    %p142 = por %p140, %p141
    %p143 = scmp.ne.s32.totalorder %s135, %s137
    %p144 = scmp.eq.s32.totalorder %s17, 1
    %p145 = por %p143, %p144
    %p146 = scmp.ne.s32.totalorder %s137, %s138
    %p147 = scmp.eq.s32.totalorder %s17, 0
    %p148 = por %p146, %p147
    %p149 = scmp.ne.s32.totalorder %s137, %s138
    %p150 = scmp.eq.s32.totalorder %s18, 1
    %p151 = por %p149, %p150
    %p153 = scmp.ne.s32.totalorder %s138, %s152
    %p154 = scmp.eq.s32.totalorder %s18, 0
    %p155 = por %p153, %p154
    %s156 = ssub.s32 %s12, %s19
    %p157 = scmp.eq.s32.totalorder %s156, 0
    %s159 = sadd.s32 %s158, 1
    %s160 = scalar_select %p157, %s158, %s159
    %p163 = pneg %p157
    %p164 = scmp.eq.s32.totalorder %s12, 1
    %p165 = por %p163, %p164
    %p166 = scmp.ne.s32.totalorder %s158, %s161
    %p167 = scmp.eq.s32.totalorder %s12, 0
    %p168 = por %p166, %p167
    %p169 = scmp.ne.s32.totalorder %s158, %s161
    %p170 = scmp.eq.s32.totalorder %s17, 1
    %p171 = por %p169, %p170
    %p172 = scmp.ne.s32.totalorder %s161, %s162
    %p173 = scmp.eq.s32.totalorder %s17, 0
    %p174 = por %p172, %p173
    %p175 = scmp.ne.s32.totalorder %s161, %s162
    %p176 = scmp.eq.s32.totalorder %s18, 1
    %p177 = por %p175, %p176
    %p179 = scmp.ne.s32.totalorder %s162, %s178
    %p180 = scmp.eq.s32.totalorder %s18, 0
    %p181 = por %p179, %p180
    %p182 = scmp.le.s32.totalorder 1, %s12
    %p183 = scmp.lt.s32.totalorder %s12, 3
    %p184 = pnand %p182, %p183
    %p185 = pneg %p184
    // Predicated region
    $region9: #{msr_fpn_forward.9} parent=5 // pred_check
      _
    $region10: #{msr_fpn_forward.9} parent=5 // pred_check_branch
      %187 = sbr.rel (%p184) target = $region12
    $region11: #{msr_fpn_forward.9} parent=5 // pred_region
      %s188 = ssub.s32 %s12, 1
      // Predicated region
      $region13: #{msr_fpn_forward.9} parent=11 // pred_check
        %p189 = pneg %p85
      $region14: #{msr_fpn_forward.9} parent=11 // pred_check_branch
        %191 = sbr.rel (%p189) target = $region16
      $region15: #{msr_fpn_forward.9} parent=11 // pred_region
        _
      $region16: #{msr_fpn_forward.9} parent=11 // pred_fallthru
        _
      // Predicated region
      $region17: #{msr_fpn_forward.9} parent=11 // pred_check
        %p192 = pneg %p106
      $region18: #{msr_fpn_forward.9} parent=11 // pred_check_branch
        %194 = sbr.rel (%p192) target = $region20
      $region19: #{msr_fpn_forward.9} parent=11 // pred_region
        _
      $region20: #{msr_fpn_forward.9} parent=11 // pred_fallthru
        _
      // Predicated region
      $region21: #{msr_fpn_forward.9} parent=11 // pred_check
        %p195 = pneg %p127
      $region22: #{msr_fpn_forward.9} parent=11 // pred_check_branch
        %197 = sbr.rel (%p195) target = $region24
      $region23: #{msr_fpn_forward.9} parent=11 // pred_region
        _
      $region24: #{msr_fpn_forward.9} parent=11 // pred_fallthru
        _
      // Predicated region
      $region25: #{msr_fpn_forward.9} parent=11 // pred_check
        %p198 = pneg %p148
      $region26: #{msr_fpn_forward.9} parent=11 // pred_check_branch
        %200 = sbr.rel (%p198) target = $region28
      $region27: #{msr_fpn_forward.9} parent=11 // pred_region
        _
      $region28: #{msr_fpn_forward.9} parent=11 // pred_fallthru
        _
    $region12: #{msr_fpn_forward.9} parent=5 // pred_fallthru
      _
    %p201 = scmp.lt.s32.totalorder %s12, 2
    // Predicated region
    $region29: #{msr_fpn_forward.9} parent=5 // pred_check
      %p202 = pneg %p201
    $region30: #{msr_fpn_forward.9} parent=5 // pred_check_branch
      %204 = sbr.rel (%p202) target = $region32
    $region31: #{msr_fpn_forward.9} parent=5 // pred_region
      // Predicated region
      $region33: #{msr_fpn_forward.9} parent=31 // pred_check
        %p205 = pneg %p32
      $region34: #{msr_fpn_forward.9} parent=31 // pred_check_branch
        %207 = sbr.rel (%p205) target = $region36
      $region35: #{msr_fpn_forward.9} parent=31 // pred_region
        %s208 = smul.u32 32, %s12
        %p209 = scmp.lt.s32.totalorder %s208, 63
        %s210 = scalar_select %p209, %s208, 63
        %s211 = smul.addr %s210, 8
        %s212 = scalar_lea.vmem %s0, %s211
        %s213 = smul.u32 32, %s12
      $region36: #{msr_fpn_forward.9} parent=31 // pred_fallthru
        _
      // Predicated region
      $region37: #{msr_fpn_forward.9} parent=31 // pred_check
        %p214 = pneg %p58
      $region38: #{msr_fpn_forward.9} parent=31 // pred_check_branch
        %216 = sbr.rel (%p214) target = $region40
      $region39: #{msr_fpn_forward.9} parent=31 // pred_region
        %s217 = smul.u32 32, %s12
        %p218 = scmp.lt.s32.totalorder %s217, 63
        %s219 = scalar_select %p218, %s217, 63
        %s220 = smul.addr %s219, 4
        %s221 = scalar_lea.vmem %s1, %s220
        %s222 = smul.u32 32, %s12
      $region40: #{msr_fpn_forward.9} parent=31 // pred_fallthru
        _
    $region32: #{msr_fpn_forward.9} parent=5 // pred_fallthru
      _
    %p223 = scmp.le.s32.totalorder 1, %s12
    %p224 = scmp.lt.s32.totalorder %s12, 3
    %p225 = pnand %p223, %p224
    %p226 = pneg %p225
    // Predicated region
    $region41: #{msr_fpn_forward.9} parent=5 // pred_check
      _
    $region42: #{msr_fpn_forward.9} parent=5 // pred_check_branch
      %228 = sbr.rel (%p225) target = $region44
    $region43: #{msr_fpn_forward.9} parent=5 // pred_region
      %s229 = ssub.s32 %s12, 1
      %s230 = smul.u32 32, %s17
      %p231 = scmp.lt.s32.totalorder %s230, 63
      %s232 = scalar_select %p231, %s230, 63
      %s233 = smul.addr %s232, 8
      %s234 = scalar_lea.vmem %s0, %s233
      %p235 = pneg %p38
      %p236 = pneg %p35
      %s237 = smul.u32 32, %s17
      %p238 = scmp.lt.s32.totalorder %s237, 63
      %s239 = scalar_select %p238, %s237, 63
      %s240 = smul.addr %s239, 4
      %s241 = scalar_lea.vmem %s1, %s240
      %p242 = pneg %p64
      %p243 = pneg %p61
      %p244 = pneg %p85
      %p245 = pneg %p82
      %p246 = pneg %p106
      %p247 = pneg %p103
      %p248 = pneg %p127
      %p249 = pneg %p124
      %p250 = pneg %p148
      %p251 = pneg %p145
      %p252 = pneg %p174
      %p253 = pneg %p171
      %s254 = smul.u32 32, %s17
      %p255 = scmp.lt.s32.totalorder %s254, 63
      %s256 = scalar_select %p255, %s254, 63
      %s257 = smul.addr %s256, 4
      %s258 = scalar_lea.vmem %s6, %s257
      %s259 = smul.u32 32, %s17
      %p260 = scmp.lt.s32.totalorder %s259, 63
      %s261 = scalar_select %p260, %s259, 63
      %s262 = smul.addr %s261, 8
      %s263 = scalar_lea.vmem %s0, %s262
      %s264 = smul.u32 32, %s17
      %s265 = smul.u32 32, %s17
      %p266 = scmp.lt.s32.totalorder %s265, 63
      %s267 = scalar_select %p266, %s265, 63
      %s268 = smul.addr %s267, 4
      %s269 = scalar_lea.vmem %s1, %s268
      %s270 = smul.u32 32, %s17
      %s271 = smul.u32 32, %s17
      %p272 = scmp.lt.s32.totalorder %s271, 63
      %s273 = scalar_select %p272, %s271, 63
      %s274 = smul.addr %s273, 4
      %s275 = scalar_lea.vmem %s6, %s274
      %s276 = smul.u32 32, %s17
      %v278 = vld [vmem:[%s263] sm:$0xff]
      %v279 = vld [vmem:[%s263 + $0x8] sm:$0xff]
      %v280 = vld [vmem:[%s263 + $0x10] sm:$0xff]
      %v281 = vld [vmem:[%s263 + $0x18] sm:$0xff]
      %v282 = vld [vmem:[%s263 + $0x20] sm:$0xff]
      %v283 = vld [vmem:[%s263 + $0x28] sm:$0xff]
      %v284 = vld [vmem:[%s263 + $0x30] sm:$0xff]
      %v285 = vld [vmem:[%s263 + $0x38] sm:$0xff]
      %v286 = vld [vmem:[%s263 + $0x40] sm:$0xff]
      %v287 = vld [vmem:[%s263 + $0x48] sm:$0xff]
      %v288 = vld [vmem:[%s263 + $0x50] sm:$0xff]
      %v289 = vld [vmem:[%s263 + $0x58] sm:$0xff]
      %v290 = vld [vmem:[%s263 + $0x60] sm:$0xff]
      %v291 = vld [vmem:[%s263 + $0x68] sm:$0xff]
      %v292 = vld [vmem:[%s263 + $0x70] sm:$0xff]
      %v293 = vld [vmem:[%s263 + $0x78] sm:$0xff]
      %v294 = vld [vmem:[%s263 + $0x80] sm:$0xff]
      %v295 = vld [vmem:[%s263 + $0x88] sm:$0xff]
      %v296 = vld [vmem:[%s263 + $0x90] sm:$0xff]
      %v297 = vld [vmem:[%s263 + $0x98] sm:$0xff]
      %v298 = vld [vmem:[%s263 + $0xa0] sm:$0xff]
      %v299 = vld [vmem:[%s263 + $0xa8] sm:$0xff]
      %v300 = vld [vmem:[%s263 + $0xb0] sm:$0xff]
      %v301 = vld [vmem:[%s263 + $0xb8] sm:$0xff]
      %v302 = vld [vmem:[%s263 + $0xc0] sm:$0xff]
      %v303 = vld [vmem:[%s263 + $0xc8] sm:$0xff]
      %v304 = vld [vmem:[%s263 + $0xd0] sm:$0xff]
      %v305 = vld [vmem:[%s263 + $0xd8] sm:$0xff]
      %v306 = vld [vmem:[%s263 + $0xe0] sm:$0xff]
      %v307 = vld [vmem:[%s263 + $0xe8] sm:$0xff]
      %v308 = vld [vmem:[%s263 + $0xf0] sm:$0xff]
      %v309 = vld [vmem:[%s263 + $0xf8] sm:$0xff]
      %v310 = vld [vmem:[%s2] sm:$0xf]
      %v311 = vld [vmem:[%s2 + $0x4] sm:$0xf]
      %v312 = vld [vmem:[%s269] sm:$0xf]
      %v313 = vld [vmem:[%s269 + $0x4] sm:$0xf]
      %v314 = vld [vmem:[%s269 + $0x8] sm:$0xf]
      %v315 = vld [vmem:[%s269 + $0xc] sm:$0xf]
      %v316 = vld [vmem:[%s269 + $0x10] sm:$0xf]
      %v317 = vld [vmem:[%s269 + $0x14] sm:$0xf]
      %v318 = vld [vmem:[%s269 + $0x18] sm:$0xf]
      %v319 = vld [vmem:[%s269 + $0x1c] sm:$0xf]
      %v320 = vld [vmem:[%s269 + $0x20] sm:$0xf]
      %v321 = vld [vmem:[%s269 + $0x24] sm:$0xf]
      %v322 = vld [vmem:[%s269 + $0x28] sm:$0xf]
      %v323 = vld [vmem:[%s269 + $0x2c] sm:$0xf]
      %v324 = vld [vmem:[%s269 + $0x30] sm:$0xf]
      %v325 = vld [vmem:[%s269 + $0x34] sm:$0xf]
      %v326 = vld [vmem:[%s269 + $0x38] sm:$0xf]
      %v327 = vld [vmem:[%s269 + $0x3c] sm:$0xf]
      %v328 = vld [vmem:[%s269 + $0x40] sm:$0xf]
      %v329 = vld [vmem:[%s269 + $0x44] sm:$0xf]
      %v330 = vld [vmem:[%s269 + $0x48] sm:$0xf]
      %v331 = vld [vmem:[%s269 + $0x4c] sm:$0xf]
      %v332 = vld [vmem:[%s269 + $0x50] sm:$0xf]
      %v333 = vld [vmem:[%s269 + $0x54] sm:$0xf]
      %v334 = vld [vmem:[%s269 + $0x58] sm:$0xf]
      %v335 = vld [vmem:[%s269 + $0x5c] sm:$0xf]
      %v336 = vld [vmem:[%s269 + $0x60] sm:$0xf]
      %v337 = vld [vmem:[%s269 + $0x64] sm:$0xf]
      %v338 = vld [vmem:[%s269 + $0x68] sm:$0xf]
      %v339 = vld [vmem:[%s269 + $0x6c] sm:$0xf]
      %v340 = vld [vmem:[%s269 + $0x70] sm:$0xf]
      %v341 = vld [vmem:[%s269 + $0x74] sm:$0xf]
      %v342 = vld [vmem:[%s269 + $0x78] sm:$0xf]
      %v343 = vld [vmem:[%s269 + $0x7c] sm:$0xf]
      %v376 = vunpack.c.l.b16 %v312
      %v377 = vunpack.c.l.b16 %v313
      %v378 = vunpack.c.l.b16 %v314
      %v379 = vunpack.c.l.b16 %v315
      %v380 = vunpack.c.l.b16 %v316
      %v381 = vunpack.c.l.b16 %v317
      %v382 = vunpack.c.l.b16 %v318
      %v383 = vunpack.c.l.b16 %v319
      %v384 = vunpack.c.l.b16 %v320
      %v385 = vunpack.c.l.b16 %v321
      %v386 = vunpack.c.l.b16 %v322
      %v387 = vunpack.c.l.b16 %v323
      %v388 = vunpack.c.l.b16 %v324
      %v389 = vunpack.c.l.b16 %v325
      %v390 = vunpack.c.l.b16 %v326
      %v391 = vunpack.c.l.b16 %v327
      %v392 = vunpack.c.l.b16 %v328
      %v393 = vunpack.c.l.b16 %v329
      %v394 = vunpack.c.l.b16 %v330
      %v395 = vunpack.c.l.b16 %v331
      %v396 = vunpack.c.l.b16 %v332
      %v397 = vunpack.c.l.b16 %v333
      %v398 = vunpack.c.l.b16 %v334
      %v399 = vunpack.c.l.b16 %v335
      %v400 = vunpack.c.l.b16 %v336
      %v401 = vunpack.c.l.b16 %v337
      %v402 = vunpack.c.l.b16 %v338
      %v403 = vunpack.c.l.b16 %v339
      %v404 = vunpack.c.l.b16 %v340
      %v405 = vunpack.c.l.b16 %v341
      %v406 = vunpack.c.l.b16 %v342
      %v407 = vunpack.c.l.b16 %v343
      %v408 = vpack.c.b16 %v377, %v376
      %v409 = vpack.c.b16 %v379, %v378
      %v410 = vpack.c.b16 %v381, %v380
      %v411 = vpack.c.b16 %v383, %v382
      %v412 = vpack.c.b16 %v385, %v384
      %v413 = vpack.c.b16 %v387, %v386
      %v414 = vpack.c.b16 %v389, %v388
      %v415 = vpack.c.b16 %v391, %v390
      %v416 = vpack.c.b16 %v393, %v392
      %v417 = vpack.c.b16 %v395, %v394
      %v418 = vpack.c.b16 %v397, %v396
      %v419 = vpack.c.b16 %v399, %v398
      %v420 = vpack.c.b16 %v401, %v400
      %v421 = vpack.c.b16 %v403, %v402
      %v422 = vpack.c.b16 %v405, %v404
      %v423 = vpack.c.b16 %v407, %v406
      %v426 = vunpack.c.l.b16 %v310
      %v427 = vunpack.c.l.b16 %v311
      %v428 = vpack.c.b16 %v427, %v426
      %vm430 = vcmask 130048
      %v432 = vsel %vm430, %v408, 0
      %v435 = vsel %vm430, %v409, 0
      %v438 = vsel %vm430, %v410, 0
      %v441 = vsel %vm430, %v411, 0
      %v444 = vsel %vm430, %v412, 0
      %v447 = vsel %vm430, %v413, 0
      %v450 = vsel %vm430, %v414, 0
      %v453 = vsel %vm430, %v415, 0
      %v456 = vsel %vm430, %v416, 0
      %v459 = vsel %vm430, %v417, 0
      %v462 = vsel %vm430, %v418, 0
      %v465 = vsel %vm430, %v419, 0
      %v468 = vsel %vm430, %v420, 0
      %v471 = vsel %vm430, %v421, 0
      %v474 = vsel %vm430, %v422, 0
      %v477 = vsel %vm430, %v423, 0
      %479 = vmatpush.bf16.msra.mxu0 0
      %480 = vmatpush.bf16.msra.mxu0 0
      %481 = vmatpush.bf16.msra.mxu0 0
      %482 = vmatpush.bf16.msra.mxu0 0
      %483 = vmatpush.bf16.msra.mxu0 0
      %484 = vmatpush.bf16.msra.mxu0 0
      %485 = vmatpush.bf16.msra.mxu0 0
      %486 = vmatpush.bf16.msra.mxu0 %v428
      %487 = vmatmul.bf16.gmra.mxu0 %v432
      %v488 = vpop.f32.mrf.mxu0
      %v489 = vadd.f32 0.0, %v488
      %v490 = vpop.f32.mrf.mxu0
      %v491 = vadd.f32 0.0, %v490
      %492 = vmatmul.bf16.gmra.mxu0 %v435
      %v493 = vpop.f32.mrf.mxu0
      %v494 = vadd.f32 0.0, %v493
      %v495 = vpop.f32.mrf.mxu0
      %v496 = vadd.f32 0.0, %v495
      %497 = vmatmul.bf16.gmra.mxu0 %v438
      %v498 = vpop.f32.mrf.mxu0
      %v499 = vadd.f32 0.0, %v498
      %v500 = vpop.f32.mrf.mxu0
      %v501 = vadd.f32 0.0, %v500
      %502 = vmatmul.bf16.gmra.mxu0 %v441
      %v503 = vpop.f32.mrf.mxu0
      %v504 = vadd.f32 0.0, %v503
      %v505 = vpop.f32.mrf.mxu0
      %v506 = vadd.f32 0.0, %v505
      %507 = vmatmul.bf16.gmra.mxu0 %v444
      %v508 = vpop.f32.mrf.mxu0
      %v509 = vadd.f32 0.0, %v508
      %v510 = vpop.f32.mrf.mxu0
      %v511 = vadd.f32 0.0, %v510
      %512 = vmatmul.bf16.gmra.mxu0 %v447
      %v513 = vpop.f32.mrf.mxu0
      %v514 = vadd.f32 0.0, %v513
      %v515 = vpop.f32.mrf.mxu0
      %v516 = vadd.f32 0.0, %v515
      %517 = vmatmul.bf16.gmra.mxu0 %v450
      %v518 = vpop.f32.mrf.mxu0
      %v519 = vadd.f32 0.0, %v518
      %v520 = vpop.f32.mrf.mxu0
      %v521 = vadd.f32 0.0, %v520
      %522 = vmatmul.bf16.gmra.mxu0 %v453
      %v523 = vpop.f32.mrf.mxu0
      %v524 = vadd.f32 0.0, %v523
      %v525 = vpop.f32.mrf.mxu0
      %v526 = vadd.f32 0.0, %v525
      %527 = vmatmul.bf16.gmra.mxu0 %v456
      %v528 = vpop.f32.mrf.mxu0
      %v529 = vadd.f32 0.0, %v528
      %v530 = vpop.f32.mrf.mxu0
      %v531 = vadd.f32 0.0, %v530
      %532 = vmatmul.bf16.gmra.mxu0 %v459
      %v533 = vpop.f32.mrf.mxu0
      %v534 = vadd.f32 0.0, %v533
      %v535 = vpop.f32.mrf.mxu0
      %v536 = vadd.f32 0.0, %v535
      %537 = vmatmul.bf16.gmra.mxu0 %v462
      %v538 = vpop.f32.mrf.mxu0
      %v539 = vadd.f32 0.0, %v538
      %v540 = vpop.f32.mrf.mxu0
      %v541 = vadd.f32 0.0, %v540
      %542 = vmatmul.bf16.gmra.mxu0 %v465
      %v543 = vpop.f32.mrf.mxu0
      %v544 = vadd.f32 0.0, %v543
      %v545 = vpop.f32.mrf.mxu0
      %v546 = vadd.f32 0.0, %v545
      %547 = vmatmul.bf16.gmra.mxu0 %v468
      %v548 = vpop.f32.mrf.mxu0
      %v549 = vadd.f32 0.0, %v548
      %v550 = vpop.f32.mrf.mxu0
      %v551 = vadd.f32 0.0, %v550
      %552 = vmatmul.bf16.gmra.mxu0 %v471
      %v553 = vpop.f32.mrf.mxu0
      %v554 = vadd.f32 0.0, %v553
      %v555 = vpop.f32.mrf.mxu0
      %v556 = vadd.f32 0.0, %v555
      %557 = vmatmul.bf16.gmra.mxu0 %v474
      %v558 = vpop.f32.mrf.mxu0
      %v559 = vadd.f32 0.0, %v558
      %v560 = vpop.f32.mrf.mxu0
      %v561 = vadd.f32 0.0, %v560
      %562 = vmatmul.bf16.gmra.mxu0 %v477
      %v563 = vpop.f32.mrf.mxu0
      %v564 = vadd.f32 0.0, %v563
      %v565 = vpop.f32.mrf.mxu0
      %v566 = vadd.f32 0.0, %v565
      %567 = vdwg.mxu0
      %v568 = vadd.f32 %v278, %v489
      %v569 = vadd.f32 %v279, %v491
      %v570 = vadd.f32 %v280, %v494
      %v571 = vadd.f32 %v281, %v496
      %v572 = vadd.f32 %v282, %v499
      %v573 = vadd.f32 %v283, %v501
      %v574 = vadd.f32 %v284, %v504
      %v575 = vadd.f32 %v285, %v506
      %v576 = vadd.f32 %v286, %v509
      %v577 = vadd.f32 %v287, %v511
      %v578 = vadd.f32 %v288, %v514
      %v579 = vadd.f32 %v289, %v516
      %v580 = vadd.f32 %v290, %v519
      %v581 = vadd.f32 %v291, %v521
      %v582 = vadd.f32 %v292, %v524
      %v583 = vadd.f32 %v293, %v526
      %v584 = vadd.f32 %v294, %v529
      %v585 = vadd.f32 %v295, %v531
      %v586 = vadd.f32 %v296, %v534
      %v587 = vadd.f32 %v297, %v536
      %v588 = vadd.f32 %v298, %v539
      %v589 = vadd.f32 %v299, %v541
      %v590 = vadd.f32 %v300, %v544
      %v591 = vadd.f32 %v301, %v546
      %v592 = vadd.f32 %v302, %v549
      %v593 = vadd.f32 %v303, %v551
      %v594 = vadd.f32 %v304, %v554
      %v595 = vadd.f32 %v305, %v556
      %v596 = vadd.f32 %v306, %v559
      %v597 = vadd.f32 %v307, %v561
      %v598 = vadd.f32 %v308, %v564
      %v599 = vadd.f32 %v309, %v566
      %v600 = vld [vmem:[%s3] sm:$0x1]
      %v602 = vperm.slane %v600, 0
      %v604 = vadd.f32 %v568, %v602
      %v605 = vadd.f32 %v569, %v602
      %v606 = vadd.f32 %v570, %v602
      %v607 = vadd.f32 %v571, %v602
      %v608 = vadd.f32 %v572, %v602
      %v609 = vadd.f32 %v573, %v602
      %v610 = vadd.f32 %v574, %v602
      %v611 = vadd.f32 %v575, %v602
      %v612 = vadd.f32 %v576, %v602
      %v613 = vadd.f32 %v577, %v602
      %v614 = vadd.f32 %v578, %v602
      %v615 = vadd.f32 %v579, %v602
      %v616 = vadd.f32 %v580, %v602
      %v617 = vadd.f32 %v581, %v602
      %v618 = vadd.f32 %v582, %v602
      %v619 = vadd.f32 %v583, %v602
      %v620 = vadd.f32 %v584, %v602
      %v621 = vadd.f32 %v585, %v602
      %v622 = vadd.f32 %v586, %v602
      %v623 = vadd.f32 %v587, %v602
      %v624 = vadd.f32 %v588, %v602
      %v625 = vadd.f32 %v589, %v602
      %v626 = vadd.f32 %v590, %v602
      %v627 = vadd.f32 %v591, %v602
      %v628 = vadd.f32 %v592, %v602
      %v629 = vadd.f32 %v593, %v602
      %v630 = vadd.f32 %v594, %v602
      %v631 = vadd.f32 %v595, %v602
      %v632 = vadd.f32 %v596, %v602
      %v633 = vadd.f32 %v597, %v602
      %v634 = vadd.f32 %v598, %v602
      %v635 = vadd.f32 %v599, %v602
      %v636 = vmin.f32 %v604, 20.0
      %v637 = vmin.f32 %v605, 20.0
      %v638 = vmin.f32 %v606, 20.0
      %v639 = vmin.f32 %v607, 20.0
      %v640 = vmin.f32 %v608, 20.0
      %v641 = vmin.f32 %v609, 20.0
      %v642 = vmin.f32 %v610, 20.0
      %v643 = vmin.f32 %v611, 20.0
      %v644 = vmin.f32 %v612, 20.0
      %v645 = vmin.f32 %v613, 20.0
      %v646 = vmin.f32 %v614, 20.0
      %v647 = vmin.f32 %v615, 20.0
      %v648 = vmin.f32 %v616, 20.0
      %v649 = vmin.f32 %v617, 20.0
      %v650 = vmin.f32 %v618, 20.0
      %v651 = vmin.f32 %v619, 20.0
      %v652 = vmin.f32 %v620, 20.0
      %v653 = vmin.f32 %v621, 20.0
      %v654 = vmin.f32 %v622, 20.0
      %v655 = vmin.f32 %v623, 20.0
      %v656 = vmin.f32 %v624, 20.0
      %v657 = vmin.f32 %v625, 20.0
      %v658 = vmin.f32 %v626, 20.0
      %v659 = vmin.f32 %v627, 20.0
      %v660 = vmin.f32 %v628, 20.0
      %v661 = vmin.f32 %v629, 20.0
      %v662 = vmin.f32 %v630, 20.0
      %v663 = vmin.f32 %v631, 20.0
      %v664 = vmin.f32 %v632, 20.0
      %v665 = vmin.f32 %v633, 20.0
      %v666 = vmin.f32 %v634, 20.0
      %v667 = vmin.f32 %v635, 20.0
      %v668 = vmul.f32 %v636, 1.442695
      %v669 = vpow.pop %v668
      %v670 = vmul.f32 %v637, 1.442695
      %v671 = vpow.pop %v670
      %v672 = vmul.f32 %v638, 1.442695
      %v673 = vpow.pop %v672
      %v674 = vmul.f32 %v639, 1.442695
      %v675 = vpow.pop %v674
      %v676 = vmul.f32 %v640, 1.442695
      %v677 = vpow.pop %v676
      %v678 = vmul.f32 %v641, 1.442695
      %v679 = vpow.pop %v678
      %v680 = vmul.f32 %v642, 1.442695
      %v681 = vpow.pop %v680
      %v682 = vmul.f32 %v643, 1.442695
      %v683 = vpow.pop %v682
      %v684 = vmul.f32 %v644, 1.442695
      %v685 = vpow.pop %v684
      %v686 = vmul.f32 %v645, 1.442695
      %v687 = vpow.pop %v686
      %v688 = vmul.f32 %v646, 1.442695
      %v689 = vpow.pop %v688
      %v690 = vmul.f32 %v647, 1.442695
      %v691 = vpow.pop %v690
      %v692 = vmul.f32 %v648, 1.442695
      %v693 = vpow.pop %v692
      %v694 = vmul.f32 %v649, 1.442695
      %v695 = vpow.pop %v694
      %v696 = vmul.f32 %v650, 1.442695
      %v697 = vpow.pop %v696
      %v698 = vmul.f32 %v651, 1.442695
      %v699 = vpow.pop %v698
      %v700 = vmul.f32 %v652, 1.442695
      %v701 = vpow.pop %v700
      %v702 = vmul.f32 %v653, 1.442695
      %v703 = vpow.pop %v702
      %v704 = vmul.f32 %v654, 1.442695
      %v705 = vpow.pop %v704
      %v706 = vmul.f32 %v655, 1.442695
      %v707 = vpow.pop %v706
      %v708 = vmul.f32 %v656, 1.442695
      %v709 = vpow.pop %v708
      %v710 = vmul.f32 %v657, 1.442695
      %v711 = vpow.pop %v710
      %v712 = vmul.f32 %v658, 1.442695
      %v713 = vpow.pop %v712
      %v714 = vmul.f32 %v659, 1.442695
      %v715 = vpow.pop %v714
      %v716 = vmul.f32 %v660, 1.442695
      %v717 = vpow.pop %v716
      %v718 = vmul.f32 %v661, 1.442695
      %v719 = vpow.pop %v718
      %v720 = vmul.f32 %v662, 1.442695
      %v721 = vpow.pop %v720
      %v722 = vmul.f32 %v663, 1.442695
      %v723 = vpow.pop %v722
      %v724 = vmul.f32 %v664, 1.442695
      %v725 = vpow.pop %v724
      %v726 = vmul.f32 %v665, 1.442695
      %v727 = vpow.pop %v726
      %v728 = vmul.f32 %v666, 1.442695
      %v729 = vpow.pop %v728
      %v730 = vmul.f32 %v667, 1.442695
      %v731 = vpow.pop %v730
      %v732 = vadd.f32 %v669, 1.0
      %v733 = vadd.f32 %v671, 1.0
      %v734 = vadd.f32 %v673, 1.0
      %v735 = vadd.f32 %v675, 1.0
      %v736 = vadd.f32 %v677, 1.0
      %v737 = vadd.f32 %v679, 1.0
      %v738 = vadd.f32 %v681, 1.0
      %v739 = vadd.f32 %v683, 1.0
      %v740 = vadd.f32 %v685, 1.0
      %v741 = vadd.f32 %v687, 1.0
      %v742 = vadd.f32 %v689, 1.0
      %v743 = vadd.f32 %v691, 1.0
      %v744 = vadd.f32 %v693, 1.0
      %v745 = vadd.f32 %v695, 1.0
      %v746 = vadd.f32 %v697, 1.0
      %v747 = vadd.f32 %v699, 1.0
      %v748 = vadd.f32 %v701, 1.0
      %v749 = vadd.f32 %v703, 1.0
      %v750 = vadd.f32 %v705, 1.0
      %v751 = vadd.f32 %v707, 1.0
      %v752 = vadd.f32 %v709, 1.0
      %v753 = vadd.f32 %v711, 1.0
      %v754 = vadd.f32 %v713, 1.0
      %v755 = vadd.f32 %v715, 1.0
      %v756 = vadd.f32 %v717, 1.0
      %v757 = vadd.f32 %v719, 1.0
      %v758 = vadd.f32 %v721, 1.0
      %v759 = vadd.f32 %v723, 1.0
      %v760 = vadd.f32 %v725, 1.0
      %v761 = vadd.f32 %v727, 1.0
      %v762 = vadd.f32 %v729, 1.0
      %v763 = vadd.f32 %v731, 1.0
      %v764 = vmul.f32 %v732, %v732
      %v765 = vmul.f32 %v733, %v733
      %v766 = vmul.f32 %v734, %v734
      %v767 = vmul.f32 %v735, %v735
      %v768 = vmul.f32 %v736, %v736
      %v769 = vmul.f32 %v737, %v737
      %v770 = vmul.f32 %v738, %v738
      %v771 = vmul.f32 %v739, %v739
      %v772 = vmul.f32 %v740, %v740
      %v773 = vmul.f32 %v741, %v741
      %v774 = vmul.f32 %v742, %v742
      %v775 = vmul.f32 %v743, %v743
      %v776 = vmul.f32 %v744, %v744
      %v777 = vmul.f32 %v745, %v745
      %v778 = vmul.f32 %v746, %v746
      %v779 = vmul.f32 %v747, %v747
      %v780 = vmul.f32 %v748, %v748
      %v781 = vmul.f32 %v749, %v749
      %v782 = vmul.f32 %v750, %v750
      %v783 = vmul.f32 %v751, %v751
      %v784 = vmul.f32 %v752, %v752
      %v785 = vmul.f32 %v753, %v753
      %v786 = vmul.f32 %v754, %v754
      %v787 = vmul.f32 %v755, %v755
      %v788 = vmul.f32 %v756, %v756
      %v789 = vmul.f32 %v757, %v757
      %v790 = vmul.f32 %v758, %v758
      %v791 = vmul.f32 %v759, %v759
      %v792 = vmul.f32 %v760, %v760
      %v793 = vmul.f32 %v761, %v761
      %v794 = vmul.f32 %v762, %v762
      %v795 = vmul.f32 %v763, %v763
      %v796 = vsub.f32 %v764, 1.0
      %v797 = vsub.f32 %v765, 1.0
      %v798 = vsub.f32 %v766, 1.0
      %v799 = vsub.f32 %v767, 1.0
      %v800 = vsub.f32 %v768, 1.0
      %v801 = vsub.f32 %v769, 1.0
      %v802 = vsub.f32 %v770, 1.0
      %v803 = vsub.f32 %v771, 1.0
      %v804 = vsub.f32 %v772, 1.0
      %v805 = vsub.f32 %v773, 1.0
      %v806 = vsub.f32 %v774, 1.0
      %v807 = vsub.f32 %v775, 1.0
      %v808 = vsub.f32 %v776, 1.0
      %v809 = vsub.f32 %v777, 1.0
      %v810 = vsub.f32 %v778, 1.0
      %v811 = vsub.f32 %v779, 1.0
      %v812 = vsub.f32 %v780, 1.0
      %v813 = vsub.f32 %v781, 1.0
      %v814 = vsub.f32 %v782, 1.0
      %v815 = vsub.f32 %v783, 1.0
      %v816 = vsub.f32 %v784, 1.0
      %v817 = vsub.f32 %v785, 1.0
      %v818 = vsub.f32 %v786, 1.0
      %v819 = vsub.f32 %v787, 1.0
      %v820 = vsub.f32 %v788, 1.0
      %v821 = vsub.f32 %v789, 1.0
      %v822 = vsub.f32 %v790, 1.0
      %v823 = vsub.f32 %v791, 1.0
      %v824 = vsub.f32 %v792, 1.0
      %v825 = vsub.f32 %v793, 1.0
      %v826 = vsub.f32 %v794, 1.0
      %v827 = vsub.f32 %v795, 1.0
      %v828 = vmul.f32 %v604, %v796
      %v829 = vmul.f32 %v605, %v797
      %v830 = vmul.f32 %v606, %v798
      %v831 = vmul.f32 %v607, %v799
      %v832 = vmul.f32 %v608, %v800
      %v833 = vmul.f32 %v609, %v801
      %v834 = vmul.f32 %v610, %v802
      %v835 = vmul.f32 %v611, %v803
      %v836 = vmul.f32 %v612, %v804
      %v837 = vmul.f32 %v613, %v805
      %v838 = vmul.f32 %v614, %v806
      %v839 = vmul.f32 %v615, %v807
      %v840 = vmul.f32 %v616, %v808
      %v841 = vmul.f32 %v617, %v809
      %v842 = vmul.f32 %v618, %v810
      %v843 = vmul.f32 %v619, %v811
      %v844 = vmul.f32 %v620, %v812
      %v845 = vmul.f32 %v621, %v813
      %v846 = vmul.f32 %v622, %v814
      %v847 = vmul.f32 %v623, %v815
      %v848 = vmul.f32 %v624, %v816
      %v849 = vmul.f32 %v625, %v817
      %v850 = vmul.f32 %v626, %v818
      %v851 = vmul.f32 %v627, %v819
      %v852 = vmul.f32 %v628, %v820
      %v853 = vmul.f32 %v629, %v821
      %v854 = vmul.f32 %v630, %v822
      %v855 = vmul.f32 %v631, %v823
      %v856 = vmul.f32 %v632, %v824
      %v857 = vmul.f32 %v633, %v825
      %v858 = vmul.f32 %v634, %v826
      %v859 = vmul.f32 %v635, %v827
      %v860 = vadd.f32 %v764, 1.0
      %v861 = vadd.f32 %v765, 1.0
      %v862 = vadd.f32 %v766, 1.0
      %v863 = vadd.f32 %v767, 1.0
      %v864 = vadd.f32 %v768, 1.0
      %v865 = vadd.f32 %v769, 1.0
      %v866 = vadd.f32 %v770, 1.0
      %v867 = vadd.f32 %v771, 1.0
      %v868 = vadd.f32 %v772, 1.0
      %v869 = vadd.f32 %v773, 1.0
      %v870 = vadd.f32 %v774, 1.0
      %v871 = vadd.f32 %v775, 1.0
      %v872 = vadd.f32 %v776, 1.0
      %v873 = vadd.f32 %v777, 1.0
      %v874 = vadd.f32 %v778, 1.0
      %v875 = vadd.f32 %v779, 1.0
      %v876 = vadd.f32 %v780, 1.0
      %v877 = vadd.f32 %v781, 1.0
      %v878 = vadd.f32 %v782, 1.0
      %v879 = vadd.f32 %v783, 1.0
      %v880 = vadd.f32 %v784, 1.0
      %v881 = vadd.f32 %v785, 1.0
      %v882 = vadd.f32 %v786, 1.0
      %v883 = vadd.f32 %v787, 1.0
      %v884 = vadd.f32 %v788, 1.0
      %v885 = vadd.f32 %v789, 1.0
      %v886 = vadd.f32 %v790, 1.0
      %v887 = vadd.f32 %v791, 1.0
      %v888 = vadd.f32 %v792, 1.0
      %v889 = vadd.f32 %v793, 1.0
      %v890 = vadd.f32 %v794, 1.0
      %v891 = vadd.f32 %v795, 1.0
      %v892 = vrcp.pop %v860
      %v893 = vrcp.pop %v861
      %v894 = vrcp.pop %v862
      %v895 = vrcp.pop %v863
      %v896 = vrcp.pop %v864
      %v897 = vrcp.pop %v865
      %v898 = vrcp.pop %v866
      %v899 = vrcp.pop %v867
      %v900 = vrcp.pop %v868
      %v901 = vrcp.pop %v869
      %v902 = vrcp.pop %v870
      %v903 = vrcp.pop %v871
      %v904 = vrcp.pop %v872
      %v905 = vrcp.pop %v873
      %v906 = vrcp.pop %v874
      %v907 = vrcp.pop %v875
      %v908 = vrcp.pop %v876
      %v909 = vrcp.pop %v877
      %v910 = vrcp.pop %v878
      %v911 = vrcp.pop %v879
      %v912 = vrcp.pop %v880
      %v913 = vrcp.pop %v881
      %v914 = vrcp.pop %v882
      %v915 = vrcp.pop %v883
      %v916 = vrcp.pop %v884
      %v917 = vrcp.pop %v885
      %v918 = vrcp.pop %v886
      %v919 = vrcp.pop %v887
      %v920 = vrcp.pop %v888
      %v921 = vrcp.pop %v889
      %v922 = vrcp.pop %v890
      %v923 = vrcp.pop %v891
      %v924 = vmul.f32 %v828, %v892
      %v925 = vmul.f32 %v829, %v893
      %v926 = vmul.f32 %v830, %v894
      %v927 = vmul.f32 %v831, %v895
      %v928 = vmul.f32 %v832, %v896
      %v929 = vmul.f32 %v833, %v897
      %v930 = vmul.f32 %v834, %v898
      %v931 = vmul.f32 %v835, %v899
      %v932 = vmul.f32 %v836, %v900
      %v933 = vmul.f32 %v837, %v901
      %v934 = vmul.f32 %v838, %v902
      %v935 = vmul.f32 %v839, %v903
      %v936 = vmul.f32 %v840, %v904
      %v937 = vmul.f32 %v841, %v905
      %v938 = vmul.f32 %v842, %v906
      %v939 = vmul.f32 %v843, %v907
      %v940 = vmul.f32 %v844, %v908
      %v941 = vmul.f32 %v845, %v909
      %v942 = vmul.f32 %v846, %v910
      %v943 = vmul.f32 %v847, %v911
      %v944 = vmul.f32 %v848, %v912
      %v945 = vmul.f32 %v849, %v913
      %v946 = vmul.f32 %v850, %v914
      %v947 = vmul.f32 %v851, %v915
      %v948 = vmul.f32 %v852, %v916
      %v949 = vmul.f32 %v853, %v917
      %v950 = vmul.f32 %v854, %v918
      %v951 = vmul.f32 %v855, %v919
      %v952 = vmul.f32 %v856, %v920
      %v953 = vmul.f32 %v857, %v921
      %v954 = vmul.f32 %v858, %v922
      %v955 = vmul.f32 %v859, %v923
      %vm956 = vcmp.gt.f32.partialorder %v604, 20.0
      %vm957 = vcmp.gt.f32.partialorder %v605, 20.0
      %vm958 = vcmp.gt.f32.partialorder %v606, 20.0
      %vm959 = vcmp.gt.f32.partialorder %v607, 20.0
      %vm960 = vcmp.gt.f32.partialorder %v608, 20.0
      %vm961 = vcmp.gt.f32.partialorder %v609, 20.0
      %vm962 = vcmp.gt.f32.partialorder %v610, 20.0
      %vm963 = vcmp.gt.f32.partialorder %v611, 20.0
      %vm964 = vcmp.gt.f32.partialorder %v612, 20.0
      %vm965 = vcmp.gt.f32.partialorder %v613, 20.0
      %vm966 = vcmp.gt.f32.partialorder %v614, 20.0
      %vm967 = vcmp.gt.f32.partialorder %v615, 20.0
      %vm968 = vcmp.gt.f32.partialorder %v616, 20.0
      %vm969 = vcmp.gt.f32.partialorder %v617, 20.0
      %vm970 = vcmp.gt.f32.partialorder %v618, 20.0
      %vm971 = vcmp.gt.f32.partialorder %v619, 20.0
      %vm972 = vcmp.gt.f32.partialorder %v620, 20.0
      %vm973 = vcmp.gt.f32.partialorder %v621, 20.0
      %vm974 = vcmp.gt.f32.partialorder %v622, 20.0
      %vm975 = vcmp.gt.f32.partialorder %v623, 20.0
      %vm976 = vcmp.gt.f32.partialorder %v624, 20.0
      %vm977 = vcmp.gt.f32.partialorder %v625, 20.0
      %vm978 = vcmp.gt.f32.partialorder %v626, 20.0
      %vm979 = vcmp.gt.f32.partialorder %v627, 20.0
      %vm980 = vcmp.gt.f32.partialorder %v628, 20.0
      %vm981 = vcmp.gt.f32.partialorder %v629, 20.0
      %vm982 = vcmp.gt.f32.partialorder %v630, 20.0
      %vm983 = vcmp.gt.f32.partialorder %v631, 20.0
      %vm984 = vcmp.gt.f32.partialorder %v632, 20.0
      %vm985 = vcmp.gt.f32.partialorder %v633, 20.0
      %vm986 = vcmp.gt.f32.partialorder %v634, 20.0
      %vm987 = vcmp.gt.f32.partialorder %v635, 20.0
      %v988 = vsel %vm956, %v604, %v924
      %v989 = vsel %vm957, %v605, %v925
      %v990 = vsel %vm958, %v606, %v926
      %v991 = vsel %vm959, %v607, %v927
      %v992 = vsel %vm960, %v608, %v928
      %v993 = vsel %vm961, %v609, %v929
      %v994 = vsel %vm962, %v610, %v930
      %v995 = vsel %vm963, %v611, %v931
      %v996 = vsel %vm964, %v612, %v932
      %v997 = vsel %vm965, %v613, %v933
      %v998 = vsel %vm966, %v614, %v934
      %v999 = vsel %vm967, %v615, %v935
      %v1000 = vsel %vm968, %v616, %v936
      %v1001 = vsel %vm969, %v617, %v937
      %v1002 = vsel %vm970, %v618, %v938
      %v1003 = vsel %vm971, %v619, %v939
      %v1004 = vsel %vm972, %v620, %v940
      %v1005 = vsel %vm973, %v621, %v941
      %v1006 = vsel %vm974, %v622, %v942
      %v1007 = vsel %vm975, %v623, %v943
      %v1008 = vsel %vm976, %v624, %v944
      %v1009 = vsel %vm977, %v625, %v945
      %v1010 = vsel %vm978, %v626, %v946
      %v1011 = vsel %vm979, %v627, %v947
      %v1012 = vsel %vm980, %v628, %v948
      %v1013 = vsel %vm981, %v629, %v949
      %v1014 = vsel %vm982, %v630, %v950
      %v1015 = vsel %vm983, %v631, %v951
      %v1016 = vsel %vm984, %v632, %v952
      %v1017 = vsel %vm985, %v633, %v953
      %v1018 = vsel %vm986, %v634, %v954
      %v1019 = vsel %vm987, %v635, %v955
      %v1020 = vpack.c.bf16 %v989, %v988
      %v1021 = vpack.c.bf16 %v991, %v990
      %v1022 = vpack.c.bf16 %v993, %v992
      %v1023 = vpack.c.bf16 %v995, %v994
      %v1024 = vpack.c.bf16 %v997, %v996
      %v1025 = vpack.c.bf16 %v999, %v998
      %v1026 = vpack.c.bf16 %v1001, %v1000
      %v1027 = vpack.c.bf16 %v1003, %v1002
      %v1028 = vpack.c.bf16 %v1005, %v1004
      %v1029 = vpack.c.bf16 %v1007, %v1006
      %v1030 = vpack.c.bf16 %v1009, %v1008
      %v1031 = vpack.c.bf16 %v1011, %v1010
      %v1032 = vpack.c.bf16 %v1013, %v1012
      %v1033 = vpack.c.bf16 %v1015, %v1014
      %v1034 = vpack.c.bf16 %v1017, %v1016
      %v1035 = vpack.c.bf16 %v1019, %v1018
      %v1036 = vld [vmem:[%s4] sm:$0xf]
      %v1037 = vld [vmem:[%s4 + $0x4] sm:$0xf]
      %v1038 = vld [vmem:[%s4 + $0x8] sm:$0xf]
      %v1039 = vld [vmem:[%s4 + $0xc] sm:$0xf]
      %v1040 = vld [vmem:[%s4 + $0x10] sm:$0xf]
      %v1041 = vld [vmem:[%s4 + $0x14] sm:$0xf]
      %v1042 = vld [vmem:[%s4 + $0x18] sm:$0xf]
      %v1043 = vld [vmem:[%s4 + $0x1c] sm:$0xf]
      %v1044 = vld [vmem:[%s4 + $0x20] sm:$0xf]
      %v1045 = vld [vmem:[%s4 + $0x24] sm:$0xf]
      %v1046 = vld [vmem:[%s4 + $0x28] sm:$0xf]
      %v1047 = vld [vmem:[%s4 + $0x2c] sm:$0xf]
      %v1048 = vld [vmem:[%s4 + $0x30] sm:$0xf]
      %v1049 = vld [vmem:[%s4 + $0x34] sm:$0xf]
      %v1050 = vld [vmem:[%s4 + $0x38] sm:$0xf]
      %v1051 = vld [vmem:[%s4 + $0x3c] sm:$0xf]
      %v1052 = vld [vmem:[%s5] sm:$0x1]
      %v1054 = vperm.slane %v1052, 0
      %v1072 = vunpack.c.l.b16 %v1036
      %v1073 = vunpack.c.l.b16 %v1037
      %v1074 = vunpack.c.l.b16 %v1038
      %v1075 = vunpack.c.l.b16 %v1039
      %v1076 = vunpack.c.l.b16 %v1040
      %v1077 = vunpack.c.l.b16 %v1041
      %v1078 = vunpack.c.l.b16 %v1042
      %v1079 = vunpack.c.l.b16 %v1043
      %v1080 = vunpack.c.l.b16 %v1044
      %v1081 = vunpack.c.l.b16 %v1045
      %v1082 = vunpack.c.l.b16 %v1046
      %v1083 = vunpack.c.l.b16 %v1047
      %v1084 = vunpack.c.l.b16 %v1048
      %v1085 = vunpack.c.l.b16 %v1049
      %v1086 = vunpack.c.l.b16 %v1050
      %v1087 = vunpack.c.l.b16 %v1051
      %v1088 = vpack.c.b16 %v1073, %v1072
      %v1089 = vpack.c.b16 %v1075, %v1074
      %v1090 = vpack.c.b16 %v1077, %v1076
      %v1091 = vpack.c.b16 %v1079, %v1078
      %v1092 = vpack.c.b16 %v1081, %v1080
      %v1093 = vpack.c.b16 %v1083, %v1082
      %v1094 = vpack.c.b16 %v1085, %v1084
      %v1095 = vpack.c.b16 %v1087, %v1086
      %1104 = vmatpush.bf16.msra.mxu0 %v1095
      %1105 = vmatpush.bf16.msra.mxu0 %v1094
      %1106 = vmatpush.bf16.msra.mxu0 %v1093
      %1107 = vmatpush.bf16.msra.mxu0 %v1092
      %1108 = vmatpush.bf16.msra.mxu0 %v1091
      %1109 = vmatpush.bf16.msra.mxu0 %v1090
      %1110 = vmatpush.bf16.msra.mxu0 %v1089
      %1111 = vmatpush.bf16.msra.mxu0 %v1088
      %1112 = vmatmul.bf16.gmra.mxu0 %v1020
      %v1113 = vpop.f32.mrf.mxu0
      %v1114 = vadd.f32 %v1054, %v1113
      %v1115 = vpop.f32.mrf.mxu0
      %v1116 = vadd.f32 %v1054, %v1115
      %1117 = vmatmul.bf16.gmra.mxu0 %v1021
      %v1118 = vpop.f32.mrf.mxu0
      %v1119 = vadd.f32 %v1054, %v1118
      %v1120 = vpop.f32.mrf.mxu0
      %v1121 = vadd.f32 %v1054, %v1120
      %1122 = vmatmul.bf16.gmra.mxu0 %v1022
      %v1123 = vpop.f32.mrf.mxu0
      %v1124 = vadd.f32 %v1054, %v1123
      %v1125 = vpop.f32.mrf.mxu0
      %v1126 = vadd.f32 %v1054, %v1125
      %1127 = vmatmul.bf16.gmra.mxu0 %v1023
      %v1128 = vpop.f32.mrf.mxu0
      %v1129 = vadd.f32 %v1054, %v1128
      %v1130 = vpop.f32.mrf.mxu0
      %v1131 = vadd.f32 %v1054, %v1130
      %1132 = vmatmul.bf16.gmra.mxu0 %v1024
      %v1133 = vpop.f32.mrf.mxu0
      %v1134 = vadd.f32 %v1054, %v1133
      %v1135 = vpop.f32.mrf.mxu0
      %v1136 = vadd.f32 %v1054, %v1135
      %1137 = vmatmul.bf16.gmra.mxu0 %v1025
      %v1138 = vpop.f32.mrf.mxu0
      %v1139 = vadd.f32 %v1054, %v1138
      %v1140 = vpop.f32.mrf.mxu0
      %v1141 = vadd.f32 %v1054, %v1140
      %1142 = vmatmul.bf16.gmra.mxu0 %v1026
      %v1143 = vpop.f32.mrf.mxu0
      %v1144 = vadd.f32 %v1054, %v1143
      %v1145 = vpop.f32.mrf.mxu0
      %v1146 = vadd.f32 %v1054, %v1145
      %1147 = vmatmul.bf16.gmra.mxu0 %v1027
      %v1148 = vpop.f32.mrf.mxu0
      %v1149 = vadd.f32 %v1054, %v1148
      %v1150 = vpop.f32.mrf.mxu0
      %v1151 = vadd.f32 %v1054, %v1150
      %1152 = vmatmul.bf16.gmra.mxu0 %v1028
      %v1153 = vpop.f32.mrf.mxu0
      %v1154 = vadd.f32 %v1054, %v1153
      %v1155 = vpop.f32.mrf.mxu0
      %v1156 = vadd.f32 %v1054, %v1155
      %1157 = vmatmul.bf16.gmra.mxu0 %v1029
      %v1158 = vpop.f32.mrf.mxu0
      %v1159 = vadd.f32 %v1054, %v1158
      %v1160 = vpop.f32.mrf.mxu0
      %v1161 = vadd.f32 %v1054, %v1160
      %1162 = vmatmul.bf16.gmra.mxu0 %v1030
      %v1163 = vpop.f32.mrf.mxu0
      %v1164 = vadd.f32 %v1054, %v1163
      %v1165 = vpop.f32.mrf.mxu0
      %v1166 = vadd.f32 %v1054, %v1165
      %1167 = vmatmul.bf16.gmra.mxu0 %v1031
      %v1168 = vpop.f32.mrf.mxu0
      %v1169 = vadd.f32 %v1054, %v1168
      %v1170 = vpop.f32.mrf.mxu0
      %v1171 = vadd.f32 %v1054, %v1170
      %1172 = vmatmul.bf16.gmra.mxu0 %v1032
      %v1173 = vpop.f32.mrf.mxu0
      %v1174 = vadd.f32 %v1054, %v1173
      %v1175 = vpop.f32.mrf.mxu0
      %v1176 = vadd.f32 %v1054, %v1175
      %1177 = vmatmul.bf16.gmra.mxu0 %v1033
      %v1178 = vpop.f32.mrf.mxu0
      %v1179 = vadd.f32 %v1054, %v1178
      %v1180 = vpop.f32.mrf.mxu0
      %v1181 = vadd.f32 %v1054, %v1180
      %1182 = vmatmul.bf16.gmra.mxu0 %v1034
      %v1183 = vpop.f32.mrf.mxu0
      %v1184 = vadd.f32 %v1054, %v1183
      %v1185 = vpop.f32.mrf.mxu0
      %v1186 = vadd.f32 %v1054, %v1185
      %1187 = vmatmul.bf16.gmra.mxu0 %v1035
      %v1188 = vpop.f32.mrf.mxu0
      %v1189 = vadd.f32 %v1054, %v1188
      %v1190 = vpop.f32.mrf.mxu0
      %v1191 = vadd.f32 %v1054, %v1190
      %1192 = vdwg.mxu0
      %v1193 = vpack.c.bf16 %v1114, %v1114
      %v1194 = vpack.c.bf16 %v1116, %v1116
      %v1195 = vpack.c.bf16 %v1119, %v1119
      %v1196 = vpack.c.bf16 %v1121, %v1121
      %v1197 = vpack.c.bf16 %v1124, %v1124
      %v1198 = vpack.c.bf16 %v1126, %v1126
      %v1199 = vpack.c.bf16 %v1129, %v1129
      %v1200 = vpack.c.bf16 %v1131, %v1131
      %v1201 = vpack.c.bf16 %v1134, %v1134
      %v1202 = vpack.c.bf16 %v1136, %v1136
      %v1203 = vpack.c.bf16 %v1139, %v1139
      %v1204 = vpack.c.bf16 %v1141, %v1141
      %v1205 = vpack.c.bf16 %v1144, %v1144
      %v1206 = vpack.c.bf16 %v1146, %v1146
      %v1207 = vpack.c.bf16 %v1149, %v1149
      %v1208 = vpack.c.bf16 %v1151, %v1151
      %v1209 = vpack.c.bf16 %v1154, %v1154
      %v1210 = vpack.c.bf16 %v1156, %v1156
      %v1211 = vpack.c.bf16 %v1159, %v1159
      %v1212 = vpack.c.bf16 %v1161, %v1161
      %v1213 = vpack.c.bf16 %v1164, %v1164
      %v1214 = vpack.c.bf16 %v1166, %v1166
      %v1215 = vpack.c.bf16 %v1169, %v1169
      %v1216 = vpack.c.bf16 %v1171, %v1171
      %v1217 = vpack.c.bf16 %v1174, %v1174
      %v1218 = vpack.c.bf16 %v1176, %v1176
      %v1219 = vpack.c.bf16 %v1179, %v1179
      %v1220 = vpack.c.bf16 %v1181, %v1181
      %v1221 = vpack.c.bf16 %v1184, %v1184
      %v1222 = vpack.c.bf16 %v1186, %v1186
      %v1223 = vpack.c.bf16 %v1189, %v1189
      %v1224 = vpack.c.bf16 %v1191, %v1191
      %1225 = vst [vmem:[%s275] sm:$0xf] %v1193
      %1226 = vst [vmem:[%s275 + $0x4] sm:$0xf] %v1194
      %1227 = vst [vmem:[%s275 + $0x8] sm:$0xf] %v1195
      %1228 = vst [vmem:[%s275 + $0xc] sm:$0xf] %v1196
      %1229 = vst [vmem:[%s275 + $0x10] sm:$0xf] %v1197
      %1230 = vst [vmem:[%s275 + $0x14] sm:$0xf] %v1198
      %1231 = vst [vmem:[%s275 + $0x18] sm:$0xf] %v1199
      %1232 = vst [vmem:[%s275 + $0x1c] sm:$0xf] %v1200
      %1233 = vst [vmem:[%s275 + $0x20] sm:$0xf] %v1201
      %1234 = vst [vmem:[%s275 + $0x24] sm:$0xf] %v1202
      %1235 = vst [vmem:[%s275 + $0x28] sm:$0xf] %v1203
      %1236 = vst [vmem:[%s275 + $0x2c] sm:$0xf] %v1204
      %1237 = vst [vmem:[%s275 + $0x30] sm:$0xf] %v1205
      %1238 = vst [vmem:[%s275 + $0x34] sm:$0xf] %v1206
      %1239 = vst [vmem:[%s275 + $0x38] sm:$0xf] %v1207
      %1240 = vst [vmem:[%s275 + $0x3c] sm:$0xf] %v1208
      %1241 = vst [vmem:[%s275 + $0x40] sm:$0xf] %v1209
      %1242 = vst [vmem:[%s275 + $0x44] sm:$0xf] %v1210
      %1243 = vst [vmem:[%s275 + $0x48] sm:$0xf] %v1211
      %1244 = vst [vmem:[%s275 + $0x4c] sm:$0xf] %v1212
      %1245 = vst [vmem:[%s275 + $0x50] sm:$0xf] %v1213
      %1246 = vst [vmem:[%s275 + $0x54] sm:$0xf] %v1214
      %1247 = vst [vmem:[%s275 + $0x58] sm:$0xf] %v1215
      %1248 = vst [vmem:[%s275 + $0x5c] sm:$0xf] %v1216
      %1249 = vst [vmem:[%s275 + $0x60] sm:$0xf] %v1217
      %1250 = vst [vmem:[%s275 + $0x64] sm:$0xf] %v1218
      %1251 = vst [vmem:[%s275 + $0x68] sm:$0xf] %v1219
      %1252 = vst [vmem:[%s275 + $0x6c] sm:$0xf] %v1220
      %1253 = vst [vmem:[%s275 + $0x70] sm:$0xf] %v1221
      %1254 = vst [vmem:[%s275 + $0x74] sm:$0xf] %v1222
      %1255 = vst [vmem:[%s275 + $0x78] sm:$0xf] %v1223
      %1256 = vst [vmem:[%s275 + $0x7c] sm:$0xf] %v1224
      %s1257 = smul.u32 32, %s17
      %p1258 = scmp.lt.s32.totalorder %s1257, 63
      %s1259 = scalar_select %p1258, %s1257, 63
      %s1260 = smul.addr %s1259, 4
      %s1261 = scalar_lea.vmem %s6, %s1260
      // Predicated region
      $region45: #{msr_fpn_forward.9} parent=43 // pred_check
        %p1262 = pneg %p171
      $region46: #{msr_fpn_forward.9} parent=43 // pred_check_branch
        %1264 = sbr.rel (%p1262) target = $region48
      $region47: #{msr_fpn_forward.9} parent=43 // pred_region
        %s1265 = smul.u32 32, %s17
      $region48: #{msr_fpn_forward.9} parent=43 // pred_fallthru
        _
    $region44: #{msr_fpn_forward.9} parent=5 // pred_fallthru
      _
    %p1266 = scmp.le.s32.totalorder 2, %s12
    // Predicated region
    $region49: #{msr_fpn_forward.9} parent=5 // pred_check
      %p1267 = pneg %p1266
    $region50: #{msr_fpn_forward.9} parent=5 // pred_check_branch
      %1269 = sbr.rel (%p1267) target = $region52
    $region51: #{msr_fpn_forward.9} parent=5 // pred_region
      %s1270 = ssub.s32 %s12, 2
      // Predicated region
      $region53: #{msr_fpn_forward.9} parent=51 // pred_check
        %p1271 = pneg %p177
      $region54: #{msr_fpn_forward.9} parent=51 // pred_check_branch
        %1273 = sbr.rel (%p1271) target = $region56
      $region55: #{msr_fpn_forward.9} parent=51 // pred_region
        %s1274 = smul.u32 32, %s18
        %p1275 = scmp.lt.s32.totalorder %s1274, 63
        %s1276 = scalar_select %p1275, %s1274, 63
        %s1277 = smul.addr %s1276, 4
        %s1278 = scalar_lea.vmem %s6, %s1277
      $region56: #{msr_fpn_forward.9} parent=51 // pred_fallthru
        _
    $region52: #{msr_fpn_forward.9} parent=5 // pred_fallthru
      _
  $region6: #{msr_fpn_forward.9} parent=0 // loop_footer
    %s16 = sadd.s32 1, %s12
  $region7: #{msr_fpn_forward.9} parent=0 // loop_footer_branch
    %11 = sbr.rel target = $region3
  $region8: #{msr_fpn_forward.9} parent=0 // loop_exit
    _

// kernel: msr_fpn_forward.6
$region0: #{msr_fpn_forward.6}
  #allocation0 [shape = 'u32[]', space=smem, size = 0x4, offset = 0x4, fixed_abs, tag = 'smem constant byte address 0x4 - core index']
  #allocation1 [shape = 'u32[72,128]{1,0:T(1,128)}', space=vmem, size = 0x9000, scoped, tag = 'internal scratch']
  %s0 = inlined_call_operand.vmem [shape: bf16[32,2592], index: 0, kind: input, shape index: {}]
  %s1 = inlined_call_operand.vmem [shape: bf16[2592,512], index: 1, kind: input, shape index: {}]
  %s2 = inlined_call_operand.vmem [shape: f32[1,512], index: 2, kind: input, shape index: {}]
  %s3 = inlined_call_operand.vmem [shape: bf16[32,512], index: 3, kind: output, shape index: {}]
  %s4 = sld [smem:[#allocation0]]
  $region22: #{msr_fpn_forward.6} parent=0
    _
  %s6 = ssub.s32 1, %s4
  %s7 = scalar_select 0, %s6, %s4
  // Predicated region
  $region2: #{msr_fpn_forward.6} parent=0 // pred_check
    _
  $region3: #{msr_fpn_forward.6} parent=0 // pred_check_branch
    %9 = sbr.rel (0) target = $region5
  $region4: #{msr_fpn_forward.6} parent=0 // pred_region
    _
  $region5: #{msr_fpn_forward.6} parent=0 // pred_fallthru
    _
  // Predicated region
  $region6: #{msr_fpn_forward.6} parent=0 // pred_check
    _
  $region7: #{msr_fpn_forward.6} parent=0 // pred_check_branch
    %11 = sbr.rel (0) target = $region9
  $region8: #{msr_fpn_forward.6} parent=0 // pred_region
    _
  $region9: #{msr_fpn_forward.6} parent=0 // pred_fallthru
    _
  // Predicated region
  $region10: #{msr_fpn_forward.6} parent=0 // pred_check
    _
  $region11: #{msr_fpn_forward.6} parent=0 // pred_check_branch
    %13 = sbr.rel (0) target = $region13
  $region12: #{msr_fpn_forward.6} parent=0 // pred_region
    _
  $region13: #{msr_fpn_forward.6} parent=0 // pred_fallthru
    _
  %v15 = vld [vmem:[%s1] sm:$0xff]
  %v16 = vld [vmem:[%s1 + $0x8] sm:$0xff]
  %v17 = vld [vmem:[%s1 + $0x10] sm:$0xff]
  %v18 = vld [vmem:[%s1 + $0x18] sm:$0xff]
  %v19 = vld [vmem:[%s1 + $0x20] sm:$0xff]
  %v20 = vld [vmem:[%s1 + $0x28] sm:$0xff]
  %v21 = vld [vmem:[%s1 + $0x30] sm:$0xff]
  %v22 = vld [vmem:[%s1 + $0x38] sm:$0xff]
  %v23 = vld [vmem:[%s1 + $0x40] sm:$0xff]
  %v24 = vld [vmem:[%s1 + $0x48] sm:$0xff]
  %v25 = vld [vmem:[%s1 + $0x50] sm:$0xff]
  %v26 = vld [vmem:[%s1 + $0x58] sm:$0xff]
  %v27 = vld [vmem:[%s1 + $0x60] sm:$0xff]
  %v28 = vld [vmem:[%s1 + $0x68] sm:$0xff]
  %v29 = vld [vmem:[%s1 + $0x70] sm:$0xff]
  %v30 = vld [vmem:[%s1 + $0x78] sm:$0xff]
  %v31 = vld [vmem:[%s1 + $0x80] sm:$0xff]
  %v32 = vld [vmem:[%s1 + $0x88] sm:$0xff]
  %v33 = vld [vmem:[%s1 + $0x90] sm:$0xff]
  %v34 = vld [vmem:[%s1 + $0x98] sm:$0xff]
  %v35 = vld [vmem:[%s1 + $0xa0] sm:$0xff]
  %v36 = vld [vmem:[%s1 + $0xa8] sm:$0xff]
  %v37 = vld [vmem:[%s1 + $0xb0] sm:$0xff]
  %v38 = vld [vmem:[%s1 + $0xb8] sm:$0xff]
  %v39 = vld [vmem:[%s1 + $0xc0] sm:$0xff]
  %v40 = vld [vmem:[%s1 + $0xc8] sm:$0xff]
  %v41 = vld [vmem:[%s1 + $0xd0] sm:$0xff]
  %v42 = vld [vmem:[%s1 + $0xd8] sm:$0xff]
  %v43 = vld [vmem:[%s1 + $0xe0] sm:$0xff]
  %v44 = vld [vmem:[%s1 + $0xe8] sm:$0xff]
  %v45 = vld [vmem:[%s1 + $0xf0] sm:$0xff]
  %v46 = vld [vmem:[%s1 + $0xf8] sm:$0xff]
  %v47 = vld [vmem:[%s1 + $0x100] sm:$0xff]
  %v48 = vld [vmem:[%s1 + $0x108] sm:$0xff]
  %v49 = vld [vmem:[%s1 + $0x110] sm:$0xff]
  %v50 = vld [vmem:[%s1 + $0x118] sm:$0xff]
  %v51 = vld [vmem:[%s1 + $0x120] sm:$0xff]
  %v52 = vld [vmem:[%s1 + $0x128] sm:$0xff]
  %v53 = vld [vmem:[%s1 + $0x130] sm:$0xff]
  %v54 = vld [vmem:[%s1 + $0x138] sm:$0xff]
  %v55 = vld [vmem:[%s1 + $0x140] sm:$0xff]
  %v56 = vld [vmem:[%s1 + $0x148] sm:$0xff]
  %v57 = vld [vmem:[%s1 + $0x150] sm:$0xff]
  %v58 = vld [vmem:[%s1 + $0x158] sm:$0xff]
  %v59 = vld [vmem:[%s1 + $0x160] sm:$0xff]
  %v60 = vld [vmem:[%s1 + $0x168] sm:$0xff]
  %v61 = vld [vmem:[%s1 + $0x170] sm:$0xff]
  %v62 = vld [vmem:[%s1 + $0x178] sm:$0xff]
  %v63 = vld [vmem:[%s1 + $0x180] sm:$0xff]
  %v64 = vld [vmem:[%s1 + $0x188] sm:$0xff]
  %v65 = vld [vmem:[%s1 + $0x190] sm:$0xff]
  %v66 = vld [vmem:[%s1 + $0x198] sm:$0xff]
  %v67 = vld [vmem:[%s1 + $0x1a0] sm:$0xff]
  %v68 = vld [vmem:[%s1 + $0x1a8] sm:$0xff]
  %v69 = vld [vmem:[%s1 + $0x1b0] sm:$0xff]
  %v70 = vld [vmem:[%s1 + $0x1b8] sm:$0xff]
  %v71 = vld [vmem:[%s1 + $0x1c0] sm:$0xff]
  %v72 = vld [vmem:[%s1 + $0x1c8] sm:$0xff]
  %v73 = vld [vmem:[%s1 + $0x1d0] sm:$0xff]
  %v74 = vld [vmem:[%s1 + $0x1d8] sm:$0xff]
  %v75 = vld [vmem:[%s1 + $0x1e0] sm:$0xff]
  %v76 = vld [vmem:[%s1 + $0x1e8] sm:$0xff]
  %v77 = vld [vmem:[%s1 + $0x1f0] sm:$0xff]
  %v78 = vld [vmem:[%s1 + $0x1f8] sm:$0xff]
  %v79 = vld [vmem:[%s1 + $0x200] sm:$0xff]
  %v80 = vld [vmem:[%s1 + $0x208] sm:$0xff]
  %v81 = vld [vmem:[%s1 + $0x210] sm:$0xff]
  %v82 = vld [vmem:[%s1 + $0x218] sm:$0xff]
  %v83 = vld [vmem:[%s1 + $0x220] sm:$0xff]
  %v84 = vld [vmem:[%s1 + $0x228] sm:$0xff]
  %v85 = vld [vmem:[%s1 + $0x230] sm:$0xff]
  %v86 = vld [vmem:[%s1 + $0x238] sm:$0xff]
  %v87 = vld [vmem:[%s1 + $0x240] sm:$0xff]
  %v88 = vld [vmem:[%s1 + $0x248] sm:$0xff]
  %v89 = vld [vmem:[%s1 + $0x250] sm:$0xff]
  %v90 = vld [vmem:[%s1 + $0x258] sm:$0xff]
  %v91 = vld [vmem:[%s1 + $0x260] sm:$0xff]
  %v92 = vld [vmem:[%s1 + $0x268] sm:$0xff]
  %v93 = vld [vmem:[%s1 + $0x270] sm:$0xff]
  %v94 = vld [vmem:[%s1 + $0x278] sm:$0xff]
  %v95 = vld [vmem:[%s1 + $0x280] sm:$0xff]
  %v96 = vld [vmem:[%s1 + $0x288] sm:$0xff]
  %v97 = vld [vmem:[%s1 + $0x290] sm:$0xff]
  %v98 = vld [vmem:[%s1 + $0x298] sm:$0xff]
  %v99 = vld [vmem:[%s1 + $0x2a0] sm:$0xff]
  %v100 = vld [vmem:[%s1 + $0x2a8] sm:$0xff]
  %v101 = vld [vmem:[%s1 + $0x2b0] sm:$0xff]
  %v102 = vld [vmem:[%s1 + $0x2b8] sm:$0xff]
  %v103 = vld [vmem:[%s1 + $0x2c0] sm:$0xff]
  %v104 = vld [vmem:[%s1 + $0x2c8] sm:$0xff]
  %v105 = vld [vmem:[%s1 + $0x2d0] sm:$0xff]
  %v106 = vld [vmem:[%s1 + $0x2d8] sm:$0xff]
  %v107 = vld [vmem:[%s1 + $0x2e0] sm:$0xff]
  %v108 = vld [vmem:[%s1 + $0x2e8] sm:$0xff]
  %v109 = vld [vmem:[%s1 + $0x2f0] sm:$0xff]
  %v110 = vld [vmem:[%s1 + $0x2f8] sm:$0xff]
  %v111 = vld [vmem:[%s1 + $0x300] sm:$0xff]
  %v112 = vld [vmem:[%s1 + $0x308] sm:$0xff]
  %v113 = vld [vmem:[%s1 + $0x310] sm:$0xff]
  %v114 = vld [vmem:[%s1 + $0x318] sm:$0xff]
  %v115 = vld [vmem:[%s1 + $0x320] sm:$0xff]
  %v116 = vld [vmem:[%s1 + $0x328] sm:$0xff]
  %v117 = vld [vmem:[%s1 + $0x330] sm:$0xff]
  %v118 = vld [vmem:[%s1 + $0x338] sm:$0xff]
  %v119 = vld [vmem:[%s1 + $0x340] sm:$0xff]
  %v120 = vld [vmem:[%s1 + $0x348] sm:$0xff]
  %v121 = vld [vmem:[%s1 + $0x350] sm:$0xff]
  %v122 = vld [vmem:[%s1 + $0x358] sm:$0xff]
  %v123 = vld [vmem:[%s1 + $0x360] sm:$0xff]
  %v124 = vld [vmem:[%s1 + $0x368] sm:$0xff]
  %v125 = vld [vmem:[%s1 + $0x370] sm:$0xff]
  %v126 = vld [vmem:[%s1 + $0x378] sm:$0xff]
  %v127 = vld [vmem:[%s1 + $0x380] sm:$0xff]
  %v128 = vld [vmem:[%s1 + $0x388] sm:$0xff]
  %v129 = vld [vmem:[%s1 + $0x390] sm:$0xff]
  %v130 = vld [vmem:[%s1 + $0x398] sm:$0xff]
  %v131 = vld [vmem:[%s1 + $0x3a0] sm:$0xff]
  %v132 = vld [vmem:[%s1 + $0x3a8] sm:$0xff]
  %v133 = vld [vmem:[%s1 + $0x3b0] sm:$0xff]
  %v134 = vld [vmem:[%s1 + $0x3b8] sm:$0xff]
  %v135 = vld [vmem:[%s1 + $0x3c0] sm:$0xff]
  %v136 = vld [vmem:[%s1 + $0x3c8] sm:$0xff]
  %v137 = vld [vmem:[%s1 + $0x3d0] sm:$0xff]
  %v138 = vld [vmem:[%s1 + $0x3d8] sm:$0xff]
  %v139 = vld [vmem:[%s1 + $0x3e0] sm:$0xff]
  %v140 = vld [vmem:[%s1 + $0x3e8] sm:$0xff]
  %v141 = vld [vmem:[%s1 + $0x3f0] sm:$0xff]
  %v142 = vld [vmem:[%s1 + $0x3f8] sm:$0xff]
  %v143 = vld [vmem:[%s1 + $0x400] sm:$0xff]
  %v144 = vld [vmem:[%s1 + $0x408] sm:$0xff]
  %v145 = vld [vmem:[%s1 + $0x410] sm:$0xff]
  %v146 = vld [vmem:[%s1 + $0x418] sm:$0xff]
  %v147 = vld [vmem:[%s1 + $0x420] sm:$0xff]
  %v148 = vld [vmem:[%s1 + $0x428] sm:$0xff]
  %v149 = vld [vmem:[%s1 + $0x430] sm:$0xff]
  %v150 = vld [vmem:[%s1 + $0x438] sm:$0xff]
  %v151 = vld [vmem:[%s1 + $0x440] sm:$0xff]
  %v152 = vld [vmem:[%s1 + $0x448] sm:$0xff]
  %v153 = vld [vmem:[%s1 + $0x450] sm:$0xff]
  %v154 = vld [vmem:[%s1 + $0x458] sm:$0xff]
  %v155 = vld [vmem:[%s1 + $0x460] sm:$0xff]
  %v156 = vld [vmem:[%s1 + $0x468] sm:$0xff]
  %v157 = vld [vmem:[%s1 + $0x470] sm:$0xff]
  %v158 = vld [vmem:[%s1 + $0x478] sm:$0xff]
  %v159 = vld [vmem:[%s1 + $0x480] sm:$0xff]
  %v160 = vld [vmem:[%s1 + $0x488] sm:$0xff]
  %v161 = vld [vmem:[%s1 + $0x490] sm:$0xff]
  %v162 = vld [vmem:[%s1 + $0x498] sm:$0xff]
  %v163 = vld [vmem:[%s1 + $0x4a0] sm:$0xff]
  %v164 = vld [vmem:[%s1 + $0x4a8] sm:$0xff]
  %v165 = vld [vmem:[%s1 + $0x4b0] sm:$0xff]
  %v166 = vld [vmem:[%s1 + $0x4b8] sm:$0xff]
  %v167 = vld [vmem:[%s1 + $0x4c0] sm:$0xff]
  %v168 = vld [vmem:[%s1 + $0x4c8] sm:$0xff]
  %v169 = vld [vmem:[%s1 + $0x4d0] sm:$0xff]
  %v170 = vld [vmem:[%s1 + $0x4d8] sm:$0xff]
  %v171 = vld [vmem:[%s1 + $0x4e0] sm:$0xff]
  %v172 = vld [vmem:[%s1 + $0x4e8] sm:$0xff]
  %v173 = vld [vmem:[%s1 + $0x4f0] sm:$0xff]
  %v174 = vld [vmem:[%s1 + $0x4f8] sm:$0xff]
  %v175 = vld [vmem:[%s1 + $0x500] sm:$0xff]
  %v176 = vld [vmem:[%s1 + $0x508] sm:$0xff]
  %v177 = vld [vmem:[%s1 + $0x510] sm:$0xff]
  %v178 = vld [vmem:[%s1 + $0x518] sm:$0xff]
  %v179 = vld [vmem:[%s1 + $0x520] sm:$0xff]
  %v180 = vld [vmem:[%s1 + $0x528] sm:$0xff]
  %v181 = vld [vmem:[%s1 + $0x530] sm:$0xff]
  %v182 = vld [vmem:[%s1 + $0x538] sm:$0xff]
  %v183 = vld [vmem:[%s1 + $0x540] sm:$0xff]
  %v184 = vld [vmem:[%s1 + $0x548] sm:$0xff]
  %v185 = vld [vmem:[%s1 + $0x550] sm:$0xff]
  %v186 = vld [vmem:[%s1 + $0x558] sm:$0xff]
  %v187 = vld [vmem:[%s1 + $0x560] sm:$0xff]
  %v188 = vld [vmem:[%s1 + $0x568] sm:$0xff]
  %v189 = vld [vmem:[%s1 + $0x570] sm:$0xff]
  %v190 = vld [vmem:[%s1 + $0x578] sm:$0xff]
  %v191 = vld [vmem:[%s1 + $0x580] sm:$0xff]
  %v192 = vld [vmem:[%s1 + $0x588] sm:$0xff]
  %v193 = vld [vmem:[%s1 + $0x590] sm:$0xff]
  %v194 = vld [vmem:[%s1 + $0x598] sm:$0xff]
  %v195 = vld [vmem:[%s1 + $0x5a0] sm:$0xff]
  %v196 = vld [vmem:[%s1 + $0x5a8] sm:$0xff]
  %v197 = vld [vmem:[%s1 + $0x5b0] sm:$0xff]
  %v198 = vld [vmem:[%s1 + $0x5b8] sm:$0xff]
  %v199 = vld [vmem:[%s1 + $0x5c0] sm:$0xff]
  %v200 = vld [vmem:[%s1 + $0x5c8] sm:$0xff]
  %v201 = vld [vmem:[%s1 + $0x5d0] sm:$0xff]
  %v202 = vld [vmem:[%s1 + $0x5d8] sm:$0xff]
  %v203 = vld [vmem:[%s1 + $0x5e0] sm:$0xff]
  %v204 = vld [vmem:[%s1 + $0x5e8] sm:$0xff]
  %v205 = vld [vmem:[%s1 + $0x5f0] sm:$0xff]
  %v206 = vld [vmem:[%s1 + $0x5f8] sm:$0xff]
  %v207 = vld [vmem:[%s1 + $0x600] sm:$0xff]
  %v208 = vld [vmem:[%s1 + $0x608] sm:$0xff]
  %v209 = vld [vmem:[%s1 + $0x610] sm:$0xff]
  %v210 = vld [vmem:[%s1 + $0x618] sm:$0xff]
  %v211 = vld [vmem:[%s1 + $0x620] sm:$0xff]
  %v212 = vld [vmem:[%s1 + $0x628] sm:$0xff]
  %v213 = vld [vmem:[%s1 + $0x630] sm:$0xff]
  %v214 = vld [vmem:[%s1 + $0x638] sm:$0xff]
  %v215 = vld [vmem:[%s1 + $0x640] sm:$0xff]
  %v216 = vld [vmem:[%s1 + $0x648] sm:$0xff]
  %v217 = vld [vmem:[%s1 + $0x650] sm:$0xff]
  %v218 = vld [vmem:[%s1 + $0x658] sm:$0xff]
  %v219 = vld [vmem:[%s1 + $0x660] sm:$0xff]
  %v220 = vld [vmem:[%s1 + $0x668] sm:$0xff]
  %v221 = vld [vmem:[%s1 + $0x670] sm:$0xff]
  %v222 = vld [vmem:[%s1 + $0x678] sm:$0xff]
  %v223 = vld [vmem:[%s1 + $0x680] sm:$0xff]
  %v224 = vld [vmem:[%s1 + $0x688] sm:$0xff]
  %v225 = vld [vmem:[%s1 + $0x690] sm:$0xff]
  %v226 = vld [vmem:[%s1 + $0x698] sm:$0xff]
  %v227 = vld [vmem:[%s1 + $0x6a0] sm:$0xff]
  %v228 = vld [vmem:[%s1 + $0x6a8] sm:$0xff]
  %v229 = vld [vmem:[%s1 + $0x6b0] sm:$0xff]
  %v230 = vld [vmem:[%s1 + $0x6b8] sm:$0xff]
  %v231 = vld [vmem:[%s1 + $0x6c0] sm:$0xff]
  %v232 = vld [vmem:[%s1 + $0x6c8] sm:$0xff]
  %v233 = vld [vmem:[%s1 + $0x6d0] sm:$0xff]
  %v234 = vld [vmem:[%s1 + $0x6d8] sm:$0xff]
  %v235 = vld [vmem:[%s1 + $0x6e0] sm:$0xff]
  %v236 = vld [vmem:[%s1 + $0x6e8] sm:$0xff]
  %v237 = vld [vmem:[%s1 + $0x6f0] sm:$0xff]
  %v238 = vld [vmem:[%s1 + $0x6f8] sm:$0xff]
  %v239 = vld [vmem:[%s1 + $0x700] sm:$0xff]
  %v240 = vld [vmem:[%s1 + $0x708] sm:$0xff]
  %v241 = vld [vmem:[%s1 + $0x710] sm:$0xff]
  %v242 = vld [vmem:[%s1 + $0x718] sm:$0xff]
  %v243 = vld [vmem:[%s1 + $0x720] sm:$0xff]
  %v244 = vld [vmem:[%s1 + $0x728] sm:$0xff]
  %v245 = vld [vmem:[%s1 + $0x730] sm:$0xff]
  %v246 = vld [vmem:[%s1 + $0x738] sm:$0xff]
  %v247 = vld [vmem:[%s1 + $0x740] sm:$0xff]
  %v248 = vld [vmem:[%s1 + $0x748] sm:$0xff]
  %v249 = vld [vmem:[%s1 + $0x750] sm:$0xff]
  %v250 = vld [vmem:[%s1 + $0x758] sm:$0xff]
  %v251 = vld [vmem:[%s1 + $0x760] sm:$0xff]
  %v252 = vld [vmem:[%s1 + $0x768] sm:$0xff]
  %v253 = vld [vmem:[%s1 + $0x770] sm:$0xff]
  %v254 = vld [vmem:[%s1 + $0x778] sm:$0xff]
  %v255 = vld [vmem:[%s1 + $0x780] sm:$0xff]
  %v256 = vld [vmem:[%s1 + $0x788] sm:$0xff]
  %v257 = vld [vmem:[%s1 + $0x790] sm:$0xff]
  %v258 = vld [vmem:[%s1 + $0x798] sm:$0xff]
  %v259 = vld [vmem:[%s1 + $0x7a0] sm:$0xff]
  %v260 = vld [vmem:[%s1 + $0x7a8] sm:$0xff]
  %v261 = vld [vmem:[%s1 + $0x7b0] sm:$0xff]
  %v262 = vld [vmem:[%s1 + $0x7b8] sm:$0xff]
  %v263 = vld [vmem:[%s1 + $0x7c0] sm:$0xff]
  %v264 = vld [vmem:[%s1 + $0x7c8] sm:$0xff]
  %v265 = vld [vmem:[%s1 + $0x7d0] sm:$0xff]
  %v266 = vld [vmem:[%s1 + $0x7d8] sm:$0xff]
  %v267 = vld [vmem:[%s1 + $0x7e0] sm:$0xff]
  %v268 = vld [vmem:[%s1 + $0x7e8] sm:$0xff]
  %v269 = vld [vmem:[%s1 + $0x7f0] sm:$0xff]
  %v270 = vld [vmem:[%s1 + $0x7f8] sm:$0xff]
  %v271 = vld [vmem:[%s1 + $0x800] sm:$0xff]
  %v272 = vld [vmem:[%s1 + $0x808] sm:$0xff]
  %v273 = vld [vmem:[%s1 + $0x810] sm:$0xff]
  %v274 = vld [vmem:[%s1 + $0x818] sm:$0xff]
  %v275 = vld [vmem:[%s1 + $0x820] sm:$0xff]
  %v276 = vld [vmem:[%s1 + $0x828] sm:$0xff]
  %v277 = vld [vmem:[%s1 + $0x830] sm:$0xff]
  %v278 = vld [vmem:[%s1 + $0x838] sm:$0xff]
  %v279 = vld [vmem:[%s1 + $0x840] sm:$0xff]
  %v280 = vld [vmem:[%s1 + $0x848] sm:$0xff]
  %v281 = vld [vmem:[%s1 + $0x850] sm:$0xff]
  %v282 = vld [vmem:[%s1 + $0x858] sm:$0xff]
  %v283 = vld [vmem:[%s1 + $0x860] sm:$0xff]
  %v284 = vld [vmem:[%s1 + $0x868] sm:$0xff]
  %v285 = vld [vmem:[%s1 + $0x870] sm:$0xff]
  %v286 = vld [vmem:[%s1 + $0x878] sm:$0xff]
  %v287 = vld [vmem:[%s1 + $0x880] sm:$0xff]
  %v288 = vld [vmem:[%s1 + $0x888] sm:$0xff]
  %v289 = vld [vmem:[%s1 + $0x890] sm:$0xff]
  %v290 = vld [vmem:[%s1 + $0x898] sm:$0xff]
  %v291 = vld [vmem:[%s1 + $0x8a0] sm:$0xff]
  %v292 = vld [vmem:[%s1 + $0x8a8] sm:$0xff]
  %v293 = vld [vmem:[%s1 + $0x8b0] sm:$0xff]
  %v294 = vld [vmem:[%s1 + $0x8b8] sm:$0xff]
  %v295 = vld [vmem:[%s1 + $0x8c0] sm:$0xff]
  %v296 = vld [vmem:[%s1 + $0x8c8] sm:$0xff]
  %v297 = vld [vmem:[%s1 + $0x8d0] sm:$0xff]
  %v298 = vld [vmem:[%s1 + $0x8d8] sm:$0xff]
  %v299 = vld [vmem:[%s1 + $0x8e0] sm:$0xff]
  %v300 = vld [vmem:[%s1 + $0x8e8] sm:$0xff]
  %v301 = vld [vmem:[%s1 + $0x8f0] sm:$0xff]
  %v302 = vld [vmem:[%s1 + $0x8f8] sm:$0xff]
  %v303 = vld [vmem:[%s1 + $0x900] sm:$0xff]
  %v304 = vld [vmem:[%s1 + $0x908] sm:$0xff]
  %v305 = vld [vmem:[%s1 + $0x910] sm:$0xff]
  %v306 = vld [vmem:[%s1 + $0x918] sm:$0xff]
  %v307 = vld [vmem:[%s1 + $0x920] sm:$0xff]
  %v308 = vld [vmem:[%s1 + $0x928] sm:$0xff]
  %v309 = vld [vmem:[%s1 + $0x930] sm:$0xff]
  %v310 = vld [vmem:[%s1 + $0x938] sm:$0xff]
  %v311 = vld [vmem:[%s1 + $0x940] sm:$0xff]
  %v312 = vld [vmem:[%s1 + $0x948] sm:$0xff]
  %v313 = vld [vmem:[%s1 + $0x950] sm:$0xff]
  %v314 = vld [vmem:[%s1 + $0x958] sm:$0xff]
  %v315 = vld [vmem:[%s1 + $0x960] sm:$0xff]
  %v316 = vld [vmem:[%s1 + $0x968] sm:$0xff]
  %v317 = vld [vmem:[%s1 + $0x970] sm:$0xff]
  %v318 = vld [vmem:[%s1 + $0x978] sm:$0xff]
  %v319 = vld [vmem:[%s1 + $0x980] sm:$0xff]
  %v320 = vld [vmem:[%s1 + $0x988] sm:$0xff]
  %v321 = vld [vmem:[%s1 + $0x990] sm:$0xff]
  %v322 = vld [vmem:[%s1 + $0x998] sm:$0xff]
  %v323 = vld [vmem:[%s1 + $0x9a0] sm:$0xff]
  %v324 = vld [vmem:[%s1 + $0x9a8] sm:$0xff]
  %v325 = vld [vmem:[%s1 + $0x9b0] sm:$0xff]
  %v326 = vld [vmem:[%s1 + $0x9b8] sm:$0xff]
  %v327 = vld [vmem:[%s1 + $0x9c0] sm:$0xff]
  %v328 = vld [vmem:[%s1 + $0x9c8] sm:$0xff]
  %v329 = vld [vmem:[%s1 + $0x9d0] sm:$0xff]
  %v330 = vld [vmem:[%s1 + $0x9d8] sm:$0xff]
  %v331 = vld [vmem:[%s1 + $0x9e0] sm:$0xff]
  %v332 = vld [vmem:[%s1 + $0x9e8] sm:$0xff]
  %v333 = vld [vmem:[%s1 + $0x9f0] sm:$0xff]
  %v334 = vld [vmem:[%s1 + $0x9f8] sm:$0xff]
  %v335 = vld [vmem:[%s1 + $0xa00] sm:$0xff]
  %v336 = vld [vmem:[%s1 + $0xa08] sm:$0xff]
  %v337 = vld [vmem:[%s1 + $0xa10] sm:$0xff]
  %v338 = vld [vmem:[%s1 + $0xa18] sm:$0xff]
  %v339 = vld [vmem:[%s1 + $0xa20] sm:$0xff]
  %v340 = vld [vmem:[%s1 + $0xa28] sm:$0xff]
  %v341 = vld [vmem:[%s1 + $0xa30] sm:$0xff]
  %v342 = vld [vmem:[%s1 + $0xa38] sm:$0xff]
  %v343 = vld [vmem:[%s1 + $0xa40] sm:$0xff]
  %v344 = vld [vmem:[%s1 + $0xa48] sm:$0xff]
  %v345 = vld [vmem:[%s1 + $0xa50] sm:$0xff]
  %v346 = vld [vmem:[%s1 + $0xa58] sm:$0xff]
  %v347 = vld [vmem:[%s1 + $0xa60] sm:$0xff]
  %v348 = vld [vmem:[%s1 + $0xa68] sm:$0xff]
  %v349 = vld [vmem:[%s1 + $0xa70] sm:$0xff]
  %v350 = vld [vmem:[%s1 + $0xa78] sm:$0xff]
  %v351 = vld [vmem:[%s1 + $0xa80] sm:$0xff]
  %v352 = vld [vmem:[%s1 + $0xa88] sm:$0xff]
  %v353 = vld [vmem:[%s1 + $0xa90] sm:$0xff]
  %v354 = vld [vmem:[%s1 + $0xa98] sm:$0xff]
  %v355 = vld [vmem:[%s1 + $0xaa0] sm:$0xff]
  %v356 = vld [vmem:[%s1 + $0xaa8] sm:$0xff]
  %v357 = vld [vmem:[%s1 + $0xab0] sm:$0xff]
  %v358 = vld [vmem:[%s1 + $0xab8] sm:$0xff]
  %v359 = vld [vmem:[%s1 + $0xac0] sm:$0xff]
  %v360 = vld [vmem:[%s1 + $0xac8] sm:$0xff]
  %v361 = vld [vmem:[%s1 + $0xad0] sm:$0xff]
  %v362 = vld [vmem:[%s1 + $0xad8] sm:$0xff]
  %v363 = vld [vmem:[%s1 + $0xae0] sm:$0xff]
  %v364 = vld [vmem:[%s1 + $0xae8] sm:$0xff]
  %v365 = vld [vmem:[%s1 + $0xaf0] sm:$0xff]
  %v366 = vld [vmem:[%s1 + $0xaf8] sm:$0xff]
  %v367 = vld [vmem:[%s1 + $0xb00] sm:$0xff]
  %v368 = vld [vmem:[%s1 + $0xb08] sm:$0xff]
  %v369 = vld [vmem:[%s1 + $0xb10] sm:$0xff]
  %v370 = vld [vmem:[%s1 + $0xb18] sm:$0xff]
  %v371 = vld [vmem:[%s1 + $0xb20] sm:$0xff]
  %v372 = vld [vmem:[%s1 + $0xb28] sm:$0xff]
  %v373 = vld [vmem:[%s1 + $0xb30] sm:$0xff]
  %v374 = vld [vmem:[%s1 + $0xb38] sm:$0xff]
  %v375 = vld [vmem:[%s1 + $0xb40] sm:$0xff]
  %v376 = vld [vmem:[%s1 + $0xb48] sm:$0xff]
  %v377 = vld [vmem:[%s1 + $0xb50] sm:$0xff]
  %v378 = vld [vmem:[%s1 + $0xb58] sm:$0xff]
  %v379 = vld [vmem:[%s1 + $0xb60] sm:$0xff]
  %v380 = vld [vmem:[%s1 + $0xb68] sm:$0xff]
  %v381 = vld [vmem:[%s1 + $0xb70] sm:$0xff]
  %v382 = vld [vmem:[%s1 + $0xb78] sm:$0xff]
  %v383 = vld [vmem:[%s1 + $0xb80] sm:$0xff]
  %v384 = vld [vmem:[%s1 + $0xb88] sm:$0xff]
  %v385 = vld [vmem:[%s1 + $0xb90] sm:$0xff]
  %v386 = vld [vmem:[%s1 + $0xb98] sm:$0xff]
  %v387 = vld [vmem:[%s1 + $0xba0] sm:$0xff]
  %v388 = vld [vmem:[%s1 + $0xba8] sm:$0xff]
  %v389 = vld [vmem:[%s1 + $0xbb0] sm:$0xff]
  %v390 = vld [vmem:[%s1 + $0xbb8] sm:$0xff]
  %v391 = vld [vmem:[%s1 + $0xbc0] sm:$0xff]
  %v392 = vld [vmem:[%s1 + $0xbc8] sm:$0xff]
  %v393 = vld [vmem:[%s1 + $0xbd0] sm:$0xff]
  %v394 = vld [vmem:[%s1 + $0xbd8] sm:$0xff]
  %v395 = vld [vmem:[%s1 + $0xbe0] sm:$0xff]
  %v396 = vld [vmem:[%s1 + $0xbe8] sm:$0xff]
  %v397 = vld [vmem:[%s1 + $0xbf0] sm:$0xff]
  %v398 = vld [vmem:[%s1 + $0xbf8] sm:$0xff]
  %v399 = vld [vmem:[%s1 + $0xc00] sm:$0xff]
  %v400 = vld [vmem:[%s1 + $0xc08] sm:$0xff]
  %v401 = vld [vmem:[%s1 + $0xc10] sm:$0xff]
  %v402 = vld [vmem:[%s1 + $0xc18] sm:$0xff]
  %v403 = vld [vmem:[%s1 + $0xc20] sm:$0xff]
  %v404 = vld [vmem:[%s1 + $0xc28] sm:$0xff]
  %v405 = vld [vmem:[%s1 + $0xc30] sm:$0xff]
  %v406 = vld [vmem:[%s1 + $0xc38] sm:$0xff]
  %v407 = vld [vmem:[%s1 + $0xc40] sm:$0xff]
  %v408 = vld [vmem:[%s1 + $0xc48] sm:$0xff]
  %v409 = vld [vmem:[%s1 + $0xc50] sm:$0xff]
  %v410 = vld [vmem:[%s1 + $0xc58] sm:$0xff]
  %v411 = vld [vmem:[%s1 + $0xc60] sm:$0xff]
  %v412 = vld [vmem:[%s1 + $0xc68] sm:$0xff]
  %v413 = vld [vmem:[%s1 + $0xc70] sm:$0xff]
  %v414 = vld [vmem:[%s1 + $0xc78] sm:$0xff]
  %v415 = vld [vmem:[%s1 + $0xc80] sm:$0xff]
  %v416 = vld [vmem:[%s1 + $0xc88] sm:$0xff]
  %v417 = vld [vmem:[%s1 + $0xc90] sm:$0xff]
  %v418 = vld [vmem:[%s1 + $0xc98] sm:$0xff]
  %v419 = vld [vmem:[%s1 + $0xca0] sm:$0xff]
  %v420 = vld [vmem:[%s1 + $0xca8] sm:$0xff]
  %v421 = vld [vmem:[%s1 + $0xcb0] sm:$0xff]
  %v422 = vld [vmem:[%s1 + $0xcb8] sm:$0xff]
  %v423 = vld [vmem:[%s1 + $0xcc0] sm:$0xff]
  %v424 = vld [vmem:[%s1 + $0xcc8] sm:$0xff]
  %v425 = vld [vmem:[%s1 + $0xcd0] sm:$0xff]
  %v426 = vld [vmem:[%s1 + $0xcd8] sm:$0xff]
  %v427 = vld [vmem:[%s1 + $0xce0] sm:$0xff]
  %v428 = vld [vmem:[%s1 + $0xce8] sm:$0xff]
  %v429 = vld [vmem:[%s1 + $0xcf0] sm:$0xff]
  %v430 = vld [vmem:[%s1 + $0xcf8] sm:$0xff]
  %v431 = vld [vmem:[%s1 + $0xd00] sm:$0xff]
  %v432 = vld [vmem:[%s1 + $0xd08] sm:$0xff]
  %v433 = vld [vmem:[%s1 + $0xd10] sm:$0xff]
  %v434 = vld [vmem:[%s1 + $0xd18] sm:$0xff]
  %v435 = vld [vmem:[%s1 + $0xd20] sm:$0xff]
  %v436 = vld [vmem:[%s1 + $0xd28] sm:$0xff]
  %v437 = vld [vmem:[%s1 + $0xd30] sm:$0xff]
  %v438 = vld [vmem:[%s1 + $0xd38] sm:$0xff]
  %v439 = vld [vmem:[%s1 + $0xd40] sm:$0xff]
  %v440 = vld [vmem:[%s1 + $0xd48] sm:$0xff]
  %v441 = vld [vmem:[%s1 + $0xd50] sm:$0xff]
  %v442 = vld [vmem:[%s1 + $0xd58] sm:$0xff]
  %v443 = vld [vmem:[%s1 + $0xd60] sm:$0xff]
  %v444 = vld [vmem:[%s1 + $0xd68] sm:$0xff]
  %v445 = vld [vmem:[%s1 + $0xd70] sm:$0xff]
  %v446 = vld [vmem:[%s1 + $0xd78] sm:$0xff]
  %v447 = vld [vmem:[%s1 + $0xd80] sm:$0xff]
  %v448 = vld [vmem:[%s1 + $0xd88] sm:$0xff]
  %v449 = vld [vmem:[%s1 + $0xd90] sm:$0xff]
  %v450 = vld [vmem:[%s1 + $0xd98] sm:$0xff]
  %v451 = vld [vmem:[%s1 + $0xda0] sm:$0xff]
  %v452 = vld [vmem:[%s1 + $0xda8] sm:$0xff]
  %v453 = vld [vmem:[%s1 + $0xdb0] sm:$0xff]
  %v454 = vld [vmem:[%s1 + $0xdb8] sm:$0xff]
  %v455 = vld [vmem:[%s1 + $0xdc0] sm:$0xff]
  %v456 = vld [vmem:[%s1 + $0xdc8] sm:$0xff]
  %v457 = vld [vmem:[%s1 + $0xdd0] sm:$0xff]
  %v458 = vld [vmem:[%s1 + $0xdd8] sm:$0xff]
  %v459 = vld [vmem:[%s1 + $0xde0] sm:$0xff]
  %v460 = vld [vmem:[%s1 + $0xde8] sm:$0xff]
  %v461 = vld [vmem:[%s1 + $0xdf0] sm:$0xff]
  %v462 = vld [vmem:[%s1 + $0xdf8] sm:$0xff]
  %v463 = vld [vmem:[%s1 + $0xe00] sm:$0xff]
  %v464 = vld [vmem:[%s1 + $0xe08] sm:$0xff]
  %v465 = vld [vmem:[%s1 + $0xe10] sm:$0xff]
  %v466 = vld [vmem:[%s1 + $0xe18] sm:$0xff]
  %v467 = vld [vmem:[%s1 + $0xe20] sm:$0xff]
  %v468 = vld [vmem:[%s1 + $0xe28] sm:$0xff]
  %v469 = vld [vmem:[%s1 + $0xe30] sm:$0xff]
  %v470 = vld [vmem:[%s1 + $0xe38] sm:$0xff]
  %v471 = vld [vmem:[%s1 + $0xe40] sm:$0xff]
  %v472 = vld [vmem:[%s1 + $0xe48] sm:$0xff]
  %v473 = vld [vmem:[%s1 + $0xe50] sm:$0xff]
  %v474 = vld [vmem:[%s1 + $0xe58] sm:$0xff]
  %v475 = vld [vmem:[%s1 + $0xe60] sm:$0xff]
  %v476 = vld [vmem:[%s1 + $0xe68] sm:$0xff]
  %v477 = vld [vmem:[%s1 + $0xe70] sm:$0xff]
  %v478 = vld [vmem:[%s1 + $0xe78] sm:$0xff]
  %v479 = vld [vmem:[%s1 + $0xe80] sm:$0xff]
  %v480 = vld [vmem:[%s1 + $0xe88] sm:$0xff]
  %v481 = vld [vmem:[%s1 + $0xe90] sm:$0xff]
  %v482 = vld [vmem:[%s1 + $0xe98] sm:$0xff]
  %v483 = vld [vmem:[%s1 + $0xea0] sm:$0xff]
  %v484 = vld [vmem:[%s1 + $0xea8] sm:$0xff]
  %v485 = vld [vmem:[%s1 + $0xeb0] sm:$0xff]
  %v486 = vld [vmem:[%s1 + $0xeb8] sm:$0xff]
  %v487 = vld [vmem:[%s1 + $0xec0] sm:$0xff]
  %v488 = vld [vmem:[%s1 + $0xec8] sm:$0xff]
  %v489 = vld [vmem:[%s1 + $0xed0] sm:$0xff]
  %v490 = vld [vmem:[%s1 + $0xed8] sm:$0xff]
  %v491 = vld [vmem:[%s1 + $0xee0] sm:$0xff]
  %v492 = vld [vmem:[%s1 + $0xee8] sm:$0xff]
  %v493 = vld [vmem:[%s1 + $0xef0] sm:$0xff]
  %v494 = vld [vmem:[%s1 + $0xef8] sm:$0xff]
  %v495 = vld [vmem:[%s1 + $0xf00] sm:$0xff]
  %v496 = vld [vmem:[%s1 + $0xf08] sm:$0xff]
  %v497 = vld [vmem:[%s1 + $0xf10] sm:$0xff]
  %v498 = vld [vmem:[%s1 + $0xf18] sm:$0xff]
  %v499 = vld [vmem:[%s1 + $0xf20] sm:$0xff]
  %v500 = vld [vmem:[%s1 + $0xf28] sm:$0xff]
  %v501 = vld [vmem:[%s1 + $0xf30] sm:$0xff]
  %v502 = vld [vmem:[%s1 + $0xf38] sm:$0xff]
  %v503 = vld [vmem:[%s1 + $0xf40] sm:$0xff]
  %v504 = vld [vmem:[%s1 + $0xf48] sm:$0xff]
  %v505 = vld [vmem:[%s1 + $0xf50] sm:$0xff]
  %v506 = vld [vmem:[%s1 + $0xf58] sm:$0xff]
  %v507 = vld [vmem:[%s1 + $0xf60] sm:$0xff]
  %v508 = vld [vmem:[%s1 + $0xf68] sm:$0xff]
  %v509 = vld [vmem:[%s1 + $0xf70] sm:$0xff]
  %v510 = vld [vmem:[%s1 + $0xf78] sm:$0xff]
  %v511 = vld [vmem:[%s1 + $0xf80] sm:$0xff]
  %v512 = vld [vmem:[%s1 + $0xf88] sm:$0xff]
  %v513 = vld [vmem:[%s1 + $0xf90] sm:$0xff]
  %v514 = vld [vmem:[%s1 + $0xf98] sm:$0xff]
  %v515 = vld [vmem:[%s1 + $0xfa0] sm:$0xff]
  %v516 = vld [vmem:[%s1 + $0xfa8] sm:$0xff]
  %v517 = vld [vmem:[%s1 + $0xfb0] sm:$0xff]
  %v518 = vld [vmem:[%s1 + $0xfb8] sm:$0xff]
  %v519 = vld [vmem:[%s1 + $0xfc0] sm:$0xff]
  %v520 = vld [vmem:[%s1 + $0xfc8] sm:$0xff]
  %v521 = vld [vmem:[%s1 + $0xfd0] sm:$0xff]
  %v522 = vld [vmem:[%s1 + $0xfd8] sm:$0xff]
  %v523 = vld [vmem:[%s1 + $0xfe0] sm:$0xff]
  %v524 = vld [vmem:[%s1 + $0xfe8] sm:$0xff]
  %v525 = vld [vmem:[%s1 + $0xff0] sm:$0xff]
  %v526 = vld [vmem:[%s1 + $0xff8] sm:$0xff]
  %v527 = vld [vmem:[%s1 + $0x1000] sm:$0xff]
  %v528 = vld [vmem:[%s1 + $0x1008] sm:$0xff]
  %v529 = vld [vmem:[%s1 + $0x1010] sm:$0xff]
  %v530 = vld [vmem:[%s1 + $0x1018] sm:$0xff]
  %v531 = vld [vmem:[%s1 + $0x1020] sm:$0xff]
  %v532 = vld [vmem:[%s1 + $0x1028] sm:$0xff]
  %v533 = vld [vmem:[%s1 + $0x1030] sm:$0xff]
  %v534 = vld [vmem:[%s1 + $0x1038] sm:$0xff]
  %v535 = vld [vmem:[%s1 + $0x1040] sm:$0xff]
  %v536 = vld [vmem:[%s1 + $0x1048] sm:$0xff]
  %v537 = vld [vmem:[%s1 + $0x1050] sm:$0xff]
  %v538 = vld [vmem:[%s1 + $0x1058] sm:$0xff]
  %v539 = vld [vmem:[%s1 + $0x1060] sm:$0xff]
  %v540 = vld [vmem:[%s1 + $0x1068] sm:$0xff]
  %v541 = vld [vmem:[%s1 + $0x1070] sm:$0xff]
  %v542 = vld [vmem:[%s1 + $0x1078] sm:$0xff]
  %v543 = vld [vmem:[%s1 + $0x1080] sm:$0xff]
  %v544 = vld [vmem:[%s1 + $0x1088] sm:$0xff]
  %v545 = vld [vmem:[%s1 + $0x1090] sm:$0xff]
  %v546 = vld [vmem:[%s1 + $0x1098] sm:$0xff]
  %v547 = vld [vmem:[%s1 + $0x10a0] sm:$0xff]
  %v548 = vld [vmem:[%s1 + $0x10a8] sm:$0xff]
  %v549 = vld [vmem:[%s1 + $0x10b0] sm:$0xff]
  %v550 = vld [vmem:[%s1 + $0x10b8] sm:$0xff]
  %v551 = vld [vmem:[%s1 + $0x10c0] sm:$0xff]
  %v552 = vld [vmem:[%s1 + $0x10c8] sm:$0xff]
  %v553 = vld [vmem:[%s1 + $0x10d0] sm:$0xff]
  %v554 = vld [vmem:[%s1 + $0x10d8] sm:$0xff]
  %v555 = vld [vmem:[%s1 + $0x10e0] sm:$0xff]
  %v556 = vld [vmem:[%s1 + $0x10e8] sm:$0xff]
  %v557 = vld [vmem:[%s1 + $0x10f0] sm:$0xff]
  %v558 = vld [vmem:[%s1 + $0x10f8] sm:$0xff]
  %v559 = vld [vmem:[%s1 + $0x1100] sm:$0xff]
  %v560 = vld [vmem:[%s1 + $0x1108] sm:$0xff]
  %v561 = vld [vmem:[%s1 + $0x1110] sm:$0xff]
  %v562 = vld [vmem:[%s1 + $0x1118] sm:$0xff]
  %v563 = vld [vmem:[%s1 + $0x1120] sm:$0xff]
  %v564 = vld [vmem:[%s1 + $0x1128] sm:$0xff]
  %v565 = vld [vmem:[%s1 + $0x1130] sm:$0xff]
  %v566 = vld [vmem:[%s1 + $0x1138] sm:$0xff]
  %v567 = vld [vmem:[%s1 + $0x1140] sm:$0xff]
  %v568 = vld [vmem:[%s1 + $0x1148] sm:$0xff]
  %v569 = vld [vmem:[%s1 + $0x1150] sm:$0xff]
  %v570 = vld [vmem:[%s1 + $0x1158] sm:$0xff]
  %v571 = vld [vmem:[%s1 + $0x1160] sm:$0xff]
  %v572 = vld [vmem:[%s1 + $0x1168] sm:$0xff]
  %v573 = vld [vmem:[%s1 + $0x1170] sm:$0xff]
  %v574 = vld [vmem:[%s1 + $0x1178] sm:$0xff]
  %v575 = vld [vmem:[%s1 + $0x1180] sm:$0xff]
  %v576 = vld [vmem:[%s1 + $0x1188] sm:$0xff]
  %v577 = vld [vmem:[%s1 + $0x1190] sm:$0xff]
  %v578 = vld [vmem:[%s1 + $0x1198] sm:$0xff]
  %v579 = vld [vmem:[%s1 + $0x11a0] sm:$0xff]
  %v580 = vld [vmem:[%s1 + $0x11a8] sm:$0xff]
  %v581 = vld [vmem:[%s1 + $0x11b0] sm:$0xff]
  %v582 = vld [vmem:[%s1 + $0x11b8] sm:$0xff]
  %v583 = vld [vmem:[%s1 + $0x11c0] sm:$0xff]
  %v584 = vld [vmem:[%s1 + $0x11c8] sm:$0xff]
  %v585 = vld [vmem:[%s1 + $0x11d0] sm:$0xff]
  %v586 = vld [vmem:[%s1 + $0x11d8] sm:$0xff]
  %v587 = vld [vmem:[%s1 + $0x11e0] sm:$0xff]
  %v588 = vld [vmem:[%s1 + $0x11e8] sm:$0xff]
  %v589 = vld [vmem:[%s1 + $0x11f0] sm:$0xff]
  %v590 = vld [vmem:[%s1 + $0x11f8] sm:$0xff]
  %v591 = vld [vmem:[%s1 + $0x1200] sm:$0xff]
  %v592 = vld [vmem:[%s1 + $0x1208] sm:$0xff]
  %v593 = vld [vmem:[%s1 + $0x1210] sm:$0xff]
  %v594 = vld [vmem:[%s1 + $0x1218] sm:$0xff]
  %v595 = vld [vmem:[%s1 + $0x1220] sm:$0xff]
  %v596 = vld [vmem:[%s1 + $0x1228] sm:$0xff]
  %v597 = vld [vmem:[%s1 + $0x1230] sm:$0xff]
  %v598 = vld [vmem:[%s1 + $0x1238] sm:$0xff]
  %v599 = vld [vmem:[%s1 + $0x1240] sm:$0xff]
  %v600 = vld [vmem:[%s1 + $0x1248] sm:$0xff]
  %v601 = vld [vmem:[%s1 + $0x1250] sm:$0xff]
  %v602 = vld [vmem:[%s1 + $0x1258] sm:$0xff]
  %v603 = vld [vmem:[%s1 + $0x1260] sm:$0xff]
  %v604 = vld [vmem:[%s1 + $0x1268] sm:$0xff]
  %v605 = vld [vmem:[%s1 + $0x1270] sm:$0xff]
  %v606 = vld [vmem:[%s1 + $0x1278] sm:$0xff]
  %v607 = vld [vmem:[%s1 + $0x1280] sm:$0xff]
  %v608 = vld [vmem:[%s1 + $0x1288] sm:$0xff]
  %v609 = vld [vmem:[%s1 + $0x1290] sm:$0xff]
  %v610 = vld [vmem:[%s1 + $0x1298] sm:$0xff]
  %v611 = vld [vmem:[%s1 + $0x12a0] sm:$0xff]
  %v612 = vld [vmem:[%s1 + $0x12a8] sm:$0xff]
  %v613 = vld [vmem:[%s1 + $0x12b0] sm:$0xff]
  %v614 = vld [vmem:[%s1 + $0x12b8] sm:$0xff]
  %v615 = vld [vmem:[%s1 + $0x12c0] sm:$0xff]
  %v616 = vld [vmem:[%s1 + $0x12c8] sm:$0xff]
  %v617 = vld [vmem:[%s1 + $0x12d0] sm:$0xff]
  %v618 = vld [vmem:[%s1 + $0x12d8] sm:$0xff]
  %v619 = vld [vmem:[%s1 + $0x12e0] sm:$0xff]
  %v620 = vld [vmem:[%s1 + $0x12e8] sm:$0xff]
  %v621 = vld [vmem:[%s1 + $0x12f0] sm:$0xff]
  %v622 = vld [vmem:[%s1 + $0x12f8] sm:$0xff]
  %v623 = vld [vmem:[%s1 + $0x1300] sm:$0xff]
  %v624 = vld [vmem:[%s1 + $0x1308] sm:$0xff]
  %v625 = vld [vmem:[%s1 + $0x1310] sm:$0xff]
  %v626 = vld [vmem:[%s1 + $0x1318] sm:$0xff]
  %v627 = vld [vmem:[%s1 + $0x1320] sm:$0xff]
  %v628 = vld [vmem:[%s1 + $0x1328] sm:$0xff]
  %v629 = vld [vmem:[%s1 + $0x1330] sm:$0xff]
  %v630 = vld [vmem:[%s1 + $0x1338] sm:$0xff]
  %v631 = vld [vmem:[%s1 + $0x1340] sm:$0xff]
  %v632 = vld [vmem:[%s1 + $0x1348] sm:$0xff]
  %v633 = vld [vmem:[%s1 + $0x1350] sm:$0xff]
  %v634 = vld [vmem:[%s1 + $0x1358] sm:$0xff]
  %v635 = vld [vmem:[%s1 + $0x1360] sm:$0xff]
  %v636 = vld [vmem:[%s1 + $0x1368] sm:$0xff]
  %v637 = vld [vmem:[%s1 + $0x1370] sm:$0xff]
  %v638 = vld [vmem:[%s1 + $0x1378] sm:$0xff]
  %v639 = vld [vmem:[%s1 + $0x1380] sm:$0xff]
  %v640 = vld [vmem:[%s1 + $0x1388] sm:$0xff]
  %v641 = vld [vmem:[%s1 + $0x1390] sm:$0xff]
  %v642 = vld [vmem:[%s1 + $0x1398] sm:$0xff]
  %v643 = vld [vmem:[%s1 + $0x13a0] sm:$0xff]
  %v644 = vld [vmem:[%s1 + $0x13a8] sm:$0xff]
  %v645 = vld [vmem:[%s1 + $0x13b0] sm:$0xff]
  %v646 = vld [vmem:[%s1 + $0x13b8] sm:$0xff]
  %v647 = vld [vmem:[%s1 + $0x13c0] sm:$0xff]
  %v648 = vld [vmem:[%s1 + $0x13c8] sm:$0xff]
  %v649 = vld [vmem:[%s1 + $0x13d0] sm:$0xff]
  %v650 = vld [vmem:[%s1 + $0x13d8] sm:$0xff]
  %v651 = vld [vmem:[%s1 + $0x13e0] sm:$0xff]
  %v652 = vld [vmem:[%s1 + $0x13e8] sm:$0xff]
  %v653 = vld [vmem:[%s1 + $0x13f0] sm:$0xff]
  %v654 = vld [vmem:[%s1 + $0x13f8] sm:$0xff]
  %v655 = vld [vmem:[%s1 + $0x1400] sm:$0xff]
  %v656 = vld [vmem:[%s1 + $0x1408] sm:$0xff]
  %v657 = vld [vmem:[%s1 + $0x1410] sm:$0xff]
  %v658 = vld [vmem:[%s1 + $0x1418] sm:$0xff]
  %v659 = vld [vmem:[%s1 + $0x1420] sm:$0xff]
  %v660 = vld [vmem:[%s1 + $0x1428] sm:$0xff]
  %v661 = vld [vmem:[%s1 + $0x1430] sm:$0xff]
  %v662 = vld [vmem:[%s1 + $0x1438] sm:$0xff]
  %v663 = vld [vmem:[%s0] sm:$0xff]
  %v664 = vld [vmem:[%s0 + $0x8] sm:$0xff]
  %v665 = vld [vmem:[%s0 + $0x10] sm:$0xff]
  %v666 = vld [vmem:[%s0 + $0x18] sm:$0xff]
  %v667 = vld [vmem:[%s0 + $0x20] sm:$0xff]
  %v668 = vld [vmem:[%s0 + $0x28] sm:$0xff]
  %v669 = vld [vmem:[%s0 + $0x30] sm:$0xff]
  %v670 = vld [vmem:[%s0 + $0x38] sm:$0xff]
  %v671 = vld [vmem:[%s0 + $0x40] sm:$0xff]
  %v672 = vld [vmem:[%s0 + $0x48] sm:$0xff]
  %v673 = vld [vmem:[%s0 + $0x50] sm:$0xf]
  %v674 = vld [vmem:[%s0 + $0x54] sm:$0xff]
  %v675 = vld [vmem:[%s0 + $0x5c] sm:$0xff]
  %v676 = vld [vmem:[%s0 + $0x64] sm:$0xff]
  %v677 = vld [vmem:[%s0 + $0x6c] sm:$0xff]
  %v678 = vld [vmem:[%s0 + $0x74] sm:$0xff]
  %v679 = vld [vmem:[%s0 + $0x7c] sm:$0xff]
  %v680 = vld [vmem:[%s0 + $0x84] sm:$0xff]
  %v681 = vld [vmem:[%s0 + $0x8c] sm:$0xff]
  %v682 = vld [vmem:[%s0 + $0x94] sm:$0xff]
  %v683 = vld [vmem:[%s0 + $0x9c] sm:$0xff]
  %v684 = vld [vmem:[%s0 + $0xa4] sm:$0xf]
  %v685 = vld [vmem:[%s0 + $0xa8] sm:$0xff]
  %v686 = vld [vmem:[%s0 + $0xb0] sm:$0xff]
  %v687 = vld [vmem:[%s0 + $0xb8] sm:$0xff]
  %v688 = vld [vmem:[%s0 + $0xc0] sm:$0xff]
  %v689 = vld [vmem:[%s0 + $0xc8] sm:$0xff]
  %v690 = vld [vmem:[%s0 + $0xd0] sm:$0xff]
  %v691 = vld [vmem:[%s0 + $0xd8] sm:$0xff]
  %v692 = vld [vmem:[%s0 + $0xe0] sm:$0xff]
  %v693 = vld [vmem:[%s0 + $0xe8] sm:$0xff]
  %v694 = vld [vmem:[%s0 + $0xf0] sm:$0xff]
  %v695 = vld [vmem:[%s0 + $0xf8] sm:$0xf]
  %v696 = vld [vmem:[%s0 + $0xfc] sm:$0xff]
  %v697 = vld [vmem:[%s0 + $0x104] sm:$0xff]
  %v698 = vld [vmem:[%s0 + $0x10c] sm:$0xff]
  %v699 = vld [vmem:[%s0 + $0x114] sm:$0xff]
  %v700 = vld [vmem:[%s0 + $0x11c] sm:$0xff]
  %v701 = vld [vmem:[%s0 + $0x124] sm:$0xff]
  %v702 = vld [vmem:[%s0 + $0x12c] sm:$0xff]
  %v703 = vld [vmem:[%s0 + $0x134] sm:$0xff]
  %v704 = vld [vmem:[%s0 + $0x13c] sm:$0xff]
  %v705 = vld [vmem:[%s0 + $0x144] sm:$0xff]
  %v706 = vld [vmem:[%s0 + $0x14c] sm:$0xf]
  %v707 = vld [vmem:[%s2] sm:$0xf]
  %v709 = vperm.slane %v707, 0
  %v710 = vperm.slane %v707, 1
  %v711 = vperm.slane %v707, 2
  %v712 = vperm.slane %v707, 3
  %v761 = vunpack.c.l.b16 %v663
  %v762 = vunpack.c.h.b16 %v663
  %v763 = vunpack.c.l.b16 %v664
  %v764 = vunpack.c.h.b16 %v664
  %v765 = vunpack.c.l.b16 %v665
  %v766 = vunpack.c.h.b16 %v665
  %v767 = vunpack.c.l.b16 %v666
  %v768 = vunpack.c.h.b16 %v666
  %v769 = vunpack.c.l.b16 %v667
  %v770 = vunpack.c.h.b16 %v667
  %v771 = vunpack.c.l.b16 %v668
  %v772 = vunpack.c.h.b16 %v668
  %v773 = vunpack.c.l.b16 %v669
  %v774 = vunpack.c.h.b16 %v669
  %v775 = vunpack.c.l.b16 %v670
  %v776 = vunpack.c.h.b16 %v670
  %v777 = vunpack.c.l.b16 %v671
  %v778 = vunpack.c.h.b16 %v671
  %v779 = vunpack.c.l.b16 %v672
  %v780 = vunpack.c.h.b16 %v672
  %v781 = vunpack.c.l.b16 %v673
  %v782 = vunpack.c.l.b16 %v674
  %v783 = vunpack.c.h.b16 %v674
  %v784 = vunpack.c.l.b16 %v675
  %v785 = vunpack.c.h.b16 %v675
  %v786 = vunpack.c.l.b16 %v676
  %v787 = vunpack.c.h.b16 %v676
  %v788 = vunpack.c.l.b16 %v677
  %v789 = vunpack.c.h.b16 %v677
  %v790 = vunpack.c.l.b16 %v678
  %v791 = vunpack.c.h.b16 %v678
  %v792 = vunpack.c.l.b16 %v679
  %v793 = vunpack.c.h.b16 %v679
  %v794 = vunpack.c.l.b16 %v680
  %v795 = vunpack.c.h.b16 %v680
  %v796 = vunpack.c.l.b16 %v681
  %v797 = vunpack.c.h.b16 %v681
  %v798 = vunpack.c.l.b16 %v682
  %v799 = vunpack.c.h.b16 %v682
  %v800 = vunpack.c.l.b16 %v683
  %v801 = vunpack.c.h.b16 %v683
  %v802 = vunpack.c.l.b16 %v684
  %v803 = vunpack.c.l.b16 %v685
  %v804 = vunpack.c.h.b16 %v685
  %v805 = vunpack.c.l.b16 %v686
  %v806 = vunpack.c.h.b16 %v686
  %v807 = vunpack.c.l.b16 %v687
  %v808 = vunpack.c.h.b16 %v687
  %v809 = vunpack.c.l.b16 %v688
  %v810 = vunpack.c.h.b16 %v688
  %v811 = vunpack.c.l.b16 %v689
  %v812 = vunpack.c.h.b16 %v689
  %v813 = vunpack.c.l.b16 %v690
  %v814 = vunpack.c.h.b16 %v690
  %v815 = vunpack.c.l.b16 %v691
  %v816 = vunpack.c.h.b16 %v691
  %v817 = vunpack.c.l.b16 %v692
  %v818 = vunpack.c.h.b16 %v692
  %v819 = vunpack.c.l.b16 %v693
  %v820 = vunpack.c.h.b16 %v693
  %v821 = vunpack.c.l.b16 %v694
  %v822 = vunpack.c.h.b16 %v694
  %v823 = vunpack.c.l.b16 %v695
  %v824 = vunpack.c.l.b16 %v696
  %v825 = vunpack.c.h.b16 %v696
  %v826 = vunpack.c.l.b16 %v697
  %v827 = vunpack.c.h.b16 %v697
  %v828 = vunpack.c.l.b16 %v698
  %v829 = vunpack.c.h.b16 %v698
  %v830 = vunpack.c.l.b16 %v699
  %v831 = vunpack.c.h.b16 %v699
  %v832 = vunpack.c.l.b16 %v700
  %v833 = vunpack.c.h.b16 %v700
  %v834 = vunpack.c.l.b16 %v701
  %v835 = vunpack.c.h.b16 %v701
  %v836 = vunpack.c.l.b16 %v702
  %v837 = vunpack.c.h.b16 %v702
  %v838 = vunpack.c.l.b16 %v703
  %v839 = vunpack.c.h.b16 %v703
  %v840 = vunpack.c.l.b16 %v704
  %v841 = vunpack.c.h.b16 %v704
  %v842 = vunpack.c.l.b16 %v705
  %v843 = vunpack.c.h.b16 %v705
  %v844 = vunpack.c.l.b16 %v706
  %v845 = vpack.c.b16 %v782, %v761
  %v846 = vpack.c.b16 %v783, %v762
  %v847 = vpack.c.b16 %v784, %v763
  %v848 = vpack.c.b16 %v785, %v764
  %v849 = vpack.c.b16 %v786, %v765
  %v850 = vpack.c.b16 %v787, %v766
  %v851 = vpack.c.b16 %v788, %v767
  %v852 = vpack.c.b16 %v789, %v768
  %v853 = vpack.c.b16 %v790, %v769
  %v854 = vpack.c.b16 %v791, %v770
  %v855 = vpack.c.b16 %v792, %v771
  %v856 = vpack.c.b16 %v793, %v772
  %v857 = vpack.c.b16 %v794, %v773
  %v858 = vpack.c.b16 %v795, %v774
  %v859 = vpack.c.b16 %v796, %v775
  %v860 = vpack.c.b16 %v797, %v776
  %v861 = vpack.c.b16 %v798, %v777
  %v862 = vpack.c.b16 %v799, %v778
  %v863 = vpack.c.b16 %v800, %v779
  %v864 = vpack.c.b16 %v801, %v780
  %v865 = vpack.c.b16 %v802, %v781
  %v866 = vpack.c.b16 %v824, %v803
  %v867 = vpack.c.b16 %v825, %v804
  %v868 = vpack.c.b16 %v826, %v805
  %v869 = vpack.c.b16 %v827, %v806
  %v870 = vpack.c.b16 %v828, %v807
  %v871 = vpack.c.b16 %v829, %v808
  %v872 = vpack.c.b16 %v830, %v809
  %v873 = vpack.c.b16 %v831, %v810
  %v874 = vpack.c.b16 %v832, %v811
  %v875 = vpack.c.b16 %v833, %v812
  %v876 = vpack.c.b16 %v834, %v813
  %v877 = vpack.c.b16 %v835, %v814
  %v878 = vpack.c.b16 %v836, %v815
  %v879 = vpack.c.b16 %v837, %v816
  %v880 = vpack.c.b16 %v838, %v817
  %v881 = vpack.c.b16 %v839, %v818
  %v882 = vpack.c.b16 %v840, %v819
  %v883 = vpack.c.b16 %v841, %v820
  %v884 = vpack.c.b16 %v842, %v821
  %v885 = vpack.c.b16 %v843, %v822
  %v886 = vpack.c.b16 %v844, %v823
  %v1575 = vunpack.c.l.b16 %v15
  %v1576 = vunpack.c.h.b16 %v15
  %v1577 = vunpack.c.l.b16 %v16
  %v1578 = vunpack.c.h.b16 %v16
  %v1579 = vunpack.c.l.b16 %v17
  %v1580 = vunpack.c.h.b16 %v17
  %v1581 = vunpack.c.l.b16 %v18
  %v1582 = vunpack.c.h.b16 %v18
  %v1583 = vunpack.c.l.b16 %v19
  %v1584 = vunpack.c.h.b16 %v19
  %v1585 = vunpack.c.l.b16 %v20
  %v1586 = vunpack.c.h.b16 %v20
  %v1587 = vunpack.c.l.b16 %v21
  %v1588 = vunpack.c.h.b16 %v21
  %v1589 = vunpack.c.l.b16 %v22
  %v1590 = vunpack.c.h.b16 %v22
  %v1591 = vunpack.c.l.b16 %v23
  %v1592 = vunpack.c.h.b16 %v23
  %v1593 = vunpack.c.l.b16 %v24
  %v1594 = vunpack.c.h.b16 %v24
  %v1595 = vunpack.c.l.b16 %v25
  %v1596 = vunpack.c.h.b16 %v25
  %v1597 = vunpack.c.l.b16 %v26
  %v1598 = vunpack.c.h.b16 %v26
  %v1599 = vunpack.c.l.b16 %v27
  %v1600 = vunpack.c.h.b16 %v27
  %v1601 = vunpack.c.l.b16 %v28
  %v1602 = vunpack.c.h.b16 %v28
  %v1603 = vunpack.c.l.b16 %v29
  %v1604 = vunpack.c.h.b16 %v29
  %v1605 = vunpack.c.l.b16 %v30
  %v1606 = vunpack.c.h.b16 %v30
  %v1607 = vunpack.c.l.b16 %v31
  %v1608 = vunpack.c.h.b16 %v31
  %v1609 = vunpack.c.l.b16 %v32
  %v1610 = vunpack.c.h.b16 %v32
  %v1611 = vunpack.c.l.b16 %v33
  %v1612 = vunpack.c.h.b16 %v33
  %v1613 = vunpack.c.l.b16 %v34
  %v1614 = vunpack.c.h.b16 %v34
  %v1615 = vunpack.c.l.b16 %v35
  %v1616 = vunpack.c.h.b16 %v35
  %v1617 = vunpack.c.l.b16 %v36
  %v1618 = vunpack.c.h.b16 %v36
  %v1619 = vunpack.c.l.b16 %v37
  %v1620 = vunpack.c.h.b16 %v37
  %v1621 = vunpack.c.l.b16 %v38
  %v1622 = vunpack.c.h.b16 %v38
  %v1623 = vunpack.c.l.b16 %v39
  %v1624 = vunpack.c.h.b16 %v39
  %v1625 = vunpack.c.l.b16 %v40
  %v1626 = vunpack.c.h.b16 %v40
  %v1627 = vunpack.c.l.b16 %v41
  %v1628 = vunpack.c.h.b16 %v41
  %v1629 = vunpack.c.l.b16 %v42
  %v1630 = vunpack.c.h.b16 %v42
  %v1631 = vunpack.c.l.b16 %v43
  %v1632 = vunpack.c.h.b16 %v43
  %v1633 = vunpack.c.l.b16 %v44
  %v1634 = vunpack.c.h.b16 %v44
  %v1635 = vunpack.c.l.b16 %v45
  %v1636 = vunpack.c.h.b16 %v45
  %v1637 = vunpack.c.l.b16 %v46
  %v1638 = vunpack.c.h.b16 %v46
  %v1639 = vunpack.c.l.b16 %v47
  %v1640 = vunpack.c.h.b16 %v47
  %v1641 = vunpack.c.l.b16 %v48
  %v1642 = vunpack.c.h.b16 %v48
  %v1643 = vunpack.c.l.b16 %v49
  %v1644 = vunpack.c.h.b16 %v49
  %v1645 = vunpack.c.l.b16 %v50
  %v1646 = vunpack.c.h.b16 %v50
  %v1647 = vunpack.c.l.b16 %v51
  %v1648 = vunpack.c.h.b16 %v51
  %v1649 = vunpack.c.l.b16 %v52
  %v1650 = vunpack.c.h.b16 %v52
  %v1651 = vunpack.c.l.b16 %v53
  %v1652 = vunpack.c.h.b16 %v53
  %v1653 = vunpack.c.l.b16 %v54
  %v1654 = vunpack.c.h.b16 %v54
  %v1655 = vunpack.c.l.b16 %v55
  %v1656 = vunpack.c.h.b16 %v55
  %v1657 = vunpack.c.l.b16 %v56
  %v1658 = vunpack.c.h.b16 %v56
  %v1659 = vunpack.c.l.b16 %v57
  %v1660 = vunpack.c.h.b16 %v57
  %v1661 = vunpack.c.l.b16 %v58
  %v1662 = vunpack.c.h.b16 %v58
  %v1663 = vunpack.c.l.b16 %v59
  %v1664 = vunpack.c.h.b16 %v59
  %v1665 = vunpack.c.l.b16 %v60
  %v1666 = vunpack.c.h.b16 %v60
  %v1667 = vunpack.c.l.b16 %v61
  %v1668 = vunpack.c.h.b16 %v61
  %v1669 = vunpack.c.l.b16 %v62
  %v1670 = vunpack.c.h.b16 %v62
  %v1671 = vunpack.c.l.b16 %v63
  %v1672 = vunpack.c.h.b16 %v63
  %v1673 = vunpack.c.l.b16 %v64
  %v1674 = vunpack.c.h.b16 %v64
  %v1675 = vunpack.c.l.b16 %v65
  %v1676 = vunpack.c.h.b16 %v65
  %v1677 = vunpack.c.l.b16 %v66
  %v1678 = vunpack.c.h.b16 %v66
  %v1679 = vunpack.c.l.b16 %v67
  %v1680 = vunpack.c.h.b16 %v67
  %v1681 = vunpack.c.l.b16 %v68
  %v1682 = vunpack.c.h.b16 %v68
  %v1683 = vunpack.c.l.b16 %v69
  %v1684 = vunpack.c.h.b16 %v69
  %v1685 = vunpack.c.l.b16 %v70
  %v1686 = vunpack.c.h.b16 %v70
  %v1687 = vunpack.c.l.b16 %v71
  %v1688 = vunpack.c.h.b16 %v71
  %v1689 = vunpack.c.l.b16 %v72
  %v1690 = vunpack.c.h.b16 %v72
  %v1691 = vunpack.c.l.b16 %v73
  %v1692 = vunpack.c.h.b16 %v73
  %v1693 = vunpack.c.l.b16 %v74
  %v1694 = vunpack.c.h.b16 %v74
  %v1695 = vunpack.c.l.b16 %v75
  %v1696 = vunpack.c.h.b16 %v75
  %v1697 = vunpack.c.l.b16 %v76
  %v1698 = vunpack.c.h.b16 %v76
  %v1699 = vunpack.c.l.b16 %v77
  %v1700 = vunpack.c.h.b16 %v77
  %v1701 = vunpack.c.l.b16 %v78
  %v1702 = vunpack.c.h.b16 %v78
  %v1703 = vunpack.c.l.b16 %v79
  %v1704 = vunpack.c.h.b16 %v79
  %v1705 = vunpack.c.l.b16 %v80
  %v1706 = vunpack.c.h.b16 %v80
  %v1707 = vunpack.c.l.b16 %v81
  %v1708 = vunpack.c.h.b16 %v81
  %v1709 = vunpack.c.l.b16 %v82
  %v1710 = vunpack.c.h.b16 %v82
  %v1711 = vunpack.c.l.b16 %v83
  %v1712 = vunpack.c.h.b16 %v83
  %v1713 = vunpack.c.l.b16 %v84
  %v1714 = vunpack.c.h.b16 %v84
  %v1715 = vunpack.c.l.b16 %v85
  %v1716 = vunpack.c.h.b16 %v85
  %v1717 = vunpack.c.l.b16 %v86
  %v1718 = vunpack.c.h.b16 %v86
  %v1719 = vunpack.c.l.b16 %v87
  %v1720 = vunpack.c.h.b16 %v87
  %v1721 = vunpack.c.l.b16 %v88
  %v1722 = vunpack.c.h.b16 %v88
  %v1723 = vunpack.c.l.b16 %v89
  %v1724 = vunpack.c.h.b16 %v89
  %v1725 = vunpack.c.l.b16 %v90
  %v1726 = vunpack.c.h.b16 %v90
  %v1727 = vunpack.c.l.b16 %v91
  %v1728 = vunpack.c.h.b16 %v91
  %v1729 = vunpack.c.l.b16 %v92
  %v1730 = vunpack.c.h.b16 %v92
  %v1731 = vunpack.c.l.b16 %v93
  %v1732 = vunpack.c.h.b16 %v93
  %v1733 = vunpack.c.l.b16 %v94
  %v1734 = vunpack.c.h.b16 %v94
  %v1735 = vunpack.c.l.b16 %v95
  %v1736 = vunpack.c.h.b16 %v95
  %v1737 = vunpack.c.l.b16 %v96
  %v1738 = vunpack.c.h.b16 %v96
  %v1739 = vunpack.c.l.b16 %v97
  %v1740 = vunpack.c.h.b16 %v97
  %v1741 = vunpack.c.l.b16 %v98
  %v1742 = vunpack.c.h.b16 %v98
  %v1743 = vunpack.c.l.b16 %v99
  %v1744 = vunpack.c.h.b16 %v99
  %v1745 = vunpack.c.l.b16 %v100
  %v1746 = vunpack.c.h.b16 %v100
  %v1747 = vunpack.c.l.b16 %v101
  %v1748 = vunpack.c.h.b16 %v101
  %v1749 = vunpack.c.l.b16 %v102
  %v1750 = vunpack.c.h.b16 %v102
  %v1751 = vunpack.c.l.b16 %v103
  %v1752 = vunpack.c.h.b16 %v103
  %v1753 = vunpack.c.l.b16 %v104
  %v1754 = vunpack.c.h.b16 %v104
  %v1755 = vunpack.c.l.b16 %v105
  %v1756 = vunpack.c.h.b16 %v105
  %v1757 = vunpack.c.l.b16 %v106
  %v1758 = vunpack.c.h.b16 %v106
  %v1759 = vunpack.c.l.b16 %v107
  %v1760 = vunpack.c.h.b16 %v107
  %v1761 = vunpack.c.l.b16 %v108
  %v1762 = vunpack.c.h.b16 %v108
  %v1763 = vunpack.c.l.b16 %v109
  %v1764 = vunpack.c.h.b16 %v109
  %v1765 = vunpack.c.l.b16 %v110
  %v1766 = vunpack.c.h.b16 %v110
  %v1767 = vunpack.c.l.b16 %v111
  %v1768 = vunpack.c.h.b16 %v111
  %v1769 = vunpack.c.l.b16 %v112
  %v1770 = vunpack.c.h.b16 %v112
  %v1771 = vunpack.c.l.b16 %v113
  %v1772 = vunpack.c.h.b16 %v113
  %v1773 = vunpack.c.l.b16 %v114
  %v1774 = vunpack.c.h.b16 %v114
  %v1775 = vunpack.c.l.b16 %v115
  %v1776 = vunpack.c.h.b16 %v115
  %v1777 = vunpack.c.l.b16 %v116
  %v1778 = vunpack.c.h.b16 %v116
  %v1779 = vunpack.c.l.b16 %v117
  %v1780 = vunpack.c.h.b16 %v117
  %v1781 = vunpack.c.l.b16 %v118
  %v1782 = vunpack.c.h.b16 %v118
  %v1783 = vunpack.c.l.b16 %v119
  %v1784 = vunpack.c.h.b16 %v119
  %v1785 = vunpack.c.l.b16 %v120
  %v1786 = vunpack.c.h.b16 %v120
  %v1787 = vunpack.c.l.b16 %v121
  %v1788 = vunpack.c.h.b16 %v121
  %v1789 = vunpack.c.l.b16 %v122
  %v1790 = vunpack.c.h.b16 %v122
  %v1791 = vunpack.c.l.b16 %v123
  %v1792 = vunpack.c.h.b16 %v123
  %v1793 = vunpack.c.l.b16 %v124
  %v1794 = vunpack.c.h.b16 %v124
  %v1795 = vunpack.c.l.b16 %v125
  %v1796 = vunpack.c.h.b16 %v125
  %v1797 = vunpack.c.l.b16 %v126
  %v1798 = vunpack.c.h.b16 %v126
  %v1799 = vunpack.c.l.b16 %v127
  %v1800 = vunpack.c.h.b16 %v127
  %v1801 = vunpack.c.l.b16 %v128
  %v1802 = vunpack.c.h.b16 %v128
  %v1803 = vunpack.c.l.b16 %v129
  %v1804 = vunpack.c.h.b16 %v129
  %v1805 = vunpack.c.l.b16 %v130
  %v1806 = vunpack.c.h.b16 %v130
  %v1807 = vunpack.c.l.b16 %v131
  %v1808 = vunpack.c.h.b16 %v131
  %v1809 = vunpack.c.l.b16 %v132
  %v1810 = vunpack.c.h.b16 %v132
  %v1811 = vunpack.c.l.b16 %v133
  %v1812 = vunpack.c.h.b16 %v133
  %v1813 = vunpack.c.l.b16 %v134
  %v1814 = vunpack.c.h.b16 %v134
  %v1815 = vunpack.c.l.b16 %v135
  %v1816 = vunpack.c.h.b16 %v135
  %v1817 = vunpack.c.l.b16 %v136
  %v1818 = vunpack.c.h.b16 %v136
  %v1819 = vunpack.c.l.b16 %v137
  %v1820 = vunpack.c.h.b16 %v137
  %v1821 = vunpack.c.l.b16 %v138
  %v1822 = vunpack.c.h.b16 %v138
  %v1823 = vunpack.c.l.b16 %v139
  %v1824 = vunpack.c.h.b16 %v139
  %v1825 = vunpack.c.l.b16 %v140
  %v1826 = vunpack.c.h.b16 %v140
  %v1827 = vunpack.c.l.b16 %v141
  %v1828 = vunpack.c.h.b16 %v141
  %v1829 = vunpack.c.l.b16 %v142
  %v1830 = vunpack.c.h.b16 %v142
  %v1831 = vunpack.c.l.b16 %v143
  %v1832 = vunpack.c.h.b16 %v143
  %v1833 = vunpack.c.l.b16 %v144
  %v1834 = vunpack.c.h.b16 %v144
  %v1835 = vunpack.c.l.b16 %v145
  %v1836 = vunpack.c.h.b16 %v145
  %v1837 = vunpack.c.l.b16 %v146
  %v1838 = vunpack.c.h.b16 %v146
  %v1839 = vunpack.c.l.b16 %v147
  %v1840 = vunpack.c.h.b16 %v147
  %v1841 = vunpack.c.l.b16 %v148
  %v1842 = vunpack.c.h.b16 %v148
  %v1843 = vunpack.c.l.b16 %v149
  %v1844 = vunpack.c.h.b16 %v149
  %v1845 = vunpack.c.l.b16 %v150
  %v1846 = vunpack.c.h.b16 %v150
  %v1847 = vunpack.c.l.b16 %v151
  %v1848 = vunpack.c.h.b16 %v151
  %v1849 = vunpack.c.l.b16 %v152
  %v1850 = vunpack.c.h.b16 %v152
  %v1851 = vunpack.c.l.b16 %v153
  %v1852 = vunpack.c.h.b16 %v153
  %v1853 = vunpack.c.l.b16 %v154
  %v1854 = vunpack.c.h.b16 %v154
  %v1855 = vunpack.c.l.b16 %v155
  %v1856 = vunpack.c.h.b16 %v155
  %v1857 = vunpack.c.l.b16 %v156
  %v1858 = vunpack.c.h.b16 %v156
  %v1859 = vunpack.c.l.b16 %v157
  %v1860 = vunpack.c.h.b16 %v157
  %v1861 = vunpack.c.l.b16 %v158
  %v1862 = vunpack.c.h.b16 %v158
  %v1863 = vunpack.c.l.b16 %v159
  %v1864 = vunpack.c.h.b16 %v159
  %v1865 = vunpack.c.l.b16 %v160
  %v1866 = vunpack.c.h.b16 %v160
  %v1867 = vunpack.c.l.b16 %v161
  %v1868 = vunpack.c.h.b16 %v161
  %v1869 = vunpack.c.l.b16 %v162
  %v1870 = vunpack.c.h.b16 %v162
  %v1871 = vunpack.c.l.b16 %v163
  %v1872 = vunpack.c.h.b16 %v163
  %v1873 = vunpack.c.l.b16 %v164
  %v1874 = vunpack.c.h.b16 %v164
  %v1875 = vunpack.c.l.b16 %v165
  %v1876 = vunpack.c.h.b16 %v165
  %v1877 = vunpack.c.l.b16 %v166
  %v1878 = vunpack.c.h.b16 %v166
  %v1879 = vunpack.c.l.b16 %v167
  %v1880 = vunpack.c.h.b16 %v167
  %v1881 = vunpack.c.l.b16 %v168
  %v1882 = vunpack.c.h.b16 %v168
  %v1883 = vunpack.c.l.b16 %v169
  %v1884 = vunpack.c.h.b16 %v169
  %v1885 = vunpack.c.l.b16 %v170
  %v1886 = vunpack.c.h.b16 %v170
  %v1887 = vunpack.c.l.b16 %v171
  %v1888 = vunpack.c.h.b16 %v171
  %v1889 = vunpack.c.l.b16 %v172
  %v1890 = vunpack.c.h.b16 %v172
  %v1891 = vunpack.c.l.b16 %v173
  %v1892 = vunpack.c.h.b16 %v173
  %v1893 = vunpack.c.l.b16 %v174
  %v1894 = vunpack.c.h.b16 %v174
  %v1895 = vunpack.c.l.b16 %v175
  %v1896 = vunpack.c.h.b16 %v175
  %v1897 = vunpack.c.l.b16 %v176
  %v1898 = vunpack.c.h.b16 %v176
  %v1899 = vunpack.c.l.b16 %v177
  %v1900 = vunpack.c.h.b16 %v177
  %v1901 = vunpack.c.l.b16 %v178
  %v1902 = vunpack.c.h.b16 %v178
  %v1903 = vunpack.c.l.b16 %v179
  %v1904 = vunpack.c.h.b16 %v179
  %v1905 = vunpack.c.l.b16 %v180
  %v1906 = vunpack.c.h.b16 %v180
  %v1907 = vunpack.c.l.b16 %v181
  %v1908 = vunpack.c.h.b16 %v181
  %v1909 = vunpack.c.l.b16 %v182
  %v1910 = vunpack.c.h.b16 %v182
  %v1911 = vunpack.c.l.b16 %v183
  %v1912 = vunpack.c.h.b16 %v183
  %v1913 = vunpack.c.l.b16 %v184
  %v1914 = vunpack.c.h.b16 %v184
  %v1915 = vunpack.c.l.b16 %v185
  %v1916 = vunpack.c.h.b16 %v185
  %v1917 = vunpack.c.l.b16 %v186
  %v1918 = vunpack.c.h.b16 %v186
  %v1919 = vunpack.c.l.b16 %v187
  %v1920 = vunpack.c.h.b16 %v187
  %v1921 = vunpack.c.l.b16 %v188
  %v1922 = vunpack.c.h.b16 %v188
  %v1923 = vunpack.c.l.b16 %v189
  %v1924 = vunpack.c.h.b16 %v189
  %v1925 = vunpack.c.l.b16 %v190
  %v1926 = vunpack.c.h.b16 %v190
  %v1927 = vunpack.c.l.b16 %v191
  %v1928 = vunpack.c.h.b16 %v191
  %v1929 = vunpack.c.l.b16 %v192
  %v1930 = vunpack.c.h.b16 %v192
  %v1931 = vunpack.c.l.b16 %v193
  %v1932 = vunpack.c.h.b16 %v193
  %v1933 = vunpack.c.l.b16 %v194
  %v1934 = vunpack.c.h.b16 %v194
  %v1935 = vunpack.c.l.b16 %v195
  %v1936 = vunpack.c.h.b16 %v195
  %v1937 = vunpack.c.l.b16 %v196
  %v1938 = vunpack.c.h.b16 %v196
  %v1939 = vunpack.c.l.b16 %v197
  %v1940 = vunpack.c.h.b16 %v197
  %v1941 = vunpack.c.l.b16 %v198
  %v1942 = vunpack.c.h.b16 %v198
  %v1943 = vunpack.c.l.b16 %v199
  %v1944 = vunpack.c.h.b16 %v199
  %v1945 = vunpack.c.l.b16 %v200
  %v1946 = vunpack.c.h.b16 %v200
  %v1947 = vunpack.c.l.b16 %v201
  %v1948 = vunpack.c.h.b16 %v201
  %v1949 = vunpack.c.l.b16 %v202
  %v1950 = vunpack.c.h.b16 %v202
  %v1951 = vunpack.c.l.b16 %v203
  %v1952 = vunpack.c.h.b16 %v203
  %v1953 = vunpack.c.l.b16 %v204
  %v1954 = vunpack.c.h.b16 %v204
  %v1955 = vunpack.c.l.b16 %v205
  %v1956 = vunpack.c.h.b16 %v205
  %v1957 = vunpack.c.l.b16 %v206
  %v1958 = vunpack.c.h.b16 %v206
  %v1959 = vunpack.c.l.b16 %v207
  %v1960 = vunpack.c.h.b16 %v207
  %v1961 = vunpack.c.l.b16 %v208
  %v1962 = vunpack.c.h.b16 %v208
  %v1963 = vunpack.c.l.b16 %v209
  %v1964 = vunpack.c.h.b16 %v209
  %v1965 = vunpack.c.l.b16 %v210
  %v1966 = vunpack.c.h.b16 %v210
  %v1967 = vunpack.c.l.b16 %v211
  %v1968 = vunpack.c.h.b16 %v211
  %v1969 = vunpack.c.l.b16 %v212
  %v1970 = vunpack.c.h.b16 %v212
  %v1971 = vunpack.c.l.b16 %v213
  %v1972 = vunpack.c.h.b16 %v213
  %v1973 = vunpack.c.l.b16 %v214
  %v1974 = vunpack.c.h.b16 %v214
  %v1975 = vunpack.c.l.b16 %v215
  %v1976 = vunpack.c.h.b16 %v215
  %v1977 = vunpack.c.l.b16 %v216
  %v1978 = vunpack.c.h.b16 %v216
  %v1979 = vunpack.c.l.b16 %v217
  %v1980 = vunpack.c.h.b16 %v217
  %v1981 = vunpack.c.l.b16 %v218
  %v1982 = vunpack.c.h.b16 %v218
  %v1983 = vunpack.c.l.b16 %v219
  %v1984 = vunpack.c.h.b16 %v219
  %v1985 = vunpack.c.l.b16 %v220
  %v1986 = vunpack.c.h.b16 %v220
  %v1987 = vunpack.c.l.b16 %v221
  %v1988 = vunpack.c.h.b16 %v221
  %v1989 = vunpack.c.l.b16 %v222
  %v1990 = vunpack.c.h.b16 %v222
  %v1991 = vunpack.c.l.b16 %v223
  %v1992 = vunpack.c.h.b16 %v223
  %v1993 = vunpack.c.l.b16 %v224
  %v1994 = vunpack.c.h.b16 %v224
  %v1995 = vunpack.c.l.b16 %v225
  %v1996 = vunpack.c.h.b16 %v225
  %v1997 = vunpack.c.l.b16 %v226
  %v1998 = vunpack.c.h.b16 %v226
  %v1999 = vunpack.c.l.b16 %v227
  %v2000 = vunpack.c.h.b16 %v227
  %v2001 = vunpack.c.l.b16 %v228
  %v2002 = vunpack.c.h.b16 %v228
  %v2003 = vunpack.c.l.b16 %v229
  %v2004 = vunpack.c.h.b16 %v229
  %v2005 = vunpack.c.l.b16 %v230
  %v2006 = vunpack.c.h.b16 %v230
  %v2007 = vunpack.c.l.b16 %v231
  %v2008 = vunpack.c.h.b16 %v231
  %v2009 = vunpack.c.l.b16 %v232
  %v2010 = vunpack.c.h.b16 %v232
  %v2011 = vunpack.c.l.b16 %v233
  %v2012 = vunpack.c.h.b16 %v233
  %v2013 = vunpack.c.l.b16 %v234
  %v2014 = vunpack.c.h.b16 %v234
  %v2015 = vunpack.c.l.b16 %v235
  %v2016 = vunpack.c.h.b16 %v235
  %v2017 = vunpack.c.l.b16 %v236
  %v2018 = vunpack.c.h.b16 %v236
  %v2019 = vunpack.c.l.b16 %v237
  %v2020 = vunpack.c.h.b16 %v237
  %v2021 = vunpack.c.l.b16 %v238
  %v2022 = vunpack.c.h.b16 %v238
  %v2023 = vunpack.c.l.b16 %v239
  %v2024 = vunpack.c.h.b16 %v239
  %v2025 = vunpack.c.l.b16 %v240
  %v2026 = vunpack.c.h.b16 %v240
  %v2027 = vunpack.c.l.b16 %v241
  %v2028 = vunpack.c.h.b16 %v241
  %v2029 = vunpack.c.l.b16 %v242
  %v2030 = vunpack.c.h.b16 %v242
  %v2031 = vunpack.c.l.b16 %v243
  %v2032 = vunpack.c.h.b16 %v243
  %v2033 = vunpack.c.l.b16 %v244
  %v2034 = vunpack.c.h.b16 %v244
  %v2035 = vunpack.c.l.b16 %v245
  %v2036 = vunpack.c.h.b16 %v245
  %v2037 = vunpack.c.l.b16 %v246
  %v2038 = vunpack.c.h.b16 %v246
  %v2039 = vunpack.c.l.b16 %v247
  %v2040 = vunpack.c.h.b16 %v247
  %v2041 = vunpack.c.l.b16 %v248
  %v2042 = vunpack.c.h.b16 %v248
  %v2043 = vunpack.c.l.b16 %v249
  %v2044 = vunpack.c.h.b16 %v249
  %v2045 = vunpack.c.l.b16 %v250
  %v2046 = vunpack.c.h.b16 %v250
  %v2047 = vunpack.c.l.b16 %v251
  %v2048 = vunpack.c.h.b16 %v251
  %v2049 = vunpack.c.l.b16 %v252
  %v2050 = vunpack.c.h.b16 %v252
  %v2051 = vunpack.c.l.b16 %v253
  %v2052 = vunpack.c.h.b16 %v253
  %v2053 = vunpack.c.l.b16 %v254
  %v2054 = vunpack.c.h.b16 %v254
  %v2055 = vunpack.c.l.b16 %v255
  %v2056 = vunpack.c.h.b16 %v255
  %v2057 = vunpack.c.l.b16 %v256
  %v2058 = vunpack.c.h.b16 %v256
  %v2059 = vunpack.c.l.b16 %v257
  %v2060 = vunpack.c.h.b16 %v257
  %v2061 = vunpack.c.l.b16 %v258
  %v2062 = vunpack.c.h.b16 %v258
  %v2063 = vunpack.c.l.b16 %v259
  %v2064 = vunpack.c.h.b16 %v259
  %v2065 = vunpack.c.l.b16 %v260
  %v2066 = vunpack.c.h.b16 %v260
  %v2067 = vunpack.c.l.b16 %v261
  %v2068 = vunpack.c.h.b16 %v261
  %v2069 = vunpack.c.l.b16 %v262
  %v2070 = vunpack.c.h.b16 %v262
  %v2071 = vunpack.c.l.b16 %v263
  %v2072 = vunpack.c.h.b16 %v263
  %v2073 = vunpack.c.l.b16 %v264
  %v2074 = vunpack.c.h.b16 %v264
  %v2075 = vunpack.c.l.b16 %v265
  %v2076 = vunpack.c.h.b16 %v265
  %v2077 = vunpack.c.l.b16 %v266
  %v2078 = vunpack.c.h.b16 %v266
  %v2079 = vunpack.c.l.b16 %v267
  %v2080 = vunpack.c.h.b16 %v267
  %v2081 = vunpack.c.l.b16 %v268
  %v2082 = vunpack.c.h.b16 %v268
  %v2083 = vunpack.c.l.b16 %v269
  %v2084 = vunpack.c.h.b16 %v269
  %v2085 = vunpack.c.l.b16 %v270
  %v2086 = vunpack.c.h.b16 %v270
  %v2087 = vunpack.c.l.b16 %v271
  %v2088 = vunpack.c.h.b16 %v271
  %v2089 = vunpack.c.l.b16 %v272
  %v2090 = vunpack.c.h.b16 %v272
  %v2091 = vunpack.c.l.b16 %v273
  %v2092 = vunpack.c.h.b16 %v273
  %v2093 = vunpack.c.l.b16 %v274
  %v2094 = vunpack.c.h.b16 %v274
  %v2095 = vunpack.c.l.b16 %v275
  %v2096 = vunpack.c.h.b16 %v275
  %v2097 = vunpack.c.l.b16 %v276
  %v2098 = vunpack.c.h.b16 %v276
  %v2099 = vunpack.c.l.b16 %v277
  %v2100 = vunpack.c.h.b16 %v277
  %v2101 = vunpack.c.l.b16 %v278
  %v2102 = vunpack.c.h.b16 %v278
  %v2103 = vunpack.c.l.b16 %v279
  %v2104 = vunpack.c.h.b16 %v279
  %v2105 = vunpack.c.l.b16 %v280
  %v2106 = vunpack.c.h.b16 %v280
  %v2107 = vunpack.c.l.b16 %v281
  %v2108 = vunpack.c.h.b16 %v281
  %v2109 = vunpack.c.l.b16 %v282
  %v2110 = vunpack.c.h.b16 %v282
  %v2111 = vunpack.c.l.b16 %v283
  %v2112 = vunpack.c.h.b16 %v283
  %v2113 = vunpack.c.l.b16 %v284
  %v2114 = vunpack.c.h.b16 %v284
  %v2115 = vunpack.c.l.b16 %v285
  %v2116 = vunpack.c.h.b16 %v285
  %v2117 = vunpack.c.l.b16 %v286
  %v2118 = vunpack.c.h.b16 %v286
  %v2119 = vunpack.c.l.b16 %v287
  %v2120 = vunpack.c.h.b16 %v287
  %v2121 = vunpack.c.l.b16 %v288
  %v2122 = vunpack.c.h.b16 %v288
  %v2123 = vunpack.c.l.b16 %v289
  %v2124 = vunpack.c.h.b16 %v289
  %v2125 = vunpack.c.l.b16 %v290
  %v2126 = vunpack.c.h.b16 %v290
  %v2127 = vunpack.c.l.b16 %v291
  %v2128 = vunpack.c.h.b16 %v291
  %v2129 = vunpack.c.l.b16 %v292
  %v2130 = vunpack.c.h.b16 %v292
  %v2131 = vunpack.c.l.b16 %v293
  %v2132 = vunpack.c.h.b16 %v293
  %v2133 = vunpack.c.l.b16 %v294
  %v2134 = vunpack.c.h.b16 %v294
  %v2135 = vunpack.c.l.b16 %v295
  %v2136 = vunpack.c.h.b16 %v295
  %v2137 = vunpack.c.l.b16 %v296
  %v2138 = vunpack.c.h.b16 %v296
  %v2139 = vunpack.c.l.b16 %v297
  %v2140 = vunpack.c.h.b16 %v297
  %v2141 = vunpack.c.l.b16 %v298
  %v2142 = vunpack.c.h.b16 %v298
  %v2143 = vunpack.c.l.b16 %v299
  %v2144 = vunpack.c.h.b16 %v299
  %v2145 = vunpack.c.l.b16 %v300
  %v2146 = vunpack.c.h.b16 %v300
  %v2147 = vunpack.c.l.b16 %v301
  %v2148 = vunpack.c.h.b16 %v301
  %v2149 = vunpack.c.l.b16 %v302
  %v2150 = vunpack.c.h.b16 %v302
  %v2151 = vunpack.c.l.b16 %v303
  %v2152 = vunpack.c.h.b16 %v303
  %v2153 = vunpack.c.l.b16 %v304
  %v2154 = vunpack.c.h.b16 %v304
  %v2155 = vunpack.c.l.b16 %v305
  %v2156 = vunpack.c.h.b16 %v305
  %v2157 = vunpack.c.l.b16 %v306
  %v2158 = vunpack.c.h.b16 %v306
  %v2159 = vunpack.c.l.b16 %v307
  %v2160 = vunpack.c.h.b16 %v307
  %v2161 = vunpack.c.l.b16 %v308
  %v2162 = vunpack.c.h.b16 %v308
  %v2163 = vunpack.c.l.b16 %v309
  %v2164 = vunpack.c.h.b16 %v309
  %v2165 = vunpack.c.l.b16 %v310
  %v2166 = vunpack.c.h.b16 %v310
  %v2167 = vunpack.c.l.b16 %v311
  %v2168 = vunpack.c.h.b16 %v311
  %v2169 = vunpack.c.l.b16 %v312
  %v2170 = vunpack.c.h.b16 %v312
  %v2171 = vunpack.c.l.b16 %v313
  %v2172 = vunpack.c.h.b16 %v313
  %v2173 = vunpack.c.l.b16 %v314
  %v2174 = vunpack.c.h.b16 %v314
  %v2175 = vunpack.c.l.b16 %v315
  %v2176 = vunpack.c.h.b16 %v315
  %v2177 = vunpack.c.l.b16 %v316
  %v2178 = vunpack.c.h.b16 %v316
  %v2179 = vunpack.c.l.b16 %v317
  %v2180 = vunpack.c.h.b16 %v317
  %v2181 = vunpack.c.l.b16 %v318
  %v2182 = vunpack.c.h.b16 %v318
  %v2183 = vunpack.c.l.b16 %v319
  %v2184 = vunpack.c.h.b16 %v319
  %v2185 = vunpack.c.l.b16 %v320
  %v2186 = vunpack.c.h.b16 %v320
  %v2187 = vunpack.c.l.b16 %v321
  %v2188 = vunpack.c.h.b16 %v321
  %v2189 = vunpack.c.l.b16 %v322
  %v2190 = vunpack.c.h.b16 %v322
  %v2191 = vunpack.c.l.b16 %v323
  %v2192 = vunpack.c.h.b16 %v323
  %v2193 = vunpack.c.l.b16 %v324
  %v2194 = vunpack.c.h.b16 %v324
  %v2195 = vunpack.c.l.b16 %v325
  %v2196 = vunpack.c.h.b16 %v325
  %v2197 = vunpack.c.l.b16 %v326
  %v2198 = vunpack.c.h.b16 %v326
  %v2199 = vunpack.c.l.b16 %v327
  %v2200 = vunpack.c.h.b16 %v327
  %v2201 = vunpack.c.l.b16 %v328
  %v2202 = vunpack.c.h.b16 %v328
  %v2203 = vunpack.c.l.b16 %v329
  %v2204 = vunpack.c.h.b16 %v329
  %v2205 = vunpack.c.l.b16 %v330
  %v2206 = vunpack.c.h.b16 %v330
  %v2207 = vunpack.c.l.b16 %v331
  %v2208 = vunpack.c.h.b16 %v331
  %v2209 = vunpack.c.l.b16 %v332
  %v2210 = vunpack.c.h.b16 %v332
  %v2211 = vunpack.c.l.b16 %v333
  %v2212 = vunpack.c.h.b16 %v333
  %v2213 = vunpack.c.l.b16 %v334
  %v2214 = vunpack.c.h.b16 %v334
  %v2215 = vunpack.c.l.b16 %v335
  %v2216 = vunpack.c.h.b16 %v335
  %v2217 = vunpack.c.l.b16 %v336
  %v2218 = vunpack.c.h.b16 %v336
  %v2219 = vunpack.c.l.b16 %v337
  %v2220 = vunpack.c.h.b16 %v337
  %v2221 = vunpack.c.l.b16 %v338
  %v2222 = vunpack.c.h.b16 %v338
  %v2223 = vunpack.c.l.b16 %v339
  %v2224 = vunpack.c.h.b16 %v339
  %v2225 = vunpack.c.l.b16 %v340
  %v2226 = vunpack.c.h.b16 %v340
  %v2227 = vunpack.c.l.b16 %v341
  %v2228 = vunpack.c.h.b16 %v341
  %v2229 = vunpack.c.l.b16 %v342
  %v2230 = vunpack.c.h.b16 %v342
  %v2231 = vunpack.c.l.b16 %v343
  %v2232 = vunpack.c.h.b16 %v343
  %v2233 = vunpack.c.l.b16 %v344
  %v2234 = vunpack.c.h.b16 %v344
  %v2235 = vunpack.c.l.b16 %v345
  %v2236 = vunpack.c.h.b16 %v345
  %v2237 = vunpack.c.l.b16 %v346
  %v2238 = vunpack.c.h.b16 %v346
  %v2239 = vunpack.c.l.b16 %v347
  %v2240 = vunpack.c.h.b16 %v347
  %v2241 = vunpack.c.l.b16 %v348
  %v2242 = vunpack.c.h.b16 %v348
  %v2243 = vunpack.c.l.b16 %v349
  %v2244 = vunpack.c.h.b16 %v349
  %v2245 = vunpack.c.l.b16 %v350
  %v2246 = vunpack.c.h.b16 %v350
  %v2247 = vunpack.c.l.b16 %v351
  %v2248 = vunpack.c.h.b16 %v351
  %v2249 = vunpack.c.l.b16 %v352
  %v2250 = vunpack.c.h.b16 %v352
  %v2251 = vunpack.c.l.b16 %v353
  %v2252 = vunpack.c.h.b16 %v353
  %v2253 = vunpack.c.l.b16 %v354
  %v2254 = vunpack.c.h.b16 %v354
  %v2255 = vunpack.c.l.b16 %v355
  %v2256 = vunpack.c.h.b16 %v355
  %v2257 = vunpack.c.l.b16 %v356
  %v2258 = vunpack.c.h.b16 %v356
  %v2259 = vunpack.c.l.b16 %v357
  %v2260 = vunpack.c.h.b16 %v357
  %v2261 = vunpack.c.l.b16 %v358
  %v2262 = vunpack.c.h.b16 %v358
  %v2263 = vunpack.c.l.b16 %v359
  %v2264 = vunpack.c.h.b16 %v359
  %v2265 = vunpack.c.l.b16 %v360
  %v2266 = vunpack.c.h.b16 %v360
  %v2267 = vunpack.c.l.b16 %v361
  %v2268 = vunpack.c.h.b16 %v361
  %v2269 = vunpack.c.l.b16 %v362
  %v2270 = vunpack.c.h.b16 %v362
  %v2271 = vunpack.c.l.b16 %v363
  %v2272 = vunpack.c.h.b16 %v363
  %v2273 = vunpack.c.l.b16 %v364
  %v2274 = vunpack.c.h.b16 %v364
  %v2275 = vunpack.c.l.b16 %v365
  %v2276 = vunpack.c.h.b16 %v365
  %v2277 = vunpack.c.l.b16 %v366
  %v2278 = vunpack.c.h.b16 %v366
  %v2279 = vunpack.c.l.b16 %v367
  %v2280 = vunpack.c.h.b16 %v367
  %v2281 = vunpack.c.l.b16 %v368
  %v2282 = vunpack.c.h.b16 %v368
  %v2283 = vunpack.c.l.b16 %v369
  %v2284 = vunpack.c.h.b16 %v369
  %v2285 = vunpack.c.l.b16 %v370
  %v2286 = vunpack.c.h.b16 %v370
  %v2287 = vunpack.c.l.b16 %v371
  %v2288 = vunpack.c.h.b16 %v371
  %v2289 = vunpack.c.l.b16 %v372
  %v2290 = vunpack.c.h.b16 %v372
  %v2291 = vunpack.c.l.b16 %v373
  %v2292 = vunpack.c.h.b16 %v373
  %v2293 = vunpack.c.l.b16 %v374
  %v2294 = vunpack.c.h.b16 %v374
  %v2295 = vunpack.c.l.b16 %v375
  %v2296 = vunpack.c.h.b16 %v375
  %v2297 = vunpack.c.l.b16 %v376
  %v2298 = vunpack.c.h.b16 %v376
  %v2299 = vunpack.c.l.b16 %v377
  %v2300 = vunpack.c.h.b16 %v377
  %v2301 = vunpack.c.l.b16 %v378
  %v2302 = vunpack.c.h.b16 %v378
  %v2303 = vunpack.c.l.b16 %v379
  %v2304 = vunpack.c.h.b16 %v379
  %v2305 = vunpack.c.l.b16 %v380
  %v2306 = vunpack.c.h.b16 %v380
  %v2307 = vunpack.c.l.b16 %v381
  %v2308 = vunpack.c.h.b16 %v381
  %v2309 = vunpack.c.l.b16 %v382
  %v2310 = vunpack.c.h.b16 %v382
  %v2311 = vunpack.c.l.b16 %v383
  %v2312 = vunpack.c.h.b16 %v383
  %v2313 = vunpack.c.l.b16 %v384
  %v2314 = vunpack.c.h.b16 %v384
  %v2315 = vunpack.c.l.b16 %v385
  %v2316 = vunpack.c.h.b16 %v385
  %v2317 = vunpack.c.l.b16 %v386
  %v2318 = vunpack.c.h.b16 %v386
  %v2319 = vunpack.c.l.b16 %v387
  %v2320 = vunpack.c.h.b16 %v387
  %v2321 = vunpack.c.l.b16 %v388
  %v2322 = vunpack.c.h.b16 %v388
  %v2323 = vunpack.c.l.b16 %v389
  %v2324 = vunpack.c.h.b16 %v389
  %v2325 = vunpack.c.l.b16 %v390
  %v2326 = vunpack.c.h.b16 %v390
  %v2327 = vunpack.c.l.b16 %v391
  %v2328 = vunpack.c.h.b16 %v391
  %v2329 = vunpack.c.l.b16 %v392
  %v2330 = vunpack.c.h.b16 %v392
  %v2331 = vunpack.c.l.b16 %v393
  %v2332 = vunpack.c.h.b16 %v393
  %v2333 = vunpack.c.l.b16 %v394
  %v2334 = vunpack.c.h.b16 %v394
  %v2335 = vunpack.c.l.b16 %v395
  %v2336 = vunpack.c.h.b16 %v395
  %v2337 = vunpack.c.l.b16 %v396
  %v2338 = vunpack.c.h.b16 %v396
  %v2339 = vunpack.c.l.b16 %v397
  %v2340 = vunpack.c.h.b16 %v397
  %v2341 = vunpack.c.l.b16 %v398
  %v2342 = vunpack.c.h.b16 %v398
  %v2343 = vunpack.c.l.b16 %v399
  %v2344 = vunpack.c.h.b16 %v399
  %v2345 = vunpack.c.l.b16 %v400
  %v2346 = vunpack.c.h.b16 %v400
  %v2347 = vunpack.c.l.b16 %v401
  %v2348 = vunpack.c.h.b16 %v401
  %v2349 = vunpack.c.l.b16 %v402
  %v2350 = vunpack.c.h.b16 %v402
  %v2351 = vunpack.c.l.b16 %v403
  %v2352 = vunpack.c.h.b16 %v403
  %v2353 = vunpack.c.l.b16 %v404
  %v2354 = vunpack.c.h.b16 %v404
  %v2355 = vunpack.c.l.b16 %v405
  %v2356 = vunpack.c.h.b16 %v405
  %v2357 = vunpack.c.l.b16 %v406
  %v2358 = vunpack.c.h.b16 %v406
  %v2359 = vunpack.c.l.b16 %v407
  %v2360 = vunpack.c.h.b16 %v407
  %v2361 = vunpack.c.l.b16 %v408
  %v2362 = vunpack.c.h.b16 %v408
  %v2363 = vunpack.c.l.b16 %v409
  %v2364 = vunpack.c.h.b16 %v409
  %v2365 = vunpack.c.l.b16 %v410
  %v2366 = vunpack.c.h.b16 %v410
  %v2367 = vunpack.c.l.b16 %v411
  %v2368 = vunpack.c.h.b16 %v411
  %v2369 = vunpack.c.l.b16 %v412
  %v2370 = vunpack.c.h.b16 %v412
  %v2371 = vunpack.c.l.b16 %v413
  %v2372 = vunpack.c.h.b16 %v413
  %v2373 = vunpack.c.l.b16 %v414
  %v2374 = vunpack.c.h.b16 %v414
  %v2375 = vunpack.c.l.b16 %v415
  %v2376 = vunpack.c.h.b16 %v415
  %v2377 = vunpack.c.l.b16 %v416
  %v2378 = vunpack.c.h.b16 %v416
  %v2379 = vunpack.c.l.b16 %v417
  %v2380 = vunpack.c.h.b16 %v417
  %v2381 = vunpack.c.l.b16 %v418
  %v2382 = vunpack.c.h.b16 %v418
  %v2383 = vunpack.c.l.b16 %v419
  %v2384 = vunpack.c.h.b16 %v419
  %v2385 = vunpack.c.l.b16 %v420
  %v2386 = vunpack.c.h.b16 %v420
  %v2387 = vunpack.c.l.b16 %v421
  %v2388 = vunpack.c.h.b16 %v421
  %v2389 = vunpack.c.l.b16 %v422
  %v2390 = vunpack.c.h.b16 %v422
  %v2391 = vunpack.c.l.b16 %v423
  %v2392 = vunpack.c.h.b16 %v423
  %v2393 = vunpack.c.l.b16 %v424
  %v2394 = vunpack.c.h.b16 %v424
  %v2395 = vunpack.c.l.b16 %v425
  %v2396 = vunpack.c.h.b16 %v425
  %v2397 = vunpack.c.l.b16 %v426
  %v2398 = vunpack.c.h.b16 %v426
  %v2399 = vunpack.c.l.b16 %v427
  %v2400 = vunpack.c.h.b16 %v427
  %v2401 = vunpack.c.l.b16 %v428
  %v2402 = vunpack.c.h.b16 %v428
  %v2403 = vunpack.c.l.b16 %v429
  %v2404 = vunpack.c.h.b16 %v429
  %v2405 = vunpack.c.l.b16 %v430
  %v2406 = vunpack.c.h.b16 %v430
  %v2407 = vunpack.c.l.b16 %v431
  %v2408 = vunpack.c.h.b16 %v431
  %v2409 = vunpack.c.l.b16 %v432
  %v2410 = vunpack.c.h.b16 %v432
  %v2411 = vunpack.c.l.b16 %v433
  %v2412 = vunpack.c.h.b16 %v433
  %v2413 = vunpack.c.l.b16 %v434
  %v2414 = vunpack.c.h.b16 %v434
  %v2415 = vunpack.c.l.b16 %v435
  %v2416 = vunpack.c.h.b16 %v435
  %v2417 = vunpack.c.l.b16 %v436
  %v2418 = vunpack.c.h.b16 %v436
  %v2419 = vunpack.c.l.b16 %v437
  %v2420 = vunpack.c.h.b16 %v437
  %v2421 = vunpack.c.l.b16 %v438
  %v2422 = vunpack.c.h.b16 %v438
  %v2423 = vunpack.c.l.b16 %v439
  %v2424 = vunpack.c.h.b16 %v439
  %v2425 = vunpack.c.l.b16 %v440
  %v2426 = vunpack.c.h.b16 %v440
  %v2427 = vunpack.c.l.b16 %v441
  %v2428 = vunpack.c.h.b16 %v441
  %v2429 = vunpack.c.l.b16 %v442
  %v2430 = vunpack.c.h.b16 %v442
  %v2431 = vunpack.c.l.b16 %v443
  %v2432 = vunpack.c.h.b16 %v443
  %v2433 = vunpack.c.l.b16 %v444
  %v2434 = vunpack.c.h.b16 %v444
  %v2435 = vunpack.c.l.b16 %v445
  %v2436 = vunpack.c.h.b16 %v445
  %v2437 = vunpack.c.l.b16 %v446
  %v2438 = vunpack.c.h.b16 %v446
  %v2439 = vunpack.c.l.b16 %v447
  %v2440 = vunpack.c.h.b16 %v447
  %v2441 = vunpack.c.l.b16 %v448
  %v2442 = vunpack.c.h.b16 %v448
  %v2443 = vunpack.c.l.b16 %v449
  %v2444 = vunpack.c.h.b16 %v449
  %v2445 = vunpack.c.l.b16 %v450
  %v2446 = vunpack.c.h.b16 %v450
  %v2447 = vunpack.c.l.b16 %v451
  %v2448 = vunpack.c.h.b16 %v451
  %v2449 = vunpack.c.l.b16 %v452
  %v2450 = vunpack.c.h.b16 %v452
  %v2451 = vunpack.c.l.b16 %v453
  %v2452 = vunpack.c.h.b16 %v453
  %v2453 = vunpack.c.l.b16 %v454
  %v2454 = vunpack.c.h.b16 %v454
  %v2455 = vunpack.c.l.b16 %v455
  %v2456 = vunpack.c.h.b16 %v455
  %v2457 = vunpack.c.l.b16 %v456
  %v2458 = vunpack.c.h.b16 %v456
  %v2459 = vunpack.c.l.b16 %v457
  %v2460 = vunpack.c.h.b16 %v457
  %v2461 = vunpack.c.l.b16 %v458
  %v2462 = vunpack.c.h.b16 %v458
  %v2463 = vunpack.c.l.b16 %v459
  %v2464 = vunpack.c.h.b16 %v459
  %v2465 = vunpack.c.l.b16 %v460
  %v2466 = vunpack.c.h.b16 %v460
  %v2467 = vunpack.c.l.b16 %v461
  %v2468 = vunpack.c.h.b16 %v461
  %v2469 = vunpack.c.l.b16 %v462
  %v2470 = vunpack.c.h.b16 %v462
  %v2471 = vunpack.c.l.b16 %v463
  %v2472 = vunpack.c.h.b16 %v463
  %v2473 = vunpack.c.l.b16 %v464
  %v2474 = vunpack.c.h.b16 %v464
  %v2475 = vunpack.c.l.b16 %v465
  %v2476 = vunpack.c.h.b16 %v465
  %v2477 = vunpack.c.l.b16 %v466
  %v2478 = vunpack.c.h.b16 %v466
  %v2479 = vunpack.c.l.b16 %v467
  %v2480 = vunpack.c.h.b16 %v467
  %v2481 = vunpack.c.l.b16 %v468
  %v2482 = vunpack.c.h.b16 %v468
  %v2483 = vunpack.c.l.b16 %v469
  %v2484 = vunpack.c.h.b16 %v469
  %v2485 = vunpack.c.l.b16 %v470
  %v2486 = vunpack.c.h.b16 %v470
  %v2487 = vunpack.c.l.b16 %v471
  %v2488 = vunpack.c.h.b16 %v471
  %v2489 = vunpack.c.l.b16 %v472
  %v2490 = vunpack.c.h.b16 %v472
  %v2491 = vunpack.c.l.b16 %v473
  %v2492 = vunpack.c.h.b16 %v473
  %v2493 = vunpack.c.l.b16 %v474
  %v2494 = vunpack.c.h.b16 %v474
  %v2495 = vunpack.c.l.b16 %v475
  %v2496 = vunpack.c.h.b16 %v475
  %v2497 = vunpack.c.l.b16 %v476
  %v2498 = vunpack.c.h.b16 %v476
  %v2499 = vunpack.c.l.b16 %v477
  %v2500 = vunpack.c.h.b16 %v477
  %v2501 = vunpack.c.l.b16 %v478
  %v2502 = vunpack.c.h.b16 %v478
  %v2503 = vunpack.c.l.b16 %v479
  %v2504 = vunpack.c.h.b16 %v479
  %v2505 = vunpack.c.l.b16 %v480
  %v2506 = vunpack.c.h.b16 %v480
  %v2507 = vunpack.c.l.b16 %v481
  %v2508 = vunpack.c.h.b16 %v481
  %v2509 = vunpack.c.l.b16 %v482
  %v2510 = vunpack.c.h.b16 %v482
  %v2511 = vunpack.c.l.b16 %v483
  %v2512 = vunpack.c.h.b16 %v483
  %v2513 = vunpack.c.l.b16 %v484
  %v2514 = vunpack.c.h.b16 %v484
  %v2515 = vunpack.c.l.b16 %v485
  %v2516 = vunpack.c.h.b16 %v485
  %v2517 = vunpack.c.l.b16 %v486
  %v2518 = vunpack.c.h.b16 %v486
  %v2519 = vunpack.c.l.b16 %v487
  %v2520 = vunpack.c.h.b16 %v487
  %v2521 = vunpack.c.l.b16 %v488
  %v2522 = vunpack.c.h.b16 %v488
  %v2523 = vunpack.c.l.b16 %v489
  %v2524 = vunpack.c.h.b16 %v489
  %v2525 = vunpack.c.l.b16 %v490
  %v2526 = vunpack.c.h.b16 %v490
  %v2527 = vunpack.c.l.b16 %v491
  %v2528 = vunpack.c.h.b16 %v491
  %v2529 = vunpack.c.l.b16 %v492
  %v2530 = vunpack.c.h.b16 %v492
  %v2531 = vunpack.c.l.b16 %v493
  %v2532 = vunpack.c.h.b16 %v493
  %v2533 = vunpack.c.l.b16 %v494
  %v2534 = vunpack.c.h.b16 %v494
  %v2535 = vunpack.c.l.b16 %v495
  %v2536 = vunpack.c.h.b16 %v495
  %v2537 = vunpack.c.l.b16 %v496
  %v2538 = vunpack.c.h.b16 %v496
  %v2539 = vunpack.c.l.b16 %v497
  %v2540 = vunpack.c.h.b16 %v497
  %v2541 = vunpack.c.l.b16 %v498
  %v2542 = vunpack.c.h.b16 %v498
  %v2543 = vunpack.c.l.b16 %v499
  %v2544 = vunpack.c.h.b16 %v499
  %v2545 = vunpack.c.l.b16 %v500
  %v2546 = vunpack.c.h.b16 %v500
  %v2547 = vunpack.c.l.b16 %v501
  %v2548 = vunpack.c.h.b16 %v501
  %v2549 = vunpack.c.l.b16 %v502
  %v2550 = vunpack.c.h.b16 %v502
  %v2551 = vunpack.c.l.b16 %v503
  %v2552 = vunpack.c.h.b16 %v503
  %v2553 = vunpack.c.l.b16 %v504
  %v2554 = vunpack.c.h.b16 %v504
  %v2555 = vunpack.c.l.b16 %v505
  %v2556 = vunpack.c.h.b16 %v505
  %v2557 = vunpack.c.l.b16 %v506
  %v2558 = vunpack.c.h.b16 %v506
  %v2559 = vunpack.c.l.b16 %v507
  %v2560 = vunpack.c.h.b16 %v507
  %v2561 = vunpack.c.l.b16 %v508
  %v2562 = vunpack.c.h.b16 %v508
  %v2563 = vunpack.c.l.b16 %v509
  %v2564 = vunpack.c.h.b16 %v509
  %v2565 = vunpack.c.l.b16 %v510
  %v2566 = vunpack.c.h.b16 %v510
  %v2567 = vunpack.c.l.b16 %v511
  %v2568 = vunpack.c.h.b16 %v511
  %v2569 = vunpack.c.l.b16 %v512
  %v2570 = vunpack.c.h.b16 %v512
  %v2571 = vunpack.c.l.b16 %v513
  %v2572 = vunpack.c.h.b16 %v513
  %v2573 = vunpack.c.l.b16 %v514
  %v2574 = vunpack.c.h.b16 %v514
  %v2575 = vunpack.c.l.b16 %v515
  %v2576 = vunpack.c.h.b16 %v515
  %v2577 = vunpack.c.l.b16 %v516
  %v2578 = vunpack.c.h.b16 %v516
  %v2579 = vunpack.c.l.b16 %v517
  %v2580 = vunpack.c.h.b16 %v517
  %v2581 = vunpack.c.l.b16 %v518
  %v2582 = vunpack.c.h.b16 %v518
  %v2583 = vunpack.c.l.b16 %v519
  %v2584 = vunpack.c.h.b16 %v519
  %v2585 = vunpack.c.l.b16 %v520
  %v2586 = vunpack.c.h.b16 %v520
  %v2587 = vunpack.c.l.b16 %v521
  %v2588 = vunpack.c.h.b16 %v521
  %v2589 = vunpack.c.l.b16 %v522
  %v2590 = vunpack.c.h.b16 %v522
  %v2591 = vunpack.c.l.b16 %v523
  %v2592 = vunpack.c.h.b16 %v523
  %v2593 = vunpack.c.l.b16 %v524
  %v2594 = vunpack.c.h.b16 %v524
  %v2595 = vunpack.c.l.b16 %v525
  %v2596 = vunpack.c.h.b16 %v525
  %v2597 = vunpack.c.l.b16 %v526
  %v2598 = vunpack.c.h.b16 %v526
  %v2599 = vunpack.c.l.b16 %v527
  %v2600 = vunpack.c.h.b16 %v527
  %v2601 = vunpack.c.l.b16 %v528
  %v2602 = vunpack.c.h.b16 %v528
  %v2603 = vunpack.c.l.b16 %v529
  %v2604 = vunpack.c.h.b16 %v529
  %v2605 = vunpack.c.l.b16 %v530
  %v2606 = vunpack.c.h.b16 %v530
  %v2607 = vunpack.c.l.b16 %v531
  %v2608 = vunpack.c.h.b16 %v531
  %v2609 = vunpack.c.l.b16 %v532
  %v2610 = vunpack.c.h.b16 %v532
  %v2611 = vunpack.c.l.b16 %v533
  %v2612 = vunpack.c.h.b16 %v533
  %v2613 = vunpack.c.l.b16 %v534
  %v2614 = vunpack.c.h.b16 %v534
  %v2615 = vunpack.c.l.b16 %v535
  %v2616 = vunpack.c.h.b16 %v535
  %v2617 = vunpack.c.l.b16 %v536
  %v2618 = vunpack.c.h.b16 %v536
  %v2619 = vunpack.c.l.b16 %v537
  %v2620 = vunpack.c.h.b16 %v537
  %v2621 = vunpack.c.l.b16 %v538
  %v2622 = vunpack.c.h.b16 %v538
  %v2623 = vunpack.c.l.b16 %v539
  %v2624 = vunpack.c.h.b16 %v539
  %v2625 = vunpack.c.l.b16 %v540
  %v2626 = vunpack.c.h.b16 %v540
  %v2627 = vunpack.c.l.b16 %v541
  %v2628 = vunpack.c.h.b16 %v541
  %v2629 = vunpack.c.l.b16 %v542
  %v2630 = vunpack.c.h.b16 %v542
  %v2631 = vunpack.c.l.b16 %v543
  %v2632 = vunpack.c.h.b16 %v543
  %v2633 = vunpack.c.l.b16 %v544
  %v2634 = vunpack.c.h.b16 %v544
  %v2635 = vunpack.c.l.b16 %v545
  %v2636 = vunpack.c.h.b16 %v545
  %v2637 = vunpack.c.l.b16 %v546
  %v2638 = vunpack.c.h.b16 %v546
  %v2639 = vunpack.c.l.b16 %v547
  %v2640 = vunpack.c.h.b16 %v547
  %v2641 = vunpack.c.l.b16 %v548
  %v2642 = vunpack.c.h.b16 %v548
  %v2643 = vunpack.c.l.b16 %v549
  %v2644 = vunpack.c.h.b16 %v549
  %v2645 = vunpack.c.l.b16 %v550
  %v2646 = vunpack.c.h.b16 %v550
  %v2647 = vunpack.c.l.b16 %v551
  %v2648 = vunpack.c.h.b16 %v551
  %v2649 = vunpack.c.l.b16 %v552
  %v2650 = vunpack.c.h.b16 %v552
  %v2651 = vunpack.c.l.b16 %v553
  %v2652 = vunpack.c.h.b16 %v553
  %v2653 = vunpack.c.l.b16 %v554
  %v2654 = vunpack.c.h.b16 %v554
  %v2655 = vunpack.c.l.b16 %v555
  %v2656 = vunpack.c.h.b16 %v555
  %v2657 = vunpack.c.l.b16 %v556
  %v2658 = vunpack.c.h.b16 %v556
  %v2659 = vunpack.c.l.b16 %v557
  %v2660 = vunpack.c.h.b16 %v557
  %v2661 = vunpack.c.l.b16 %v558
  %v2662 = vunpack.c.h.b16 %v558
  %v2663 = vunpack.c.l.b16 %v559
  %v2664 = vunpack.c.h.b16 %v559
  %v2665 = vunpack.c.l.b16 %v560
  %v2666 = vunpack.c.h.b16 %v560
  %v2667 = vunpack.c.l.b16 %v561
  %v2668 = vunpack.c.h.b16 %v561
  %v2669 = vunpack.c.l.b16 %v562
  %v2670 = vunpack.c.h.b16 %v562
  %v2671 = vunpack.c.l.b16 %v563
  %v2672 = vunpack.c.h.b16 %v563
  %v2673 = vunpack.c.l.b16 %v564
  %v2674 = vunpack.c.h.b16 %v564
  %v2675 = vunpack.c.l.b16 %v565
  %v2676 = vunpack.c.h.b16 %v565
  %v2677 = vunpack.c.l.b16 %v566
  %v2678 = vunpack.c.h.b16 %v566
  %v2679 = vunpack.c.l.b16 %v567
  %v2680 = vunpack.c.h.b16 %v567
  %v2681 = vunpack.c.l.b16 %v568
  %v2682 = vunpack.c.h.b16 %v568
  %v2683 = vunpack.c.l.b16 %v569
  %v2684 = vunpack.c.h.b16 %v569
  %v2685 = vunpack.c.l.b16 %v570
  %v2686 = vunpack.c.h.b16 %v570
  %v2687 = vunpack.c.l.b16 %v571
  %v2688 = vunpack.c.h.b16 %v571
  %v2689 = vunpack.c.l.b16 %v572
  %v2690 = vunpack.c.h.b16 %v572
  %v2691 = vunpack.c.l.b16 %v573
  %v2692 = vunpack.c.h.b16 %v573
  %v2693 = vunpack.c.l.b16 %v574
  %v2694 = vunpack.c.h.b16 %v574
  %v2695 = vunpack.c.l.b16 %v575
  %v2696 = vunpack.c.h.b16 %v575
  %v2697 = vunpack.c.l.b16 %v576
  %v2698 = vunpack.c.h.b16 %v576
  %v2699 = vunpack.c.l.b16 %v577
  %v2700 = vunpack.c.h.b16 %v577
  %v2701 = vunpack.c.l.b16 %v578
  %v2702 = vunpack.c.h.b16 %v578
  %v2703 = vunpack.c.l.b16 %v579
  %v2704 = vunpack.c.h.b16 %v579
  %v2705 = vunpack.c.l.b16 %v580
  %v2706 = vunpack.c.h.b16 %v580
  %v2707 = vunpack.c.l.b16 %v581
  %v2708 = vunpack.c.h.b16 %v581
  %v2709 = vunpack.c.l.b16 %v582
  %v2710 = vunpack.c.h.b16 %v582
  %v2711 = vunpack.c.l.b16 %v583
  %v2712 = vunpack.c.h.b16 %v583
  %v2713 = vunpack.c.l.b16 %v584
  %v2714 = vunpack.c.h.b16 %v584
  %v2715 = vunpack.c.l.b16 %v585
  %v2716 = vunpack.c.h.b16 %v585
  %v2717 = vunpack.c.l.b16 %v586
  %v2718 = vunpack.c.h.b16 %v586
  %v2719 = vunpack.c.l.b16 %v587
  %v2720 = vunpack.c.h.b16 %v587
  %v2721 = vunpack.c.l.b16 %v588
  %v2722 = vunpack.c.h.b16 %v588
  %v2723 = vunpack.c.l.b16 %v589
  %v2724 = vunpack.c.h.b16 %v589
  %v2725 = vunpack.c.l.b16 %v590
  %v2726 = vunpack.c.h.b16 %v590
  %v2727 = vunpack.c.l.b16 %v591
  %v2728 = vunpack.c.h.b16 %v591
  %v2729 = vunpack.c.l.b16 %v592
  %v2730 = vunpack.c.h.b16 %v592
  %v2731 = vunpack.c.l.b16 %v593
  %v2732 = vunpack.c.h.b16 %v593
  %v2733 = vunpack.c.l.b16 %v594
  %v2734 = vunpack.c.h.b16 %v594
  %v2735 = vunpack.c.l.b16 %v595
  %v2736 = vunpack.c.h.b16 %v595
  %v2737 = vunpack.c.l.b16 %v596
  %v2738 = vunpack.c.h.b16 %v596
  %v2739 = vunpack.c.l.b16 %v597
  %v2740 = vunpack.c.h.b16 %v597
  %v2741 = vunpack.c.l.b16 %v598
  %v2742 = vunpack.c.h.b16 %v598
  %v2743 = vunpack.c.l.b16 %v599
  %v2744 = vunpack.c.h.b16 %v599
  %v2745 = vunpack.c.l.b16 %v600
  %v2746 = vunpack.c.h.b16 %v600
  %v2747 = vunpack.c.l.b16 %v601
  %v2748 = vunpack.c.h.b16 %v601
  %v2749 = vunpack.c.l.b16 %v602
  %v2750 = vunpack.c.h.b16 %v602
  %v2751 = vunpack.c.l.b16 %v603
  %v2752 = vunpack.c.h.b16 %v603
  %v2753 = vunpack.c.l.b16 %v604
  %v2754 = vunpack.c.h.b16 %v604
  %v2755 = vunpack.c.l.b16 %v605
  %v2756 = vunpack.c.h.b16 %v605
  %v2757 = vunpack.c.l.b16 %v606
  %v2758 = vunpack.c.h.b16 %v606
  %v2759 = vunpack.c.l.b16 %v607
  %v2760 = vunpack.c.h.b16 %v607
  %v2761 = vunpack.c.l.b16 %v608
  %v2762 = vunpack.c.h.b16 %v608
  %v2763 = vunpack.c.l.b16 %v609
  %v2764 = vunpack.c.h.b16 %v609
  %v2765 = vunpack.c.l.b16 %v610
  %v2766 = vunpack.c.h.b16 %v610
  %v2767 = vunpack.c.l.b16 %v611
  %v2768 = vunpack.c.h.b16 %v611
  %v2769 = vunpack.c.l.b16 %v612
  %v2770 = vunpack.c.h.b16 %v612
  %v2771 = vunpack.c.l.b16 %v613
  %v2772 = vunpack.c.h.b16 %v613
  %v2773 = vunpack.c.l.b16 %v614
  %v2774 = vunpack.c.h.b16 %v614
  %v2775 = vunpack.c.l.b16 %v615
  %v2776 = vunpack.c.h.b16 %v615
  %v2777 = vunpack.c.l.b16 %v616
  %v2778 = vunpack.c.h.b16 %v616
  %v2779 = vunpack.c.l.b16 %v617
  %v2780 = vunpack.c.h.b16 %v617
  %v2781 = vunpack.c.l.b16 %v618
  %v2782 = vunpack.c.h.b16 %v618
  %v2783 = vunpack.c.l.b16 %v619
  %v2784 = vunpack.c.h.b16 %v619
  %v2785 = vunpack.c.l.b16 %v620
  %v2786 = vunpack.c.h.b16 %v620
  %v2787 = vunpack.c.l.b16 %v621
  %v2788 = vunpack.c.h.b16 %v621
  %v2789 = vunpack.c.l.b16 %v622
  %v2790 = vunpack.c.h.b16 %v622
  %v2791 = vunpack.c.l.b16 %v623
  %v2792 = vunpack.c.h.b16 %v623
  %v2793 = vunpack.c.l.b16 %v624
  %v2794 = vunpack.c.h.b16 %v624
  %v2795 = vunpack.c.l.b16 %v625
  %v2796 = vunpack.c.h.b16 %v625
  %v2797 = vunpack.c.l.b16 %v626
  %v2798 = vunpack.c.h.b16 %v626
  %v2799 = vunpack.c.l.b16 %v627
  %v2800 = vunpack.c.h.b16 %v627
  %v2801 = vunpack.c.l.b16 %v628
  %v2802 = vunpack.c.h.b16 %v628
  %v2803 = vunpack.c.l.b16 %v629
  %v2804 = vunpack.c.h.b16 %v629
  %v2805 = vunpack.c.l.b16 %v630
  %v2806 = vunpack.c.h.b16 %v630
  %v2807 = vunpack.c.l.b16 %v631
  %v2808 = vunpack.c.h.b16 %v631
  %v2809 = vunpack.c.l.b16 %v632
  %v2810 = vunpack.c.h.b16 %v632
  %v2811 = vunpack.c.l.b16 %v633
  %v2812 = vunpack.c.h.b16 %v633
  %v2813 = vunpack.c.l.b16 %v634
  %v2814 = vunpack.c.h.b16 %v634
  %v2815 = vunpack.c.l.b16 %v635
  %v2816 = vunpack.c.h.b16 %v635
  %v2817 = vunpack.c.l.b16 %v636
  %v2818 = vunpack.c.h.b16 %v636
  %v2819 = vunpack.c.l.b16 %v637
  %v2820 = vunpack.c.h.b16 %v637
  %v2821 = vunpack.c.l.b16 %v638
  %v2822 = vunpack.c.h.b16 %v638
  %v2823 = vunpack.c.l.b16 %v639
  %v2824 = vunpack.c.h.b16 %v639
  %v2825 = vunpack.c.l.b16 %v640
  %v2826 = vunpack.c.h.b16 %v640
  %v2827 = vunpack.c.l.b16 %v641
  %v2828 = vunpack.c.h.b16 %v641
  %v2829 = vunpack.c.l.b16 %v642
  %v2830 = vunpack.c.h.b16 %v642
  %v2831 = vunpack.c.l.b16 %v643
  %v2832 = vunpack.c.h.b16 %v643
  %v2833 = vunpack.c.l.b16 %v644
  %v2834 = vunpack.c.h.b16 %v644
  %v2835 = vunpack.c.l.b16 %v645
  %v2836 = vunpack.c.h.b16 %v645
  %v2837 = vunpack.c.l.b16 %v646
  %v2838 = vunpack.c.h.b16 %v646
  %v2839 = vunpack.c.l.b16 %v647
  %v2840 = vunpack.c.h.b16 %v647
  %v2841 = vunpack.c.l.b16 %v648
  %v2842 = vunpack.c.h.b16 %v648
  %v2843 = vunpack.c.l.b16 %v649
  %v2844 = vunpack.c.h.b16 %v649
  %v2845 = vunpack.c.l.b16 %v650
  %v2846 = vunpack.c.h.b16 %v650
  %v2847 = vunpack.c.l.b16 %v651
  %v2848 = vunpack.c.h.b16 %v651
  %v2849 = vunpack.c.l.b16 %v652
  %v2850 = vunpack.c.h.b16 %v652
  %v2851 = vunpack.c.l.b16 %v653
  %v2852 = vunpack.c.h.b16 %v653
  %v2853 = vunpack.c.l.b16 %v654
  %v2854 = vunpack.c.h.b16 %v654
  %v2855 = vunpack.c.l.b16 %v655
  %v2856 = vunpack.c.h.b16 %v655
  %v2857 = vunpack.c.l.b16 %v656
  %v2858 = vunpack.c.h.b16 %v656
  %v2859 = vunpack.c.l.b16 %v657
  %v2860 = vunpack.c.h.b16 %v657
  %v2861 = vunpack.c.l.b16 %v658
  %v2862 = vunpack.c.h.b16 %v658
  %v2863 = vunpack.c.l.b16 %v659
  %v2864 = vunpack.c.h.b16 %v659
  %v2865 = vunpack.c.l.b16 %v660
  %v2866 = vunpack.c.h.b16 %v660
  %v2867 = vunpack.c.l.b16 %v661
  %v2868 = vunpack.c.h.b16 %v661
  %v2869 = vunpack.c.l.b16 %v662
  %v2870 = vunpack.c.h.b16 %v662
  %v2871 = vpack.c.b16 %v1579, %v1575
  %v2872 = vpack.c.b16 %v1580, %v1576
  %v2873 = vpack.c.b16 %v1581, %v1577
  %v2874 = vpack.c.b16 %v1582, %v1578
  %v2875 = vpack.c.b16 %v1587, %v1583
  %v2876 = vpack.c.b16 %v1588, %v1584
  %v2877 = vpack.c.b16 %v1589, %v1585
  %v2878 = vpack.c.b16 %v1590, %v1586
  %v2879 = vpack.c.b16 %v1595, %v1591
  %v2880 = vpack.c.b16 %v1596, %v1592
  %v2881 = vpack.c.b16 %v1597, %v1593
  %v2882 = vpack.c.b16 %v1598, %v1594
  %v2883 = vpack.c.b16 %v1603, %v1599
  %v2884 = vpack.c.b16 %v1604, %v1600
  %v2885 = vpack.c.b16 %v1605, %v1601
  %v2886 = vpack.c.b16 %v1606, %v1602
  %v2887 = vpack.c.b16 %v1611, %v1607
  %v2888 = vpack.c.b16 %v1612, %v1608
  %v2889 = vpack.c.b16 %v1613, %v1609
  %v2890 = vpack.c.b16 %v1614, %v1610
  %v2891 = vpack.c.b16 %v1619, %v1615
  %v2892 = vpack.c.b16 %v1620, %v1616
  %v2893 = vpack.c.b16 %v1621, %v1617
  %v2894 = vpack.c.b16 %v1622, %v1618
  %v2895 = vpack.c.b16 %v1627, %v1623
  %v2896 = vpack.c.b16 %v1628, %v1624
  %v2897 = vpack.c.b16 %v1629, %v1625
  %v2898 = vpack.c.b16 %v1630, %v1626
  %v2899 = vpack.c.b16 %v1635, %v1631
  %v2900 = vpack.c.b16 %v1636, %v1632
  %v2901 = vpack.c.b16 %v1637, %v1633
  %v2902 = vpack.c.b16 %v1638, %v1634
  %v2903 = vpack.c.b16 %v1643, %v1639
  %v2904 = vpack.c.b16 %v1644, %v1640
  %v2905 = vpack.c.b16 %v1645, %v1641
  %v2906 = vpack.c.b16 %v1646, %v1642
  %v2907 = vpack.c.b16 %v1651, %v1647
  %v2908 = vpack.c.b16 %v1652, %v1648
  %v2909 = vpack.c.b16 %v1653, %v1649
  %v2910 = vpack.c.b16 %v1654, %v1650
  %v2911 = vpack.c.b16 %v1659, %v1655
  %v2912 = vpack.c.b16 %v1660, %v1656
  %v2913 = vpack.c.b16 %v1661, %v1657
  %v2914 = vpack.c.b16 %v1662, %v1658
  %v2915 = vpack.c.b16 %v1667, %v1663
  %v2916 = vpack.c.b16 %v1668, %v1664
  %v2917 = vpack.c.b16 %v1669, %v1665
  %v2918 = vpack.c.b16 %v1670, %v1666
  %v2919 = vpack.c.b16 %v1675, %v1671
  %v2920 = vpack.c.b16 %v1676, %v1672
  %v2921 = vpack.c.b16 %v1677, %v1673
  %v2922 = vpack.c.b16 %v1678, %v1674
  %v2923 = vpack.c.b16 %v1683, %v1679
  %v2924 = vpack.c.b16 %v1684, %v1680
  %v2925 = vpack.c.b16 %v1685, %v1681
  %v2926 = vpack.c.b16 %v1686, %v1682
  %v2927 = vpack.c.b16 %v1691, %v1687
  %v2928 = vpack.c.b16 %v1692, %v1688
  %v2929 = vpack.c.b16 %v1693, %v1689
  %v2930 = vpack.c.b16 %v1694, %v1690
  %v2931 = vpack.c.b16 %v1699, %v1695
  %v2932 = vpack.c.b16 %v1700, %v1696
  %v2933 = vpack.c.b16 %v1701, %v1697
  %v2934 = vpack.c.b16 %v1702, %v1698
  %v2935 = vpack.c.b16 %v1707, %v1703
  %v2936 = vpack.c.b16 %v1708, %v1704
  %v2937 = vpack.c.b16 %v1709, %v1705
  %v2938 = vpack.c.b16 %v1710, %v1706
  %v2939 = vpack.c.b16 %v1715, %v1711
  %v2940 = vpack.c.b16 %v1716, %v1712
  %v2941 = vpack.c.b16 %v1717, %v1713
  %v2942 = vpack.c.b16 %v1718, %v1714
  %v2943 = vpack.c.b16 %v1723, %v1719
  %v2944 = vpack.c.b16 %v1724, %v1720
  %v2945 = vpack.c.b16 %v1725, %v1721
  %v2946 = vpack.c.b16 %v1726, %v1722
  %v2947 = vpack.c.b16 %v1731, %v1727
  %v2948 = vpack.c.b16 %v1732, %v1728
  %v2949 = vpack.c.b16 %v1733, %v1729
  %v2950 = vpack.c.b16 %v1734, %v1730
  %v2951 = vpack.c.b16 %v1739, %v1735
  %v2952 = vpack.c.b16 %v1740, %v1736
  %v2953 = vpack.c.b16 %v1741, %v1737
  %v2954 = vpack.c.b16 %v1742, %v1738
  %v2955 = vpack.c.b16 %v1747, %v1743
  %v2956 = vpack.c.b16 %v1748, %v1744
  %v2957 = vpack.c.b16 %v1749, %v1745
  %v2958 = vpack.c.b16 %v1750, %v1746
  %v2959 = vpack.c.b16 %v1755, %v1751
  %v2960 = vpack.c.b16 %v1756, %v1752
  %v2961 = vpack.c.b16 %v1757, %v1753
  %v2962 = vpack.c.b16 %v1758, %v1754
  %v2963 = vpack.c.b16 %v1763, %v1759
  %v2964 = vpack.c.b16 %v1764, %v1760
  %v2965 = vpack.c.b16 %v1765, %v1761
  %v2966 = vpack.c.b16 %v1766, %v1762
  %v2967 = vpack.c.b16 %v1771, %v1767
  %v2968 = vpack.c.b16 %v1772, %v1768
  %v2969 = vpack.c.b16 %v1773, %v1769
  %v2970 = vpack.c.b16 %v1774, %v1770
  %v2971 = vpack.c.b16 %v1779, %v1775
  %v2972 = vpack.c.b16 %v1780, %v1776
  %v2973 = vpack.c.b16 %v1781, %v1777
  %v2974 = vpack.c.b16 %v1782, %v1778
  %v2975 = vpack.c.b16 %v1787, %v1783
  %v2976 = vpack.c.b16 %v1788, %v1784
  %v2977 = vpack.c.b16 %v1789, %v1785
  %v2978 = vpack.c.b16 %v1790, %v1786
  %v2979 = vpack.c.b16 %v1795, %v1791
  %v2980 = vpack.c.b16 %v1796, %v1792
  %v2981 = vpack.c.b16 %v1797, %v1793
  %v2982 = vpack.c.b16 %v1798, %v1794
  %v2983 = vpack.c.b16 %v1803, %v1799
  %v2984 = vpack.c.b16 %v1804, %v1800
  %v2985 = vpack.c.b16 %v1805, %v1801
  %v2986 = vpack.c.b16 %v1806, %v1802
  %v2987 = vpack.c.b16 %v1811, %v1807
  %v2988 = vpack.c.b16 %v1812, %v1808
  %v2989 = vpack.c.b16 %v1813, %v1809
  %v2990 = vpack.c.b16 %v1814, %v1810
  %v2991 = vpack.c.b16 %v1819, %v1815
  %v2992 = vpack.c.b16 %v1820, %v1816
  %v2993 = vpack.c.b16 %v1821, %v1817
  %v2994 = vpack.c.b16 %v1822, %v1818
  %v2995 = vpack.c.b16 %v1827, %v1823
  %v2996 = vpack.c.b16 %v1828, %v1824
  %v2997 = vpack.c.b16 %v1829, %v1825
  %v2998 = vpack.c.b16 %v1830, %v1826
  %v2999 = vpack.c.b16 %v1835, %v1831
  %v3000 = vpack.c.b16 %v1836, %v1832
  %v3001 = vpack.c.b16 %v1837, %v1833
  %v3002 = vpack.c.b16 %v1838, %v1834
  %v3003 = vpack.c.b16 %v1843, %v1839
  %v3004 = vpack.c.b16 %v1844, %v1840
  %v3005 = vpack.c.b16 %v1845, %v1841
  %v3006 = vpack.c.b16 %v1846, %v1842
  %v3007 = vpack.c.b16 %v1851, %v1847
  %v3008 = vpack.c.b16 %v1852, %v1848
  %v3009 = vpack.c.b16 %v1853, %v1849
  %v3010 = vpack.c.b16 %v1854, %v1850
  %v3011 = vpack.c.b16 %v1859, %v1855
  %v3012 = vpack.c.b16 %v1860, %v1856
  %v3013 = vpack.c.b16 %v1861, %v1857
  %v3014 = vpack.c.b16 %v1862, %v1858
  %v3015 = vpack.c.b16 %v1867, %v1863
  %v3016 = vpack.c.b16 %v1868, %v1864
  %v3017 = vpack.c.b16 %v1869, %v1865
  %v3018 = vpack.c.b16 %v1870, %v1866
  %v3019 = vpack.c.b16 %v1875, %v1871
  %v3020 = vpack.c.b16 %v1876, %v1872
  %v3021 = vpack.c.b16 %v1877, %v1873
  %v3022 = vpack.c.b16 %v1878, %v1874
  %v3023 = vpack.c.b16 %v1883, %v1879
  %v3024 = vpack.c.b16 %v1884, %v1880
  %v3025 = vpack.c.b16 %v1885, %v1881
  %v3026 = vpack.c.b16 %v1886, %v1882
  %v3027 = vpack.c.b16 %v1891, %v1887
  %v3028 = vpack.c.b16 %v1892, %v1888
  %v3029 = vpack.c.b16 %v1893, %v1889
  %v3030 = vpack.c.b16 %v1894, %v1890
  %v3031 = vpack.c.b16 %v1899, %v1895
  %v3032 = vpack.c.b16 %v1900, %v1896
  %v3033 = vpack.c.b16 %v1901, %v1897
  %v3034 = vpack.c.b16 %v1902, %v1898
  %v3035 = vpack.c.b16 %v1907, %v1903
  %v3036 = vpack.c.b16 %v1908, %v1904
  %v3037 = vpack.c.b16 %v1909, %v1905
  %v3038 = vpack.c.b16 %v1910, %v1906
  %v3039 = vpack.c.b16 %v1915, %v1911
  %v3040 = vpack.c.b16 %v1916, %v1912
  %v3041 = vpack.c.b16 %v1917, %v1913
  %v3042 = vpack.c.b16 %v1918, %v1914
  %v3043 = vpack.c.b16 %v1923, %v1919
  %v3044 = vpack.c.b16 %v1924, %v1920
  %v3045 = vpack.c.b16 %v1925, %v1921
  %v3046 = vpack.c.b16 %v1926, %v1922
  %v3047 = vpack.c.b16 %v1931, %v1927
  %v3048 = vpack.c.b16 %v1932, %v1928
  %v3049 = vpack.c.b16 %v1933, %v1929
  %v3050 = vpack.c.b16 %v1934, %v1930
  %v3051 = vpack.c.b16 %v1939, %v1935
  %v3052 = vpack.c.b16 %v1940, %v1936
  %v3053 = vpack.c.b16 %v1941, %v1937
  %v3054 = vpack.c.b16 %v1942, %v1938
  %v3055 = vpack.c.b16 %v1947, %v1943
  %v3056 = vpack.c.b16 %v1948, %v1944
  %v3057 = vpack.c.b16 %v1949, %v1945
  %v3058 = vpack.c.b16 %v1950, %v1946
  %v3059 = vpack.c.b16 %v1955, %v1951
  %v3060 = vpack.c.b16 %v1956, %v1952
  %v3061 = vpack.c.b16 %v1957, %v1953
  %v3062 = vpack.c.b16 %v1958, %v1954
  %v3063 = vpack.c.b16 %v1963, %v1959
  %v3064 = vpack.c.b16 %v1964, %v1960
  %v3065 = vpack.c.b16 %v1965, %v1961
  %v3066 = vpack.c.b16 %v1966, %v1962
  %v3067 = vpack.c.b16 %v1971, %v1967
  %v3068 = vpack.c.b16 %v1972, %v1968
  %v3069 = vpack.c.b16 %v1973, %v1969
  %v3070 = vpack.c.b16 %v1974, %v1970
  %v3071 = vpack.c.b16 %v1979, %v1975
  %v3072 = vpack.c.b16 %v1980, %v1976
  %v3073 = vpack.c.b16 %v1981, %v1977
  %v3074 = vpack.c.b16 %v1982, %v1978
  %v3075 = vpack.c.b16 %v1987, %v1983
  %v3076 = vpack.c.b16 %v1988, %v1984
  %v3077 = vpack.c.b16 %v1989, %v1985
  %v3078 = vpack.c.b16 %v1990, %v1986
  %v3079 = vpack.c.b16 %v1995, %v1991
  %v3080 = vpack.c.b16 %v1996, %v1992
  %v3081 = vpack.c.b16 %v1997, %v1993
  %v3082 = vpack.c.b16 %v1998, %v1994
  %v3083 = vpack.c.b16 %v2003, %v1999
  %v3084 = vpack.c.b16 %v2004, %v2000
  %v3085 = vpack.c.b16 %v2005, %v2001
  %v3086 = vpack.c.b16 %v2006, %v2002
  %v3087 = vpack.c.b16 %v2011, %v2007
  %v3088 = vpack.c.b16 %v2012, %v2008
  %v3089 = vpack.c.b16 %v2013, %v2009
  %v3090 = vpack.c.b16 %v2014, %v2010
  %v3091 = vpack.c.b16 %v2019, %v2015
  %v3092 = vpack.c.b16 %v2020, %v2016
  %v3093 = vpack.c.b16 %v2021, %v2017
  %v3094 = vpack.c.b16 %v2022, %v2018
  %v3095 = vpack.c.b16 %v2027, %v2023
  %v3096 = vpack.c.b16 %v2028, %v2024
  %v3097 = vpack.c.b16 %v2029, %v2025
  %v3098 = vpack.c.b16 %v2030, %v2026
  %v3099 = vpack.c.b16 %v2035, %v2031
  %v3100 = vpack.c.b16 %v2036, %v2032
  %v3101 = vpack.c.b16 %v2037, %v2033
  %v3102 = vpack.c.b16 %v2038, %v2034
  %v3103 = vpack.c.b16 %v2043, %v2039
  %v3104 = vpack.c.b16 %v2044, %v2040
  %v3105 = vpack.c.b16 %v2045, %v2041
  %v3106 = vpack.c.b16 %v2046, %v2042
  %v3107 = vpack.c.b16 %v2051, %v2047
  %v3108 = vpack.c.b16 %v2052, %v2048
  %v3109 = vpack.c.b16 %v2053, %v2049
  %v3110 = vpack.c.b16 %v2054, %v2050
  %v3111 = vpack.c.b16 %v2059, %v2055
  %v3112 = vpack.c.b16 %v2060, %v2056
  %v3113 = vpack.c.b16 %v2061, %v2057
  %v3114 = vpack.c.b16 %v2062, %v2058
  %v3115 = vpack.c.b16 %v2067, %v2063
  %v3116 = vpack.c.b16 %v2068, %v2064
  %v3117 = vpack.c.b16 %v2069, %v2065
  %v3118 = vpack.c.b16 %v2070, %v2066
  %v3119 = vpack.c.b16 %v2075, %v2071
  %v3120 = vpack.c.b16 %v2076, %v2072
  %v3121 = vpack.c.b16 %v2077, %v2073
  %v3122 = vpack.c.b16 %v2078, %v2074
  %v3123 = vpack.c.b16 %v2083, %v2079
  %v3124 = vpack.c.b16 %v2084, %v2080
  %v3125 = vpack.c.b16 %v2085, %v2081
  %v3126 = vpack.c.b16 %v2086, %v2082
  %v3127 = vpack.c.b16 %v2091, %v2087
  %v3128 = vpack.c.b16 %v2092, %v2088
  %v3129 = vpack.c.b16 %v2093, %v2089
  %v3130 = vpack.c.b16 %v2094, %v2090
  %v3131 = vpack.c.b16 %v2099, %v2095
  %v3132 = vpack.c.b16 %v2100, %v2096
  %v3133 = vpack.c.b16 %v2101, %v2097
  %v3134 = vpack.c.b16 %v2102, %v2098
  %v3135 = vpack.c.b16 %v2107, %v2103
  %v3136 = vpack.c.b16 %v2108, %v2104
  %v3137 = vpack.c.b16 %v2109, %v2105
  %v3138 = vpack.c.b16 %v2110, %v2106
  %v3139 = vpack.c.b16 %v2115, %v2111
  %v3140 = vpack.c.b16 %v2116, %v2112
  %v3141 = vpack.c.b16 %v2117, %v2113
  %v3142 = vpack.c.b16 %v2118, %v2114
  %v3143 = vpack.c.b16 %v2123, %v2119
  %v3144 = vpack.c.b16 %v2124, %v2120
  %v3145 = vpack.c.b16 %v2125, %v2121
  %v3146 = vpack.c.b16 %v2126, %v2122
  %v3147 = vpack.c.b16 %v2131, %v2127
  %v3148 = vpack.c.b16 %v2132, %v2128
  %v3149 = vpack.c.b16 %v2133, %v2129
  %v3150 = vpack.c.b16 %v2134, %v2130
  %v3151 = vpack.c.b16 %v2139, %v2135
  %v3152 = vpack.c.b16 %v2140, %v2136
  %v3153 = vpack.c.b16 %v2141, %v2137
  %v3154 = vpack.c.b16 %v2142, %v2138
  %v3155 = vpack.c.b16 %v2147, %v2143
  %v3156 = vpack.c.b16 %v2148, %v2144
  %v3157 = vpack.c.b16 %v2149, %v2145
  %v3158 = vpack.c.b16 %v2150, %v2146
  %v3159 = vpack.c.b16 %v2155, %v2151
  %v3160 = vpack.c.b16 %v2156, %v2152
  %v3161 = vpack.c.b16 %v2157, %v2153
  %v3162 = vpack.c.b16 %v2158, %v2154
  %v3163 = vpack.c.b16 %v2163, %v2159
  %v3164 = vpack.c.b16 %v2164, %v2160
  %v3165 = vpack.c.b16 %v2165, %v2161
  %v3166 = vpack.c.b16 %v2166, %v2162
  %v3167 = vpack.c.b16 %v2171, %v2167
  %v3168 = vpack.c.b16 %v2172, %v2168
  %v3169 = vpack.c.b16 %v2173, %v2169
  %v3170 = vpack.c.b16 %v2174, %v2170
  %v3171 = vpack.c.b16 %v2179, %v2175
  %v3172 = vpack.c.b16 %v2180, %v2176
  %v3173 = vpack.c.b16 %v2181, %v2177
  %v3174 = vpack.c.b16 %v2182, %v2178
  %v3175 = vpack.c.b16 %v2187, %v2183
  %v3176 = vpack.c.b16 %v2188, %v2184
  %v3177 = vpack.c.b16 %v2189, %v2185
  %v3178 = vpack.c.b16 %v2190, %v2186
  %v3179 = vpack.c.b16 %v2195, %v2191
  %v3180 = vpack.c.b16 %v2196, %v2192
  %v3181 = vpack.c.b16 %v2197, %v2193
  %v3182 = vpack.c.b16 %v2198, %v2194
  %v3183 = vpack.c.b16 %v2203, %v2199
  %v3184 = vpack.c.b16 %v2204, %v2200
  %v3185 = vpack.c.b16 %v2205, %v2201
  %v3186 = vpack.c.b16 %v2206, %v2202
  %v3187 = vpack.c.b16 %v2211, %v2207
  %v3188 = vpack.c.b16 %v2212, %v2208
  %v3189 = vpack.c.b16 %v2213, %v2209
  %v3190 = vpack.c.b16 %v2214, %v2210
  %v3191 = vpack.c.b16 %v2219, %v2215
  %v3192 = vpack.c.b16 %v2220, %v2216
  %v3193 = vpack.c.b16 %v2221, %v2217
  %v3194 = vpack.c.b16 %v2222, %v2218
  %v3195 = vpack.c.b16 %v2227, %v2223
  %v3196 = vpack.c.b16 %v2228, %v2224
  %v3197 = vpack.c.b16 %v2229, %v2225
  %v3198 = vpack.c.b16 %v2230, %v2226
  %v3199 = vpack.c.b16 %v2235, %v2231
  %v3200 = vpack.c.b16 %v2236, %v2232
  %v3201 = vpack.c.b16 %v2237, %v2233
  %v3202 = vpack.c.b16 %v2238, %v2234
  %v3203 = vpack.c.b16 %v2243, %v2239
  %v3204 = vpack.c.b16 %v2244, %v2240
  %v3205 = vpack.c.b16 %v2245, %v2241
  %v3206 = vpack.c.b16 %v2246, %v2242
  %v3207 = vpack.c.b16 %v2251, %v2247
  %v3208 = vpack.c.b16 %v2252, %v2248
  %v3209 = vpack.c.b16 %v2253, %v2249
  %v3210 = vpack.c.b16 %v2254, %v2250
  %v3211 = vpack.c.b16 %v2259, %v2255
  %v3212 = vpack.c.b16 %v2260, %v2256
  %v3213 = vpack.c.b16 %v2261, %v2257
  %v3214 = vpack.c.b16 %v2262, %v2258
  %v3215 = vpack.c.b16 %v2267, %v2263
  %v3216 = vpack.c.b16 %v2268, %v2264
  %v3217 = vpack.c.b16 %v2269, %v2265
  %v3218 = vpack.c.b16 %v2270, %v2266
  %v3219 = vpack.c.b16 %v2275, %v2271
  %v3220 = vpack.c.b16 %v2276, %v2272
  %v3221 = vpack.c.b16 %v2277, %v2273
  %v3222 = vpack.c.b16 %v2278, %v2274
  %v3223 = vpack.c.b16 %v2283, %v2279
  %v3224 = vpack.c.b16 %v2284, %v2280
  %v3225 = vpack.c.b16 %v2285, %v2281
  %v3226 = vpack.c.b16 %v2286, %v2282
  %v3227 = vpack.c.b16 %v2291, %v2287
  %v3228 = vpack.c.b16 %v2292, %v2288
  %v3229 = vpack.c.b16 %v2293, %v2289
  %v3230 = vpack.c.b16 %v2294, %v2290
  %v3231 = vpack.c.b16 %v2299, %v2295
  %v3232 = vpack.c.b16 %v2300, %v2296
  %v3233 = vpack.c.b16 %v2301, %v2297
  %v3234 = vpack.c.b16 %v2302, %v2298
  %v3235 = vpack.c.b16 %v2307, %v2303
  %v3236 = vpack.c.b16 %v2308, %v2304
  %v3237 = vpack.c.b16 %v2309, %v2305
  %v3238 = vpack.c.b16 %v2310, %v2306
  %v3239 = vpack.c.b16 %v2315, %v2311
  %v3240 = vpack.c.b16 %v2316, %v2312
  %v3241 = vpack.c.b16 %v2317, %v2313
  %v3242 = vpack.c.b16 %v2318, %v2314
  %v3243 = vpack.c.b16 %v2323, %v2319
  %v3244 = vpack.c.b16 %v2324, %v2320
  %v3245 = vpack.c.b16 %v2325, %v2321
  %v3246 = vpack.c.b16 %v2326, %v2322
  %v3247 = vpack.c.b16 %v2331, %v2327
  %v3248 = vpack.c.b16 %v2332, %v2328
  %v3249 = vpack.c.b16 %v2333, %v2329
  %v3250 = vpack.c.b16 %v2334, %v2330
  %v3251 = vpack.c.b16 %v2339, %v2335
  %v3252 = vpack.c.b16 %v2340, %v2336
  %v3253 = vpack.c.b16 %v2341, %v2337
  %v3254 = vpack.c.b16 %v2342, %v2338
  %v3255 = vpack.c.b16 %v2347, %v2343
  %v3256 = vpack.c.b16 %v2348, %v2344
  %v3257 = vpack.c.b16 %v2349, %v2345
  %v3258 = vpack.c.b16 %v2350, %v2346
  %v3259 = vpack.c.b16 %v2355, %v2351
  %v3260 = vpack.c.b16 %v2356, %v2352
  %v3261 = vpack.c.b16 %v2357, %v2353
  %v3262 = vpack.c.b16 %v2358, %v2354
  %v3263 = vpack.c.b16 %v2363, %v2359
  %v3264 = vpack.c.b16 %v2364, %v2360
  %v3265 = vpack.c.b16 %v2365, %v2361
  %v3266 = vpack.c.b16 %v2366, %v2362
  %v3267 = vpack.c.b16 %v2371, %v2367
  %v3268 = vpack.c.b16 %v2372, %v2368
  %v3269 = vpack.c.b16 %v2373, %v2369
  %v3270 = vpack.c.b16 %v2374, %v2370
  %v3271 = vpack.c.b16 %v2379, %v2375
  %v3272 = vpack.c.b16 %v2380, %v2376
  %v3273 = vpack.c.b16 %v2381, %v2377
  %v3274 = vpack.c.b16 %v2382, %v2378
  %v3275 = vpack.c.b16 %v2387, %v2383
  %v3276 = vpack.c.b16 %v2388, %v2384
  %v3277 = vpack.c.b16 %v2389, %v2385
  %v3278 = vpack.c.b16 %v2390, %v2386
  %v3279 = vpack.c.b16 %v2395, %v2391
  %v3280 = vpack.c.b16 %v2396, %v2392
  %v3281 = vpack.c.b16 %v2397, %v2393
  %v3282 = vpack.c.b16 %v2398, %v2394
  %v3283 = vpack.c.b16 %v2403, %v2399
  %v3284 = vpack.c.b16 %v2404, %v2400
  %v3285 = vpack.c.b16 %v2405, %v2401
  %v3286 = vpack.c.b16 %v2406, %v2402
  %v3287 = vpack.c.b16 %v2411, %v2407
  %v3288 = vpack.c.b16 %v2412, %v2408
  %v3289 = vpack.c.b16 %v2413, %v2409
  %v3290 = vpack.c.b16 %v2414, %v2410
  %v3291 = vpack.c.b16 %v2419, %v2415
  %v3292 = vpack.c.b16 %v2420, %v2416
  %v3293 = vpack.c.b16 %v2421, %v2417
  %v3294 = vpack.c.b16 %v2422, %v2418
  %v3295 = vpack.c.b16 %v2427, %v2423
  %v3296 = vpack.c.b16 %v2428, %v2424
  %v3297 = vpack.c.b16 %v2429, %v2425
  %v3298 = vpack.c.b16 %v2430, %v2426
  %v3299 = vpack.c.b16 %v2435, %v2431
  %v3300 = vpack.c.b16 %v2436, %v2432
  %v3301 = vpack.c.b16 %v2437, %v2433
  %v3302 = vpack.c.b16 %v2438, %v2434
  %v3303 = vpack.c.b16 %v2443, %v2439
  %v3304 = vpack.c.b16 %v2444, %v2440
  %v3305 = vpack.c.b16 %v2445, %v2441
  %v3306 = vpack.c.b16 %v2446, %v2442
  %v3307 = vpack.c.b16 %v2451, %v2447
  %v3308 = vpack.c.b16 %v2452, %v2448
  %v3309 = vpack.c.b16 %v2453, %v2449
  %v3310 = vpack.c.b16 %v2454, %v2450
  %v3311 = vpack.c.b16 %v2459, %v2455
  %v3312 = vpack.c.b16 %v2460, %v2456
  %v3313 = vpack.c.b16 %v2461, %v2457
  %v3314 = vpack.c.b16 %v2462, %v2458
  %v3315 = vpack.c.b16 %v2467, %v2463
  %v3316 = vpack.c.b16 %v2468, %v2464
  %v3317 = vpack.c.b16 %v2469, %v2465
  %v3318 = vpack.c.b16 %v2470, %v2466
  %v3319 = vpack.c.b16 %v2475, %v2471
  %v3320 = vpack.c.b16 %v2476, %v2472
  %v3321 = vpack.c.b16 %v2477, %v2473
  %v3322 = vpack.c.b16 %v2478, %v2474
  %v3323 = vpack.c.b16 %v2483, %v2479
  %v3324 = vpack.c.b16 %v2484, %v2480
  %v3325 = vpack.c.b16 %v2485, %v2481
  %v3326 = vpack.c.b16 %v2486, %v2482
  %v3327 = vpack.c.b16 %v2491, %v2487
  %v3328 = vpack.c.b16 %v2492, %v2488
  %v3329 = vpack.c.b16 %v2493, %v2489
  %v3330 = vpack.c.b16 %v2494, %v2490
  %v3331 = vpack.c.b16 %v2499, %v2495
  %v3332 = vpack.c.b16 %v2500, %v2496
  %v3333 = vpack.c.b16 %v2501, %v2497
  %v3334 = vpack.c.b16 %v2502, %v2498
  %v3335 = vpack.c.b16 %v2507, %v2503
  %v3336 = vpack.c.b16 %v2508, %v2504
  %v3337 = vpack.c.b16 %v2509, %v2505
  %v3338 = vpack.c.b16 %v2510, %v2506
  %v3339 = vpack.c.b16 %v2515, %v2511
  %v3340 = vpack.c.b16 %v2516, %v2512
  %v3341 = vpack.c.b16 %v2517, %v2513
  %v3342 = vpack.c.b16 %v2518, %v2514
  %v3343 = vpack.c.b16 %v2523, %v2519
  %v3344 = vpack.c.b16 %v2524, %v2520
  %v3345 = vpack.c.b16 %v2525, %v2521
  %v3346 = vpack.c.b16 %v2526, %v2522
  %v3347 = vpack.c.b16 %v2531, %v2527
  %v3348 = vpack.c.b16 %v2532, %v2528
  %v3349 = vpack.c.b16 %v2533, %v2529
  %v3350 = vpack.c.b16 %v2534, %v2530
  %v3351 = vpack.c.b16 %v2539, %v2535
  %v3352 = vpack.c.b16 %v2540, %v2536
  %v3353 = vpack.c.b16 %v2541, %v2537
  %v3354 = vpack.c.b16 %v2542, %v2538
  %v3355 = vpack.c.b16 %v2547, %v2543
  %v3356 = vpack.c.b16 %v2548, %v2544
  %v3357 = vpack.c.b16 %v2549, %v2545
  %v3358 = vpack.c.b16 %v2550, %v2546
  %v3359 = vpack.c.b16 %v2555, %v2551
  %v3360 = vpack.c.b16 %v2556, %v2552
  %v3361 = vpack.c.b16 %v2557, %v2553
  %v3362 = vpack.c.b16 %v2558, %v2554
  %v3363 = vpack.c.b16 %v2563, %v2559
  %v3364 = vpack.c.b16 %v2564, %v2560
  %v3365 = vpack.c.b16 %v2565, %v2561
  %v3366 = vpack.c.b16 %v2566, %v2562
  %v3367 = vpack.c.b16 %v2571, %v2567
  %v3368 = vpack.c.b16 %v2572, %v2568
  %v3369 = vpack.c.b16 %v2573, %v2569
  %v3370 = vpack.c.b16 %v2574, %v2570
  %v3371 = vpack.c.b16 %v2579, %v2575
  %v3372 = vpack.c.b16 %v2580, %v2576
  %v3373 = vpack.c.b16 %v2581, %v2577
  %v3374 = vpack.c.b16 %v2582, %v2578
  %v3375 = vpack.c.b16 %v2587, %v2583
  %v3376 = vpack.c.b16 %v2588, %v2584
  %v3377 = vpack.c.b16 %v2589, %v2585
  %v3378 = vpack.c.b16 %v2590, %v2586
  %v3379 = vpack.c.b16 %v2595, %v2591
  %v3380 = vpack.c.b16 %v2596, %v2592
  %v3381 = vpack.c.b16 %v2597, %v2593
  %v3382 = vpack.c.b16 %v2598, %v2594
  %v3383 = vpack.c.b16 %v2603, %v2599
  %v3384 = vpack.c.b16 %v2604, %v2600
  %v3385 = vpack.c.b16 %v2605, %v2601
  %v3386 = vpack.c.b16 %v2606, %v2602
  %v3387 = vpack.c.b16 %v2611, %v2607
  %v3388 = vpack.c.b16 %v2612, %v2608
  %v3389 = vpack.c.b16 %v2613, %v2609
  %v3390 = vpack.c.b16 %v2614, %v2610
  %v3391 = vpack.c.b16 %v2619, %v2615
  %v3392 = vpack.c.b16 %v2620, %v2616
  %v3393 = vpack.c.b16 %v2621, %v2617
  %v3394 = vpack.c.b16 %v2622, %v2618
  %v3395 = vpack.c.b16 %v2627, %v2623
  %v3396 = vpack.c.b16 %v2628, %v2624
  %v3397 = vpack.c.b16 %v2629, %v2625
  %v3398 = vpack.c.b16 %v2630, %v2626
  %v3399 = vpack.c.b16 %v2635, %v2631
  %v3400 = vpack.c.b16 %v2636, %v2632
  %v3401 = vpack.c.b16 %v2637, %v2633
  %v3402 = vpack.c.b16 %v2638, %v2634
  %v3403 = vpack.c.b16 %v2643, %v2639
  %v3404 = vpack.c.b16 %v2644, %v2640
  %v3405 = vpack.c.b16 %v2645, %v2641
  %v3406 = vpack.c.b16 %v2646, %v2642
  %v3407 = vpack.c.b16 %v2651, %v2647
  %v3408 = vpack.c.b16 %v2652, %v2648
  %v3409 = vpack.c.b16 %v2653, %v2649
  %v3410 = vpack.c.b16 %v2654, %v2650
  %v3411 = vpack.c.b16 %v2659, %v2655
  %v3412 = vpack.c.b16 %v2660, %v2656
  %v3413 = vpack.c.b16 %v2661, %v2657
  %v3414 = vpack.c.b16 %v2662, %v2658
  %v3415 = vpack.c.b16 %v2667, %v2663
  %v3416 = vpack.c.b16 %v2668, %v2664
  %v3417 = vpack.c.b16 %v2669, %v2665
  %v3418 = vpack.c.b16 %v2670, %v2666
  %v3419 = vpack.c.b16 %v2675, %v2671
  %v3420 = vpack.c.b16 %v2676, %v2672
  %v3421 = vpack.c.b16 %v2677, %v2673
  %v3422 = vpack.c.b16 %v2678, %v2674
  %v3423 = vpack.c.b16 %v2683, %v2679
  %v3424 = vpack.c.b16 %v2684, %v2680
  %v3425 = vpack.c.b16 %v2685, %v2681
  %v3426 = vpack.c.b16 %v2686, %v2682
  %v3427 = vpack.c.b16 %v2691, %v2687
  %v3428 = vpack.c.b16 %v2692, %v2688
  %v3429 = vpack.c.b16 %v2693, %v2689
  %v3430 = vpack.c.b16 %v2694, %v2690
  %v3431 = vpack.c.b16 %v2699, %v2695
  %v3432 = vpack.c.b16 %v2700, %v2696
  %v3433 = vpack.c.b16 %v2701, %v2697
  %v3434 = vpack.c.b16 %v2702, %v2698
  %v3435 = vpack.c.b16 %v2707, %v2703
  %v3436 = vpack.c.b16 %v2708, %v2704
  %v3437 = vpack.c.b16 %v2709, %v2705
  %v3438 = vpack.c.b16 %v2710, %v2706
  %v3439 = vpack.c.b16 %v2715, %v2711
  %v3440 = vpack.c.b16 %v2716, %v2712
  %v3441 = vpack.c.b16 %v2717, %v2713
  %v3442 = vpack.c.b16 %v2718, %v2714
  %v3443 = vpack.c.b16 %v2723, %v2719
  %v3444 = vpack.c.b16 %v2724, %v2720
  %v3445 = vpack.c.b16 %v2725, %v2721
  %v3446 = vpack.c.b16 %v2726, %v2722
  %v3447 = vpack.c.b16 %v2731, %v2727
  %v3448 = vpack.c.b16 %v2732, %v2728
  %v3449 = vpack.c.b16 %v2733, %v2729
  %v3450 = vpack.c.b16 %v2734, %v2730
  %v3451 = vpack.c.b16 %v2739, %v2735
  %v3452 = vpack.c.b16 %v2740, %v2736
  %v3453 = vpack.c.b16 %v2741, %v2737
  %v3454 = vpack.c.b16 %v2742, %v2738
  %v3455 = vpack.c.b16 %v2747, %v2743
  %v3456 = vpack.c.b16 %v2748, %v2744
  %v3457 = vpack.c.b16 %v2749, %v2745
  %v3458 = vpack.c.b16 %v2750, %v2746
  %v3459 = vpack.c.b16 %v2755, %v2751
  %v3460 = vpack.c.b16 %v2756, %v2752
  %v3461 = vpack.c.b16 %v2757, %v2753
  %v3462 = vpack.c.b16 %v2758, %v2754
  %v3463 = vpack.c.b16 %v2763, %v2759
  %v3464 = vpack.c.b16 %v2764, %v2760
  %v3465 = vpack.c.b16 %v2765, %v2761
  %v3466 = vpack.c.b16 %v2766, %v2762
  %v3467 = vpack.c.b16 %v2771, %v2767
  %v3468 = vpack.c.b16 %v2772, %v2768
  %v3469 = vpack.c.b16 %v2773, %v2769
  %v3470 = vpack.c.b16 %v2774, %v2770
  %v3471 = vpack.c.b16 %v2779, %v2775
  %v3472 = vpack.c.b16 %v2780, %v2776
  %v3473 = vpack.c.b16 %v2781, %v2777
  %v3474 = vpack.c.b16 %v2782, %v2778
  %v3475 = vpack.c.b16 %v2787, %v2783
  %v3476 = vpack.c.b16 %v2788, %v2784
  %v3477 = vpack.c.b16 %v2789, %v2785
  %v3478 = vpack.c.b16 %v2790, %v2786
  %v3479 = vpack.c.b16 %v2795, %v2791
  %v3480 = vpack.c.b16 %v2796, %v2792
  %v3481 = vpack.c.b16 %v2797, %v2793
  %v3482 = vpack.c.b16 %v2798, %v2794
  %v3483 = vpack.c.b16 %v2803, %v2799
  %v3484 = vpack.c.b16 %v2804, %v2800
  %v3485 = vpack.c.b16 %v2805, %v2801
  %v3486 = vpack.c.b16 %v2806, %v2802
  %v3487 = vpack.c.b16 %v2811, %v2807
  %v3488 = vpack.c.b16 %v2812, %v2808
  %v3489 = vpack.c.b16 %v2813, %v2809
  %v3490 = vpack.c.b16 %v2814, %v2810
  %v3491 = vpack.c.b16 %v2819, %v2815
  %v3492 = vpack.c.b16 %v2820, %v2816
  %v3493 = vpack.c.b16 %v2821, %v2817
  %v3494 = vpack.c.b16 %v2822, %v2818
  %v3495 = vpack.c.b16 %v2827, %v2823
  %v3496 = vpack.c.b16 %v2828, %v2824
  %v3497 = vpack.c.b16 %v2829, %v2825
  %v3498 = vpack.c.b16 %v2830, %v2826
  %v3499 = vpack.c.b16 %v2835, %v2831
  %v3500 = vpack.c.b16 %v2836, %v2832
  %v3501 = vpack.c.b16 %v2837, %v2833
  %v3502 = vpack.c.b16 %v2838, %v2834
  %v3503 = vpack.c.b16 %v2843, %v2839
  %v3504 = vpack.c.b16 %v2844, %v2840
  %v3505 = vpack.c.b16 %v2845, %v2841
  %v3506 = vpack.c.b16 %v2846, %v2842
  %v3507 = vpack.c.b16 %v2851, %v2847
  %v3508 = vpack.c.b16 %v2852, %v2848
  %v3509 = vpack.c.b16 %v2853, %v2849
  %v3510 = vpack.c.b16 %v2854, %v2850
  %v3511 = vpack.c.b16 %v2859, %v2855
  %v3512 = vpack.c.b16 %v2860, %v2856
  %v3513 = vpack.c.b16 %v2861, %v2857
  %v3514 = vpack.c.b16 %v2862, %v2858
  %v3515 = vpack.c.b16 %v2867, %v2863
  %v3516 = vpack.c.b16 %v2868, %v2864
  %v3517 = vpack.c.b16 %v2869, %v2865
  %v3518 = vpack.c.b16 %v2870, %v2866
  %vm4167 = vcmask 261120
  %v4169 = vsel %vm4167, %v865, 0
  %v4172 = vsel %vm4167, %v886, 0
  %4174 = vmatpush.bf16.msra.mxu0 %v2899
  %4175 = vmatpush.bf16.msra.mxu0 %v2895
  %4176 = vmatpush.bf16.msra.mxu0 %v2891
  %4177 = vmatpush.bf16.msra.mxu0 %v2887
  %4178 = vmatpush.bf16.msra.mxu0 %v2883
  %4179 = vmatpush.bf16.msra.mxu0 %v2879
  %4180 = vmatpush.bf16.msra.mxu0 %v2875
  %4181 = vmatpush.bf16.msra.mxu0 %v2871
  %4182 = vmatmul.bf16.gmra.mxu0 %v845
  %v4183 = vpop.f32.mrf.mxu0
  %v4184 = vadd.f32 %v709, %v4183
  %v4185 = vpop.f32.mrf.mxu0
  %v4186 = vadd.f32 %v709, %v4185
  %4187 = vmatmul.bf16.gmra.mxu0 %v866
  %v4188 = vpop.f32.mrf.mxu0
  %v4189 = vadd.f32 %v709, %v4188
  %v4190 = vpop.f32.mrf.mxu0
  %v4191 = vadd.f32 %v709, %v4190
  %4192 = vdwg.mxu0
  %4193 = vmatpush.bf16.msra.mxu0 %v2931
  %4194 = vmatpush.bf16.msra.mxu0 %v2927
  %4195 = vmatpush.bf16.msra.mxu0 %v2923
  %4196 = vmatpush.bf16.msra.mxu0 %v2919
  %4197 = vmatpush.bf16.msra.mxu0 %v2915
  %4198 = vmatpush.bf16.msra.mxu0 %v2911
  %4199 = vmatpush.bf16.msra.mxu0 %v2907
  %4200 = vmatpush.bf16.msra.mxu0 %v2903
  %4201 = vmatmul.bf16.gmra.mxu0 %v846
  %v4202 = vpop.f32.mrf.mxu0
  %v4203 = vadd.f32 %v4184, %v4202
  %v4204 = vpop.f32.mrf.mxu0
  %v4205 = vadd.f32 %v4186, %v4204
  %4206 = vmatmul.bf16.gmra.mxu0 %v867
  %v4207 = vpop.f32.mrf.mxu0
  %v4208 = vadd.f32 %v4189, %v4207
  %v4209 = vpop.f32.mrf.mxu0
  %v4210 = vadd.f32 %v4191, %v4209
  %4211 = vdwg.mxu0
  %4212 = vmatpush.bf16.msra.mxu0 %v2963
  %4213 = vmatpush.bf16.msra.mxu0 %v2959
  %4214 = vmatpush.bf16.msra.mxu0 %v2955
  %4215 = vmatpush.bf16.msra.mxu0 %v2951
  %4216 = vmatpush.bf16.msra.mxu0 %v2947
  %4217 = vmatpush.bf16.msra.mxu0 %v2943
  %4218 = vmatpush.bf16.msra.mxu0 %v2939
  %4219 = vmatpush.bf16.msra.mxu0 %v2935
  %4220 = vmatmul.bf16.gmra.mxu0 %v847
  %v4221 = vpop.f32.mrf.mxu0
  %v4222 = vadd.f32 %v4203, %v4221
  %v4223 = vpop.f32.mrf.mxu0
  %v4224 = vadd.f32 %v4205, %v4223
  %4225 = vmatmul.bf16.gmra.mxu0 %v868
  %v4226 = vpop.f32.mrf.mxu0
  %v4227 = vadd.f32 %v4208, %v4226
  %v4228 = vpop.f32.mrf.mxu0
  %v4229 = vadd.f32 %v4210, %v4228
  %4230 = vdwg.mxu0
  %4231 = vmatpush.bf16.msra.mxu0 %v2995
  %4232 = vmatpush.bf16.msra.mxu0 %v2991
  %4233 = vmatpush.bf16.msra.mxu0 %v2987
  %4234 = vmatpush.bf16.msra.mxu0 %v2983
  %4235 = vmatpush.bf16.msra.mxu0 %v2979
  %4236 = vmatpush.bf16.msra.mxu0 %v2975
  %4237 = vmatpush.bf16.msra.mxu0 %v2971
  %4238 = vmatpush.bf16.msra.mxu0 %v2967
  %4239 = vmatmul.bf16.gmra.mxu0 %v848
  %v4240 = vpop.f32.mrf.mxu0
  %v4241 = vadd.f32 %v4222, %v4240
  %v4242 = vpop.f32.mrf.mxu0
  %v4243 = vadd.f32 %v4224, %v4242
  %4244 = vmatmul.bf16.gmra.mxu0 %v869
  %v4245 = vpop.f32.mrf.mxu0
  %v4246 = vadd.f32 %v4227, %v4245
  %v4247 = vpop.f32.mrf.mxu0
  %v4248 = vadd.f32 %v4229, %v4247
  %4249 = vdwg.mxu0
  %4250 = vmatpush.bf16.msra.mxu0 %v3027
  %4251 = vmatpush.bf16.msra.mxu0 %v3023
  %4252 = vmatpush.bf16.msra.mxu0 %v3019
  %4253 = vmatpush.bf16.msra.mxu0 %v3015
  %4254 = vmatpush.bf16.msra.mxu0 %v3011
  %4255 = vmatpush.bf16.msra.mxu0 %v3007
  %4256 = vmatpush.bf16.msra.mxu0 %v3003
  %4257 = vmatpush.bf16.msra.mxu0 %v2999
  %4258 = vmatmul.bf16.gmra.mxu0 %v849
  %v4259 = vpop.f32.mrf.mxu0
  %v4260 = vadd.f32 %v4241, %v4259
  %v4261 = vpop.f32.mrf.mxu0
  %v4262 = vadd.f32 %v4243, %v4261
  %4263 = vmatmul.bf16.gmra.mxu0 %v870
  %v4264 = vpop.f32.mrf.mxu0
  %v4265 = vadd.f32 %v4246, %v4264
  %v4266 = vpop.f32.mrf.mxu0
  %v4267 = vadd.f32 %v4248, %v4266
  %4268 = vdwg.mxu0
  %4269 = vmatpush.bf16.msra.mxu0 %v3059
  %4270 = vmatpush.bf16.msra.mxu0 %v3055
  %4271 = vmatpush.bf16.msra.mxu0 %v3051
  %4272 = vmatpush.bf16.msra.mxu0 %v3047
  %4273 = vmatpush.bf16.msra.mxu0 %v3043
  %4274 = vmatpush.bf16.msra.mxu0 %v3039
  %4275 = vmatpush.bf16.msra.mxu0 %v3035
  %4276 = vmatpush.bf16.msra.mxu0 %v3031
  %4277 = vmatmul.bf16.gmra.mxu0 %v850
  %v4278 = vpop.f32.mrf.mxu0
  %v4279 = vadd.f32 %v4260, %v4278
  %v4280 = vpop.f32.mrf.mxu0
  %v4281 = vadd.f32 %v4262, %v4280
  %4282 = vmatmul.bf16.gmra.mxu0 %v871
  %v4283 = vpop.f32.mrf.mxu0
  %v4284 = vadd.f32 %v4265, %v4283
  %v4285 = vpop.f32.mrf.mxu0
  %v4286 = vadd.f32 %v4267, %v4285
  %4287 = vdwg.mxu0
  %4288 = vmatpush.bf16.msra.mxu0 %v3091
  %4289 = vmatpush.bf16.msra.mxu0 %v3087
  %4290 = vmatpush.bf16.msra.mxu0 %v3083
  %4291 = vmatpush.bf16.msra.mxu0 %v3079
  %4292 = vmatpush.bf16.msra.mxu0 %v3075
  %4293 = vmatpush.bf16.msra.mxu0 %v3071
  %4294 = vmatpush.bf16.msra.mxu0 %v3067
  %4295 = vmatpush.bf16.msra.mxu0 %v3063
  %4296 = vmatmul.bf16.gmra.mxu0 %v851
  %v4297 = vpop.f32.mrf.mxu0
  %v4298 = vadd.f32 %v4279, %v4297
  %v4299 = vpop.f32.mrf.mxu0
  %v4300 = vadd.f32 %v4281, %v4299
  %4301 = vmatmul.bf16.gmra.mxu0 %v872
  %v4302 = vpop.f32.mrf.mxu0
  %v4303 = vadd.f32 %v4284, %v4302
  %v4304 = vpop.f32.mrf.mxu0
  %v4305 = vadd.f32 %v4286, %v4304
  %4306 = vdwg.mxu0
  %4307 = vmatpush.bf16.msra.mxu0 %v3123
  %4308 = vmatpush.bf16.msra.mxu0 %v3119
  %4309 = vmatpush.bf16.msra.mxu0 %v3115
  %4310 = vmatpush.bf16.msra.mxu0 %v3111
  %4311 = vmatpush.bf16.msra.mxu0 %v3107
  %4312 = vmatpush.bf16.msra.mxu0 %v3103
  %4313 = vmatpush.bf16.msra.mxu0 %v3099
  %4314 = vmatpush.bf16.msra.mxu0 %v3095
  %4315 = vmatmul.bf16.gmra.mxu0 %v852
  %v4316 = vpop.f32.mrf.mxu0
  %v4317 = vadd.f32 %v4298, %v4316
  %v4318 = vpop.f32.mrf.mxu0
  %v4319 = vadd.f32 %v4300, %v4318
  %4320 = vmatmul.bf16.gmra.mxu0 %v873
  %v4321 = vpop.f32.mrf.mxu0
  %v4322 = vadd.f32 %v4303, %v4321
  %v4323 = vpop.f32.mrf.mxu0
  %v4324 = vadd.f32 %v4305, %v4323
  %4325 = vdwg.mxu0
  %4326 = vmatpush.bf16.msra.mxu0 %v3155
  %4327 = vmatpush.bf16.msra.mxu0 %v3151
  %4328 = vmatpush.bf16.msra.mxu0 %v3147
  %4329 = vmatpush.bf16.msra.mxu0 %v3143
  %4330 = vmatpush.bf16.msra.mxu0 %v3139
  %4331 = vmatpush.bf16.msra.mxu0 %v3135
  %4332 = vmatpush.bf16.msra.mxu0 %v3131
  %4333 = vmatpush.bf16.msra.mxu0 %v3127
  %4334 = vmatmul.bf16.gmra.mxu0 %v853
  %v4335 = vpop.f32.mrf.mxu0
  %v4336 = vadd.f32 %v4317, %v4335
  %v4337 = vpop.f32.mrf.mxu0
  %v4338 = vadd.f32 %v4319, %v4337
  %4339 = vmatmul.bf16.gmra.mxu0 %v874
  %v4340 = vpop.f32.mrf.mxu0
  %v4341 = vadd.f32 %v4322, %v4340
  %v4342 = vpop.f32.mrf.mxu0
  %v4343 = vadd.f32 %v4324, %v4342
  %4344 = vdwg.mxu0
  %4345 = vmatpush.bf16.msra.mxu0 %v3187
  %4346 = vmatpush.bf16.msra.mxu0 %v3183
  %4347 = vmatpush.bf16.msra.mxu0 %v3179
  %4348 = vmatpush.bf16.msra.mxu0 %v3175
  %4349 = vmatpush.bf16.msra.mxu0 %v3171
  %4350 = vmatpush.bf16.msra.mxu0 %v3167
  %4351 = vmatpush.bf16.msra.mxu0 %v3163
  %4352 = vmatpush.bf16.msra.mxu0 %v3159
  %4353 = vmatmul.bf16.gmra.mxu0 %v854
  %v4354 = vpop.f32.mrf.mxu0
  %v4355 = vadd.f32 %v4336, %v4354
  %v4356 = vpop.f32.mrf.mxu0
  %v4357 = vadd.f32 %v4338, %v4356
  %4358 = vmatmul.bf16.gmra.mxu0 %v875
  %v4359 = vpop.f32.mrf.mxu0
  %v4360 = vadd.f32 %v4341, %v4359
  %v4361 = vpop.f32.mrf.mxu0
  %v4362 = vadd.f32 %v4343, %v4361
  %4363 = vdwg.mxu0
  %4364 = vmatpush.bf16.msra.mxu0 %v3219
  %4365 = vmatpush.bf16.msra.mxu0 %v3215
  %4366 = vmatpush.bf16.msra.mxu0 %v3211
  %4367 = vmatpush.bf16.msra.mxu0 %v3207
  %4368 = vmatpush.bf16.msra.mxu0 %v3203
  %4369 = vmatpush.bf16.msra.mxu0 %v3199
  %4370 = vmatpush.bf16.msra.mxu0 %v3195
  %4371 = vmatpush.bf16.msra.mxu0 %v3191
  %4372 = vmatmul.bf16.gmra.mxu0 %v855
  %v4373 = vpop.f32.mrf.mxu0
  %v4374 = vadd.f32 %v4355, %v4373
  %v4375 = vpop.f32.mrf.mxu0
  %v4376 = vadd.f32 %v4357, %v4375
  %4377 = vmatmul.bf16.gmra.mxu0 %v876
  %v4378 = vpop.f32.mrf.mxu0
  %v4379 = vadd.f32 %v4360, %v4378
  %v4380 = vpop.f32.mrf.mxu0
  %v4381 = vadd.f32 %v4362, %v4380
  %4382 = vdwg.mxu0
  %4383 = vmatpush.bf16.msra.mxu0 %v3251
  %4384 = vmatpush.bf16.msra.mxu0 %v3247
  %4385 = vmatpush.bf16.msra.mxu0 %v3243
  %4386 = vmatpush.bf16.msra.mxu0 %v3239
  %4387 = vmatpush.bf16.msra.mxu0 %v3235
  %4388 = vmatpush.bf16.msra.mxu0 %v3231
  %4389 = vmatpush.bf16.msra.mxu0 %v3227
  %4390 = vmatpush.bf16.msra.mxu0 %v3223
  %4391 = vmatmul.bf16.gmra.mxu0 %v856
  %v4392 = vpop.f32.mrf.mxu0
  %v4393 = vadd.f32 %v4374, %v4392
  %v4394 = vpop.f32.mrf.mxu0
  %v4395 = vadd.f32 %v4376, %v4394
  %4396 = vmatmul.bf16.gmra.mxu0 %v877
  %v4397 = vpop.f32.mrf.mxu0
  %v4398 = vadd.f32 %v4379, %v4397
  %v4399 = vpop.f32.mrf.mxu0
  %v4400 = vadd.f32 %v4381, %v4399
  %4401 = vdwg.mxu0
  %4402 = vmatpush.bf16.msra.mxu0 %v3283
  %4403 = vmatpush.bf16.msra.mxu0 %v3279
  %4404 = vmatpush.bf16.msra.mxu0 %v3275
  %4405 = vmatpush.bf16.msra.mxu0 %v3271
  %4406 = vmatpush.bf16.msra.mxu0 %v3267
  %4407 = vmatpush.bf16.msra.mxu0 %v3263
  %4408 = vmatpush.bf16.msra.mxu0 %v3259
  %4409 = vmatpush.bf16.msra.mxu0 %v3255
  %4410 = vmatmul.bf16.gmra.mxu0 %v857
  %v4411 = vpop.f32.mrf.mxu0
  %v4412 = vadd.f32 %v4393, %v4411
  %v4413 = vpop.f32.mrf.mxu0
  %v4414 = vadd.f32 %v4395, %v4413
  %4415 = vmatmul.bf16.gmra.mxu0 %v878
  %v4416 = vpop.f32.mrf.mxu0
  %v4417 = vadd.f32 %v4398, %v4416
  %v4418 = vpop.f32.mrf.mxu0
  %v4419 = vadd.f32 %v4400, %v4418
  %4420 = vdwg.mxu0
  %4421 = vmatpush.bf16.msra.mxu0 %v3315
  %4422 = vmatpush.bf16.msra.mxu0 %v3311
  %4423 = vmatpush.bf16.msra.mxu0 %v3307
  %4424 = vmatpush.bf16.msra.mxu0 %v3303
  %4425 = vmatpush.bf16.msra.mxu0 %v3299
  %4426 = vmatpush.bf16.msra.mxu0 %v3295
  %4427 = vmatpush.bf16.msra.mxu0 %v3291
  %4428 = vmatpush.bf16.msra.mxu0 %v3287
  %4429 = vmatmul.bf16.gmra.mxu0 %v858
  %v4430 = vpop.f32.mrf.mxu0
  %v4431 = vadd.f32 %v4412, %v4430
  %v4432 = vpop.f32.mrf.mxu0
  %v4433 = vadd.f32 %v4414, %v4432
  %4434 = vmatmul.bf16.gmra.mxu0 %v879
  %v4435 = vpop.f32.mrf.mxu0
  %v4436 = vadd.f32 %v4417, %v4435
  %v4437 = vpop.f32.mrf.mxu0
  %v4438 = vadd.f32 %v4419, %v4437
  %4439 = vdwg.mxu0
  %4440 = vmatpush.bf16.msra.mxu0 %v3347
  %4441 = vmatpush.bf16.msra.mxu0 %v3343
  %4442 = vmatpush.bf16.msra.mxu0 %v3339
  %4443 = vmatpush.bf16.msra.mxu0 %v3335
  %4444 = vmatpush.bf16.msra.mxu0 %v3331
  %4445 = vmatpush.bf16.msra.mxu0 %v3327
  %4446 = vmatpush.bf16.msra.mxu0 %v3323
  %4447 = vmatpush.bf16.msra.mxu0 %v3319
  %4448 = vmatmul.bf16.gmra.mxu0 %v859
  %v4449 = vpop.f32.mrf.mxu0
  %v4450 = vadd.f32 %v4431, %v4449
  %v4451 = vpop.f32.mrf.mxu0
  %v4452 = vadd.f32 %v4433, %v4451
  %4453 = vmatmul.bf16.gmra.mxu0 %v880
  %v4454 = vpop.f32.mrf.mxu0
  %v4455 = vadd.f32 %v4436, %v4454
  %v4456 = vpop.f32.mrf.mxu0
  %v4457 = vadd.f32 %v4438, %v4456
  %4458 = vdwg.mxu0
  %4459 = vmatpush.bf16.msra.mxu0 %v3379
  %4460 = vmatpush.bf16.msra.mxu0 %v3375
  %4461 = vmatpush.bf16.msra.mxu0 %v3371
  %4462 = vmatpush.bf16.msra.mxu0 %v3367
  %4463 = vmatpush.bf16.msra.mxu0 %v3363
  %4464 = vmatpush.bf16.msra.mxu0 %v3359
  %4465 = vmatpush.bf16.msra.mxu0 %v3355
  %4466 = vmatpush.bf16.msra.mxu0 %v3351
  %4467 = vmatmul.bf16.gmra.mxu0 %v860
  %v4468 = vpop.f32.mrf.mxu0
  %v4469 = vadd.f32 %v4450, %v4468
  %v4470 = vpop.f32.mrf.mxu0
  %v4471 = vadd.f32 %v4452, %v4470
  %4472 = vmatmul.bf16.gmra.mxu0 %v881
  %v4473 = vpop.f32.mrf.mxu0
  %v4474 = vadd.f32 %v4455, %v4473
  %v4475 = vpop.f32.mrf.mxu0
  %v4476 = vadd.f32 %v4457, %v4475
  %4477 = vdwg.mxu0
  %4478 = vmatpush.bf16.msra.mxu0 %v3411
  %4479 = vmatpush.bf16.msra.mxu0 %v3407
  %4480 = vmatpush.bf16.msra.mxu0 %v3403
  %4481 = vmatpush.bf16.msra.mxu0 %v3399
  %4482 = vmatpush.bf16.msra.mxu0 %v3395
  %4483 = vmatpush.bf16.msra.mxu0 %v3391
  %4484 = vmatpush.bf16.msra.mxu0 %v3387
  %4485 = vmatpush.bf16.msra.mxu0 %v3383
  %4486 = vmatmul.bf16.gmra.mxu0 %v861
  %v4487 = vpop.f32.mrf.mxu0
  %v4488 = vadd.f32 %v4469, %v4487
  %v4489 = vpop.f32.mrf.mxu0
  %v4490 = vadd.f32 %v4471, %v4489
  %4491 = vmatmul.bf16.gmra.mxu0 %v882
  %v4492 = vpop.f32.mrf.mxu0
  %v4493 = vadd.f32 %v4474, %v4492
  %v4494 = vpop.f32.mrf.mxu0
  %v4495 = vadd.f32 %v4476, %v4494
  %4496 = vdwg.mxu0
  %4497 = vmatpush.bf16.msra.mxu0 %v3443
  %4498 = vmatpush.bf16.msra.mxu0 %v3439
  %4499 = vmatpush.bf16.msra.mxu0 %v3435
  %4500 = vmatpush.bf16.msra.mxu0 %v3431
  %4501 = vmatpush.bf16.msra.mxu0 %v3427
  %4502 = vmatpush.bf16.msra.mxu0 %v3423
  %4503 = vmatpush.bf16.msra.mxu0 %v3419
  %4504 = vmatpush.bf16.msra.mxu0 %v3415
  %4505 = vmatmul.bf16.gmra.mxu0 %v862
  %v4506 = vpop.f32.mrf.mxu0
  %v4507 = vadd.f32 %v4488, %v4506
  %v4508 = vpop.f32.mrf.mxu0
  %v4509 = vadd.f32 %v4490, %v4508
  %4510 = vmatmul.bf16.gmra.mxu0 %v883
  %v4511 = vpop.f32.mrf.mxu0
  %v4512 = vadd.f32 %v4493, %v4511
  %v4513 = vpop.f32.mrf.mxu0
  %v4514 = vadd.f32 %v4495, %v4513
  %4515 = vdwg.mxu0
  %4516 = vmatpush.bf16.msra.mxu0 %v3475
  %4517 = vmatpush.bf16.msra.mxu0 %v3471
  %4518 = vmatpush.bf16.msra.mxu0 %v3467
  %4519 = vmatpush.bf16.msra.mxu0 %v3463
  %4520 = vmatpush.bf16.msra.mxu0 %v3459
  %4521 = vmatpush.bf16.msra.mxu0 %v3455
  %4522 = vmatpush.bf16.msra.mxu0 %v3451
  %4523 = vmatpush.bf16.msra.mxu0 %v3447
  %4524 = vmatmul.bf16.gmra.mxu0 %v863
  %v4525 = vpop.f32.mrf.mxu0
  %v4526 = vadd.f32 %v4507, %v4525
  %v4527 = vpop.f32.mrf.mxu0
  %v4528 = vadd.f32 %v4509, %v4527
  %4529 = vmatmul.bf16.gmra.mxu0 %v884
  %v4530 = vpop.f32.mrf.mxu0
  %v4531 = vadd.f32 %v4512, %v4530
  %v4532 = vpop.f32.mrf.mxu0
  %v4533 = vadd.f32 %v4514, %v4532
  %4534 = vdwg.mxu0
  %4535 = vmatpush.bf16.msra.mxu0 %v3507
  %4536 = vmatpush.bf16.msra.mxu0 %v3503
  %4537 = vmatpush.bf16.msra.mxu0 %v3499
  %4538 = vmatpush.bf16.msra.mxu0 %v3495
  %4539 = vmatpush.bf16.msra.mxu0 %v3491
  %4540 = vmatpush.bf16.msra.mxu0 %v3487
  %4541 = vmatpush.bf16.msra.mxu0 %v3483
  %4542 = vmatpush.bf16.msra.mxu0 %v3479
  %4543 = vmatmul.bf16.gmra.mxu0 %v864
  %v4544 = vpop.f32.mrf.mxu0
  %v4545 = vadd.f32 %v4526, %v4544
  %v4546 = vpop.f32.mrf.mxu0
  %v4547 = vadd.f32 %v4528, %v4546
  %4548 = vmatmul.bf16.gmra.mxu0 %v885
  %v4549 = vpop.f32.mrf.mxu0
  %v4550 = vadd.f32 %v4531, %v4549
  %v4551 = vpop.f32.mrf.mxu0
  %v4552 = vadd.f32 %v4533, %v4551
  %4553 = vdwg.mxu0
  %4554 = vmatpush.bf16.msra.mxu0 0
  %4555 = vmatpush.bf16.msra.mxu0 0
  %4556 = vmatpush.bf16.msra.mxu0 0
  %4557 = vmatpush.bf16.msra.mxu0 0
  %4558 = vmatpush.bf16.msra.mxu0 0
  %4559 = vmatpush.bf16.msra.mxu0 0
  %4560 = vmatpush.bf16.msra.mxu0 %v3515
  %4561 = vmatpush.bf16.msra.mxu0 %v3511
  %4562 = vmatmul.bf16.gmra.mxu0 %v4169
  %v4563 = vpop.f32.mrf.mxu0
  %v4564 = vadd.f32 %v4545, %v4563
  %v4565 = vpop.f32.mrf.mxu0
  %v4566 = vadd.f32 %v4547, %v4565
  %4567 = vmatmul.bf16.gmra.mxu0 %v4172
  %v4568 = vpop.f32.mrf.mxu0
  %v4569 = vadd.f32 %v4550, %v4568
  %v4570 = vpop.f32.mrf.mxu0
  %v4571 = vadd.f32 %v4552, %v4570
  %4572 = vdwg.mxu0
  %4573 = vmatpush.bf16.msra.mxu0 %v2900
  %4574 = vmatpush.bf16.msra.mxu0 %v2896
  %4575 = vmatpush.bf16.msra.mxu0 %v2892
  %4576 = vmatpush.bf16.msra.mxu0 %v2888
  %4577 = vmatpush.bf16.msra.mxu0 %v2884
  %4578 = vmatpush.bf16.msra.mxu0 %v2880
  %4579 = vmatpush.bf16.msra.mxu0 %v2876
  %4580 = vmatpush.bf16.msra.mxu0 %v2872
  %4581 = vmatmul.bf16.gmra.mxu0 %v845
  %v4582 = vpop.f32.mrf.mxu0
  %v4583 = vadd.f32 %v710, %v4582
  %v4584 = vpop.f32.mrf.mxu0
  %v4585 = vadd.f32 %v710, %v4584
  %4586 = vmatmul.bf16.gmra.mxu0 %v866
  %v4587 = vpop.f32.mrf.mxu0
  %v4588 = vadd.f32 %v710, %v4587
  %v4589 = vpop.f32.mrf.mxu0
  %v4590 = vadd.f32 %v710, %v4589
  %4591 = vdwg.mxu0
  %4592 = vmatpush.bf16.msra.mxu0 %v2932
  %4593 = vmatpush.bf16.msra.mxu0 %v2928
  %4594 = vmatpush.bf16.msra.mxu0 %v2924
  %4595 = vmatpush.bf16.msra.mxu0 %v2920
  %4596 = vmatpush.bf16.msra.mxu0 %v2916
  %4597 = vmatpush.bf16.msra.mxu0 %v2912
  %4598 = vmatpush.bf16.msra.mxu0 %v2908
  %4599 = vmatpush.bf16.msra.mxu0 %v2904
  %4600 = vmatmul.bf16.gmra.mxu0 %v846
  %v4601 = vpop.f32.mrf.mxu0
  %v4602 = vadd.f32 %v4583, %v4601
  %v4603 = vpop.f32.mrf.mxu0
  %v4604 = vadd.f32 %v4585, %v4603
  %4605 = vmatmul.bf16.gmra.mxu0 %v867
  %v4606 = vpop.f32.mrf.mxu0
  %v4607 = vadd.f32 %v4588, %v4606
  %v4608 = vpop.f32.mrf.mxu0
  %v4609 = vadd.f32 %v4590, %v4608
  %4610 = vdwg.mxu0
  %4611 = vmatpush.bf16.msra.mxu0 %v2964
  %4612 = vmatpush.bf16.msra.mxu0 %v2960
  %4613 = vmatpush.bf16.msra.mxu0 %v2956
  %4614 = vmatpush.bf16.msra.mxu0 %v2952
  %4615 = vmatpush.bf16.msra.mxu0 %v2948
  %4616 = vmatpush.bf16.msra.mxu0 %v2944
  %4617 = vmatpush.bf16.msra.mxu0 %v2940
  %4618 = vmatpush.bf16.msra.mxu0 %v2936
  %4619 = vmatmul.bf16.gmra.mxu0 %v847
  %v4620 = vpop.f32.mrf.mxu0
  %v4621 = vadd.f32 %v4602, %v4620
  %v4622 = vpop.f32.mrf.mxu0
  %v4623 = vadd.f32 %v4604, %v4622
  %4624 = vmatmul.bf16.gmra.mxu0 %v868
  %v4625 = vpop.f32.mrf.mxu0
  %v4626 = vadd.f32 %v4607, %v4625
  %v4627 = vpop.f32.mrf.mxu0
  %v4628 = vadd.f32 %v4609, %v4627
  %4629 = vdwg.mxu0
  %4630 = vmatpush.bf16.msra.mxu0 %v2996
  %4631 = vmatpush.bf16.msra.mxu0 %v2992
  %4632 = vmatpush.bf16.msra.mxu0 %v2988
  %4633 = vmatpush.bf16.msra.mxu0 %v2984
  %4634 = vmatpush.bf16.msra.mxu0 %v2980
  %4635 = vmatpush.bf16.msra.mxu0 %v2976
  %4636 = vmatpush.bf16.msra.mxu0 %v2972
  %4637 = vmatpush.bf16.msra.mxu0 %v2968
  %4638 = vmatmul.bf16.gmra.mxu0 %v848
  %v4639 = vpop.f32.mrf.mxu0
  %v4640 = vadd.f32 %v4621, %v4639
  %v4641 = vpop.f32.mrf.mxu0
  %v4642 = vadd.f32 %v4623, %v4641
  %4643 = vmatmul.bf16.gmra.mxu0 %v869
  %v4644 = vpop.f32.mrf.mxu0
  %v4645 = vadd.f32 %v4626, %v4644
  %v4646 = vpop.f32.mrf.mxu0
  %v4647 = vadd.f32 %v4628, %v4646
  %4648 = vdwg.mxu0
  %4649 = vmatpush.bf16.msra.mxu0 %v3028
  %4650 = vmatpush.bf16.msra.mxu0 %v3024
  %4651 = vmatpush.bf16.msra.mxu0 %v3020
  %4652 = vmatpush.bf16.msra.mxu0 %v3016
  %4653 = vmatpush.bf16.msra.mxu0 %v3012
  %4654 = vmatpush.bf16.msra.mxu0 %v3008
  %4655 = vmatpush.bf16.msra.mxu0 %v3004
  %4656 = vmatpush.bf16.msra.mxu0 %v3000
  %4657 = vmatmul.bf16.gmra.mxu0 %v849
  %v4658 = vpop.f32.mrf.mxu0
  %v4659 = vadd.f32 %v4640, %v4658
  %v4660 = vpop.f32.mrf.mxu0
  %v4661 = vadd.f32 %v4642, %v4660
  %4662 = vmatmul.bf16.gmra.mxu0 %v870
  %v4663 = vpop.f32.mrf.mxu0
  %v4664 = vadd.f32 %v4645, %v4663
  %v4665 = vpop.f32.mrf.mxu0
  %v4666 = vadd.f32 %v4647, %v4665
  %4667 = vdwg.mxu0
  %4668 = vmatpush.bf16.msra.mxu0 %v3060
  %4669 = vmatpush.bf16.msra.mxu0 %v3056
  %4670 = vmatpush.bf16.msra.mxu0 %v3052
  %4671 = vmatpush.bf16.msra.mxu0 %v3048
  %4672 = vmatpush.bf16.msra.mxu0 %v3044
  %4673 = vmatpush.bf16.msra.mxu0 %v3040
  %4674 = vmatpush.bf16.msra.mxu0 %v3036
  %4675 = vmatpush.bf16.msra.mxu0 %v3032
  %4676 = vmatmul.bf16.gmra.mxu0 %v850
  %v4677 = vpop.f32.mrf.mxu0
  %v4678 = vadd.f32 %v4659, %v4677
  %v4679 = vpop.f32.mrf.mxu0
  %v4680 = vadd.f32 %v4661, %v4679
  %4681 = vmatmul.bf16.gmra.mxu0 %v871
  %v4682 = vpop.f32.mrf.mxu0
  %v4683 = vadd.f32 %v4664, %v4682
  %v4684 = vpop.f32.mrf.mxu0
  %v4685 = vadd.f32 %v4666, %v4684
  %4686 = vdwg.mxu0
  %4687 = vmatpush.bf16.msra.mxu0 %v3092
  %4688 = vmatpush.bf16.msra.mxu0 %v3088
  %4689 = vmatpush.bf16.msra.mxu0 %v3084
  %4690 = vmatpush.bf16.msra.mxu0 %v3080
  %4691 = vmatpush.bf16.msra.mxu0 %v3076
  %4692 = vmatpush.bf16.msra.mxu0 %v3072
  %4693 = vmatpush.bf16.msra.mxu0 %v3068
  %4694 = vmatpush.bf16.msra.mxu0 %v3064
  %4695 = vmatmul.bf16.gmra.mxu0 %v851
  %v4696 = vpop.f32.mrf.mxu0
  %v4697 = vadd.f32 %v4678, %v4696
  %v4698 = vpop.f32.mrf.mxu0
  %v4699 = vadd.f32 %v4680, %v4698
  %4700 = vmatmul.bf16.gmra.mxu0 %v872
  %v4701 = vpop.f32.mrf.mxu0
  %v4702 = vadd.f32 %v4683, %v4701
  %v4703 = vpop.f32.mrf.mxu0
  %v4704 = vadd.f32 %v4685, %v4703
  %4705 = vdwg.mxu0
  %4706 = vmatpush.bf16.msra.mxu0 %v3124
  %4707 = vmatpush.bf16.msra.mxu0 %v3120
  %4708 = vmatpush.bf16.msra.mxu0 %v3116
  %4709 = vmatpush.bf16.msra.mxu0 %v3112
  %4710 = vmatpush.bf16.msra.mxu0 %v3108
  %4711 = vmatpush.bf16.msra.mxu0 %v3104
  %4712 = vmatpush.bf16.msra.mxu0 %v3100
  %4713 = vmatpush.bf16.msra.mxu0 %v3096
  %4714 = vmatmul.bf16.gmra.mxu0 %v852
  %v4715 = vpop.f32.mrf.mxu0
  %v4716 = vadd.f32 %v4697, %v4715
  %v4717 = vpop.f32.mrf.mxu0
  %v4718 = vadd.f32 %v4699, %v4717
  %4719 = vmatmul.bf16.gmra.mxu0 %v873
  %v4720 = vpop.f32.mrf.mxu0
  %v4721 = vadd.f32 %v4702, %v4720
  %v4722 = vpop.f32.mrf.mxu0
  %v4723 = vadd.f32 %v4704, %v4722
  %4724 = vdwg.mxu0
  %4725 = vmatpush.bf16.msra.mxu0 %v3156
  %4726 = vmatpush.bf16.msra.mxu0 %v3152
  %4727 = vmatpush.bf16.msra.mxu0 %v3148
  %4728 = vmatpush.bf16.msra.mxu0 %v3144
  %4729 = vmatpush.bf16.msra.mxu0 %v3140
  %4730 = vmatpush.bf16.msra.mxu0 %v3136
  %4731 = vmatpush.bf16.msra.mxu0 %v3132
  %4732 = vmatpush.bf16.msra.mxu0 %v3128
  %4733 = vmatmul.bf16.gmra.mxu0 %v853
  %v4734 = vpop.f32.mrf.mxu0
  %v4735 = vadd.f32 %v4716, %v4734
  %v4736 = vpop.f32.mrf.mxu0
  %v4737 = vadd.f32 %v4718, %v4736
  %4738 = vmatmul.bf16.gmra.mxu0 %v874
  %v4739 = vpop.f32.mrf.mxu0
  %v4740 = vadd.f32 %v4721, %v4739
  %v4741 = vpop.f32.mrf.mxu0
  %v4742 = vadd.f32 %v4723, %v4741
  %4743 = vdwg.mxu0
  %4744 = vmatpush.bf16.msra.mxu0 %v3188
  %4745 = vmatpush.bf16.msra.mxu0 %v3184
  %4746 = vmatpush.bf16.msra.mxu0 %v3180
  %4747 = vmatpush.bf16.msra.mxu0 %v3176
  %4748 = vmatpush.bf16.msra.mxu0 %v3172
  %4749 = vmatpush.bf16.msra.mxu0 %v3168
  %4750 = vmatpush.bf16.msra.mxu0 %v3164
  %4751 = vmatpush.bf16.msra.mxu0 %v3160
  %4752 = vmatmul.bf16.gmra.mxu0 %v854
  %v4753 = vpop.f32.mrf.mxu0
  %v4754 = vadd.f32 %v4735, %v4753
  %v4755 = vpop.f32.mrf.mxu0
  %v4756 = vadd.f32 %v4737, %v4755
  %4757 = vmatmul.bf16.gmra.mxu0 %v875
  %v4758 = vpop.f32.mrf.mxu0
  %v4759 = vadd.f32 %v4740, %v4758
  %v4760 = vpop.f32.mrf.mxu0
  %v4761 = vadd.f32 %v4742, %v4760
  %4762 = vdwg.mxu0
  %4763 = vmatpush.bf16.msra.mxu0 %v3220
  %4764 = vmatpush.bf16.msra.mxu0 %v3216
  %4765 = vmatpush.bf16.msra.mxu0 %v3212
  %4766 = vmatpush.bf16.msra.mxu0 %v3208
  %4767 = vmatpush.bf16.msra.mxu0 %v3204
  %4768 = vmatpush.bf16.msra.mxu0 %v3200
  %4769 = vmatpush.bf16.msra.mxu0 %v3196
  %4770 = vmatpush.bf16.msra.mxu0 %v3192
  %4771 = vmatmul.bf16.gmra.mxu0 %v855
  %v4772 = vpop.f32.mrf.mxu0
  %v4773 = vadd.f32 %v4754, %v4772
  %v4774 = vpop.f32.mrf.mxu0
  %v4775 = vadd.f32 %v4756, %v4774
  %4776 = vmatmul.bf16.gmra.mxu0 %v876
  %v4777 = vpop.f32.mrf.mxu0
  %v4778 = vadd.f32 %v4759, %v4777
  %v4779 = vpop.f32.mrf.mxu0
  %v4780 = vadd.f32 %v4761, %v4779
  %4781 = vdwg.mxu0
  %4782 = vmatpush.bf16.msra.mxu0 %v3252
  %4783 = vmatpush.bf16.msra.mxu0 %v3248
  %4784 = vmatpush.bf16.msra.mxu0 %v3244
  %4785 = vmatpush.bf16.msra.mxu0 %v3240
  %4786 = vmatpush.bf16.msra.mxu0 %v3236
  %4787 = vmatpush.bf16.msra.mxu0 %v3232
  %4788 = vmatpush.bf16.msra.mxu0 %v3228
  %4789 = vmatpush.bf16.msra.mxu0 %v3224
  %4790 = vmatmul.bf16.gmra.mxu0 %v856
  %v4791 = vpop.f32.mrf.mxu0
  %v4792 = vadd.f32 %v4773, %v4791
  %v4793 = vpop.f32.mrf.mxu0
  %v4794 = vadd.f32 %v4775, %v4793
  %4795 = vmatmul.bf16.gmra.mxu0 %v877
  %v4796 = vpop.f32.mrf.mxu0
  %v4797 = vadd.f32 %v4778, %v4796
  %v4798 = vpop.f32.mrf.mxu0
  %v4799 = vadd.f32 %v4780, %v4798
  %4800 = vdwg.mxu0
  %4801 = vmatpush.bf16.msra.mxu0 %v3284
  %4802 = vmatpush.bf16.msra.mxu0 %v3280
  %4803 = vmatpush.bf16.msra.mxu0 %v3276
  %4804 = vmatpush.bf16.msra.mxu0 %v3272
  %4805 = vmatpush.bf16.msra.mxu0 %v3268
  %4806 = vmatpush.bf16.msra.mxu0 %v3264
  %4807 = vmatpush.bf16.msra.mxu0 %v3260
  %4808 = vmatpush.bf16.msra.mxu0 %v3256
  %4809 = vmatmul.bf16.gmra.mxu0 %v857
  %v4810 = vpop.f32.mrf.mxu0
  %v4811 = vadd.f32 %v4792, %v4810
  %v4812 = vpop.f32.mrf.mxu0
  %v4813 = vadd.f32 %v4794, %v4812
  %4814 = vmatmul.bf16.gmra.mxu0 %v878
  %v4815 = vpop.f32.mrf.mxu0
  %v4816 = vadd.f32 %v4797, %v4815
  %v4817 = vpop.f32.mrf.mxu0
  %v4818 = vadd.f32 %v4799, %v4817
  %4819 = vdwg.mxu0
  %4820 = vmatpush.bf16.msra.mxu0 %v3316
  %4821 = vmatpush.bf16.msra.mxu0 %v3312
  %4822 = vmatpush.bf16.msra.mxu0 %v3308
  %4823 = vmatpush.bf16.msra.mxu0 %v3304
  %4824 = vmatpush.bf16.msra.mxu0 %v3300
  %4825 = vmatpush.bf16.msra.mxu0 %v3296
  %4826 = vmatpush.bf16.msra.mxu0 %v3292
  %4827 = vmatpush.bf16.msra.mxu0 %v3288
  %4828 = vmatmul.bf16.gmra.mxu0 %v858
  %v4829 = vpop.f32.mrf.mxu0
  %v4830 = vadd.f32 %v4811, %v4829
  %v4831 = vpop.f32.mrf.mxu0
  %v4832 = vadd.f32 %v4813, %v4831
  %4833 = vmatmul.bf16.gmra.mxu0 %v879
  %v4834 = vpop.f32.mrf.mxu0
  %v4835 = vadd.f32 %v4816, %v4834
  %v4836 = vpop.f32.mrf.mxu0
  %v4837 = vadd.f32 %v4818, %v4836
  %4838 = vdwg.mxu0
  %4839 = vmatpush.bf16.msra.mxu0 %v3348
  %4840 = vmatpush.bf16.msra.mxu0 %v3344
  %4841 = vmatpush.bf16.msra.mxu0 %v3340
  %4842 = vmatpush.bf16.msra.mxu0 %v3336
  %4843 = vmatpush.bf16.msra.mxu0 %v3332
  %4844 = vmatpush.bf16.msra.mxu0 %v3328
  %4845 = vmatpush.bf16.msra.mxu0 %v3324
  %4846 = vmatpush.bf16.msra.mxu0 %v3320
  %4847 = vmatmul.bf16.gmra.mxu0 %v859
  %v4848 = vpop.f32.mrf.mxu0
  %v4849 = vadd.f32 %v4830, %v4848
  %v4850 = vpop.f32.mrf.mxu0
  %v4851 = vadd.f32 %v4832, %v4850
  %4852 = vmatmul.bf16.gmra.mxu0 %v880
  %v4853 = vpop.f32.mrf.mxu0
  %v4854 = vadd.f32 %v4835, %v4853
  %v4855 = vpop.f32.mrf.mxu0
  %v4856 = vadd.f32 %v4837, %v4855
  %4857 = vdwg.mxu0
  %4858 = vmatpush.bf16.msra.mxu0 %v3380
  %4859 = vmatpush.bf16.msra.mxu0 %v3376
  %4860 = vmatpush.bf16.msra.mxu0 %v3372
  %4861 = vmatpush.bf16.msra.mxu0 %v3368
  %4862 = vmatpush.bf16.msra.mxu0 %v3364
  %4863 = vmatpush.bf16.msra.mxu0 %v3360
  %4864 = vmatpush.bf16.msra.mxu0 %v3356
  %4865 = vmatpush.bf16.msra.mxu0 %v3352
  %4866 = vmatmul.bf16.gmra.mxu0 %v860
  %v4867 = vpop.f32.mrf.mxu0
  %v4868 = vadd.f32 %v4849, %v4867
  %v4869 = vpop.f32.mrf.mxu0
  %v4870 = vadd.f32 %v4851, %v4869
  %4871 = vmatmul.bf16.gmra.mxu0 %v881
  %v4872 = vpop.f32.mrf.mxu0
  %v4873 = vadd.f32 %v4854, %v4872
  %v4874 = vpop.f32.mrf.mxu0
  %v4875 = vadd.f32 %v4856, %v4874
  %4876 = vdwg.mxu0
  %4877 = vmatpush.bf16.msra.mxu0 %v3412
  %4878 = vmatpush.bf16.msra.mxu0 %v3408
  %4879 = vmatpush.bf16.msra.mxu0 %v3404
  %4880 = vmatpush.bf16.msra.mxu0 %v3400
  %4881 = vmatpush.bf16.msra.mxu0 %v3396
  %4882 = vmatpush.bf16.msra.mxu0 %v3392
  %4883 = vmatpush.bf16.msra.mxu0 %v3388
  %4884 = vmatpush.bf16.msra.mxu0 %v3384
  %4885 = vmatmul.bf16.gmra.mxu0 %v861
  %v4886 = vpop.f32.mrf.mxu0
  %v4887 = vadd.f32 %v4868, %v4886
  %v4888 = vpop.f32.mrf.mxu0
  %v4889 = vadd.f32 %v4870, %v4888
  %4890 = vmatmul.bf16.gmra.mxu0 %v882
  %v4891 = vpop.f32.mrf.mxu0
  %v4892 = vadd.f32 %v4873, %v4891
  %v4893 = vpop.f32.mrf.mxu0
  %v4894 = vadd.f32 %v4875, %v4893
  %4895 = vdwg.mxu0
  %4896 = vmatpush.bf16.msra.mxu0 %v3444
  %4897 = vmatpush.bf16.msra.mxu0 %v3440
  %4898 = vmatpush.bf16.msra.mxu0 %v3436
  %4899 = vmatpush.bf16.msra.mxu0 %v3432
  %4900 = vmatpush.bf16.msra.mxu0 %v3428
  %4901 = vmatpush.bf16.msra.mxu0 %v3424
  %4902 = vmatpush.bf16.msra.mxu0 %v3420
  %4903 = vmatpush.bf16.msra.mxu0 %v3416
  %4904 = vmatmul.bf16.gmra.mxu0 %v862
  %v4905 = vpop.f32.mrf.mxu0
  %v4906 = vadd.f32 %v4887, %v4905
  %v4907 = vpop.f32.mrf.mxu0
  %v4908 = vadd.f32 %v4889, %v4907
  %4909 = vmatmul.bf16.gmra.mxu0 %v883
  %v4910 = vpop.f32.mrf.mxu0
  %v4911 = vadd.f32 %v4892, %v4910
  %v4912 = vpop.f32.mrf.mxu0
  %v4913 = vadd.f32 %v4894, %v4912
  %4914 = vdwg.mxu0
  %4915 = vmatpush.bf16.msra.mxu0 %v3476
  %4916 = vmatpush.bf16.msra.mxu0 %v3472
  %4917 = vmatpush.bf16.msra.mxu0 %v3468
  %4918 = vmatpush.bf16.msra.mxu0 %v3464
  %4919 = vmatpush.bf16.msra.mxu0 %v3460
  %4920 = vmatpush.bf16.msra.mxu0 %v3456
  %4921 = vmatpush.bf16.msra.mxu0 %v3452
  %4922 = vmatpush.bf16.msra.mxu0 %v3448
  %4923 = vmatmul.bf16.gmra.mxu0 %v863
  %v4924 = vpop.f32.mrf.mxu0
  %v4925 = vadd.f32 %v4906, %v4924
  %v4926 = vpop.f32.mrf.mxu0
  %v4927 = vadd.f32 %v4908, %v4926
  %4928 = vmatmul.bf16.gmra.mxu0 %v884
  %v4929 = vpop.f32.mrf.mxu0
  %v4930 = vadd.f32 %v4911, %v4929
  %v4931 = vpop.f32.mrf.mxu0
  %v4932 = vadd.f32 %v4913, %v4931
  %4933 = vdwg.mxu0
  %4934 = vmatpush.bf16.msra.mxu0 %v3508
  %4935 = vmatpush.bf16.msra.mxu0 %v3504
  %4936 = vmatpush.bf16.msra.mxu0 %v3500
  %4937 = vmatpush.bf16.msra.mxu0 %v3496
  %4938 = vmatpush.bf16.msra.mxu0 %v3492
  %4939 = vmatpush.bf16.msra.mxu0 %v3488
  %4940 = vmatpush.bf16.msra.mxu0 %v3484
  %4941 = vmatpush.bf16.msra.mxu0 %v3480
  %4942 = vmatmul.bf16.gmra.mxu0 %v864
  %v4943 = vpop.f32.mrf.mxu0
  %v4944 = vadd.f32 %v4925, %v4943
  %v4945 = vpop.f32.mrf.mxu0
  %v4946 = vadd.f32 %v4927, %v4945
  %4947 = vmatmul.bf16.gmra.mxu0 %v885
  %v4948 = vpop.f32.mrf.mxu0
  %v4949 = vadd.f32 %v4930, %v4948
  %v4950 = vpop.f32.mrf.mxu0
  %v4951 = vadd.f32 %v4932, %v4950
  %4952 = vdwg.mxu0
  %4953 = vmatpush.bf16.msra.mxu0 0
  %4954 = vmatpush.bf16.msra.mxu0 0
  %4955 = vmatpush.bf16.msra.mxu0 0
  %4956 = vmatpush.bf16.msra.mxu0 0
  %4957 = vmatpush.bf16.msra.mxu0 0
  %4958 = vmatpush.bf16.msra.mxu0 0
  %4959 = vmatpush.bf16.msra.mxu0 %v3516
  %4960 = vmatpush.bf16.msra.mxu0 %v3512
  %4961 = vmatmul.bf16.gmra.mxu0 %v4169
  %v4962 = vpop.f32.mrf.mxu0
  %v4963 = vadd.f32 %v4944, %v4962
  %v4964 = vpop.f32.mrf.mxu0
  %v4965 = vadd.f32 %v4946, %v4964
  %4966 = vmatmul.bf16.gmra.mxu0 %v4172
  %v4967 = vpop.f32.mrf.mxu0
  %v4968 = vadd.f32 %v4949, %v4967
  %v4969 = vpop.f32.mrf.mxu0
  %v4970 = vadd.f32 %v4951, %v4969
  %4971 = vdwg.mxu0
  %4972 = vmatpush.bf16.msra.mxu0 %v2901
  %4973 = vmatpush.bf16.msra.mxu0 %v2897
  %4974 = vmatpush.bf16.msra.mxu0 %v2893
  %4975 = vmatpush.bf16.msra.mxu0 %v2889
  %4976 = vmatpush.bf16.msra.mxu0 %v2885
  %4977 = vmatpush.bf16.msra.mxu0 %v2881
  %4978 = vmatpush.bf16.msra.mxu0 %v2877
  %4979 = vmatpush.bf16.msra.mxu0 %v2873
  %4980 = vmatmul.bf16.gmra.mxu0 %v845
  %v4981 = vpop.f32.mrf.mxu0
  %v4982 = vadd.f32 %v711, %v4981
  %v4983 = vpop.f32.mrf.mxu0
  %v4984 = vadd.f32 %v711, %v4983
  %4985 = vmatmul.bf16.gmra.mxu0 %v866
  %v4986 = vpop.f32.mrf.mxu0
  %v4987 = vadd.f32 %v711, %v4986
  %v4988 = vpop.f32.mrf.mxu0
  %v4989 = vadd.f32 %v711, %v4988
  %4990 = vdwg.mxu0
  %4991 = vmatpush.bf16.msra.mxu0 %v2933
  %4992 = vmatpush.bf16.msra.mxu0 %v2929
  %4993 = vmatpush.bf16.msra.mxu0 %v2925
  %4994 = vmatpush.bf16.msra.mxu0 %v2921
  %4995 = vmatpush.bf16.msra.mxu0 %v2917
  %4996 = vmatpush.bf16.msra.mxu0 %v2913
  %4997 = vmatpush.bf16.msra.mxu0 %v2909
  %4998 = vmatpush.bf16.msra.mxu0 %v2905
  %4999 = vmatmul.bf16.gmra.mxu0 %v846
  %v5000 = vpop.f32.mrf.mxu0
  %v5001 = vadd.f32 %v4982, %v5000
  %v5002 = vpop.f32.mrf.mxu0
  %v5003 = vadd.f32 %v4984, %v5002
  %5004 = vmatmul.bf16.gmra.mxu0 %v867
  %v5005 = vpop.f32.mrf.mxu0
  %v5006 = vadd.f32 %v4987, %v5005
  %v5007 = vpop.f32.mrf.mxu0
  %v5008 = vadd.f32 %v4989, %v5007
  %5009 = vdwg.mxu0
  %5010 = vmatpush.bf16.msra.mxu0 %v2965
  %5011 = vmatpush.bf16.msra.mxu0 %v2961
  %5012 = vmatpush.bf16.msra.mxu0 %v2957
  %5013 = vmatpush.bf16.msra.mxu0 %v2953
  %5014 = vmatpush.bf16.msra.mxu0 %v2949
  %5015 = vmatpush.bf16.msra.mxu0 %v2945
  %5016 = vmatpush.bf16.msra.mxu0 %v2941
  %5017 = vmatpush.bf16.msra.mxu0 %v2937
  %5018 = vmatmul.bf16.gmra.mxu0 %v847
  %v5019 = vpop.f32.mrf.mxu0
  %v5020 = vadd.f32 %v5001, %v5019
  %v5021 = vpop.f32.mrf.mxu0
  %v5022 = vadd.f32 %v5003, %v5021
  %5023 = vmatmul.bf16.gmra.mxu0 %v868
  %v5024 = vpop.f32.mrf.mxu0
  %v5025 = vadd.f32 %v5006, %v5024
  %v5026 = vpop.f32.mrf.mxu0
  %v5027 = vadd.f32 %v5008, %v5026
  %5028 = vdwg.mxu0
  %5029 = vmatpush.bf16.msra.mxu0 %v2997
  %5030 = vmatpush.bf16.msra.mxu0 %v2993
  %5031 = vmatpush.bf16.msra.mxu0 %v2989
  %5032 = vmatpush.bf16.msra.mxu0 %v2985
  %5033 = vmatpush.bf16.msra.mxu0 %v2981
  %5034 = vmatpush.bf16.msra.mxu0 %v2977
  %5035 = vmatpush.bf16.msra.mxu0 %v2973
  %5036 = vmatpush.bf16.msra.mxu0 %v2969
  %5037 = vmatmul.bf16.gmra.mxu0 %v848
  %v5038 = vpop.f32.mrf.mxu0
  %v5039 = vadd.f32 %v5020, %v5038
  %v5040 = vpop.f32.mrf.mxu0
  %v5041 = vadd.f32 %v5022, %v5040
  %5042 = vmatmul.bf16.gmra.mxu0 %v869
  %v5043 = vpop.f32.mrf.mxu0
  %v5044 = vadd.f32 %v5025, %v5043
  %v5045 = vpop.f32.mrf.mxu0
  %v5046 = vadd.f32 %v5027, %v5045
  %5047 = vdwg.mxu0
  %5048 = vmatpush.bf16.msra.mxu0 %v3029
  %5049 = vmatpush.bf16.msra.mxu0 %v3025
  %5050 = vmatpush.bf16.msra.mxu0 %v3021
  %5051 = vmatpush.bf16.msra.mxu0 %v3017
  %5052 = vmatpush.bf16.msra.mxu0 %v3013
  %5053 = vmatpush.bf16.msra.mxu0 %v3009
  %5054 = vmatpush.bf16.msra.mxu0 %v3005
  %5055 = vmatpush.bf16.msra.mxu0 %v3001
  %5056 = vmatmul.bf16.gmra.mxu0 %v849
  %v5057 = vpop.f32.mrf.mxu0
  %v5058 = vadd.f32 %v5039, %v5057
  %v5059 = vpop.f32.mrf.mxu0
  %v5060 = vadd.f32 %v5041, %v5059
  %5061 = vmatmul.bf16.gmra.mxu0 %v870
  %v5062 = vpop.f32.mrf.mxu0
  %v5063 = vadd.f32 %v5044, %v5062
  %v5064 = vpop.f32.mrf.mxu0
  %v5065 = vadd.f32 %v5046, %v5064
  %5066 = vdwg.mxu0
  %5067 = vmatpush.bf16.msra.mxu0 %v3061
  %5068 = vmatpush.bf16.msra.mxu0 %v3057
  %5069 = vmatpush.bf16.msra.mxu0 %v3053
  %5070 = vmatpush.bf16.msra.mxu0 %v3049
  %5071 = vmatpush.bf16.msra.mxu0 %v3045
  %5072 = vmatpush.bf16.msra.mxu0 %v3041
  %5073 = vmatpush.bf16.msra.mxu0 %v3037
  %5074 = vmatpush.bf16.msra.mxu0 %v3033
  %5075 = vmatmul.bf16.gmra.mxu0 %v850
  %v5076 = vpop.f32.mrf.mxu0
  %v5077 = vadd.f32 %v5058, %v5076
  %v5078 = vpop.f32.mrf.mxu0
  %v5079 = vadd.f32 %v5060, %v5078
  %5080 = vmatmul.bf16.gmra.mxu0 %v871
  %v5081 = vpop.f32.mrf.mxu0
  %v5082 = vadd.f32 %v5063, %v5081
  %v5083 = vpop.f32.mrf.mxu0
  %v5084 = vadd.f32 %v5065, %v5083
  %5085 = vdwg.mxu0
  %5086 = vmatpush.bf16.msra.mxu0 %v3093
  %5087 = vmatpush.bf16.msra.mxu0 %v3089
  %5088 = vmatpush.bf16.msra.mxu0 %v3085
  %5089 = vmatpush.bf16.msra.mxu0 %v3081
  %5090 = vmatpush.bf16.msra.mxu0 %v3077
  %5091 = vmatpush.bf16.msra.mxu0 %v3073
  %5092 = vmatpush.bf16.msra.mxu0 %v3069
  %5093 = vmatpush.bf16.msra.mxu0 %v3065
  %5094 = vmatmul.bf16.gmra.mxu0 %v851
  %v5095 = vpop.f32.mrf.mxu0
  %v5096 = vadd.f32 %v5077, %v5095
  %v5097 = vpop.f32.mrf.mxu0
  %v5098 = vadd.f32 %v5079, %v5097
  %5099 = vmatmul.bf16.gmra.mxu0 %v872
  %v5100 = vpop.f32.mrf.mxu0
  %v5101 = vadd.f32 %v5082, %v5100
  %v5102 = vpop.f32.mrf.mxu0
  %v5103 = vadd.f32 %v5084, %v5102
  %5104 = vdwg.mxu0
  %5105 = vmatpush.bf16.msra.mxu0 %v3125
  %5106 = vmatpush.bf16.msra.mxu0 %v3121
  %5107 = vmatpush.bf16.msra.mxu0 %v3117
  %5108 = vmatpush.bf16.msra.mxu0 %v3113
  %5109 = vmatpush.bf16.msra.mxu0 %v3109
  %5110 = vmatpush.bf16.msra.mxu0 %v3105
  %5111 = vmatpush.bf16.msra.mxu0 %v3101
  %5112 = vmatpush.bf16.msra.mxu0 %v3097
  %5113 = vmatmul.bf16.gmra.mxu0 %v852
  %v5114 = vpop.f32.mrf.mxu0
  %v5115 = vadd.f32 %v5096, %v5114
  %v5116 = vpop.f32.mrf.mxu0
  %v5117 = vadd.f32 %v5098, %v5116
  %5118 = vmatmul.bf16.gmra.mxu0 %v873
  %v5119 = vpop.f32.mrf.mxu0
  %v5120 = vadd.f32 %v5101, %v5119
  %v5121 = vpop.f32.mrf.mxu0
  %v5122 = vadd.f32 %v5103, %v5121
  %5123 = vdwg.mxu0
  %5124 = vmatpush.bf16.msra.mxu0 %v3157
  %5125 = vmatpush.bf16.msra.mxu0 %v3153
  %5126 = vmatpush.bf16.msra.mxu0 %v3149
  %5127 = vmatpush.bf16.msra.mxu0 %v3145
  %5128 = vmatpush.bf16.msra.mxu0 %v3141
  %5129 = vmatpush.bf16.msra.mxu0 %v3137
  %5130 = vmatpush.bf16.msra.mxu0 %v3133
  %5131 = vmatpush.bf16.msra.mxu0 %v3129
  %5132 = vmatmul.bf16.gmra.mxu0 %v853
  %v5133 = vpop.f32.mrf.mxu0
  %v5134 = vadd.f32 %v5115, %v5133
  %v5135 = vpop.f32.mrf.mxu0
  %v5136 = vadd.f32 %v5117, %v5135
  %5137 = vmatmul.bf16.gmra.mxu0 %v874
  %v5138 = vpop.f32.mrf.mxu0
  %v5139 = vadd.f32 %v5120, %v5138
  %v5140 = vpop.f32.mrf.mxu0
  %v5141 = vadd.f32 %v5122, %v5140
  %5142 = vdwg.mxu0
  %5143 = vmatpush.bf16.msra.mxu0 %v3189
  %5144 = vmatpush.bf16.msra.mxu0 %v3185
  %5145 = vmatpush.bf16.msra.mxu0 %v3181
  %5146 = vmatpush.bf16.msra.mxu0 %v3177
  %5147 = vmatpush.bf16.msra.mxu0 %v3173
  %5148 = vmatpush.bf16.msra.mxu0 %v3169
  %5149 = vmatpush.bf16.msra.mxu0 %v3165
  %5150 = vmatpush.bf16.msra.mxu0 %v3161
  %5151 = vmatmul.bf16.gmra.mxu0 %v854
  %v5152 = vpop.f32.mrf.mxu0
  %v5153 = vadd.f32 %v5134, %v5152
  %v5154 = vpop.f32.mrf.mxu0
  %v5155 = vadd.f32 %v5136, %v5154
  %5156 = vmatmul.bf16.gmra.mxu0 %v875
  %v5157 = vpop.f32.mrf.mxu0
  %v5158 = vadd.f32 %v5139, %v5157
  %v5159 = vpop.f32.mrf.mxu0
  %v5160 = vadd.f32 %v5141, %v5159
  %5161 = vdwg.mxu0
  %5162 = vmatpush.bf16.msra.mxu0 %v3221
  %5163 = vmatpush.bf16.msra.mxu0 %v3217
  %5164 = vmatpush.bf16.msra.mxu0 %v3213
  %5165 = vmatpush.bf16.msra.mxu0 %v3209
  %5166 = vmatpush.bf16.msra.mxu0 %v3205
  %5167 = vmatpush.bf16.msra.mxu0 %v3201
  %5168 = vmatpush.bf16.msra.mxu0 %v3197
  %5169 = vmatpush.bf16.msra.mxu0 %v3193
  %5170 = vmatmul.bf16.gmra.mxu0 %v855
  %v5171 = vpop.f32.mrf.mxu0
  %v5172 = vadd.f32 %v5153, %v5171
  %v5173 = vpop.f32.mrf.mxu0
  %v5174 = vadd.f32 %v5155, %v5173
  %5175 = vmatmul.bf16.gmra.mxu0 %v876
  %v5176 = vpop.f32.mrf.mxu0
  %v5177 = vadd.f32 %v5158, %v5176
  %v5178 = vpop.f32.mrf.mxu0
  %v5179 = vadd.f32 %v5160, %v5178
  %5180 = vdwg.mxu0
  %5181 = vmatpush.bf16.msra.mxu0 %v3253
  %5182 = vmatpush.bf16.msra.mxu0 %v3249
  %5183 = vmatpush.bf16.msra.mxu0 %v3245
  %5184 = vmatpush.bf16.msra.mxu0 %v3241
  %5185 = vmatpush.bf16.msra.mxu0 %v3237
  %5186 = vmatpush.bf16.msra.mxu0 %v3233
  %5187 = vmatpush.bf16.msra.mxu0 %v3229
  %5188 = vmatpush.bf16.msra.mxu0 %v3225
  %5189 = vmatmul.bf16.gmra.mxu0 %v856
  %v5190 = vpop.f32.mrf.mxu0
  %v5191 = vadd.f32 %v5172, %v5190
  %v5192 = vpop.f32.mrf.mxu0
  %v5193 = vadd.f32 %v5174, %v5192
  %5194 = vmatmul.bf16.gmra.mxu0 %v877
  %v5195 = vpop.f32.mrf.mxu0
  %v5196 = vadd.f32 %v5177, %v5195
  %v5197 = vpop.f32.mrf.mxu0
  %v5198 = vadd.f32 %v5179, %v5197
  %5199 = vdwg.mxu0
  %5200 = vmatpush.bf16.msra.mxu0 %v3285
  %5201 = vmatpush.bf16.msra.mxu0 %v3281
  %5202 = vmatpush.bf16.msra.mxu0 %v3277
  %5203 = vmatpush.bf16.msra.mxu0 %v3273
  %5204 = vmatpush.bf16.msra.mxu0 %v3269
  %5205 = vmatpush.bf16.msra.mxu0 %v3265
  %5206 = vmatpush.bf16.msra.mxu0 %v3261
  %5207 = vmatpush.bf16.msra.mxu0 %v3257
  %5208 = vmatmul.bf16.gmra.mxu0 %v857
  %v5209 = vpop.f32.mrf.mxu0
  %v5210 = vadd.f32 %v5191, %v5209
  %v5211 = vpop.f32.mrf.mxu0
  %v5212 = vadd.f32 %v5193, %v5211
  %5213 = vmatmul.bf16.gmra.mxu0 %v878
  %v5214 = vpop.f32.mrf.mxu0
  %v5215 = vadd.f32 %v5196, %v5214
  %v5216 = vpop.f32.mrf.mxu0
  %v5217 = vadd.f32 %v5198, %v5216
  %5218 = vdwg.mxu0
  %5219 = vmatpush.bf16.msra.mxu0 %v3317
  %5220 = vmatpush.bf16.msra.mxu0 %v3313
  %5221 = vmatpush.bf16.msra.mxu0 %v3309
  %5222 = vmatpush.bf16.msra.mxu0 %v3305
  %5223 = vmatpush.bf16.msra.mxu0 %v3301
  %5224 = vmatpush.bf16.msra.mxu0 %v3297
  %5225 = vmatpush.bf16.msra.mxu0 %v3293
  %5226 = vmatpush.bf16.msra.mxu0 %v3289
  %5227 = vmatmul.bf16.gmra.mxu0 %v858
  %v5228 = vpop.f32.mrf.mxu0
  %v5229 = vadd.f32 %v5210, %v5228
  %v5230 = vpop.f32.mrf.mxu0
  %v5231 = vadd.f32 %v5212, %v5230
  %5232 = vmatmul.bf16.gmra.mxu0 %v879
  %v5233 = vpop.f32.mrf.mxu0
  %v5234 = vadd.f32 %v5215, %v5233
  %v5235 = vpop.f32.mrf.mxu0
  %v5236 = vadd.f32 %v5217, %v5235
  %5237 = vdwg.mxu0
  %5238 = vmatpush.bf16.msra.mxu0 %v3349
  %5239 = vmatpush.bf16.msra.mxu0 %v3345
  %5240 = vmatpush.bf16.msra.mxu0 %v3341
  %5241 = vmatpush.bf16.msra.mxu0 %v3337
  %5242 = vmatpush.bf16.msra.mxu0 %v3333
  %5243 = vmatpush.bf16.msra.mxu0 %v3329
  %5244 = vmatpush.bf16.msra.mxu0 %v3325
  %5245 = vmatpush.bf16.msra.mxu0 %v3321
  %5246 = vmatmul.bf16.gmra.mxu0 %v859
  %v5247 = vpop.f32.mrf.mxu0
  %v5248 = vadd.f32 %v5229, %v5247
  %v5249 = vpop.f32.mrf.mxu0
  %v5250 = vadd.f32 %v5231, %v5249
  %5251 = vmatmul.bf16.gmra.mxu0 %v880
  %v5252 = vpop.f32.mrf.mxu0
  %v5253 = vadd.f32 %v5234, %v5252
  %v5254 = vpop.f32.mrf.mxu0
  %v5255 = vadd.f32 %v5236, %v5254
  %5256 = vdwg.mxu0
  %5257 = vmatpush.bf16.msra.mxu0 %v3381
  %5258 = vmatpush.bf16.msra.mxu0 %v3377
  %5259 = vmatpush.bf16.msra.mxu0 %v3373
  %5260 = vmatpush.bf16.msra.mxu0 %v3369
  %5261 = vmatpush.bf16.msra.mxu0 %v3365
  %5262 = vmatpush.bf16.msra.mxu0 %v3361
  %5263 = vmatpush.bf16.msra.mxu0 %v3357
  %5264 = vmatpush.bf16.msra.mxu0 %v3353
  %5265 = vmatmul.bf16.gmra.mxu0 %v860
  %v5266 = vpop.f32.mrf.mxu0
  %v5267 = vadd.f32 %v5248, %v5266
  %v5268 = vpop.f32.mrf.mxu0
  %v5269 = vadd.f32 %v5250, %v5268
  %5270 = vmatmul.bf16.gmra.mxu0 %v881
  %v5271 = vpop.f32.mrf.mxu0
  %v5272 = vadd.f32 %v5253, %v5271
  %v5273 = vpop.f32.mrf.mxu0
  %v5274 = vadd.f32 %v5255, %v5273
  %5275 = vdwg.mxu0
  %5276 = vmatpush.bf16.msra.mxu0 %v3413
  %5277 = vmatpush.bf16.msra.mxu0 %v3409
  %5278 = vmatpush.bf16.msra.mxu0 %v3405
  %5279 = vmatpush.bf16.msra.mxu0 %v3401
  %5280 = vmatpush.bf16.msra.mxu0 %v3397
  %5281 = vmatpush.bf16.msra.mxu0 %v3393
  %5282 = vmatpush.bf16.msra.mxu0 %v3389
  %5283 = vmatpush.bf16.msra.mxu0 %v3385
  %5284 = vmatmul.bf16.gmra.mxu0 %v861
  %v5285 = vpop.f32.mrf.mxu0
  %v5286 = vadd.f32 %v5267, %v5285
  %v5287 = vpop.f32.mrf.mxu0
  %v5288 = vadd.f32 %v5269, %v5287
  %5289 = vmatmul.bf16.gmra.mxu0 %v882
  %v5290 = vpop.f32.mrf.mxu0
  %v5291 = vadd.f32 %v5272, %v5290
  %v5292 = vpop.f32.mrf.mxu0
  %v5293 = vadd.f32 %v5274, %v5292
  %5294 = vdwg.mxu0
  %5295 = vmatpush.bf16.msra.mxu0 %v3445
  %5296 = vmatpush.bf16.msra.mxu0 %v3441
  %5297 = vmatpush.bf16.msra.mxu0 %v3437
  %5298 = vmatpush.bf16.msra.mxu0 %v3433
  %5299 = vmatpush.bf16.msra.mxu0 %v3429
  %5300 = vmatpush.bf16.msra.mxu0 %v3425
  %5301 = vmatpush.bf16.msra.mxu0 %v3421
  %5302 = vmatpush.bf16.msra.mxu0 %v3417
  %5303 = vmatmul.bf16.gmra.mxu0 %v862
  %v5304 = vpop.f32.mrf.mxu0
  %v5305 = vadd.f32 %v5286, %v5304
  %v5306 = vpop.f32.mrf.mxu0
  %v5307 = vadd.f32 %v5288, %v5306
  %5308 = vmatmul.bf16.gmra.mxu0 %v883
  %v5309 = vpop.f32.mrf.mxu0
  %v5310 = vadd.f32 %v5291, %v5309
  %v5311 = vpop.f32.mrf.mxu0
  %v5312 = vadd.f32 %v5293, %v5311
  %5313 = vdwg.mxu0
  %5314 = vmatpush.bf16.msra.mxu0 %v3477
  %5315 = vmatpush.bf16.msra.mxu0 %v3473
  %5316 = vmatpush.bf16.msra.mxu0 %v3469
  %5317 = vmatpush.bf16.msra.mxu0 %v3465
  %5318 = vmatpush.bf16.msra.mxu0 %v3461
  %5319 = vmatpush.bf16.msra.mxu0 %v3457
  %5320 = vmatpush.bf16.msra.mxu0 %v3453
  %5321 = vmatpush.bf16.msra.mxu0 %v3449
  %5322 = vmatmul.bf16.gmra.mxu0 %v863
  %v5323 = vpop.f32.mrf.mxu0
  %v5324 = vadd.f32 %v5305, %v5323
  %v5325 = vpop.f32.mrf.mxu0
  %v5326 = vadd.f32 %v5307, %v5325
  %5327 = vmatmul.bf16.gmra.mxu0 %v884
  %v5328 = vpop.f32.mrf.mxu0
  %v5329 = vadd.f32 %v5310, %v5328
  %v5330 = vpop.f32.mrf.mxu0
  %v5331 = vadd.f32 %v5312, %v5330
  %5332 = vdwg.mxu0
  %5333 = vmatpush.bf16.msra.mxu0 %v3509
  %5334 = vmatpush.bf16.msra.mxu0 %v3505
  %5335 = vmatpush.bf16.msra.mxu0 %v3501
  %5336 = vmatpush.bf16.msra.mxu0 %v3497
  %5337 = vmatpush.bf16.msra.mxu0 %v3493
  %5338 = vmatpush.bf16.msra.mxu0 %v3489
  %5339 = vmatpush.bf16.msra.mxu0 %v3485
  %5340 = vmatpush.bf16.msra.mxu0 %v3481
  %5341 = vmatmul.bf16.gmra.mxu0 %v864
  %v5342 = vpop.f32.mrf.mxu0
  %v5343 = vadd.f32 %v5324, %v5342
  %v5344 = vpop.f32.mrf.mxu0
  %v5345 = vadd.f32 %v5326, %v5344
  %5346 = vmatmul.bf16.gmra.mxu0 %v885
  %v5347 = vpop.f32.mrf.mxu0
  %v5348 = vadd.f32 %v5329, %v5347
  %v5349 = vpop.f32.mrf.mxu0
  %v5350 = vadd.f32 %v5331, %v5349
  %5351 = vdwg.mxu0
  %5352 = vmatpush.bf16.msra.mxu0 0
  %5353 = vmatpush.bf16.msra.mxu0 0
  %5354 = vmatpush.bf16.msra.mxu0 0
  %5355 = vmatpush.bf16.msra.mxu0 0
  %5356 = vmatpush.bf16.msra.mxu0 0
  %5357 = vmatpush.bf16.msra.mxu0 0
  %5358 = vmatpush.bf16.msra.mxu0 %v3517
  %5359 = vmatpush.bf16.msra.mxu0 %v3513
  %5360 = vmatmul.bf16.gmra.mxu0 %v4169
  %v5361 = vpop.f32.mrf.mxu0
  %v5362 = vadd.f32 %v5343, %v5361
  %v5363 = vpop.f32.mrf.mxu0
  %v5364 = vadd.f32 %v5345, %v5363
  %5365 = vmatmul.bf16.gmra.mxu0 %v4172
  %v5366 = vpop.f32.mrf.mxu0
  %v5367 = vadd.f32 %v5348, %v5366
  %v5368 = vpop.f32.mrf.mxu0
  %v5369 = vadd.f32 %v5350, %v5368
  %5370 = vdwg.mxu0
  %5371 = vmatpush.bf16.msra.mxu0 %v2902
  %5372 = vmatpush.bf16.msra.mxu0 %v2898
  %5373 = vmatpush.bf16.msra.mxu0 %v2894
  %5374 = vmatpush.bf16.msra.mxu0 %v2890
  %5375 = vmatpush.bf16.msra.mxu0 %v2886
  %5376 = vmatpush.bf16.msra.mxu0 %v2882
  %5377 = vmatpush.bf16.msra.mxu0 %v2878
  %5378 = vmatpush.bf16.msra.mxu0 %v2874
  %5379 = vmatmul.bf16.gmra.mxu0 %v845
  %v5380 = vpop.f32.mrf.mxu0
  %v5381 = vadd.f32 %v712, %v5380
  %v5382 = vpop.f32.mrf.mxu0
  %v5383 = vadd.f32 %v712, %v5382
  %5384 = vmatmul.bf16.gmra.mxu0 %v866
  %v5385 = vpop.f32.mrf.mxu0
  %v5386 = vadd.f32 %v712, %v5385
  %v5387 = vpop.f32.mrf.mxu0
  %v5388 = vadd.f32 %v712, %v5387
  %5389 = vdwg.mxu0
  %5390 = vmatpush.bf16.msra.mxu0 %v2934
  %5391 = vmatpush.bf16.msra.mxu0 %v2930
  %5392 = vmatpush.bf16.msra.mxu0 %v2926
  %5393 = vmatpush.bf16.msra.mxu0 %v2922
  %5394 = vmatpush.bf16.msra.mxu0 %v2918
  %5395 = vmatpush.bf16.msra.mxu0 %v2914
  %5396 = vmatpush.bf16.msra.mxu0 %v2910
  %5397 = vmatpush.bf16.msra.mxu0 %v2906
  %5398 = vmatmul.bf16.gmra.mxu0 %v846
  %v5399 = vpop.f32.mrf.mxu0
  %v5400 = vadd.f32 %v5381, %v5399
  %v5401 = vpop.f32.mrf.mxu0
  %v5402 = vadd.f32 %v5383, %v5401
  %5403 = vmatmul.bf16.gmra.mxu0 %v867
  %v5404 = vpop.f32.mrf.mxu0
  %v5405 = vadd.f32 %v5386, %v5404
  %v5406 = vpop.f32.mrf.mxu0
  %v5407 = vadd.f32 %v5388, %v5406
  %5408 = vdwg.mxu0
  %5409 = vmatpush.bf16.msra.mxu0 %v2966
  %5410 = vmatpush.bf16.msra.mxu0 %v2962
  %5411 = vmatpush.bf16.msra.mxu0 %v2958
  %5412 = vmatpush.bf16.msra.mxu0 %v2954
  %5413 = vmatpush.bf16.msra.mxu0 %v2950
  %5414 = vmatpush.bf16.msra.mxu0 %v2946
  %5415 = vmatpush.bf16.msra.mxu0 %v2942
  %5416 = vmatpush.bf16.msra.mxu0 %v2938
  %5417 = vmatmul.bf16.gmra.mxu0 %v847
  %v5418 = vpop.f32.mrf.mxu0
  %v5419 = vadd.f32 %v5400, %v5418
  %v5420 = vpop.f32.mrf.mxu0
  %v5421 = vadd.f32 %v5402, %v5420
  %5422 = vmatmul.bf16.gmra.mxu0 %v868
  %v5423 = vpop.f32.mrf.mxu0
  %v5424 = vadd.f32 %v5405, %v5423
  %v5425 = vpop.f32.mrf.mxu0
  %v5426 = vadd.f32 %v5407, %v5425
  %5427 = vdwg.mxu0
  %5428 = vmatpush.bf16.msra.mxu0 %v2998
  %5429 = vmatpush.bf16.msra.mxu0 %v2994
  %5430 = vmatpush.bf16.msra.mxu0 %v2990
  %5431 = vmatpush.bf16.msra.mxu0 %v2986
  %5432 = vmatpush.bf16.msra.mxu0 %v2982
  %5433 = vmatpush.bf16.msra.mxu0 %v2978
  %5434 = vmatpush.bf16.msra.mxu0 %v2974
  %5435 = vmatpush.bf16.msra.mxu0 %v2970
  %5436 = vmatmul.bf16.gmra.mxu0 %v848
  %v5437 = vpop.f32.mrf.mxu0
  %v5438 = vadd.f32 %v5419, %v5437
  %v5439 = vpop.f32.mrf.mxu0
  %v5440 = vadd.f32 %v5421, %v5439
  %5441 = vmatmul.bf16.gmra.mxu0 %v869
  %v5442 = vpop.f32.mrf.mxu0
  %v5443 = vadd.f32 %v5424, %v5442
  %v5444 = vpop.f32.mrf.mxu0
  %v5445 = vadd.f32 %v5426, %v5444
  %5446 = vdwg.mxu0
  %5447 = vmatpush.bf16.msra.mxu0 %v3030
  %5448 = vmatpush.bf16.msra.mxu0 %v3026
  %5449 = vmatpush.bf16.msra.mxu0 %v3022
  %5450 = vmatpush.bf16.msra.mxu0 %v3018
  %5451 = vmatpush.bf16.msra.mxu0 %v3014
  %5452 = vmatpush.bf16.msra.mxu0 %v3010
  %5453 = vmatpush.bf16.msra.mxu0 %v3006
  %5454 = vmatpush.bf16.msra.mxu0 %v3002
  %5455 = vmatmul.bf16.gmra.mxu0 %v849
  %v5456 = vpop.f32.mrf.mxu0
  %v5457 = vadd.f32 %v5438, %v5456
  %v5458 = vpop.f32.mrf.mxu0
  %v5459 = vadd.f32 %v5440, %v5458
  %5460 = vmatmul.bf16.gmra.mxu0 %v870
  %v5461 = vpop.f32.mrf.mxu0
  %v5462 = vadd.f32 %v5443, %v5461
  %v5463 = vpop.f32.mrf.mxu0
  %v5464 = vadd.f32 %v5445, %v5463
  %5465 = vdwg.mxu0
  %5466 = vmatpush.bf16.msra.mxu0 %v3062
  %5467 = vmatpush.bf16.msra.mxu0 %v3058
  %5468 = vmatpush.bf16.msra.mxu0 %v3054
  %5469 = vmatpush.bf16.msra.mxu0 %v3050
  %5470 = vmatpush.bf16.msra.mxu0 %v3046
  %5471 = vmatpush.bf16.msra.mxu0 %v3042
  %5472 = vmatpush.bf16.msra.mxu0 %v3038
  %5473 = vmatpush.bf16.msra.mxu0 %v3034
  %5474 = vmatmul.bf16.gmra.mxu0 %v850
  %v5475 = vpop.f32.mrf.mxu0
  %v5476 = vadd.f32 %v5457, %v5475
  %v5477 = vpop.f32.mrf.mxu0
  %v5478 = vadd.f32 %v5459, %v5477
  %5479 = vmatmul.bf16.gmra.mxu0 %v871
  %v5480 = vpop.f32.mrf.mxu0
  %v5481 = vadd.f32 %v5462, %v5480
  %v5482 = vpop.f32.mrf.mxu0
  %v5483 = vadd.f32 %v5464, %v5482
  %5484 = vdwg.mxu0
  %5485 = vmatpush.bf16.msra.mxu0 %v3094
  %5486 = vmatpush.bf16.msra.mxu0 %v3090
  %5487 = vmatpush.bf16.msra.mxu0 %v3086
  %5488 = vmatpush.bf16.msra.mxu0 %v3082
  %5489 = vmatpush.bf16.msra.mxu0 %v3078
  %5490 = vmatpush.bf16.msra.mxu0 %v3074
  %5491 = vmatpush.bf16.msra.mxu0 %v3070
  %5492 = vmatpush.bf16.msra.mxu0 %v3066
  %5493 = vmatmul.bf16.gmra.mxu0 %v851
  %v5494 = vpop.f32.mrf.mxu0
  %v5495 = vadd.f32 %v5476, %v5494
  %v5496 = vpop.f32.mrf.mxu0
  %v5497 = vadd.f32 %v5478, %v5496
  %5498 = vmatmul.bf16.gmra.mxu0 %v872
  %v5499 = vpop.f32.mrf.mxu0
  %v5500 = vadd.f32 %v5481, %v5499
  %v5501 = vpop.f32.mrf.mxu0
  %v5502 = vadd.f32 %v5483, %v5501
  %5503 = vdwg.mxu0
  %5504 = vmatpush.bf16.msra.mxu0 %v3126
  %5505 = vmatpush.bf16.msra.mxu0 %v3122
  %5506 = vmatpush.bf16.msra.mxu0 %v3118
  %5507 = vmatpush.bf16.msra.mxu0 %v3114
  %5508 = vmatpush.bf16.msra.mxu0 %v3110
  %5509 = vmatpush.bf16.msra.mxu0 %v3106
  %5510 = vmatpush.bf16.msra.mxu0 %v3102
  %5511 = vmatpush.bf16.msra.mxu0 %v3098
  %5512 = vmatmul.bf16.gmra.mxu0 %v852
  %v5513 = vpop.f32.mrf.mxu0
  %v5514 = vadd.f32 %v5495, %v5513
  %v5515 = vpop.f32.mrf.mxu0
  %v5516 = vadd.f32 %v5497, %v5515
  %5517 = vmatmul.bf16.gmra.mxu0 %v873
  %v5518 = vpop.f32.mrf.mxu0
  %v5519 = vadd.f32 %v5500, %v5518
  %v5520 = vpop.f32.mrf.mxu0
  %v5521 = vadd.f32 %v5502, %v5520
  %5522 = vdwg.mxu0
  %5523 = vmatpush.bf16.msra.mxu0 %v3158
  %5524 = vmatpush.bf16.msra.mxu0 %v3154
  %5525 = vmatpush.bf16.msra.mxu0 %v3150
  %5526 = vmatpush.bf16.msra.mxu0 %v3146
  %5527 = vmatpush.bf16.msra.mxu0 %v3142
  %5528 = vmatpush.bf16.msra.mxu0 %v3138
  %5529 = vmatpush.bf16.msra.mxu0 %v3134
  %5530 = vmatpush.bf16.msra.mxu0 %v3130
  %5531 = vmatmul.bf16.gmra.mxu0 %v853
  %v5532 = vpop.f32.mrf.mxu0
  %v5533 = vadd.f32 %v5514, %v5532
  %v5534 = vpop.f32.mrf.mxu0
  %v5535 = vadd.f32 %v5516, %v5534
  %5536 = vmatmul.bf16.gmra.mxu0 %v874
  %v5537 = vpop.f32.mrf.mxu0
  %v5538 = vadd.f32 %v5519, %v5537
  %v5539 = vpop.f32.mrf.mxu0
  %v5540 = vadd.f32 %v5521, %v5539
  %5541 = vdwg.mxu0
  %5542 = vmatpush.bf16.msra.mxu0 %v3190
  %5543 = vmatpush.bf16.msra.mxu0 %v3186
  %5544 = vmatpush.bf16.msra.mxu0 %v3182
  %5545 = vmatpush.bf16.msra.mxu0 %v3178
  %5546 = vmatpush.bf16.msra.mxu0 %v3174
  %5547 = vmatpush.bf16.msra.mxu0 %v3170
  %5548 = vmatpush.bf16.msra.mxu0 %v3166
  %5549 = vmatpush.bf16.msra.mxu0 %v3162
  %5550 = vmatmul.bf16.gmra.mxu0 %v854
  %v5551 = vpop.f32.mrf.mxu0
  %v5552 = vadd.f32 %v5533, %v5551
  %v5553 = vpop.f32.mrf.mxu0
  %v5554 = vadd.f32 %v5535, %v5553
  %5555 = vmatmul.bf16.gmra.mxu0 %v875
  %v5556 = vpop.f32.mrf.mxu0
  %v5557 = vadd.f32 %v5538, %v5556
  %v5558 = vpop.f32.mrf.mxu0
  %v5559 = vadd.f32 %v5540, %v5558
  %5560 = vdwg.mxu0
  %5561 = vmatpush.bf16.msra.mxu0 %v3222
  %5562 = vmatpush.bf16.msra.mxu0 %v3218
  %5563 = vmatpush.bf16.msra.mxu0 %v3214
  %5564 = vmatpush.bf16.msra.mxu0 %v3210
  %5565 = vmatpush.bf16.msra.mxu0 %v3206
  %5566 = vmatpush.bf16.msra.mxu0 %v3202
  %5567 = vmatpush.bf16.msra.mxu0 %v3198
  %5568 = vmatpush.bf16.msra.mxu0 %v3194
  %5569 = vmatmul.bf16.gmra.mxu0 %v855
  %v5570 = vpop.f32.mrf.mxu0
  %v5571 = vadd.f32 %v5552, %v5570
  %v5572 = vpop.f32.mrf.mxu0
  %v5573 = vadd.f32 %v5554, %v5572
  %5574 = vmatmul.bf16.gmra.mxu0 %v876
  %v5575 = vpop.f32.mrf.mxu0
  %v5576 = vadd.f32 %v5557, %v5575
  %v5577 = vpop.f32.mrf.mxu0
  %v5578 = vadd.f32 %v5559, %v5577
  %5579 = vdwg.mxu0
  %5580 = vmatpush.bf16.msra.mxu0 %v3254
  %5581 = vmatpush.bf16.msra.mxu0 %v3250
  %5582 = vmatpush.bf16.msra.mxu0 %v3246
  %5583 = vmatpush.bf16.msra.mxu0 %v3242
  %5584 = vmatpush.bf16.msra.mxu0 %v3238
  %5585 = vmatpush.bf16.msra.mxu0 %v3234
  %5586 = vmatpush.bf16.msra.mxu0 %v3230
  %5587 = vmatpush.bf16.msra.mxu0 %v3226
  %5588 = vmatmul.bf16.gmra.mxu0 %v856
  %v5589 = vpop.f32.mrf.mxu0
  %v5590 = vadd.f32 %v5571, %v5589
  %v5591 = vpop.f32.mrf.mxu0
  %v5592 = vadd.f32 %v5573, %v5591
  %5593 = vmatmul.bf16.gmra.mxu0 %v877
  %v5594 = vpop.f32.mrf.mxu0
  %v5595 = vadd.f32 %v5576, %v5594
  %v5596 = vpop.f32.mrf.mxu0
  %v5597 = vadd.f32 %v5578, %v5596
  %5598 = vdwg.mxu0
  %5599 = vmatpush.bf16.msra.mxu0 %v3286
  %5600 = vmatpush.bf16.msra.mxu0 %v3282
  %5601 = vmatpush.bf16.msra.mxu0 %v3278
  %5602 = vmatpush.bf16.msra.mxu0 %v3274
  %5603 = vmatpush.bf16.msra.mxu0 %v3270
  %5604 = vmatpush.bf16.msra.mxu0 %v3266
  %5605 = vmatpush.bf16.msra.mxu0 %v3262
  %5606 = vmatpush.bf16.msra.mxu0 %v3258
  %5607 = vmatmul.bf16.gmra.mxu0 %v857
  %v5608 = vpop.f32.mrf.mxu0
  %v5609 = vadd.f32 %v5590, %v5608
  %v5610 = vpop.f32.mrf.mxu0
  %v5611 = vadd.f32 %v5592, %v5610
  %5612 = vmatmul.bf16.gmra.mxu0 %v878
  %v5613 = vpop.f32.mrf.mxu0
  %v5614 = vadd.f32 %v5595, %v5613
  %v5615 = vpop.f32.mrf.mxu0
  %v5616 = vadd.f32 %v5597, %v5615
  %5617 = vdwg.mxu0
  %5618 = vmatpush.bf16.msra.mxu0 %v3318
  %5619 = vmatpush.bf16.msra.mxu0 %v3314
  %5620 = vmatpush.bf16.msra.mxu0 %v3310
  %5621 = vmatpush.bf16.msra.mxu0 %v3306
  %5622 = vmatpush.bf16.msra.mxu0 %v3302
  %5623 = vmatpush.bf16.msra.mxu0 %v3298
  %5624 = vmatpush.bf16.msra.mxu0 %v3294
  %5625 = vmatpush.bf16.msra.mxu0 %v3290
  %5626 = vmatmul.bf16.gmra.mxu0 %v858
  %v5627 = vpop.f32.mrf.mxu0
  %v5628 = vadd.f32 %v5609, %v5627
  %v5629 = vpop.f32.mrf.mxu0
  %v5630 = vadd.f32 %v5611, %v5629
  %5631 = vmatmul.bf16.gmra.mxu0 %v879
  %v5632 = vpop.f32.mrf.mxu0
  %v5633 = vadd.f32 %v5614, %v5632
  %v5634 = vpop.f32.mrf.mxu0
  %v5635 = vadd.f32 %v5616, %v5634
  %5636 = vdwg.mxu0
  %5637 = vmatpush.bf16.msra.mxu0 %v3350
  %5638 = vmatpush.bf16.msra.mxu0 %v3346
  %5639 = vmatpush.bf16.msra.mxu0 %v3342
  %5640 = vmatpush.bf16.msra.mxu0 %v3338
  %5641 = vmatpush.bf16.msra.mxu0 %v3334
  %5642 = vmatpush.bf16.msra.mxu0 %v3330
  %5643 = vmatpush.bf16.msra.mxu0 %v3326
  %5644 = vmatpush.bf16.msra.mxu0 %v3322
  %5645 = vmatmul.bf16.gmra.mxu0 %v859
  %v5646 = vpop.f32.mrf.mxu0
  %v5647 = vadd.f32 %v5628, %v5646
  %v5648 = vpop.f32.mrf.mxu0
  %v5649 = vadd.f32 %v5630, %v5648
  %5650 = vmatmul.bf16.gmra.mxu0 %v880
  %v5651 = vpop.f32.mrf.mxu0
  %v5652 = vadd.f32 %v5633, %v5651
  %v5653 = vpop.f32.mrf.mxu0
  %v5654 = vadd.f32 %v5635, %v5653
  %5655 = vdwg.mxu0
  %5656 = vmatpush.bf16.msra.mxu0 %v3382
  %5657 = vmatpush.bf16.msra.mxu0 %v3378
  %5658 = vmatpush.bf16.msra.mxu0 %v3374
  %5659 = vmatpush.bf16.msra.mxu0 %v3370
  %5660 = vmatpush.bf16.msra.mxu0 %v3366
  %5661 = vmatpush.bf16.msra.mxu0 %v3362
  %5662 = vmatpush.bf16.msra.mxu0 %v3358
  %5663 = vmatpush.bf16.msra.mxu0 %v3354
  %5664 = vmatmul.bf16.gmra.mxu0 %v860
  %v5665 = vpop.f32.mrf.mxu0
  %v5666 = vadd.f32 %v5647, %v5665
  %v5667 = vpop.f32.mrf.mxu0
  %v5668 = vadd.f32 %v5649, %v5667
  %5669 = vmatmul.bf16.gmra.mxu0 %v881
  %v5670 = vpop.f32.mrf.mxu0
  %v5671 = vadd.f32 %v5652, %v5670
  %v5672 = vpop.f32.mrf.mxu0
  %v5673 = vadd.f32 %v5654, %v5672
  %5674 = vdwg.mxu0
  %5675 = vmatpush.bf16.msra.mxu0 %v3414
  %5676 = vmatpush.bf16.msra.mxu0 %v3410
  %5677 = vmatpush.bf16.msra.mxu0 %v3406
  %5678 = vmatpush.bf16.msra.mxu0 %v3402
  %5679 = vmatpush.bf16.msra.mxu0 %v3398
  %5680 = vmatpush.bf16.msra.mxu0 %v3394
  %5681 = vmatpush.bf16.msra.mxu0 %v3390
  %5682 = vmatpush.bf16.msra.mxu0 %v3386
  %5683 = vmatmul.bf16.gmra.mxu0 %v861
  %v5684 = vpop.f32.mrf.mxu0
  %v5685 = vadd.f32 %v5666, %v5684
  %v5686 = vpop.f32.mrf.mxu0
  %v5687 = vadd.f32 %v5668, %v5686
  %5688 = vmatmul.bf16.gmra.mxu0 %v882
  %v5689 = vpop.f32.mrf.mxu0
  %v5690 = vadd.f32 %v5671, %v5689
  %v5691 = vpop.f32.mrf.mxu0
  %v5692 = vadd.f32 %v5673, %v5691
  %5693 = vdwg.mxu0
  %5694 = vmatpush.bf16.msra.mxu0 %v3446
  %5695 = vmatpush.bf16.msra.mxu0 %v3442
  %5696 = vmatpush.bf16.msra.mxu0 %v3438
  %5697 = vmatpush.bf16.msra.mxu0 %v3434
  %5698 = vmatpush.bf16.msra.mxu0 %v3430
  %5699 = vmatpush.bf16.msra.mxu0 %v3426
  %5700 = vmatpush.bf16.msra.mxu0 %v3422
  %5701 = vmatpush.bf16.msra.mxu0 %v3418
  %5702 = vmatmul.bf16.gmra.mxu0 %v862
  %v5703 = vpop.f32.mrf.mxu0
  %v5704 = vadd.f32 %v5685, %v5703
  %v5705 = vpop.f32.mrf.mxu0
  %v5706 = vadd.f32 %v5687, %v5705
  %5707 = vmatmul.bf16.gmra.mxu0 %v883
  %v5708 = vpop.f32.mrf.mxu0
  %v5709 = vadd.f32 %v5690, %v5708
  %v5710 = vpop.f32.mrf.mxu0
  %v5711 = vadd.f32 %v5692, %v5710
  %5712 = vdwg.mxu0
  %5713 = vmatpush.bf16.msra.mxu0 %v3478
  %5714 = vmatpush.bf16.msra.mxu0 %v3474
  %5715 = vmatpush.bf16.msra.mxu0 %v3470
  %5716 = vmatpush.bf16.msra.mxu0 %v3466
  %5717 = vmatpush.bf16.msra.mxu0 %v3462
  %5718 = vmatpush.bf16.msra.mxu0 %v3458
  %5719 = vmatpush.bf16.msra.mxu0 %v3454
  %5720 = vmatpush.bf16.msra.mxu0 %v3450
  %5721 = vmatmul.bf16.gmra.mxu0 %v863
  %v5722 = vpop.f32.mrf.mxu0
  %v5723 = vadd.f32 %v5704, %v5722
  %v5724 = vpop.f32.mrf.mxu0
  %v5725 = vadd.f32 %v5706, %v5724
  %5726 = vmatmul.bf16.gmra.mxu0 %v884
  %v5727 = vpop.f32.mrf.mxu0
  %v5728 = vadd.f32 %v5709, %v5727
  %v5729 = vpop.f32.mrf.mxu0
  %v5730 = vadd.f32 %v5711, %v5729
  %5731 = vdwg.mxu0
  %5732 = vmatpush.bf16.msra.mxu0 %v3510
  %5733 = vmatpush.bf16.msra.mxu0 %v3506
  %5734 = vmatpush.bf16.msra.mxu0 %v3502
  %5735 = vmatpush.bf16.msra.mxu0 %v3498
  %5736 = vmatpush.bf16.msra.mxu0 %v3494
  %5737 = vmatpush.bf16.msra.mxu0 %v3490
  %5738 = vmatpush.bf16.msra.mxu0 %v3486
  %5739 = vmatpush.bf16.msra.mxu0 %v3482
  %5740 = vmatmul.bf16.gmra.mxu0 %v864
  %v5741 = vpop.f32.mrf.mxu0
  %v5742 = vadd.f32 %v5723, %v5741
  %v5743 = vpop.f32.mrf.mxu0
  %v5744 = vadd.f32 %v5725, %v5743
  %5745 = vmatmul.bf16.gmra.mxu0 %v885
  %v5746 = vpop.f32.mrf.mxu0
  %v5747 = vadd.f32 %v5728, %v5746
  %v5748 = vpop.f32.mrf.mxu0
  %v5749 = vadd.f32 %v5730, %v5748
  %5750 = vdwg.mxu0
  %5751 = vmatpush.bf16.msra.mxu0 0
  %5752 = vmatpush.bf16.msra.mxu0 0
  %5753 = vmatpush.bf16.msra.mxu0 0
  %5754 = vmatpush.bf16.msra.mxu0 0
  %5755 = vmatpush.bf16.msra.mxu0 0
  %5756 = vmatpush.bf16.msra.mxu0 0
  %5757 = vmatpush.bf16.msra.mxu0 %v3518
  %5758 = vmatpush.bf16.msra.mxu0 %v3514
  %5759 = vmatmul.bf16.gmra.mxu0 %v4169
  %v5760 = vpop.f32.mrf.mxu0
  %v5761 = vadd.f32 %v5742, %v5760
  %v5762 = vpop.f32.mrf.mxu0
  %v5763 = vadd.f32 %v5744, %v5762
  %5764 = vmatmul.bf16.gmra.mxu0 %v4172
  %v5765 = vpop.f32.mrf.mxu0
  %v5766 = vadd.f32 %v5747, %v5765
  %v5767 = vpop.f32.mrf.mxu0
  %v5768 = vadd.f32 %v5749, %v5767
  %5769 = vdwg.mxu0
  %vm5770 = vcmp.gt.f32.partialorder %v4564, 0.0
  %vm5771 = vcmp.gt.f32.partialorder %v4963, 0.0
  %vm5772 = vcmp.gt.f32.partialorder %v5362, 0.0
  %vm5773 = vcmp.gt.f32.partialorder %v5761, 0.0
  %vm5774 = vcmp.gt.f32.partialorder %v4566, 0.0
  %vm5775 = vcmp.gt.f32.partialorder %v4965, 0.0
  %vm5776 = vcmp.gt.f32.partialorder %v5364, 0.0
  %vm5777 = vcmp.gt.f32.partialorder %v5763, 0.0
  %vm5778 = vcmp.gt.f32.partialorder %v4569, 0.0
  %vm5779 = vcmp.gt.f32.partialorder %v4968, 0.0
  %vm5780 = vcmp.gt.f32.partialorder %v5367, 0.0
  %vm5781 = vcmp.gt.f32.partialorder %v5766, 0.0
  %vm5782 = vcmp.gt.f32.partialorder %v4571, 0.0
  %vm5783 = vcmp.gt.f32.partialorder %v4970, 0.0
  %vm5784 = vcmp.gt.f32.partialorder %v5369, 0.0
  %vm5785 = vcmp.gt.f32.partialorder %v5768, 0.0
  %v5786 = vmul.f32 %v4564, 0.1
  %v5787 = vmul.f32 %v4963, 0.1
  %v5788 = vmul.f32 %v5362, 0.1
  %v5789 = vmul.f32 %v5761, 0.1
  %v5790 = vmul.f32 %v4566, 0.1
  %v5791 = vmul.f32 %v4965, 0.1
  %v5792 = vmul.f32 %v5364, 0.1
  %v5793 = vmul.f32 %v5763, 0.1
  %v5794 = vmul.f32 %v4569, 0.1
  %v5795 = vmul.f32 %v4968, 0.1
  %v5796 = vmul.f32 %v5367, 0.1
  %v5797 = vmul.f32 %v5766, 0.1
  %v5798 = vmul.f32 %v4571, 0.1
  %v5799 = vmul.f32 %v4970, 0.1
  %v5800 = vmul.f32 %v5369, 0.1
  %v5801 = vmul.f32 %v5768, 0.1
  %v5802 = vsel %vm5770, %v4564, %v5786
  %v5803 = vsel %vm5771, %v4963, %v5787
  %v5804 = vsel %vm5772, %v5362, %v5788
  %v5805 = vsel %vm5773, %v5761, %v5789
  %v5806 = vsel %vm5774, %v4566, %v5790
  %v5807 = vsel %vm5775, %v4965, %v5791
  %v5808 = vsel %vm5776, %v5364, %v5792
  %v5809 = vsel %vm5777, %v5763, %v5793
  %v5810 = vsel %vm5778, %v4569, %v5794
  %v5811 = vsel %vm5779, %v4968, %v5795
  %v5812 = vsel %vm5780, %v5367, %v5796
  %v5813 = vsel %vm5781, %v5766, %v5797
  %v5814 = vsel %vm5782, %v4571, %v5798
  %v5815 = vsel %vm5783, %v4970, %v5799
  %v5816 = vsel %vm5784, %v5369, %v5800
  %v5817 = vsel %vm5785, %v5768, %v5801
  %v5818 = vpack.c.bf16 %v5803, %v5802
  %v5819 = vpack.c.bf16 %v5805, %v5804
  %v5820 = vpack.c.bf16 %v5807, %v5806
  %v5821 = vpack.c.bf16 %v5809, %v5808
  %v5822 = vpack.c.bf16 %v5811, %v5810
  %v5823 = vpack.c.bf16 %v5813, %v5812
  %v5824 = vpack.c.bf16 %v5815, %v5814
  %v5825 = vpack.c.bf16 %v5817, %v5816
  %5826 = vst [vmem:[%s3] sm:$0xff] %v5818
  %5827 = vst [vmem:[%s3 + $0x8] sm:$0xff] %v5819
  %5828 = vst [vmem:[%s3 + $0x10] sm:$0xff] %v5820
  %5829 = vst [vmem:[%s3 + $0x18] sm:$0xff] %v5821
  %5830 = vst [vmem:[%s3 + $0x20] sm:$0xff] %v5822
  %5831 = vst [vmem:[%s3 + $0x28] sm:$0xff] %v5823
  %5832 = vst [vmem:[%s3 + $0x30] sm:$0xff] %v5824
  %5833 = vst [vmem:[%s3 + $0x38] sm:$0xff] %v5825
  // Predicated region
  $region14: #{msr_fpn_forward.6} parent=0 // pred_check
    _
  $region15: #{msr_fpn_forward.6} parent=0 // pred_check_branch
    %5835 = sbr.rel (0) target = $region17
  $region16: #{msr_fpn_forward.6} parent=0 // pred_region
    _
  $region17: #{msr_fpn_forward.6} parent=0 // pred_fallthru
    _
  // Predicated region
  $region18: #{msr_fpn_forward.6} parent=0 // pred_check
    _
  $region19: #{msr_fpn_forward.6} parent=0 // pred_check_branch
    %5837 = sbr.rel (0) target = $region21
  $region20: #{msr_fpn_forward.6} parent=0 // pred_region
    _
  $region21: #{msr_fpn_forward.6} parent=0 // pred_fallthru
    _

</llo_original>
